<compile_context>
chip_gen: v7x
topology: tpu7x:2x2x1
jax: 0.10.0
libtpu: 0.0.40
codegen_flags: <defaults>
</compile_context>

<pallas_src>
import functools

import jax
import jax.numpy as jnp
from jax.experimental import pallas as pl
from jax.experimental.pallas import tpu as pltpu

LRELU_SLOPE = 0.1
MXU_DTYPE = jnp.bfloat16          # matmul operand dtype (f32 accumulation)
ACT_DTYPE = jnp.bfloat16          # inter-kernel activation dtype


def _parallel_params():
    return pltpu.CompilerParams(dimension_semantics=("parallel",))


# ---------------------------------------------------------------------------
# In-kernel helpers
# ---------------------------------------------------------------------------

def _lrelu(v, slope):
    return jnp.where(v >= 0, v, v * slope)


def _zero_borders(scr_ref, left, right):
    """Zero the left/right halo columns of a (C, Lp) padded scratch ref."""
    C, Lp = scr_ref.shape
    if left > 0:
        scr_ref[:, :left] = jnp.zeros((C, left), scr_ref.dtype)
    if right > 0:
        scr_ref[:, Lp - right:] = jnp.zeros((C, right), scr_ref.dtype)


def _im2col_from_scratch(scr_ref, base, K, dilation, Lout):
    """Read K shifted windows from the padded scratch -> (K*C, Lout)."""
    cols = [scr_ref[:, base + k * dilation: base + k * dilation + Lout]
            for k in range(K)]
    return cols[0] if K == 1 else jnp.concatenate(cols, axis=0)


def _conv_from_scratch(scr_ref, w2d, b, K, dilation, pad, max_pad, Lout):
    """Conv as a single MXU dot on the padded-scratch operand; f32 result."""
    X = _im2col_from_scratch(scr_ref, max_pad - pad, K, dilation, Lout)
    return jnp.dot(w2d, X, preferred_element_type=jnp.float32) + b


# ---------------------------------------------------------------------------
# Wrapper-side weight reshaping (tiny, done once per call by XLA)
# ---------------------------------------------------------------------------

def _weight2d(w, dtype=MXU_DTYPE):
    """(Cout, Cin, K) -> (Cout, K*Cin), tap-major columns."""
    Cout, Cin, K = w.shape
    return jnp.transpose(w, (0, 2, 1)).reshape(Cout, K * Cin).astype(dtype)


def _bias2d(b):
    return b.reshape(b.shape[0], 1).astype(jnp.float32)


# ---------------------------------------------------------------------------
# Plain Conv1d (used for conv_pre)
# ---------------------------------------------------------------------------

def _conv1d_kernel(x_ref, w_ref, b_ref, o_ref, scr_ref, *, K, dilation, pad):
    L = x_ref.shape[-1]
    Lout = o_ref.shape[-1]
    _zero_borders(scr_ref, pad, pad)
    scr_ref[:, pad:pad + L] = x_ref[...].astype(MXU_DTYPE)
    y = _conv_from_scratch(scr_ref, w_ref[...], b_ref[...],
                           K, dilation, pad, pad, Lout)
    o_ref[...] = y.astype(o_ref.dtype)


def conv1d(x, w, b, *, pad, dilation=1):
    B, Cin, L = x.shape
    Cout, _, K = w.shape
    Lout = L + 2 * pad - dilation * (K - 1)
    w2d, b2 = _weight2d(w), _bias2d(b)
    kernel = functools.partial(_conv1d_kernel, K=K, dilation=dilation, pad=pad)
    return pl.pallas_call(
        kernel,
        grid=(B,),
        in_specs=[pl.BlockSpec((None, Cin, L), lambda bb: (bb, 0, 0)),
                  pl.BlockSpec((Cout, K * Cin), lambda bb: (0, 0)),
                  pl.BlockSpec((Cout, 1), lambda bb: (0, 0))],
        out_specs=pl.BlockSpec((None, Cout, Lout), lambda bb: (bb, 0, 0)),
        out_shape=jax.ShapeDtypeStruct((B, Cout, Lout), ACT_DTYPE),
        scratch_shapes=[pltpu.VMEM((Cin, L + 2 * pad), MXU_DTYPE)],
        compiler_params=_parallel_params(),
    )(x, w2d, b2)


# ---------------------------------------------------------------------------
# ConvTranspose1d via polyphase decomposition (fused pre-leaky_relu).
# The kernel writes a phase-major (stride, Cout, Lq) block; interleaving to
# (Cout, Lout) is a linear XLA transpose+reshape in the wrapper.
# ---------------------------------------------------------------------------

def _conv_transpose_kernel(x_ref, w_ref, b_ref, o_ref, scr_ref, *,
                           phase_offs, pad_l, slope):
    L = x_ref.shape[-1]
    Lq = o_ref.shape[-1]
    x = x_ref[...].astype(jnp.float32)
    if slope is not None:
        x = _lrelu(x, slope)
    pad_r = scr_ref.shape[-1] - pad_l - L
    _zero_borders(scr_ref, pad_l, pad_r)
    scr_ref[:, pad_l:pad_l + L] = x.astype(MXU_DTYPE)
    b = b_ref[...]
    for r, offs in enumerate(phase_offs):
        cols = [scr_ref[:, o + pad_l: o + pad_l + Lq] for o in offs]
        X = cols[0] if len(cols) == 1 else jnp.concatenate(cols, axis=0)
        ph = jnp.dot(w_ref[r], X, preferred_element_type=jnp.float32) + b
        o_ref[r] = ph.astype(o_ref.dtype)


def conv_transpose1d(x, w, b, *, stride, padding, pre_lrelu=None):
    """PyTorch ConvTranspose1d (weight layout (Cin, Cout, K)), polyphase form."""
    B, Cin, L = x.shape
    Cin2, Cout, K = w.shape
    assert Cin2 == Cin
    s = stride
    assert K % s == 0, "polyphase path assumes kernel_size % stride == 0"
    Lout = (L - 1) * s - 2 * padding + K
    assert Lout % s == 0
    Lq = Lout // s
    nt = K // s
    phase_taps, phase_offs = [], []
    for r in range(s):
        taps = [k for k in range(K) if (r + padding - k) % s == 0]
        offs = tuple((r + padding - k) // s for k in taps)
        assert len(taps) == nt
        phase_taps.append(taps)
        phase_offs.append(offs)
    all_offs = [o for offs in phase_offs for o in offs]
    pad_l = max(0, -min(all_offs))
    pad_r = max(0, (Lq - 1 + max(all_offs)) - (L - 1))

    wT = jnp.transpose(w, (1, 0, 2))                   # (Cout, Cin, K)
    Wp = jnp.stack([jnp.concatenate([wT[:, :, k] for k in taps], axis=1)
                    for taps in phase_taps], axis=0).astype(MXU_DTYPE)
    b2 = _bias2d(b)
    kernel = functools.partial(_conv_transpose_kernel,
                               phase_offs=tuple(phase_offs),
                               pad_l=pad_l, slope=pre_lrelu)
    y = pl.pallas_call(
        kernel,
        grid=(B,),
        in_specs=[pl.BlockSpec((None, Cin, L), lambda bb: (bb, 0, 0)),
                  pl.BlockSpec((s, Cout, nt * Cin), lambda bb: (0, 0, 0)),
                  pl.BlockSpec((Cout, 1), lambda bb: (0, 0))],
        out_specs=pl.BlockSpec((None, s, Cout, Lq), lambda bb: (bb, 0, 0, 0)),
        out_shape=jax.ShapeDtypeStruct((B, s, Cout, Lq), ACT_DTYPE),
        scratch_shapes=[pltpu.VMEM((Cin, pad_l + L + pad_r), MXU_DTYPE)],
        compiler_params=_parallel_params(),
    )(x, Wp, b2)
    # Interleave phases: out[b, c, q*s + r] = y[b, r, c, q]  (linear, XLA-side).
    return jnp.transpose(y, (0, 2, 3, 1)).reshape(B, Cout, Lout)


# ---------------------------------------------------------------------------
# Fused upsample stage: all ResBlock1s of a stage + averaging in one kernel
# ---------------------------------------------------------------------------

def _stage_kernel(*refs, conv_meta, dilation_sizes, max_pad):
    n_conv = len(conv_meta)
    x_ref = refs[0]
    w_refs = refs[1:1 + n_conv]
    b_refs = refs[1 + n_conv:1 + 2 * n_conv]
    o_ref = refs[1 + 2 * n_conv]
    scr_ref = refs[2 + 2 * n_conv]
    L = o_ref.shape[-1]
    _zero_borders(scr_ref, max_pad, max_pad)
    x0 = x_ref[...].astype(jnp.float32)                # (ch, L)
    num_kernels = len(dilation_sizes)
    idx = 0
    xs = None
    for j in range(num_kernels):
        xj = x0
        for _ in dilation_sizes[j]:
            K1, d1, p1 = conv_meta[idx]
            scr_ref[:, max_pad:max_pad + L] = _lrelu(xj, LRELU_SLOPE).astype(MXU_DTYPE)
            xt = _conv_from_scratch(scr_ref, w_refs[idx][...], b_refs[idx][...],
                                    K1, d1, p1, max_pad, L)
            idx += 1
            K2, d2, p2 = conv_meta[idx]
            scr_ref[:, max_pad:max_pad + L] = _lrelu(xt, LRELU_SLOPE).astype(MXU_DTYPE)
            xj = _conv_from_scratch(scr_ref, w_refs[idx][...], b_refs[idx][...],
                                    K2, d2, p2, max_pad, L) + xj
            idx += 1
        xs = xj if xs is None else xs + xj
    o_ref[...] = (xs * jnp.float32(1.0 / num_kernels)).astype(o_ref.dtype)


def resblock_stage(x, stage_params, kernel_sizes, dilation_sizes):
    """x -> mean_j ResBlock1_j(x), fused into a single pallas_call."""
    B, ch, L = x.shape
    flat_w, flat_b, conv_meta = [], [], []
    for j, (ksz, dils) in enumerate(zip(kernel_sizes, dilation_sizes)):
        rb = stage_params[j]
        for jj, d in enumerate(dils):
            for (w, b, dd) in ((*rb['convs1'][jj], d), (*rb['convs2'][jj], 1)):
                Kc = w.shape[-1]
                flat_w.append(_weight2d(w))
                flat_b.append(_bias2d(b))
                conv_meta.append((Kc, dd, dd * (Kc - 1) // 2))
    max_pad = max(m[2] for m in conv_meta)
    kernel = functools.partial(
        _stage_kernel, conv_meta=tuple(conv_meta),
        dilation_sizes=tuple(tuple(d) for d in dilation_sizes),
        max_pad=max_pad)
    in_specs = [pl.BlockSpec((None, ch, L), lambda bb: (bb, 0, 0))]
    in_specs += [pl.BlockSpec(wi.shape, lambda bb: (0, 0)) for wi in flat_w]
    in_specs += [pl.BlockSpec(bi.shape, lambda bb: (0, 0)) for bi in flat_b]
    return pl.pallas_call(
        kernel,
        grid=(B,),
        in_specs=in_specs,
        out_specs=pl.BlockSpec((None, ch, L), lambda bb: (bb, 0, 0)),
        out_shape=jax.ShapeDtypeStruct((B, ch, L), ACT_DTYPE),
        scratch_shapes=[pltpu.VMEM((ch, L + 2 * max_pad), MXU_DTYPE)],
        input_output_aliases={0: 0},       # reuse the x buffer for the output
        compiler_params=_parallel_params(),
    )(x, *flat_w, *flat_b)


# ---------------------------------------------------------------------------
# Fused tail: leaky_relu(0.01) + ReflectionPad1d((1,0)) + conv_post + exp/sin
# (dots kept in f32 since they feed exp()).
# ---------------------------------------------------------------------------

def _conv_post_kernel(x_ref, ws_ref, bs_ref, wp_ref, bp_ref, spec_ref,
                      phase_ref, scr_ref, *, K, pad):
    L = x_ref.shape[-1]
    Lout = spec_ref.shape[-1]                          # = L + 1
    x = _lrelu(x_ref[...].astype(jnp.float32), 0.01)   # F.leaky_relu default
    _zero_borders(scr_ref, pad, pad)
    scr_ref[:, pad:pad + 1] = x[:, 1:2]                # ReflectionPad1d((1, 0))
    scr_ref[:, pad + 1:pad + 1 + L] = x
    X = _im2col_from_scratch(scr_ref, 0, K, 1, Lout)
    spec_ref[...] = jnp.exp(
        jnp.dot(ws_ref[...], X, preferred_element_type=jnp.float32) + bs_ref[...])
    phase_ref[...] = jnp.sin(
        jnp.dot(wp_ref[...], X, preferred_element_type=jnp.float32) + bp_ref[...])


def conv_post_spec_phase(x, w, b, n_fft):
    B, ch, L = x.shape
    Cout, _, K = w.shape
    half = n_fft // 2 + 1
    rest = Cout - half
    pad = (K - 1) // 2
    Lout = L + 1                                       # +1 from the reflection pad
    w2d = _weight2d(w, jnp.float32)                    # keep f32 for exp() path
    ws, wph = w2d[:half], w2d[half:]
    bs, bph = _bias2d(b[:half]), _bias2d(b[half:])
    kernel = functools.partial(_conv_post_kernel, K=K, pad=pad)
    return pl.pallas_call(
        kernel,
        grid=(B,),
        in_specs=[pl.BlockSpec((None, ch, L), lambda bb: (bb, 0, 0)),
                  pl.BlockSpec((half, K * ch), lambda bb: (0, 0)),
                  pl.BlockSpec((half, 1), lambda bb: (0, 0)),
                  pl.BlockSpec((rest, K * ch), lambda bb: (0, 0)),
                  pl.BlockSpec((rest, 1), lambda bb: (0, 0))],
        out_specs=(pl.BlockSpec((None, half, Lout), lambda bb: (bb, 0, 0)),
                   pl.BlockSpec((None, rest, Lout), lambda bb: (bb, 0, 0))),
        out_shape=(jax.ShapeDtypeStruct((B, half, Lout), jnp.float32),
                   jax.ShapeDtypeStruct((B, rest, Lout), jnp.float32)),
        scratch_shapes=[pltpu.VMEM((ch, Lout + 2 * pad), jnp.float32)],
        compiler_params=_parallel_params(),
    )(x, ws, bs, wph, bph)


# ---------------------------------------------------------------------------
# Parameters (deterministic synthetic init; weight_norm is a reparameterization
# so the forward uses the effective weights directly)
# ---------------------------------------------------------------------------

def init_params(key, config):
    def nxt():
        nonlocal key
        key, sub = jax.random.split(key)
        return sub

    def conv_w(cout, cin, k):
        return 0.01 * jax.random.normal(nxt(), (cout, cin, k), jnp.float32)

    def bias(c):
        return 0.01 * jax.random.normal(nxt(), (c,), jnp.float32)

    uic = config['upsample_initial_channel']
    params = {'conv_pre': (conv_w(uic, 80, 7), bias(uic)), 'ups': [], 'resblocks': []}
    for i, (u, k) in enumerate(zip(config['upsample_rates'],
                                   config['upsample_kernel_sizes'])):
        cin = uic // 2 ** i
        cout = uic // 2 ** (i + 1)
        # ConvTranspose1d weight layout: (Cin, Cout, K)
        params['ups'].append(
            (0.01 * jax.random.normal(nxt(), (cin, cout, k), jnp.float32), bias(cout)))
    ch = uic
    for i in range(len(config['upsample_rates'])):
        ch = uic // 2 ** (i + 1)
        for k, ds in zip(config['resblock_kernel_sizes'],
                         config['resblock_dilation_sizes']):
            rb = {'convs1': [(conv_w(ch, ch, k), bias(ch)) for _ in ds],
                  'convs2': [(conv_w(ch, ch, k), bias(ch)) for _ in ds]}
            params['resblocks'].append(rb)
    n_fft = config['gen_istft_n_fft']
    params['conv_post'] = (conv_w(n_fft + 2, ch, 7), bias(n_fft + 2))
    return params


# ---------------------------------------------------------------------------
# Forward pass (matches iSTFT.forward)
# ---------------------------------------------------------------------------

def istft_forward(params, x, config):
    num_kernels = len(config['resblock_kernel_sizes'])
    num_upsamples = len(config['upsample_rates'])

    w, b = params['conv_pre']
    x = conv1d(x, w, b, pad=3)

    for i in range(num_upsamples):
        u = config['upsample_rates'][i]
        k = config['upsample_kernel_sizes'][i]
        wu, bu = params['ups'][i]
        # F.leaky_relu(x, 0.1) fused as the pre-activation of the transpose conv
        x = conv_transpose1d(x, wu, bu, stride=u, padding=(k - u) // 2,
                             pre_lrelu=LRELU_SLOPE)
        stage = [params['resblocks'][i * num_kernels + j] for j in range(num_kernels)]
        x = resblock_stage(x, stage, config['resblock_kernel_sizes'],
                           config['resblock_dilation_sizes'])

    wp, bp = params['conv_post']
    spec, phase = conv_post_spec_phase(x, wp, bp, config['gen_istft_n_fft'])
    return spec, phase


if __name__ == "__main__":
    config = {
        'resblock': '1',
        'resblock_kernel_sizes': [3, 5],
        'resblock_dilation_sizes': [[1, 3], [1, 3]],
        'upsample_rates': [4, 4],
        'upsample_kernel_sizes': [8, 8],
        'upsample_initial_channel': 32,
        'gen_istft_n_fft': 16,
    }
    key = jax.random.PRNGKey(0)
    pkey, xkey = jax.random.split(key)
    params = init_params(pkey, config)

    B, T = 2, 8
    x = jax.random.normal(xkey, (B, 80, T), jnp.float32)   # mel input, NCL layout

    fwd = jax.jit(functools.partial(istft_forward, config=config))
    spec, phase = fwd(params, x)
    jax.block_until_ready((spec, phase))

    L_out = T * config['upsample_rates'][0] * config['upsample_rates'][1] + 1
    half = config['gen_istft_n_fft'] // 2 + 1
    assert spec.shape == (B, half, L_out), spec.shape
    assert phase.shape == (B, half, L_out), phase.shape
    assert bool(jnp.all(jnp.isfinite(spec))) and bool(jnp.all(jnp.isfinite(phase)))
    print("KERNEL_OK")
</pallas_src>

<mosaic_0001>
module attributes {stable_mosaic.version = 11 : i64} {
  func.func @_conv1d_kernel(%arg0: i32, %arg1: memref<1x80x8xf32, #tpu.memory_space<vmem>>, %arg2: memref<32x560xbf16, #tpu.memory_space<vmem>>, %arg3: memref<32x1xf32, #tpu.memory_space<vmem>>, %arg4: memref<1x32x8xbf16, #tpu.memory_space<vmem>>, %arg5: memref<80x14xbf16, #tpu.memory_space<vmem>>) attributes {dimension_semantics = [#tpu.dimension_semantics<parallel>], iteration_bounds = array<i64: 2>, scalar_prefetch = 0 : i64, scratch_operands = 1 : i64, tpu.core_type = #tpu.core_type<tc>, window_params = [{transform_indices = @transform_0, window_bounds = array<i64: 1, 80, 8>}, {pipeline_mode = #tpu.pipeline_mode<synchronous>, transform_indices = @transform_1, window_bounds = array<i64: 32, 560>}, {pipeline_mode = #tpu.pipeline_mode<synchronous>, transform_indices = @transform_2, window_bounds = array<i64: 32, 1>}, {transform_indices = @transform_3, window_bounds = array<i64: 1, 32, 8>}]} {
    %cst = arith.constant 0.000000e+00 : bf16
    %0 = vector.broadcast %cst : bf16 to vector<80x3xbf16>
    %c0 = arith.constant 0 : index
    %c0_0 = arith.constant 0 : index
    %1 = vector.load %arg5[%c0, %c0_0] : memref<80x14xbf16, #tpu.memory_space<vmem>>, vector<80x3xbf16>
    tpu.vector_store %arg5[%c0, %c0_0], %0 {strides = array<i32>} : memref<80x14xbf16, #tpu.memory_space<vmem>>, vector<80x3xbf16>,
    %cst_1 = arith.constant 0.000000e+00 : bf16
    %2 = vector.broadcast %cst_1 : bf16 to vector<80x3xbf16>
    %c0_2 = arith.constant 0 : index
    %c11 = arith.constant 11 : index
    %3 = vector.load %arg5[%c0_2, %c11] : memref<80x14xbf16, #tpu.memory_space<vmem>>, vector<80x3xbf16>
    tpu.vector_store %arg5[%c0_2, %c11], %2 {strides = array<i32>} : memref<80x14xbf16, #tpu.memory_space<vmem>>, vector<80x3xbf16>,
    %c0_3 = arith.constant 0 : index
    %c0_4 = arith.constant 0 : index
    %c0_5 = arith.constant 0 : index
    %4 = vector.load %arg1[%c0_3, %c0_4, %c0_5] : memref<1x80x8xf32, #tpu.memory_space<vmem>>, vector<1x80x8xf32>
    %5 = vector.shape_cast %4 : vector<1x80x8xf32> to vector<80x8xf32>
    %6 = arith.truncf %5 : vector<80x8xf32> to vector<80x8xbf16>
    %c0_6 = arith.constant 0 : index
    %c3 = arith.constant 3 : index
    %7 = vector.load %arg5[%c0_6, %c3] : memref<80x14xbf16, #tpu.memory_space<vmem>>, vector<80x8xbf16>
    tpu.vector_store %arg5[%c0_6, %c3], %6 {strides = array<i32>} : memref<80x14xbf16, #tpu.memory_space<vmem>>, vector<80x8xbf16>,
    %c0_7 = arith.constant 0 : index
    %c0_8 = arith.constant 0 : index
    %8 = vector.load %arg2[%c0_7, %c0_8] : memref<32x560xbf16, #tpu.memory_space<vmem>>, vector<32x560xbf16>
    %c0_9 = arith.constant 0 : index
    %c0_10 = arith.constant 0 : index
    %9 = vector.load %arg3[%c0_9, %c0_10] : memref<32x1xf32, #tpu.memory_space<vmem>>, vector<32x1xf32>
    %c0_11 = arith.constant 0 : index
    %c0_12 = arith.constant 0 : index
    %10 = vector.load %arg5[%c0_11, %c0_12] : memref<80x14xbf16, #tpu.memory_space<vmem>>, vector<80x8xbf16>
    %c0_13 = arith.constant 0 : index
    %c1 = arith.constant 1 : index
    %11 = vector.load %arg5[%c0_13, %c1] : memref<80x14xbf16, #tpu.memory_space<vmem>>, vector<80x8xbf16>
    %c0_14 = arith.constant 0 : index
    %c2 = arith.constant 2 : index
    %12 = vector.load %arg5[%c0_14, %c2] : memref<80x14xbf16, #tpu.memory_space<vmem>>, vector<80x8xbf16>
    %c0_15 = arith.constant 0 : index
    %c3_16 = arith.constant 3 : index
    %13 = vector.load %arg5[%c0_15, %c3_16] : memref<80x14xbf16, #tpu.memory_space<vmem>>, vector<80x8xbf16>
    %c0_17 = arith.constant 0 : index
    %c4 = arith.constant 4 : index
    %14 = vector.load %arg5[%c0_17, %c4] : memref<80x14xbf16, #tpu.memory_space<vmem>>, vector<80x8xbf16>
    %c0_18 = arith.constant 0 : index
    %c5 = arith.constant 5 : index
    %15 = vector.load %arg5[%c0_18, %c5] : memref<80x14xbf16, #tpu.memory_space<vmem>>, vector<80x8xbf16>
    %c0_19 = arith.constant 0 : index
    %c6 = arith.constant 6 : index
    %16 = vector.load %arg5[%c0_19, %c6] : memref<80x14xbf16, #tpu.memory_space<vmem>>, vector<80x8xbf16>
    %17 = tpu.concatenate %10, %11, %12, %13, %14, %15, %16 in 0 : vector<80x8xbf16>, vector<80x8xbf16>, vector<80x8xbf16>, vector<80x8xbf16>, vector<80x8xbf16>, vector<80x8xbf16>, vector<80x8xbf16> -> vector<560x8xbf16>
    %cst_20 = arith.constant dense<0.000000e+00> : vector<32x8xf32>
    %18 = tpu.matmul %8, %17, %cst_20 {dimension_numbers = #tpu.dot_dimension_numbers<[1], [0], [0], [1], [0, 0, 1, 1], [], []>} : vector<32x560xbf16>, vector<560x8xbf16>, vector<32x8xf32> -> vector<32x8xf32>
    %19 = vector.broadcast %9 : vector<32x1xf32> to vector<32x8xf32>
    %20 = arith.addf %18, %19 : vector<32x8xf32>
    %21 = arith.truncf %20 : vector<32x8xf32> to vector<32x8xbf16>
    %c0_21 = arith.constant 0 : index
    %c0_22 = arith.constant 0 : index
    %c0_23 = arith.constant 0 : index
    %22 = vector.load %arg4[%c0_21, %c0_22, %c0_23] : memref<1x32x8xbf16, #tpu.memory_space<vmem>>, vector<1x32x8xbf16>
    %23 = vector.shape_cast %22 : vector<1x32x8xbf16> to vector<32x8xbf16>
    %24 = vector.shape_cast %21 : vector<32x8xbf16> to vector<1x32x8xbf16>
    tpu.vector_store %arg4[%c0_21, %c0_22, %c0_23], %24 {strides = array<i32>} : memref<1x32x8xbf16, #tpu.memory_space<vmem>>, vector<1x32x8xbf16>,
    return
  }
  func.func @transform_0(%arg0: i32) -> (i32, i32, i32) {
    %c0_i32 = arith.constant 0 : i32
    %c0_i32_0 = arith.constant 0 : i32
    %c0_i32_1 = arith.constant 0 : i32
    return %arg0, %c0_i32, %c0_i32_0 : i32, i32, i32
  }
  func.func @transform_1(%arg0: i32) -> (i32, i32) {
    %c0_i32 = arith.constant 0 : i32
    %c0_i32_0 = arith.constant 0 : i32
    %c0_i32_1 = arith.constant 0 : i32
    return %c0_i32, %c0_i32_0 : i32, i32
  }
  func.func @transform_2(%arg0: i32) -> (i32, i32) {
    %c0_i32 = arith.constant 0 : i32
    %c0_i32_0 = arith.constant 0 : i32
    %c0_i32_1 = arith.constant 0 : i32
    return %c0_i32, %c0_i32_0 : i32, i32
  }
  func.func @transform_3(%arg0: i32) -> (i32, i32, i32) {
    %c0_i32 = arith.constant 0 : i32
    %c0_i32_0 = arith.constant 0 : i32
    %c0_i32_1 = arith.constant 0 : i32
    return %arg0, %c0_i32, %c0_i32_0 : i32, i32, i32
  }
}

module attributes {stable_mosaic.version = 11 : i64} {
  func.func @_conv_transpose_kernel(%arg0: i32, %arg1: memref<1x32x8xbf16, #tpu.memory_space<vmem>>, %arg2: memref<4x16x64xbf16, #tpu.memory_space<vmem>>, %arg3: memref<16x1xf32, #tpu.memory_space<vmem>>, %arg4: memref<1x4x16x8xbf16, #tpu.memory_space<vmem>>, %arg5: memref<32x10xbf16, #tpu.memory_space<vmem>>) attributes {dimension_semantics = [#tpu.dimension_semantics<parallel>], iteration_bounds = array<i64: 2>, scalar_prefetch = 0 : i64, scratch_operands = 1 : i64, tpu.core_type = #tpu.core_type<tc>, window_params = [{transform_indices = @transform_0, window_bounds = array<i64: 1, 32, 8>}, {pipeline_mode = #tpu.pipeline_mode<synchronous>, transform_indices = @transform_1, window_bounds = array<i64: 4, 16, 64>}, {pipeline_mode = #tpu.pipeline_mode<synchronous>, transform_indices = @transform_2, window_bounds = array<i64: 16, 1>}, {transform_indices = @transform_3, window_bounds = array<i64: 1, 4, 16, 8>}]} {
    %c0 = arith.constant 0 : index
    %c0_0 = arith.constant 0 : index
    %c0_1 = arith.constant 0 : index
    %0 = vector.load %arg1[%c0, %c0_0, %c0_1] : memref<1x32x8xbf16, #tpu.memory_space<vmem>>, vector<1x32x8xbf16>
    %1 = vector.shape_cast %0 : vector<1x32x8xbf16> to vector<32x8xbf16>
    %2 = arith.extf %1 : vector<32x8xbf16> to vector<32x8xf32>
    %cst = arith.constant 0.000000e+00 : f32
    %3 = vector.broadcast %cst : f32 to vector<32x8xf32>
    %4 = arith.cmpf oge, %2, %3 : vector<32x8xf32>
    %cst_2 = arith.constant 1.000000e-01 : f32
    %5 = vector.broadcast %cst_2 : f32 to vector<32x8xf32>
    %6 = arith.mulf %2, %5 : vector<32x8xf32>
    %7 = arith.select %4, %2, %6 : vector<32x8xi1>, vector<32x8xf32>
    %cst_3 = arith.constant 0.000000e+00 : bf16
    %8 = vector.broadcast %cst_3 : bf16 to vector<32x1xbf16>
    %c0_4 = arith.constant 0 : index
    %c0_5 = arith.constant 0 : index
    %9 = vector.load %arg5[%c0_4, %c0_5] : memref<32x10xbf16, #tpu.memory_space<vmem>>, vector<32x1xbf16>
    tpu.vector_store %arg5[%c0_4, %c0_5], %8 {strides = array<i32>} : memref<32x10xbf16, #tpu.memory_space<vmem>>, vector<32x1xbf16>,
    %cst_6 = arith.constant 0.000000e+00 : bf16
    %10 = vector.broadcast %cst_6 : bf16 to vector<32x1xbf16>
    %c0_7 = arith.constant 0 : index
    %c9 = arith.constant 9 : index
    %11 = vector.load %arg5[%c0_7, %c9] : memref<32x10xbf16, #tpu.memory_space<vmem>>, vector<32x1xbf16>
    tpu.vector_store %arg5[%c0_7, %c9], %10 {strides = array<i32>} : memref<32x10xbf16, #tpu.memory_space<vmem>>, vector<32x1xbf16>,
    %12 = arith.truncf %7 : vector<32x8xf32> to vector<32x8xbf16>
    %c0_8 = arith.constant 0 : index
    %c1 = arith.constant 1 : index
    %13 = vector.load %arg5[%c0_8, %c1] : memref<32x10xbf16, #tpu.memory_space<vmem>>, vector<32x8xbf16>
    tpu.vector_store %arg5[%c0_8, %c1], %12 {strides = array<i32>} : memref<32x10xbf16, #tpu.memory_space<vmem>>, vector<32x8xbf16>,
    %c0_9 = arith.constant 0 : index
    %c0_10 = arith.constant 0 : index
    %14 = vector.load %arg3[%c0_9, %c0_10] : memref<16x1xf32, #tpu.memory_space<vmem>>, vector<16x1xf32>
    %c0_11 = arith.constant 0 : index
    %c1_12 = arith.constant 1 : index
    %15 = vector.load %arg5[%c0_11, %c1_12] : memref<32x10xbf16, #tpu.memory_space<vmem>>, vector<32x8xbf16>
    %c0_13 = arith.constant 0 : index
    %c0_14 = arith.constant 0 : index
    %16 = vector.load %arg5[%c0_13, %c0_14] : memref<32x10xbf16, #tpu.memory_space<vmem>>, vector<32x8xbf16>
    %17 = tpu.concatenate %15, %16 in 0 : vector<32x8xbf16>, vector<32x8xbf16> -> vector<64x8xbf16>
    %c0_15 = arith.constant 0 : index
    %c0_16 = arith.constant 0 : index
    %c0_17 = arith.constant 0 : index
    %18 = vector.load %arg2[%c0_15, %c0_16, %c0_17] : memref<4x16x64xbf16, #tpu.memory_space<vmem>>, vector<1x16x64xbf16>
    %19 = vector.shape_cast %18 : vector<1x16x64xbf16> to vector<16x64xbf16>
    %cst_18 = arith.constant dense<0.000000e+00> : vector<16x8xf32>
    %20 = tpu.matmul %19, %17, %cst_18 {dimension_numbers = #tpu.dot_dimension_numbers<[1], [0], [0], [1], [0, 0, 1, 1], [], []>} : vector<16x64xbf16>, vector<64x8xbf16>, vector<16x8xf32> -> vector<16x8xf32>
    %21 = vector.broadcast %14 : vector<16x1xf32> to vector<16x8xf32>
    %22 = arith.addf %20, %21 : vector<16x8xf32>
    %23 = arith.truncf %22 : vector<16x8xf32> to vector<16x8xbf16>
    %c0_19 = arith.constant 0 : index
    %c0_20 = arith.constant 0 : index
    %c0_21 = arith.constant 0 : index
    %c0_22 = arith.constant 0 : index
    %24 = vector.load %arg4[%c0_19, %c0_20, %c0_21, %c0_22] : memref<1x4x16x8xbf16, #tpu.memory_space<vmem>>, vector<1x1x16x8xbf16>
    %25 = vector.shape_cast %24 : vector<1x1x16x8xbf16> to vector<16x8xbf16>
    %26 = vector.shape_cast %23 : vector<16x8xbf16> to vector<1x1x16x8xbf16>
    tpu.vector_store %arg4[%c0_19, %c0_20, %c0_21, %c0_22], %26 {strides = array<i32>} : memref<1x4x16x8xbf16, #tpu.memory_space<vmem>>, vector<1x1x16x8xbf16>,
    %c0_23 = arith.constant 0 : index
    %c1_24 = arith.constant 1 : index
    %27 = vector.load %arg5[%c0_23, %c1_24] : memref<32x10xbf16, #tpu.memory_space<vmem>>, vector<32x8xbf16>
    %c0_25 = arith.constant 0 : index
    %c0_26 = arith.constant 0 : index
    %28 = vector.load %arg5[%c0_25, %c0_26] : memref<32x10xbf16, #tpu.memory_space<vmem>>, vector<32x8xbf16>
    %29 = tpu.concatenate %27, %28 in 0 : vector<32x8xbf16>, vector<32x8xbf16> -> vector<64x8xbf16>
    %c1_27 = arith.constant 1 : index
    %c0_28 = arith.constant 0 : index
    %c0_29 = arith.constant 0 : index
    %30 = vector.load %arg2[%c1_27, %c0_28, %c0_29] : memref<4x16x64xbf16, #tpu.memory_space<vmem>>, vector<1x16x64xbf16>
    %31 = vector.shape_cast %30 : vector<1x16x64xbf16> to vector<16x64xbf16>
    %cst_30 = arith.constant dense<0.000000e+00> : vector<16x8xf32>
    %32 = tpu.matmul %31, %29, %cst_30 {dimension_numbers = #tpu.dot_dimension_numbers<[1], [0], [0], [1], [0, 0, 1, 1], [], []>} : vector<16x64xbf16>, vector<64x8xbf16>, vector<16x8xf32> -> vector<16x8xf32>
    %33 = vector.broadcast %14 : vector<16x1xf32> to vector<16x8xf32>
    %34 = arith.addf %32, %33 : vector<16x8xf32>
    %35 = arith.truncf %34 : vector<16x8xf32> to vector<16x8xbf16>
    %c0_31 = arith.constant 0 : index
    %c1_32 = arith.constant 1 : index
    %c0_33 = arith.constant 0 : index
    %c0_34 = arith.constant 0 : index
    %36 = vector.load %arg4[%c0_31, %c1_32, %c0_33, %c0_34] : memref<1x4x16x8xbf16, #tpu.memory_space<vmem>>, vector<1x1x16x8xbf16>
    %37 = vector.shape_cast %36 : vector<1x1x16x8xbf16> to vector<16x8xbf16>
    %38 = vector.shape_cast %35 : vector<16x8xbf16> to vector<1x1x16x8xbf16>
    tpu.vector_store %arg4[%c0_31, %c1_32, %c0_33, %c0_34], %38 {strides = array<i32>} : memref<1x4x16x8xbf16, #tpu.memory_space<vmem>>, vector<1x1x16x8xbf16>,
    %c0_35 = arith.constant 0 : index
    %c2 = arith.constant 2 : index
    %39 = vector.load %arg5[%c0_35, %c2] : memref<32x10xbf16, #tpu.memory_space<vmem>>, vector<32x8xbf16>
    %c0_36 = arith.constant 0 : index
    %c1_37 = arith.constant 1 : index
    %40 = vector.load %arg5[%c0_36, %c1_37] : memref<32x10xbf16, #tpu.memory_space<vmem>>, vector<32x8xbf16>
    %41 = tpu.concatenate %39, %40 in 0 : vector<32x8xbf16>, vector<32x8xbf16> -> vector<64x8xbf16>
    %c2_38 = arith.constant 2 : index
    %c0_39 = arith.constant 0 : index
    %c0_40 = arith.constant 0 : index
    %42 = vector.load %arg2[%c2_38, %c0_39, %c0_40] : memref<4x16x64xbf16, #tpu.memory_space<vmem>>, vector<1x16x64xbf16>
    %43 = vector.shape_cast %42 : vector<1x16x64xbf16> to vector<16x64xbf16>
    %cst_41 = arith.constant dense<0.000000e+00> : vector<16x8xf32>
    %44 = tpu.matmul %43, %41, %cst_41 {dimension_numbers = #tpu.dot_dimension_numbers<[1], [0], [0], [1], [0, 0, 1, 1], [], []>} : vector<16x64xbf16>, vector<64x8xbf16>, vector<16x8xf32> -> vector<16x8xf32>
    %45 = vector.broadcast %14 : vector<16x1xf32> to vector<16x8xf32>
    %46 = arith.addf %44, %45 : vector<16x8xf32>
    %47 = arith.truncf %46 : vector<16x8xf32> to vector<16x8xbf16>
    %c0_42 = arith.constant 0 : index
    %c2_43 = arith.constant 2 : index
    %c0_44 = arith.constant 0 : index
    %c0_45 = arith.constant 0 : index
    %48 = vector.load %arg4[%c0_42, %c2_43, %c0_44, %c0_45] : memref<1x4x16x8xbf16, #tpu.memory_space<vmem>>, vector<1x1x16x8xbf16>
    %49 = vector.shape_cast %48 : vector<1x1x16x8xbf16> to vector<16x8xbf16>
    %50 = vector.shape_cast %47 : vector<16x8xbf16> to vector<1x1x16x8xbf16>
    tpu.vector_store %arg4[%c0_42, %c2_43, %c0_44, %c0_45], %50 {strides = array<i32>} : memref<1x4x16x8xbf16, #tpu.memory_space<vmem>>, vector<1x1x16x8xbf16>,
    %c0_46 = arith.constant 0 : index
    %c2_47 = arith.constant 2 : index
    %51 = vector.load %arg5[%c0_46, %c2_47] : memref<32x10xbf16, #tpu.memory_space<vmem>>, vector<32x8xbf16>
    %c0_48 = arith.constant 0 : index
    %c1_49 = arith.constant 1 : index
    %52 = vector.load %arg5[%c0_48, %c1_49] : memref<32x10xbf16, #tpu.memory_space<vmem>>, vector<32x8xbf16>
    %53 = tpu.concatenate %51, %52 in 0 : vector<32x8xbf16>, vector<32x8xbf16> -> vector<64x8xbf16>
    %c3 = arith.constant 3 : index
    %c0_50 = arith.constant 0 : index
    %c0_51 = arith.constant 0 : index
    %54 = vector.load %arg2[%c3, %c0_50, %c0_51] : memref<4x16x64xbf16, #tpu.memory_space<vmem>>, vector<1x16x64xbf16>
    %55 = vector.shape_cast %54 : vector<1x16x64xbf16> to vector<16x64xbf16>
    %cst_52 = arith.constant dense<0.000000e+00> : vector<16x8xf32>
    %56 = tpu.matmul %55, %53, %cst_52 {dimension_numbers = #tpu.dot_dimension_numbers<[1], [0], [0], [1], [0, 0, 1, 1], [], []>} : vector<16x64xbf16>, vector<64x8xbf16>, vector<16x8xf32> -> vector<16x8xf32>
    %57 = vector.broadcast %14 : vector<16x1xf32> to vector<16x8xf32>
    %58 = arith.addf %56, %57 : vector<16x8xf32>
    %59 = arith.truncf %58 : vector<16x8xf32> to vector<16x8xbf16>
    %c0_53 = arith.constant 0 : index
    %c3_54 = arith.constant 3 : index
    %c0_55 = arith.constant 0 : index
    %c0_56 = arith.constant 0 : index
    %60 = vector.load %arg4[%c0_53, %c3_54, %c0_55, %c0_56] : memref<1x4x16x8xbf16, #tpu.memory_space<vmem>>, vector<1x1x16x8xbf16>
    %61 = vector.shape_cast %60 : vector<1x1x16x8xbf16> to vector<16x8xbf16>
    %62 = vector.shape_cast %59 : vector<16x8xbf16> to vector<1x1x16x8xbf16>
    tpu.vector_store %arg4[%c0_53, %c3_54, %c0_55, %c0_56], %62 {strides = array<i32>} : memref<1x4x16x8xbf16, #tpu.memory_space<vmem>>, vector<1x1x16x8xbf16>,
    return
  }
  func.func @transform_0(%arg0: i32) -> (i32, i32, i32) {
    %c0_i32 = arith.constant 0 : i32
    %c0_i32_0 = arith.constant 0 : i32
    %c0_i32_1 = arith.constant 0 : i32
    return %arg0, %c0_i32, %c0_i32_0 : i32, i32, i32
  }
  func.func @transform_1(%arg0: i32) -> (i32, i32, i32) {
    %c0_i32 = arith.constant 0 : i32
    %c0_i32_0 = arith.constant 0 : i32
    %c0_i32_1 = arith.constant 0 : i32
    %c0_i32_2 = arith.constant 0 : i32
    return %c0_i32, %c0_i32_0, %c0_i32_1 : i32, i32, i32
  }
  func.func @transform_2(%arg0: i32) -> (i32, i32) {
    %c0_i32 = arith.constant 0 : i32
    %c0_i32_0 = arith.constant 0 : i32
    %c0_i32_1 = arith.constant 0 : i32
    return %c0_i32, %c0_i32_0 : i32, i32
  }
  func.func @transform_3(%arg0: i32) -> (i32, i32, i32, i32) {
    %c0_i32 = arith.constant 0 : i32
    %c0_i32_0 = arith.constant 0 : i32
    %c0_i32_1 = arith.constant 0 : i32
    %c0_i32_2 = arith.constant 0 : i32
    return %arg0, %c0_i32, %c0_i32_0, %c0_i32_1 : i32, i32, i32, i32
  }
}

module attributes {stable_mosaic.version = 11 : i64} {
  func.func @_stage_kernel(%arg0: i32, %arg1: memref<1x16x32xbf16, #tpu.memory_space<vmem>>, %arg2: memref<16x48xbf16, #tpu.memory_space<vmem>>, %arg3: memref<16x48xbf16, #tpu.memory_space<vmem>>, %arg4: memref<16x48xbf16, #tpu.memory_space<vmem>>, %arg5: memref<16x48xbf16, #tpu.memory_space<vmem>>, %arg6: memref<16x80xbf16, #tpu.memory_space<vmem>>, %arg7: memref<16x80xbf16, #tpu.memory_space<vmem>>, %arg8: memref<16x80xbf16, #tpu.memory_space<vmem>>, %arg9: memref<16x80xbf16, #tpu.memory_space<vmem>>, %arg10: memref<16x1xf32, #tpu.memory_space<vmem>>, %arg11: memref<16x1xf32, #tpu.memory_space<vmem>>, %arg12: memref<16x1xf32, #tpu.memory_space<vmem>>, %arg13: memref<16x1xf32, #tpu.memory_space<vmem>>, %arg14: memref<16x1xf32, #tpu.memory_space<vmem>>, %arg15: memref<16x1xf32, #tpu.memory_space<vmem>>, %arg16: memref<16x1xf32, #tpu.memory_space<vmem>>, %arg17: memref<16x1xf32, #tpu.memory_space<vmem>>, %arg18: memref<1x16x32xbf16, #tpu.memory_space<vmem>>, %arg19: memref<16x44xbf16, #tpu.memory_space<vmem>>) attributes {dimension_semantics = [#tpu.dimension_semantics<parallel>], iteration_bounds = array<i64: 2>, scalar_prefetch = 0 : i64, scratch_operands = 1 : i64, tpu.core_type = #tpu.core_type<tc>, window_params = [{transform_indices = @transform_0, window_bounds = array<i64: 1, 16, 32>}, {pipeline_mode = #tpu.pipeline_mode<synchronous>, transform_indices = @transform_1, window_bounds = array<i64: 16, 48>}, {pipeline_mode = #tpu.pipeline_mode<synchronous>, transform_indices = @transform_2, window_bounds = array<i64: 16, 48>}, {pipeline_mode = #tpu.pipeline_mode<synchronous>, transform_indices = @transform_3, window_bounds = array<i64: 16, 48>}, {pipeline_mode = #tpu.pipeline_mode<synchronous>, transform_indices = @transform_4, window_bounds = array<i64: 16, 48>}, {pipeline_mode = #tpu.pipeline_mode<synchronous>, transform_indices = @transform_5, window_bounds = array<i64: 16, 80>}, {pipeline_mode = #tpu.pipeline_mode<synchronous>, transform_indices = @transform_6, window_bounds = array<i64: 16, 80>}, {pipeline_mode = #tpu.pipeline_mode<synchronous>, transform_indices = @transform_7, window_bounds = array<i64: 16, 80>}, {pipeline_mode = #tpu.pipeline_mode<synchronous>, transform_indices = @transform_8, window_bounds = array<i64: 16, 80>}, {pipeline_mode = #tpu.pipeline_mode<synchronous>, transform_indices = @transform_9, window_bounds = array<i64: 16, 1>}, {pipeline_mode = #tpu.pipeline_mode<synchronous>, transform_indices = @transform_10, window_bounds = array<i64: 16, 1>}, {pipeline_mode = #tpu.pipeline_mode<synchronous>, transform_indices = @transform_11, window_bounds = array<i64: 16, 1>}, {pipeline_mode = #tpu.pipeline_mode<synchronous>, transform_indices = @transform_12, window_bounds = array<i64: 16, 1>}, {pipeline_mode = #tpu.pipeline_mode<synchronous>, transform_indices = @transform_13, window_bounds = array<i64: 16, 1>}, {pipeline_mode = #tpu.pipeline_mode<synchronous>, transform_indices = @transform_14, window_bounds = array<i64: 16, 1>}, {pipeline_mode = #tpu.pipeline_mode<synchronous>, transform_indices = @transform_15, window_bounds = array<i64: 16, 1>}, {pipeline_mode = #tpu.pipeline_mode<synchronous>, transform_indices = @transform_16, window_bounds = array<i64: 16, 1>}, {transform_indices = @transform_17, window_bounds = array<i64: 1, 16, 32>}]} {
    %cst = arith.constant 0.000000e+00 : bf16
    %0 = vector.broadcast %cst : bf16 to vector<16x6xbf16>
    %c0 = arith.constant 0 : index
    %c0_0 = arith.constant 0 : index
    %1 = vector.load %arg19[%c0, %c0_0] : memref<16x44xbf16, #tpu.memory_space<vmem>>, vector<16x6xbf16>
    tpu.vector_store %arg19[%c0, %c0_0], %0 {strides = array<i32>} : memref<16x44xbf16, #tpu.memory_space<vmem>>, vector<16x6xbf16>,
    %cst_1 = arith.constant 0.000000e+00 : bf16
    %2 = vector.broadcast %cst_1 : bf16 to vector<16x6xbf16>
    %c0_2 = arith.constant 0 : index
    %c38 = arith.constant 38 : index
    %3 = vector.load %arg19[%c0_2, %c38] : memref<16x44xbf16, #tpu.memory_space<vmem>>, vector<16x6xbf16>
    tpu.vector_store %arg19[%c0_2, %c38], %2 {strides = array<i32>} : memref<16x44xbf16, #tpu.memory_space<vmem>>, vector<16x6xbf16>,
    %c0_3 = arith.constant 0 : index
    %c0_4 = arith.constant 0 : index
    %c0_5 = arith.constant 0 : index
    %4 = vector.load %arg1[%c0_3, %c0_4, %c0_5] : memref<1x16x32xbf16, #tpu.memory_space<vmem>>, vector<1x16x32xbf16>
    %5 = vector.shape_cast %4 : vector<1x16x32xbf16> to vector<16x32xbf16>
    %6 = arith.extf %5 : vector<16x32xbf16> to vector<16x32xf32>
    %cst_6 = arith.constant 0.000000e+00 : f32
    %7 = vector.broadcast %cst_6 : f32 to vector<16x32xf32>
    %8 = arith.cmpf oge, %6, %7 : vector<16x32xf32>
    %cst_7 = arith.constant 1.000000e-01 : f32
    %9 = vector.broadcast %cst_7 : f32 to vector<16x32xf32>
    %10 = arith.mulf %6, %9 : vector<16x32xf32>
    %11 = arith.select %8, %6, %10 : vector<16x32xi1>, vector<16x32xf32>
    %12 = arith.truncf %11 : vector<16x32xf32> to vector<16x32xbf16>
    %c0_8 = arith.constant 0 : index
    %c6 = arith.constant 6 : index
    %13 = vector.load %arg19[%c0_8, %c6] : memref<16x44xbf16, #tpu.memory_space<vmem>>, vector<16x32xbf16>
    tpu.vector_store %arg19[%c0_8, %c6], %12 {strides = array<i32>} : memref<16x44xbf16, #tpu.memory_space<vmem>>, vector<16x32xbf16>,
    %c0_9 = arith.constant 0 : index
    %c0_10 = arith.constant 0 : index
    %14 = vector.load %arg2[%c0_9, %c0_10] : memref<16x48xbf16, #tpu.memory_space<vmem>>, vector<16x48xbf16>
    %c0_11 = arith.constant 0 : index
    %c0_12 = arith.constant 0 : index
    %15 = vector.load %arg10[%c0_11, %c0_12] : memref<16x1xf32, #tpu.memory_space<vmem>>, vector<16x1xf32>
    %c0_13 = arith.constant 0 : index
    %c5 = arith.constant 5 : index
    %16 = vector.load %arg19[%c0_13, %c5] : memref<16x44xbf16, #tpu.memory_space<vmem>>, vector<16x32xbf16>
    %c0_14 = arith.constant 0 : index
    %c6_15 = arith.constant 6 : index
    %17 = vector.load %arg19[%c0_14, %c6_15] : memref<16x44xbf16, #tpu.memory_space<vmem>>, vector<16x32xbf16>
    %c0_16 = arith.constant 0 : index
    %c7 = arith.constant 7 : index
    %18 = vector.load %arg19[%c0_16, %c7] : memref<16x44xbf16, #tpu.memory_space<vmem>>, vector<16x32xbf16>
    %19 = tpu.concatenate %16, %17, %18 in 0 : vector<16x32xbf16>, vector<16x32xbf16>, vector<16x32xbf16> -> vector<48x32xbf16>
    %cst_17 = arith.constant dense<0.000000e+00> : vector<16x32xf32>
    %20 = tpu.matmul %14, %19, %cst_17 {dimension_numbers = #tpu.dot_dimension_numbers<[1], [0], [0], [1], [0, 0, 1, 1], [], []>} : vector<16x48xbf16>, vector<48x32xbf16>, vector<16x32xf32> -> vector<16x32xf32>
    %21 = vector.broadcast %15 : vector<16x1xf32> to vector<16x32xf32>
    %22 = arith.addf %20, %21 : vector<16x32xf32>
    %cst_18 = arith.constant 0.000000e+00 : f32
    %23 = vector.broadcast %cst_18 : f32 to vector<16x32xf32>
    %24 = arith.cmpf oge, %22, %23 : vector<16x32xf32>
    %cst_19 = arith.constant 1.000000e-01 : f32
    %25 = vector.broadcast %cst_19 : f32 to vector<16x32xf32>
    %26 = arith.mulf %22, %25 : vector<16x32xf32>
    %27 = arith.select %24, %22, %26 : vector<16x32xi1>, vector<16x32xf32>
    %28 = arith.truncf %27 : vector<16x32xf32> to vector<16x32xbf16>
    %c0_20 = arith.constant 0 : index
    %c6_21 = arith.constant 6 : index
    %29 = vector.load %arg19[%c0_20, %c6_21] : memref<16x44xbf16, #tpu.memory_space<vmem>>, vector<16x32xbf16>
    tpu.vector_store %arg19[%c0_20, %c6_21], %28 {strides = array<i32>} : memref<16x44xbf16, #tpu.memory_space<vmem>>, vector<16x32xbf16>,
    %c0_22 = arith.constant 0 : index
    %c0_23 = arith.constant 0 : index
    %30 = vector.load %arg3[%c0_22, %c0_23] : memref<16x48xbf16, #tpu.memory_space<vmem>>, vector<16x48xbf16>
    %c0_24 = arith.constant 0 : index
    %c0_25 = arith.constant 0 : index
    %31 = vector.load %arg11[%c0_24, %c0_25] : memref<16x1xf32, #tpu.memory_space<vmem>>, vector<16x1xf32>
    %c0_26 = arith.constant 0 : index
    %c5_27 = arith.constant 5 : index
    %32 = vector.load %arg19[%c0_26, %c5_27] : memref<16x44xbf16, #tpu.memory_space<vmem>>, vector<16x32xbf16>
    %c0_28 = arith.constant 0 : index
    %c6_29 = arith.constant 6 : index
    %33 = vector.load %arg19[%c0_28, %c6_29] : memref<16x44xbf16, #tpu.memory_space<vmem>>, vector<16x32xbf16>
    %c0_30 = arith.constant 0 : index
    %c7_31 = arith.constant 7 : index
    %34 = vector.load %arg19[%c0_30, %c7_31] : memref<16x44xbf16, #tpu.memory_space<vmem>>, vector<16x32xbf16>
    %35 = tpu.concatenate %32, %33, %34 in 0 : vector<16x32xbf16>, vector<16x32xbf16>, vector<16x32xbf16> -> vector<48x32xbf16>
    %cst_32 = arith.constant dense<0.000000e+00> : vector<16x32xf32>
    %36 = tpu.matmul %30, %35, %cst_32 {dimension_numbers = #tpu.dot_dimension_numbers<[1], [0], [0], [1], [0, 0, 1, 1], [], []>} : vector<16x48xbf16>, vector<48x32xbf16>, vector<16x32xf32> -> vector<16x32xf32>
    %37 = vector.broadcast %31 : vector<16x1xf32> to vector<16x32xf32>
    %38 = arith.addf %36, %37 : vector<16x32xf32>
    %39 = arith.addf %38, %6 : vector<16x32xf32>
    %cst_33 = arith.constant 0.000000e+00 : f32
    %40 = vector.broadcast %cst_33 : f32 to vector<16x32xf32>
    %41 = arith.cmpf oge, %39, %40 : vector<16x32xf32>
    %cst_34 = arith.constant 1.000000e-01 : f32
    %42 = vector.broadcast %cst_34 : f32 to vector<16x32xf32>
    %43 = arith.mulf %39, %42 : vector<16x32xf32>
    %44 = arith.select %41, %39, %43 : vector<16x32xi1>, vector<16x32xf32>
    %45 = arith.truncf %44 : vector<16x32xf32> to vector<16x32xbf16>
    %c0_35 = arith.constant 0 : index
    %c6_36 = arith.constant 6 : index
    %46 = vector.load %arg19[%c0_35, %c6_36] : memref<16x44xbf16, #tpu.memory_space<vmem>>, vector<16x32xbf16>
    tpu.vector_store %arg19[%c0_35, %c6_36], %45 {strides = array<i32>} : memref<16x44xbf16, #tpu.memory_space<vmem>>, vector<16x32xbf16>,
    %c0_37 = arith.constant 0 : index
    %c0_38 = arith.constant 0 : index
    %47 = vector.load %arg4[%c0_37, %c0_38] : memref<16x48xbf16, #tpu.memory_space<vmem>>, vector<16x48xbf16>
    %c0_39 = arith.constant 0 : index
    %c0_40 = arith.constant 0 : index
    %48 = vector.load %arg12[%c0_39, %c0_40] : memref<16x1xf32, #tpu.memory_space<vmem>>, vector<16x1xf32>
    %c0_41 = arith.constant 0 : index
    %c3 = arith.constant 3 : index
    %49 = vector.load %arg19[%c0_41, %c3] : memref<16x44xbf16, #tpu.memory_space<vmem>>, vector<16x32xbf16>
    %c0_42 = arith.constant 0 : index
    %c6_43 = arith.constant 6 : index
    %50 = vector.load %arg19[%c0_42, %c6_43] : memref<16x44xbf16, #tpu.memory_space<vmem>>, vector<16x32xbf16>
    %c0_44 = arith.constant 0 : index
    %c9 = arith.constant 9 : index
    %51 = vector.load %arg19[%c0_44, %c9] : memref<16x44xbf16, #tpu.memory_space<vmem>>, vector<16x32xbf16>
    %52 = tpu.concatenate %49, %50, %51 in 0 : vector<16x32xbf16>, vector<16x32xbf16>, vector<16x32xbf16> -> vector<48x32xbf16>
    %cst_45 = arith.constant dense<0.000000e+00> : vector<16x32xf32>
    %53 = tpu.matmul %47, %52, %cst_45 {dimension_numbers = #tpu.dot_dimension_numbers<[1], [0], [0], [1], [0, 0, 1, 1], [], []>} : vector<16x48xbf16>, vector<48x32xbf16>, vector<16x32xf32> -> vector<16x32xf32>
    %54 = vector.broadcast %48 : vector<16x1xf32> to vector<16x32xf32>
    %55 = arith.addf %53, %54 : vector<16x32xf32>
    %cst_46 = arith.constant 0.000000e+00 : f32
    %56 = vector.broadcast %cst_46 : f32 to vector<16x32xf32>
    %57 = arith.cmpf oge, %55, %56 : vector<16x32xf32>
    %cst_47 = arith.constant 1.000000e-01 : f32
    %58 = vector.broadcast %cst_47 : f32 to vector<16x32xf32>
    %59 = arith.mulf %55, %58 : vector<16x32xf32>
    %60 = arith.select %57, %55, %59 : vector<16x32xi1>, vector<16x32xf32>
    %61 = arith.truncf %60 : vector<16x32xf32> to vector<16x32xbf16>
    %c0_48 = arith.constant 0 : index
    %c6_49 = arith.constant 6 : index
    %62 = vector.load %arg19[%c0_48, %c6_49] : memref<16x44xbf16, #tpu.memory_space<vmem>>, vector<16x32xbf16>
    tpu.vector_store %arg19[%c0_48, %c6_49], %61 {strides = array<i32>} : memref<16x44xbf16, #tpu.memory_space<vmem>>, vector<16x32xbf16>,
    %c0_50 = arith.constant 0 : index
    %c0_51 = arith.constant 0 : index
    %63 = vector.load %arg5[%c0_50, %c0_51] : memref<16x48xbf16, #tpu.memory_space<vmem>>, vector<16x48xbf16>
    %c0_52 = arith.constant 0 : index
    %c0_53 = arith.constant 0 : index
    %64 = vector.load %arg13[%c0_52, %c0_53] : memref<16x1xf32, #tpu.memory_space<vmem>>, vector<16x1xf32>
    %c0_54 = arith.constant 0 : index
    %c5_55 = arith.constant 5 : index
    %65 = vector.load %arg19[%c0_54, %c5_55] : memref<16x44xbf16, #tpu.memory_space<vmem>>, vector<16x32xbf16>
    %c0_56 = arith.constant 0 : index
    %c6_57 = arith.constant 6 : index
    %66 = vector.load %arg19[%c0_56, %c6_57] : memref<16x44xbf16, #tpu.memory_space<vmem>>, vector<16x32xbf16>
    %c0_58 = arith.constant 0 : index
    %c7_59 = arith.constant 7 : index
    %67 = vector.load %arg19[%c0_58, %c7_59] : memref<16x44xbf16, #tpu.memory_space<vmem>>, vector<16x32xbf16>
    %68 = tpu.concatenate %65, %66, %67 in 0 : vector<16x32xbf16>, vector<16x32xbf16>, vector<16x32xbf16> -> vector<48x32xbf16>
    %cst_60 = arith.constant dense<0.000000e+00> : vector<16x32xf32>
    %69 = tpu.matmul %63, %68, %cst_60 {dimension_numbers = #tpu.dot_dimension_numbers<[1], [0], [0], [1], [0, 0, 1, 1], [], []>} : vector<16x48xbf16>, vector<48x32xbf16>, vector<16x32xf32> -> vector<16x32xf32>
    %70 = vector.broadcast %64 : vector<16x1xf32> to vector<16x32xf32>
    %71 = arith.addf %69, %70 : vector<16x32xf32>
    %72 = arith.addf %71, %39 : vector<16x32xf32>
    %cst_61 = arith.constant 0.000000e+00 : f32
    %73 = vector.broadcast %cst_61 : f32 to vector<16x32xf32>
    %74 = arith.cmpf oge, %6, %73 : vector<16x32xf32>
    %cst_62 = arith.constant 1.000000e-01 : f32
    %75 = vector.broadcast %cst_62 : f32 to vector<16x32xf32>
    %76 = arith.mulf %6, %75 : vector<16x32xf32>
    %77 = arith.select %74, %6, %76 : vector<16x32xi1>, vector<16x32xf32>
    %78 = arith.truncf %77 : vector<16x32xf32> to vector<16x32xbf16>
    %c0_63 = arith.constant 0 : index
    %c6_64 = arith.constant 6 : index
    %79 = vector.load %arg19[%c0_63, %c6_64] : memref<16x44xbf16, #tpu.memory_space<vmem>>, vector<16x32xbf16>
    tpu.vector_store %arg19[%c0_63, %c6_64], %78 {strides = array<i32>} : memref<16x44xbf16, #tpu.memory_space<vmem>>, vector<16x32xbf16>,
    %c0_65 = arith.constant 0 : index
    %c0_66 = arith.constant 0 : index
    %80 = vector.load %arg6[%c0_65, %c0_66] : memref<16x80xbf16, #tpu.memory_space<vmem>>, vector<16x80xbf16>
    %c0_67 = arith.constant 0 : index
    %c0_68 = arith.constant 0 : index
    %81 = vector.load %arg14[%c0_67, %c0_68] : memref<16x1xf32, #tpu.memory_space<vmem>>, vector<16x1xf32>
    %c0_69 = arith.constant 0 : index
    %c4 = arith.constant 4 : index
    %82 = vector.load %arg19[%c0_69, %c4] : memref<16x44xbf16, #tpu.memory_space<vmem>>, vector<16x32xbf16>
    %c0_70 = arith.constant 0 : index
    %c5_71 = arith.constant 5 : index
    %83 = vector.load %arg19[%c0_70, %c5_71] : memref<16x44xbf16, #tpu.memory_space<vmem>>, vector<16x32xbf16>
    %c0_72 = arith.constant 0 : index
    %c6_73 = arith.constant 6 : index
    %84 = vector.load %arg19[%c0_72, %c6_73] : memref<16x44xbf16, #tpu.memory_space<vmem>>, vector<16x32xbf16>
    %c0_74 = arith.constant 0 : index
    %c7_75 = arith.constant 7 : index
    %85 = vector.load %arg19[%c0_74, %c7_75] : memref<16x44xbf16, #tpu.memory_space<vmem>>, vector<16x32xbf16>
    %c0_76 = arith.constant 0 : index
    %c8 = arith.constant 8 : index
    %86 = vector.load %arg19[%c0_76, %c8] : memref<16x44xbf16, #tpu.memory_space<vmem>>, vector<16x32xbf16>
    %87 = tpu.concatenate %82, %83, %84, %85, %86 in 0 : vector<16x32xbf16>, vector<16x32xbf16>, vector<16x32xbf16>, vector<16x32xbf16>, vector<16x32xbf16> -> vector<80x32xbf16>
    %cst_77 = arith.constant dense<0.000000e+00> : vector<16x32xf32>
    %88 = tpu.matmul %80, %87, %cst_77 {dimension_numbers = #tpu.dot_dimension_numbers<[1], [0], [0], [1], [0, 0, 1, 1], [], []>} : vector<16x80xbf16>, vector<80x32xbf16>, vector<16x32xf32> -> vector<16x32xf32>
    %89 = vector.broadcast %81 : vector<16x1xf32> to vector<16x32xf32>
    %90 = arith.addf %88, %89 : vector<16x32xf32>
    %cst_78 = arith.constant 0.000000e+00 : f32
    %91 = vector.broadcast %cst_78 : f32 to vector<16x32xf32>
    %92 = arith.cmpf oge, %90, %91 : vector<16x32xf32>
    %cst_79 = arith.constant 1.000000e-01 : f32
    %93 = vector.broadcast %cst_79 : f32 to vector<16x32xf32>
    %94 = arith.mulf %90, %93 : vector<16x32xf32>
    %95 = arith.select %92, %90, %94 : vector<16x32xi1>, vector<16x32xf32>
    %96 = arith.truncf %95 : vector<16x32xf32> to vector<16x32xbf16>
    %c0_80 = arith.constant 0 : index
    %c6_81 = arith.constant 6 : index
    %97 = vector.load %arg19[%c0_80, %c6_81] : memref<16x44xbf16, #tpu.memory_space<vmem>>, vector<16x32xbf16>
    tpu.vector_store %arg19[%c0_80, %c6_81], %96 {strides = array<i32>} : memref<16x44xbf16, #tpu.memory_space<vmem>>, vector<16x32xbf16>,
    %c0_82 = arith.constant 0 : index
    %c0_83 = arith.constant 0 : index
    %98 = vector.load %arg7[%c0_82, %c0_83] : memref<16x80xbf16, #tpu.memory_space<vmem>>, vector<16x80xbf16>
    %c0_84 = arith.constant 0 : index
    %c0_85 = arith.constant 0 : index
    %99 = vector.load %arg15[%c0_84, %c0_85] : memref<16x1xf32, #tpu.memory_space<vmem>>, vector<16x1xf32>
    %c0_86 = arith.constant 0 : index
    %c4_87 = arith.constant 4 : index
    %100 = vector.load %arg19[%c0_86, %c4_87] : memref<16x44xbf16, #tpu.memory_space<vmem>>, vector<16x32xbf16>
    %c0_88 = arith.constant 0 : index
    %c5_89 = arith.constant 5 : index
    %101 = vector.load %arg19[%c0_88, %c5_89] : memref<16x44xbf16, #tpu.memory_space<vmem>>, vector<16x32xbf16>
    %c0_90 = arith.constant 0 : index
    %c6_91 = arith.constant 6 : index
    %102 = vector.load %arg19[%c0_90, %c6_91] : memref<16x44xbf16, #tpu.memory_space<vmem>>, vector<16x32xbf16>
    %c0_92 = arith.constant 0 : index
    %c7_93 = arith.constant 7 : index
    %103 = vector.load %arg19[%c0_92, %c7_93] : memref<16x44xbf16, #tpu.memory_space<vmem>>, vector<16x32xbf16>
    %c0_94 = arith.constant 0 : index
    %c8_95 = arith.constant 8 : index
    %104 = vector.load %arg19[%c0_94, %c8_95] : memref<16x44xbf16, #tpu.memory_space<vmem>>, vector<16x32xbf16>
    %105 = tpu.concatenate %100, %101, %102, %103, %104 in 0 : vector<16x32xbf16>, vector<16x32xbf16>, vector<16x32xbf16>, vector<16x32xbf16>, vector<16x32xbf16> -> vector<80x32xbf16>
    %cst_96 = arith.constant dense<0.000000e+00> : vector<16x32xf32>
    %106 = tpu.matmul %98, %105, %cst_96 {dimension_numbers = #tpu.dot_dimension_numbers<[1], [0], [0], [1], [0, 0, 1, 1], [], []>} : vector<16x80xbf16>, vector<80x32xbf16>, vector<16x32xf32> -> vector<16x32xf32>
    %107 = vector.broadcast %99 : vector<16x1xf32> to vector<16x32xf32>
    %108 = arith.addf %106, %107 : vector<16x32xf32>
    %109 = arith.addf %108, %6 : vector<16x32xf32>
    %cst_97 = arith.constant 0.000000e+00 : f32
    %110 = vector.broadcast %cst_97 : f32 to vector<16x32xf32>
    %111 = arith.cmpf oge, %109, %110 : vector<16x32xf32>
    %cst_98 = arith.constant 1.000000e-01 : f32
    %112 = vector.broadcast %cst_98 : f32 to vector<16x32xf32>
    %113 = arith.mulf %109, %112 : vector<16x32xf32>
    %114 = arith.select %111, %109, %113 : vector<16x32xi1>, vector<16x32xf32>
    %115 = arith.truncf %114 : vector<16x32xf32> to vector<16x32xbf16>
    %c0_99 = arith.constant 0 : index
    %c6_100 = arith.constant 6 : index
    %116 = vector.load %arg19[%c0_99, %c6_100] : memref<16x44xbf16, #tpu.memory_space<vmem>>, vector<16x32xbf16>
    tpu.vector_store %arg19[%c0_99, %c6_100], %115 {strides = array<i32>} : memref<16x44xbf16, #tpu.memory_space<vmem>>, vector<16x32xbf16>,
    %c0_101 = arith.constant 0 : index
    %c0_102 = arith.constant 0 : index
    %117 = vector.load %arg8[%c0_101, %c0_102] : memref<16x80xbf16, #tpu.memory_space<vmem>>, vector<16x80xbf16>
    %c0_103 = arith.constant 0 : index
    %c0_104 = arith.constant 0 : index
    %118 = vector.load %arg16[%c0_103, %c0_104] : memref<16x1xf32, #tpu.memory_space<vmem>>, vector<16x1xf32>
    %c0_105 = arith.constant 0 : index
    %c0_106 = arith.constant 0 : index
    %119 = vector.load %arg19[%c0_105, %c0_106] : memref<16x44xbf16, #tpu.memory_space<vmem>>, vector<16x32xbf16>
    %c0_107 = arith.constant 0 : index
    %c3_108 = arith.constant 3 : index
    %120 = vector.load %arg19[%c0_107, %c3_108] : memref<16x44xbf16, #tpu.memory_space<vmem>>, vector<16x32xbf16>
    %c0_109 = arith.constant 0 : index
    %c6_110 = arith.constant 6 : index
    %121 = vector.load %arg19[%c0_109, %c6_110] : memref<16x44xbf16, #tpu.memory_space<vmem>>, vector<16x32xbf16>
    %c0_111 = arith.constant 0 : index
    %c9_112 = arith.constant 9 : index
    %122 = vector.load %arg19[%c0_111, %c9_112] : memref<16x44xbf16, #tpu.memory_space<vmem>>, vector<16x32xbf16>
    %c0_113 = arith.constant 0 : index
    %c12 = arith.constant 12 : index
    %123 = vector.load %arg19[%c0_113, %c12] : memref<16x44xbf16, #tpu.memory_space<vmem>>, vector<16x32xbf16>
    %124 = tpu.concatenate %119, %120, %121, %122, %123 in 0 : vector<16x32xbf16>, vector<16x32xbf16>, vector<16x32xbf16>, vector<16x32xbf16>, vector<16x32xbf16> -> vector<80x32xbf16>
    %cst_114 = arith.constant dense<0.000000e+00> : vector<16x32xf32>
    %125 = tpu.matmul %117, %124, %cst_114 {dimension_numbers = #tpu.dot_dimension_numbers<[1], [0], [0], [1], [0, 0, 1, 1], [], []>} : vector<16x80xbf16>, vector<80x32xbf16>, vector<16x32xf32> -> vector<16x32xf32>
    %126 = vector.broadcast %118 : vector<16x1xf32> to vector<16x32xf32>
    %127 = arith.addf %125, %126 : vector<16x32xf32>
    %cst_115 = arith.constant 0.000000e+00 : f32
    %128 = vector.broadcast %cst_115 : f32 to vector<16x32xf32>
    %129 = arith.cmpf oge, %127, %128 : vector<16x32xf32>
    %cst_116 = arith.constant 1.000000e-01 : f32
    %130 = vector.broadcast %cst_116 : f32 to vector<16x32xf32>
    %131 = arith.mulf %127, %130 : vector<16x32xf32>
    %132 = arith.select %129, %127, %131 : vector<16x32xi1>, vector<16x32xf32>
    %133 = arith.truncf %132 : vector<16x32xf32> to vector<16x32xbf16>
    %c0_117 = arith.constant 0 : index
    %c6_118 = arith.constant 6 : index
    %134 = vector.load %arg19[%c0_117, %c6_118] : memref<16x44xbf16, #tpu.memory_space<vmem>>, vector<16x32xbf16>
    tpu.vector_store %arg19[%c0_117, %c6_118], %133 {strides = array<i32>} : memref<16x44xbf16, #tpu.memory_space<vmem>>, vector<16x32xbf16>,
    %c0_119 = arith.constant 0 : index
    %c0_120 = arith.constant 0 : index
    %135 = vector.load %arg9[%c0_119, %c0_120] : memref<16x80xbf16, #tpu.memory_space<vmem>>, vector<16x80xbf16>
    %c0_121 = arith.constant 0 : index
    %c0_122 = arith.constant 0 : index
    %136 = vector.load %arg17[%c0_121, %c0_122] : memref<16x1xf32, #tpu.memory_space<vmem>>, vector<16x1xf32>
    %c0_123 = arith.constant 0 : index
    %c4_124 = arith.constant 4 : index
    %137 = vector.load %arg19[%c0_123, %c4_124] : memref<16x44xbf16, #tpu.memory_space<vmem>>, vector<16x32xbf16>
    %c0_125 = arith.constant 0 : index
    %c5_126 = arith.constant 5 : index
    %138 = vector.load %arg19[%c0_125, %c5_126] : memref<16x44xbf16, #tpu.memory_space<vmem>>, vector<16x32xbf16>
    %c0_127 = arith.constant 0 : index
    %c6_128 = arith.constant 6 : index
    %139 = vector.load %arg19[%c0_127, %c6_128] : memref<16x44xbf16, #tpu.memory_space<vmem>>, vector<16x32xbf16>
    %c0_129 = arith.constant 0 : index
    %c7_130 = arith.constant 7 : index
    %140 = vector.load %arg19[%c0_129, %c7_130] : memref<16x44xbf16, #tpu.memory_space<vmem>>, vector<16x32xbf16>
    %c0_131 = arith.constant 0 : index
    %c8_132 = arith.constant 8 : index
    %141 = vector.load %arg19[%c0_131, %c8_132] : memref<16x44xbf16, #tpu.memory_space<vmem>>, vector<16x32xbf16>
    %142 = tpu.concatenate %137, %138, %139, %140, %141 in 0 : vector<16x32xbf16>, vector<16x32xbf16>, vector<16x32xbf16>, vector<16x32xbf16>, vector<16x32xbf16> -> vector<80x32xbf16>
    %cst_133 = arith.constant dense<0.000000e+00> : vector<16x32xf32>
    %143 = tpu.matmul %135, %142, %cst_133 {dimension_numbers = #tpu.dot_dimension_numbers<[1], [0], [0], [1], [0, 0, 1, 1], [], []>} : vector<16x80xbf16>, vector<80x32xbf16>, vector<16x32xf32> -> vector<16x32xf32>
    %144 = vector.broadcast %136 : vector<16x1xf32> to vector<16x32xf32>
    %145 = arith.addf %143, %144 : vector<16x32xf32>
    %146 = arith.addf %145, %109 : vector<16x32xf32>
    %147 = arith.addf %72, %146 : vector<16x32xf32>
    %cst_134 = arith.constant 5.000000e-01 : f32
    %148 = vector.broadcast %cst_134 : f32 to vector<16x32xf32>
    %149 = arith.mulf %147, %148 : vector<16x32xf32>
    %150 = arith.truncf %149 : vector<16x32xf32> to vector<16x32xbf16>
    %c0_135 = arith.constant 0 : index
    %c0_136 = arith.constant 0 : index
    %c0_137 = arith.constant 0 : index
    %151 = vector.load %arg18[%c0_135, %c0_136, %c0_137] : memref<1x16x32xbf16, #tpu.memory_space<vmem>>, vector<1x16x32xbf16>
    %152 = vector.shape_cast %151 : vector<1x16x32xbf16> to vector<16x32xbf16>
    %153 = vector.shape_cast %150 : vector<16x32xbf16> to vector<1x16x32xbf16>
    tpu.vector_store %arg18[%c0_135, %c0_136, %c0_137], %153 {strides = array<i32>} : memref<1x16x32xbf16, #tpu.memory_space<vmem>>, vector<1x16x32xbf16>,
    return
  }
  func.func @transform_0(%arg0: i32) -> (i32, i32, i32) {
    %c0_i32 = arith.constant 0 : i32
    %c0_i32_0 = arith.constant 0 : i32
    %c0_i32_1 = arith.constant 0 : i32
    return %arg0, %c0_i32, %c0_i32_0 : i32, i32, i32
  }
  func.func @transform_1(%arg0: i32) -> (i32, i32) {
    %c0_i32 = arith.constant 0 : i32
    %c0_i32_0 = arith.constant 0 : i32
    %c0_i32_1 = arith.constant 0 : i32
    return %c0_i32, %c0_i32_0 : i32, i32
  }
  func.func @transform_2(%arg0: i32) -> (i32, i32) {
    %c0_i32 = arith.constant 0 : i32
    %c0_i32_0 = arith.constant 0 : i32
    %c0_i32_1 = arith.constant 0 : i32
    return %c0_i32, %c0_i32_0 : i32, i32
  }
  func.func @transform_3(%arg0: i32) -> (i32, i32) {
    %c0_i32 = arith.constant 0 : i32
    %c0_i32_0 = arith.constant 0 : i32
    %c0_i32_1 = arith.constant 0 : i32
    return %c0_i32, %c0_i32_0 : i32, i32
  }
  func.func @transform_4(%arg0: i32) -> (i32, i32) {
    %c0_i32 = arith.constant 0 : i32
    %c0_i32_0 = arith.constant 0 : i32
    %c0_i32_1 = arith.constant 0 : i32
    return %c0_i32, %c0_i32_0 : i32, i32
  }
  func.func @transform_5(%arg0: i32) -> (i32, i32) {
    %c0_i32 = arith.constant 0 : i32
    %c0_i32_0 = arith.constant 0 : i32
    %c0_i32_1 = arith.constant 0 : i32
    return %c0_i32, %c0_i32_0 : i32, i32
  }
  func.func @transform_6(%arg0: i32) -> (i32, i32) {
    %c0_i32 = arith.constant 0 : i32
    %c0_i32_0 = arith.constant 0 : i32
    %c0_i32_1 = arith.constant 0 : i32
    return %c0_i32, %c0_i32_0 : i32, i32
  }
  func.func @transform_7(%arg0: i32) -> (i32, i32) {
    %c0_i32 = arith.constant 0 : i32
    %c0_i32_0 = arith.constant 0 : i32
    %c0_i32_1 = arith.constant 0 : i32
    return %c0_i32, %c0_i32_0 : i32, i32
  }
  func.func @transform_8(%arg0: i32) -> (i32, i32) {
    %c0_i32 = arith.constant 0 : i32
    %c0_i32_0 = arith.constant 0 : i32
    %c0_i32_1 = arith.constant 0 : i32
    return %c0_i32, %c0_i32_0 : i32, i32
  }
  func.func @transform_9(%arg0: i32) -> (i32, i32) {
    %c0_i32 = arith.constant 0 : i32
    %c0_i32_0 = arith.constant 0 : i32
    %c0_i32_1 = arith.constant 0 : i32
    return %c0_i32, %c0_i32_0 : i32, i32
  }
  func.func @transform_10(%arg0: i32) -> (i32, i32) {
    %c0_i32 = arith.constant 0 : i32
    %c0_i32_0 = arith.constant 0 : i32
    %c0_i32_1 = arith.constant 0 : i32
    return %c0_i32, %c0_i32_0 : i32, i32
  }
  func.func @transform_11(%arg0: i32) -> (i32, i32) {
    %c0_i32 = arith.constant 0 : i32
    %c0_i32_0 = arith.constant 0 : i32
    %c0_i32_1 = arith.constant 0 : i32
    return %c0_i32, %c0_i32_0 : i32, i32
  }
  func.func @transform_12(%arg0: i32) -> (i32, i32) {
    %c0_i32 = arith.constant 0 : i32
    %c0_i32_0 = arith.constant 0 : i32
    %c0_i32_1 = arith.constant 0 : i32
    return %c0_i32, %c0_i32_0 : i32, i32
  }
  func.func @transform_13(%arg0: i32) -> (i32, i32) {
    %c0_i32 = arith.constant 0 : i32
    %c0_i32_0 = arith.constant 0 : i32
    %c0_i32_1 = arith.constant 0 : i32
    return %c0_i32, %c0_i32_0 : i32, i32
  }
  func.func @transform_14(%arg0: i32) -> (i32, i32) {
    %c0_i32 = arith.constant 0 : i32
    %c0_i32_0 = arith.constant 0 : i32
    %c0_i32_1 = arith.constant 0 : i32
    return %c0_i32, %c0_i32_0 : i32, i32
  }
  func.func @transform_15(%arg0: i32) -> (i32, i32) {
    %c0_i32 = arith.constant 0 : i32
    %c0_i32_0 = arith.constant 0 : i32
    %c0_i32_1 = arith.constant 0 : i32
    return %c0_i32, %c0_i32_0 : i32, i32
  }
  func.func @transform_16(%arg0: i32) -> (i32, i32) {
    %c0_i32 = arith.constant 0 : i32
    %c0_i32_0 = arith.constant 0 : i32
    %c0_i32_1 = arith.constant 0 : i32
    return %c0_i32, %c0_i32_0 : i32, i32
  }
  func.func @transform_17(%arg0: i32) -> (i32, i32, i32) {
    %c0_i32 = arith.constant 0 : i32
    %c0_i32_0 = arith.constant 0 : i32
    %c0_i32_1 = arith.constant 0 : i32
    return %arg0, %c0_i32, %c0_i32_0 : i32, i32, i32
  }
}

module attributes {stable_mosaic.version = 11 : i64} {
  func.func @_conv_transpose_kernel(%arg0: i32, %arg1: memref<1x16x32xbf16, #tpu.memory_space<vmem>>, %arg2: memref<4x8x32xbf16, #tpu.memory_space<vmem>>, %arg3: memref<8x1xf32, #tpu.memory_space<vmem>>, %arg4: memref<1x4x8x32xbf16, #tpu.memory_space<vmem>>, %arg5: memref<16x34xbf16, #tpu.memory_space<vmem>>) attributes {dimension_semantics = [#tpu.dimension_semantics<parallel>], iteration_bounds = array<i64: 2>, scalar_prefetch = 0 : i64, scratch_operands = 1 : i64, tpu.core_type = #tpu.core_type<tc>, window_params = [{transform_indices = @transform_0, window_bounds = array<i64: 1, 16, 32>}, {pipeline_mode = #tpu.pipeline_mode<synchronous>, transform_indices = @transform_1, window_bounds = array<i64: 4, 8, 32>}, {pipeline_mode = #tpu.pipeline_mode<synchronous>, transform_indices = @transform_2, window_bounds = array<i64: 8, 1>}, {transform_indices = @transform_3, window_bounds = array<i64: 1, 4, 8, 32>}]} {
    %c0 = arith.constant 0 : index
    %c0_0 = arith.constant 0 : index
    %c0_1 = arith.constant 0 : index
    %0 = vector.load %arg1[%c0, %c0_0, %c0_1] : memref<1x16x32xbf16, #tpu.memory_space<vmem>>, vector<1x16x32xbf16>
    %1 = vector.shape_cast %0 : vector<1x16x32xbf16> to vector<16x32xbf16>
    %2 = arith.extf %1 : vector<16x32xbf16> to vector<16x32xf32>
    %cst = arith.constant 0.000000e+00 : f32
    %3 = vector.broadcast %cst : f32 to vector<16x32xf32>
    %4 = arith.cmpf oge, %2, %3 : vector<16x32xf32>
    %cst_2 = arith.constant 1.000000e-01 : f32
    %5 = vector.broadcast %cst_2 : f32 to vector<16x32xf32>
    %6 = arith.mulf %2, %5 : vector<16x32xf32>
    %7 = arith.select %4, %2, %6 : vector<16x32xi1>, vector<16x32xf32>
    %cst_3 = arith.constant 0.000000e+00 : bf16
    %8 = vector.broadcast %cst_3 : bf16 to vector<16x1xbf16>
    %c0_4 = arith.constant 0 : index
    %c0_5 = arith.constant 0 : index
    %9 = vector.load %arg5[%c0_4, %c0_5] : memref<16x34xbf16, #tpu.memory_space<vmem>>, vector<16x1xbf16>
    tpu.vector_store %arg5[%c0_4, %c0_5], %8 {strides = array<i32>} : memref<16x34xbf16, #tpu.memory_space<vmem>>, vector<16x1xbf16>,
    %cst_6 = arith.constant 0.000000e+00 : bf16
    %10 = vector.broadcast %cst_6 : bf16 to vector<16x1xbf16>
    %c0_7 = arith.constant 0 : index
    %c33 = arith.constant 33 : index
    %11 = vector.load %arg5[%c0_7, %c33] : memref<16x34xbf16, #tpu.memory_space<vmem>>, vector<16x1xbf16>
    tpu.vector_store %arg5[%c0_7, %c33], %10 {strides = array<i32>} : memref<16x34xbf16, #tpu.memory_space<vmem>>, vector<16x1xbf16>,
    %12 = arith.truncf %7 : vector<16x32xf32> to vector<16x32xbf16>
    %c0_8 = arith.constant 0 : index
    %c1 = arith.constant 1 : index
    %13 = vector.load %arg5[%c0_8, %c1] : memref<16x34xbf16, #tpu.memory_space<vmem>>, vector<16x32xbf16>
    tpu.vector_store %arg5[%c0_8, %c1], %12 {strides = array<i32>} : memref<16x34xbf16, #tpu.memory_space<vmem>>, vector<16x32xbf16>,
    %c0_9 = arith.constant 0 : index
    %c0_10 = arith.constant 0 : index
    %14 = vector.load %arg3[%c0_9, %c0_10] : memref<8x1xf32, #tpu.memory_space<vmem>>, vector<8x1xf32>
    %c0_11 = arith.constant 0 : index
    %c1_12 = arith.constant 1 : index
    %15 = vector.load %arg5[%c0_11, %c1_12] : memref<16x34xbf16, #tpu.memory_space<vmem>>, vector<16x32xbf16>
    %c0_13 = arith.constant 0 : index
    %c0_14 = arith.constant 0 : index
    %16 = vector.load %arg5[%c0_13, %c0_14] : memref<16x34xbf16, #tpu.memory_space<vmem>>, vector<16x32xbf16>
    %17 = tpu.concatenate %15, %16 in 0 : vector<16x32xbf16>, vector<16x32xbf16> -> vector<32x32xbf16>
    %c0_15 = arith.constant 0 : index
    %c0_16 = arith.constant 0 : index
    %c0_17 = arith.constant 0 : index
    %18 = vector.load %arg2[%c0_15, %c0_16, %c0_17] : memref<4x8x32xbf16, #tpu.memory_space<vmem>>, vector<1x8x32xbf16>
    %19 = vector.shape_cast %18 : vector<1x8x32xbf16> to vector<8x32xbf16>
    %cst_18 = arith.constant dense<0.000000e+00> : vector<8x32xf32>
    %20 = tpu.matmul %19, %17, %cst_18 {dimension_numbers = #tpu.dot_dimension_numbers<[1], [0], [0], [1], [0, 0, 1, 1], [], []>} : vector<8x32xbf16>, vector<32x32xbf16>, vector<8x32xf32> -> vector<8x32xf32>
    %21 = vector.broadcast %14 : vector<8x1xf32> to vector<8x32xf32>
    %22 = arith.addf %20, %21 : vector<8x32xf32>
    %23 = arith.truncf %22 : vector<8x32xf32> to vector<8x32xbf16>
    %c0_19 = arith.constant 0 : index
    %c0_20 = arith.constant 0 : index
    %c0_21 = arith.constant 0 : index
    %c0_22 = arith.constant 0 : index
    %24 = vector.load %arg4[%c0_19, %c0_20, %c0_21, %c0_22] : memref<1x4x8x32xbf16, #tpu.memory_space<vmem>>, vector<1x1x8x32xbf16>
    %25 = vector.shape_cast %24 : vector<1x1x8x32xbf16> to vector<8x32xbf16>
    %26 = vector.shape_cast %23 : vector<8x32xbf16> to vector<1x1x8x32xbf16>
    tpu.vector_store %arg4[%c0_19, %c0_20, %c0_21, %c0_22], %26 {strides = array<i32>} : memref<1x4x8x32xbf16, #tpu.memory_space<vmem>>, vector<1x1x8x32xbf16>,
    %c0_23 = arith.constant 0 : index
    %c1_24 = arith.constant 1 : index
    %27 = vector.load %arg5[%c0_23, %c1_24] : memref<16x34xbf16, #tpu.memory_space<vmem>>, vector<16x32xbf16>
    %c0_25 = arith.constant 0 : index
    %c0_26 = arith.constant 0 : index
    %28 = vector.load %arg5[%c0_25, %c0_26] : memref<16x34xbf16, #tpu.memory_space<vmem>>, vector<16x32xbf16>
    %29 = tpu.concatenate %27, %28 in 0 : vector<16x32xbf16>, vector<16x32xbf16> -> vector<32x32xbf16>
    %c1_27 = arith.constant 1 : index
    %c0_28 = arith.constant 0 : index
    %c0_29 = arith.constant 0 : index
    %30 = vector.load %arg2[%c1_27, %c0_28, %c0_29] : memref<4x8x32xbf16, #tpu.memory_space<vmem>>, vector<1x8x32xbf16>
    %31 = vector.shape_cast %30 : vector<1x8x32xbf16> to vector<8x32xbf16>
    %cst_30 = arith.constant dense<0.000000e+00> : vector<8x32xf32>
    %32 = tpu.matmul %31, %29, %cst_30 {dimension_numbers = #tpu.dot_dimension_numbers<[1], [0], [0], [1], [0, 0, 1, 1], [], []>} : vector<8x32xbf16>, vector<32x32xbf16>, vector<8x32xf32> -> vector<8x32xf32>
    %33 = vector.broadcast %14 : vector<8x1xf32> to vector<8x32xf32>
    %34 = arith.addf %32, %33 : vector<8x32xf32>
    %35 = arith.truncf %34 : vector<8x32xf32> to vector<8x32xbf16>
    %c0_31 = arith.constant 0 : index
    %c1_32 = arith.constant 1 : index
    %c0_33 = arith.constant 0 : index
    %c0_34 = arith.constant 0 : index
    %36 = vector.load %arg4[%c0_31, %c1_32, %c0_33, %c0_34] : memref<1x4x8x32xbf16, #tpu.memory_space<vmem>>, vector<1x1x8x32xbf16>
    %37 = vector.shape_cast %36 : vector<1x1x8x32xbf16> to vector<8x32xbf16>
    %38 = vector.shape_cast %35 : vector<8x32xbf16> to vector<1x1x8x32xbf16>
    tpu.vector_store %arg4[%c0_31, %c1_32, %c0_33, %c0_34], %38 {strides = array<i32>} : memref<1x4x8x32xbf16, #tpu.memory_space<vmem>>, vector<1x1x8x32xbf16>,
    %c0_35 = arith.constant 0 : index
    %c2 = arith.constant 2 : index
    %39 = vector.load %arg5[%c0_35, %c2] : memref<16x34xbf16, #tpu.memory_space<vmem>>, vector<16x32xbf16>
    %c0_36 = arith.constant 0 : index
    %c1_37 = arith.constant 1 : index
    %40 = vector.load %arg5[%c0_36, %c1_37] : memref<16x34xbf16, #tpu.memory_space<vmem>>, vector<16x32xbf16>
    %41 = tpu.concatenate %39, %40 in 0 : vector<16x32xbf16>, vector<16x32xbf16> -> vector<32x32xbf16>
    %c2_38 = arith.constant 2 : index
    %c0_39 = arith.constant 0 : index
    %c0_40 = arith.constant 0 : index
    %42 = vector.load %arg2[%c2_38, %c0_39, %c0_40] : memref<4x8x32xbf16, #tpu.memory_space<vmem>>, vector<1x8x32xbf16>
    %43 = vector.shape_cast %42 : vector<1x8x32xbf16> to vector<8x32xbf16>
    %cst_41 = arith.constant dense<0.000000e+00> : vector<8x32xf32>
    %44 = tpu.matmul %43, %41, %cst_41 {dimension_numbers = #tpu.dot_dimension_numbers<[1], [0], [0], [1], [0, 0, 1, 1], [], []>} : vector<8x32xbf16>, vector<32x32xbf16>, vector<8x32xf32> -> vector<8x32xf32>
    %45 = vector.broadcast %14 : vector<8x1xf32> to vector<8x32xf32>
    %46 = arith.addf %44, %45 : vector<8x32xf32>
    %47 = arith.truncf %46 : vector<8x32xf32> to vector<8x32xbf16>
    %c0_42 = arith.constant 0 : index
    %c2_43 = arith.constant 2 : index
    %c0_44 = arith.constant 0 : index
    %c0_45 = arith.constant 0 : index
    %48 = vector.load %arg4[%c0_42, %c2_43, %c0_44, %c0_45] : memref<1x4x8x32xbf16, #tpu.memory_space<vmem>>, vector<1x1x8x32xbf16>
    %49 = vector.shape_cast %48 : vector<1x1x8x32xbf16> to vector<8x32xbf16>
    %50 = vector.shape_cast %47 : vector<8x32xbf16> to vector<1x1x8x32xbf16>
    tpu.vector_store %arg4[%c0_42, %c2_43, %c0_44, %c0_45], %50 {strides = array<i32>} : memref<1x4x8x32xbf16, #tpu.memory_space<vmem>>, vector<1x1x8x32xbf16>,
    %c0_46 = arith.constant 0 : index
    %c2_47 = arith.constant 2 : index
    %51 = vector.load %arg5[%c0_46, %c2_47] : memref<16x34xbf16, #tpu.memory_space<vmem>>, vector<16x32xbf16>
    %c0_48 = arith.constant 0 : index
    %c1_49 = arith.constant 1 : index
    %52 = vector.load %arg5[%c0_48, %c1_49] : memref<16x34xbf16, #tpu.memory_space<vmem>>, vector<16x32xbf16>
    %53 = tpu.concatenate %51, %52 in 0 : vector<16x32xbf16>, vector<16x32xbf16> -> vector<32x32xbf16>
    %c3 = arith.constant 3 : index
    %c0_50 = arith.constant 0 : index
    %c0_51 = arith.constant 0 : index
    %54 = vector.load %arg2[%c3, %c0_50, %c0_51] : memref<4x8x32xbf16, #tpu.memory_space<vmem>>, vector<1x8x32xbf16>
    %55 = vector.shape_cast %54 : vector<1x8x32xbf16> to vector<8x32xbf16>
    %cst_52 = arith.constant dense<0.000000e+00> : vector<8x32xf32>
    %56 = tpu.matmul %55, %53, %cst_52 {dimension_numbers = #tpu.dot_dimension_numbers<[1], [0], [0], [1], [0, 0, 1, 1], [], []>} : vector<8x32xbf16>, vector<32x32xbf16>, vector<8x32xf32> -> vector<8x32xf32>
    %57 = vector.broadcast %14 : vector<8x1xf32> to vector<8x32xf32>
    %58 = arith.addf %56, %57 : vector<8x32xf32>
    %59 = arith.truncf %58 : vector<8x32xf32> to vector<8x32xbf16>
    %c0_53 = arith.constant 0 : index
    %c3_54 = arith.constant 3 : index
    %c0_55 = arith.constant 0 : index
    %c0_56 = arith.constant 0 : index
    %60 = vector.load %arg4[%c0_53, %c3_54, %c0_55, %c0_56] : memref<1x4x8x32xbf16, #tpu.memory_space<vmem>>, vector<1x1x8x32xbf16>
    %61 = vector.shape_cast %60 : vector<1x1x8x32xbf16> to vector<8x32xbf16>
    %62 = vector.shape_cast %59 : vector<8x32xbf16> to vector<1x1x8x32xbf16>
    tpu.vector_store %arg4[%c0_53, %c3_54, %c0_55, %c0_56], %62 {strides = array<i32>} : memref<1x4x8x32xbf16, #tpu.memory_space<vmem>>, vector<1x1x8x32xbf16>,
    return
  }
  func.func @transform_0(%arg0: i32) -> (i32, i32, i32) {
    %c0_i32 = arith.constant 0 : i32
    %c0_i32_0 = arith.constant 0 : i32
    %c0_i32_1 = arith.constant 0 : i32
    return %arg0, %c0_i32, %c0_i32_0 : i32, i32, i32
  }
  func.func @transform_1(%arg0: i32) -> (i32, i32, i32) {
    %c0_i32 = arith.constant 0 : i32
    %c0_i32_0 = arith.constant 0 : i32
    %c0_i32_1 = arith.constant 0 : i32
    %c0_i32_2 = arith.constant 0 : i32
    return %c0_i32, %c0_i32_0, %c0_i32_1 : i32, i32, i32
  }
  func.func @transform_2(%arg0: i32) -> (i32, i32) {
    %c0_i32 = arith.constant 0 : i32
    %c0_i32_0 = arith.constant 0 : i32
    %c0_i32_1 = arith.constant 0 : i32
    return %c0_i32, %c0_i32_0 : i32, i32
  }
  func.func @transform_3(%arg0: i32) -> (i32, i32, i32, i32) {
    %c0_i32 = arith.constant 0 : i32
    %c0_i32_0 = arith.constant 0 : i32
    %c0_i32_1 = arith.constant 0 : i32
    %c0_i32_2 = arith.constant 0 : i32
    return %arg0, %c0_i32, %c0_i32_0, %c0_i32_1 : i32, i32, i32, i32
  }
}

module attributes {stable_mosaic.version = 11 : i64} {
  func.func @_stage_kernel(%arg0: i32, %arg1: memref<1x8x128xbf16, #tpu.memory_space<vmem>>, %arg2: memref<8x24xbf16, #tpu.memory_space<vmem>>, %arg3: memref<8x24xbf16, #tpu.memory_space<vmem>>, %arg4: memref<8x24xbf16, #tpu.memory_space<vmem>>, %arg5: memref<8x24xbf16, #tpu.memory_space<vmem>>, %arg6: memref<8x40xbf16, #tpu.memory_space<vmem>>, %arg7: memref<8x40xbf16, #tpu.memory_space<vmem>>, %arg8: memref<8x40xbf16, #tpu.memory_space<vmem>>, %arg9: memref<8x40xbf16, #tpu.memory_space<vmem>>, %arg10: memref<8x1xf32, #tpu.memory_space<vmem>>, %arg11: memref<8x1xf32, #tpu.memory_space<vmem>>, %arg12: memref<8x1xf32, #tpu.memory_space<vmem>>, %arg13: memref<8x1xf32, #tpu.memory_space<vmem>>, %arg14: memref<8x1xf32, #tpu.memory_space<vmem>>, %arg15: memref<8x1xf32, #tpu.memory_space<vmem>>, %arg16: memref<8x1xf32, #tpu.memory_space<vmem>>, %arg17: memref<8x1xf32, #tpu.memory_space<vmem>>, %arg18: memref<1x8x128xbf16, #tpu.memory_space<vmem>>, %arg19: memref<8x140xbf16, #tpu.memory_space<vmem>>) attributes {dimension_semantics = [#tpu.dimension_semantics<parallel>], iteration_bounds = array<i64: 2>, scalar_prefetch = 0 : i64, scratch_operands = 1 : i64, tpu.core_type = #tpu.core_type<tc>, window_params = [{transform_indices = @transform_0, window_bounds = array<i64: 1, 8, 128>}, {pipeline_mode = #tpu.pipeline_mode<synchronous>, transform_indices = @transform_1, window_bounds = array<i64: 8, 24>}, {pipeline_mode = #tpu.pipeline_mode<synchronous>, transform_indices = @transform_2, window_bounds = array<i64: 8, 24>}, {pipeline_mode = #tpu.pipeline_mode<synchronous>, transform_indices = @transform_3, window_bounds = array<i64: 8, 24>}, {pipeline_mode = #tpu.pipeline_mode<synchronous>, transform_indices = @transform_4, window_bounds = array<i64: 8, 24>}, {pipeline_mode = #tpu.pipeline_mode<synchronous>, transform_indices = @transform_5, window_bounds = array<i64: 8, 40>}, {pipeline_mode = #tpu.pipeline_mode<synchronous>, transform_indices = @transform_6, window_bounds = array<i64: 8, 40>}, {pipeline_mode = #tpu.pipeline_mode<synchronous>, transform_indices = @transform_7, window_bounds = array<i64: 8, 40>}, {pipeline_mode = #tpu.pipeline_mode<synchronous>, transform_indices = @transform_8, window_bounds = array<i64: 8, 40>}, {pipeline_mode = #tpu.pipeline_mode<synchronous>, transform_indices = @transform_9, window_bounds = array<i64: 8, 1>}, {pipeline_mode = #tpu.pipeline_mode<synchronous>, transform_indices = @transform_10, window_bounds = array<i64: 8, 1>}, {pipeline_mode = #tpu.pipeline_mode<synchronous>, transform_indices = @transform_11, window_bounds = array<i64: 8, 1>}, {pipeline_mode = #tpu.pipeline_mode<synchronous>, transform_indices = @transform_12, window_bounds = array<i64: 8, 1>}, {pipeline_mode = #tpu.pipeline_mode<synchronous>, transform_indices = @transform_13, window_bounds = array<i64: 8, 1>}, {pipeline_mode = #tpu.pipeline_mode<synchronous>, transform_indices = @transform_14, window_bounds = array<i64: 8, 1>}, {pipeline_mode = #tpu.pipeline_mode<synchronous>, transform_indices = @transform_15, window_bounds = array<i64: 8, 1>}, {pipeline_mode = #tpu.pipeline_mode<synchronous>, transform_indices = @transform_16, window_bounds = array<i64: 8, 1>}, {transform_indices = @transform_17, window_bounds = array<i64: 1, 8, 128>}]} {
    %cst = arith.constant 0.000000e+00 : bf16
    %0 = vector.broadcast %cst : bf16 to vector<8x6xbf16>
    %c0 = arith.constant 0 : index
    %c0_0 = arith.constant 0 : index
    %1 = vector.load %arg19[%c0, %c0_0] : memref<8x140xbf16, #tpu.memory_space<vmem>>, vector<8x6xbf16>
    tpu.vector_store %arg19[%c0, %c0_0], %0 {strides = array<i32>} : memref<8x140xbf16, #tpu.memory_space<vmem>>, vector<8x6xbf16>,
    %cst_1 = arith.constant 0.000000e+00 : bf16
    %2 = vector.broadcast %cst_1 : bf16 to vector<8x6xbf16>
    %c0_2 = arith.constant 0 : index
    %c134 = arith.constant 134 : index
    %3 = vector.load %arg19[%c0_2, %c134] : memref<8x140xbf16, #tpu.memory_space<vmem>>, vector<8x6xbf16>
    tpu.vector_store %arg19[%c0_2, %c134], %2 {strides = array<i32>} : memref<8x140xbf16, #tpu.memory_space<vmem>>, vector<8x6xbf16>,
    %c0_3 = arith.constant 0 : index
    %c0_4 = arith.constant 0 : index
    %c0_5 = arith.constant 0 : index
    %4 = vector.load %arg1[%c0_3, %c0_4, %c0_5] : memref<1x8x128xbf16, #tpu.memory_space<vmem>>, vector<1x8x128xbf16>
    %5 = vector.shape_cast %4 : vector<1x8x128xbf16> to vector<8x128xbf16>
    %6 = arith.extf %5 : vector<8x128xbf16> to vector<8x128xf32>
    %cst_6 = arith.constant 0.000000e+00 : f32
    %7 = vector.broadcast %cst_6 : f32 to vector<8x128xf32>
    %8 = arith.cmpf oge, %6, %7 : vector<8x128xf32>
    %cst_7 = arith.constant 1.000000e-01 : f32
    %9 = vector.broadcast %cst_7 : f32 to vector<8x128xf32>
    %10 = arith.mulf %6, %9 : vector<8x128xf32>
    %11 = arith.select %8, %6, %10 : vector<8x128xi1>, vector<8x128xf32>
    %12 = arith.truncf %11 : vector<8x128xf32> to vector<8x128xbf16>
    %c0_8 = arith.constant 0 : index
    %c6 = arith.constant 6 : index
    %13 = vector.load %arg19[%c0_8, %c6] : memref<8x140xbf16, #tpu.memory_space<vmem>>, vector<8x128xbf16>
    tpu.vector_store %arg19[%c0_8, %c6], %12 {strides = array<i32>} : memref<8x140xbf16, #tpu.memory_space<vmem>>, vector<8x128xbf16>,
    %c0_9 = arith.constant 0 : index
    %c0_10 = arith.constant 0 : index
    %14 = vector.load %arg2[%c0_9, %c0_10] : memref<8x24xbf16, #tpu.memory_space<vmem>>, vector<8x24xbf16>
    %c0_11 = arith.constant 0 : index
    %c0_12 = arith.constant 0 : index
    %15 = vector.load %arg10[%c0_11, %c0_12] : memref<8x1xf32, #tpu.memory_space<vmem>>, vector<8x1xf32>
    %c0_13 = arith.constant 0 : index
    %c5 = arith.constant 5 : index
    %16 = vector.load %arg19[%c0_13, %c5] : memref<8x140xbf16, #tpu.memory_space<vmem>>, vector<8x128xbf16>
    %c0_14 = arith.constant 0 : index
    %c6_15 = arith.constant 6 : index
    %17 = vector.load %arg19[%c0_14, %c6_15] : memref<8x140xbf16, #tpu.memory_space<vmem>>, vector<8x128xbf16>
    %c0_16 = arith.constant 0 : index
    %c7 = arith.constant 7 : index
    %18 = vector.load %arg19[%c0_16, %c7] : memref<8x140xbf16, #tpu.memory_space<vmem>>, vector<8x128xbf16>
    %19 = tpu.concatenate %16, %17, %18 in 0 : vector<8x128xbf16>, vector<8x128xbf16>, vector<8x128xbf16> -> vector<24x128xbf16>
    %cst_17 = arith.constant dense<0.000000e+00> : vector<8x128xf32>
    %20 = tpu.matmul %14, %19, %cst_17 {dimension_numbers = #tpu.dot_dimension_numbers<[1], [0], [0], [1], [0, 0, 1, 1], [], []>} : vector<8x24xbf16>, vector<24x128xbf16>, vector<8x128xf32> -> vector<8x128xf32>
    %21 = vector.broadcast %15 : vector<8x1xf32> to vector<8x128xf32>
    %22 = arith.addf %20, %21 : vector<8x128xf32>
    %cst_18 = arith.constant 0.000000e+00 : f32
    %23 = vector.broadcast %cst_18 : f32 to vector<8x128xf32>
    %24 = arith.cmpf oge, %22, %23 : vector<8x128xf32>
    %cst_19 = arith.constant 1.000000e-01 : f32
    %25 = vector.broadcast %cst_19 : f32 to vector<8x128xf32>
    %26 = arith.mulf %22, %25 : vector<8x128xf32>
    %27 = arith.select %24, %22, %26 : vector<8x128xi1>, vector<8x128xf32>
    %28 = arith.truncf %27 : vector<8x128xf32> to vector<8x128xbf16>
    %c0_20 = arith.constant 0 : index
    %c6_21 = arith.constant 6 : index
    %29 = vector.load %arg19[%c0_20, %c6_21] : memref<8x140xbf16, #tpu.memory_space<vmem>>, vector<8x128xbf16>
    tpu.vector_store %arg19[%c0_20, %c6_21], %28 {strides = array<i32>} : memref<8x140xbf16, #tpu.memory_space<vmem>>, vector<8x128xbf16>,
    %c0_22 = arith.constant 0 : index
    %c0_23 = arith.constant 0 : index
    %30 = vector.load %arg3[%c0_22, %c0_23] : memref<8x24xbf16, #tpu.memory_space<vmem>>, vector<8x24xbf16>
    %c0_24 = arith.constant 0 : index
    %c0_25 = arith.constant 0 : index
    %31 = vector.load %arg11[%c0_24, %c0_25] : memref<8x1xf32, #tpu.memory_space<vmem>>, vector<8x1xf32>
    %c0_26 = arith.constant 0 : index
    %c5_27 = arith.constant 5 : index
    %32 = vector.load %arg19[%c0_26, %c5_27] : memref<8x140xbf16, #tpu.memory_space<vmem>>, vector<8x128xbf16>
    %c0_28 = arith.constant 0 : index
    %c6_29 = arith.constant 6 : index
    %33 = vector.load %arg19[%c0_28, %c6_29] : memref<8x140xbf16, #tpu.memory_space<vmem>>, vector<8x128xbf16>
    %c0_30 = arith.constant 0 : index
    %c7_31 = arith.constant 7 : index
    %34 = vector.load %arg19[%c0_30, %c7_31] : memref<8x140xbf16, #tpu.memory_space<vmem>>, vector<8x128xbf16>
    %35 = tpu.concatenate %32, %33, %34 in 0 : vector<8x128xbf16>, vector<8x128xbf16>, vector<8x128xbf16> -> vector<24x128xbf16>
    %cst_32 = arith.constant dense<0.000000e+00> : vector<8x128xf32>
    %36 = tpu.matmul %30, %35, %cst_32 {dimension_numbers = #tpu.dot_dimension_numbers<[1], [0], [0], [1], [0, 0, 1, 1], [], []>} : vector<8x24xbf16>, vector<24x128xbf16>, vector<8x128xf32> -> vector<8x128xf32>
    %37 = vector.broadcast %31 : vector<8x1xf32> to vector<8x128xf32>
    %38 = arith.addf %36, %37 : vector<8x128xf32>
    %39 = arith.addf %38, %6 : vector<8x128xf32>
    %cst_33 = arith.constant 0.000000e+00 : f32
    %40 = vector.broadcast %cst_33 : f32 to vector<8x128xf32>
    %41 = arith.cmpf oge, %39, %40 : vector<8x128xf32>
    %cst_34 = arith.constant 1.000000e-01 : f32
    %42 = vector.broadcast %cst_34 : f32 to vector<8x128xf32>
    %43 = arith.mulf %39, %42 : vector<8x128xf32>
    %44 = arith.select %41, %39, %43 : vector<8x128xi1>, vector<8x128xf32>
    %45 = arith.truncf %44 : vector<8x128xf32> to vector<8x128xbf16>
    %c0_35 = arith.constant 0 : index
    %c6_36 = arith.constant 6 : index
    %46 = vector.load %arg19[%c0_35, %c6_36] : memref<8x140xbf16, #tpu.memory_space<vmem>>, vector<8x128xbf16>
    tpu.vector_store %arg19[%c0_35, %c6_36], %45 {strides = array<i32>} : memref<8x140xbf16, #tpu.memory_space<vmem>>, vector<8x128xbf16>,
    %c0_37 = arith.constant 0 : index
    %c0_38 = arith.constant 0 : index
    %47 = vector.load %arg4[%c0_37, %c0_38] : memref<8x24xbf16, #tpu.memory_space<vmem>>, vector<8x24xbf16>
    %c0_39 = arith.constant 0 : index
    %c0_40 = arith.constant 0 : index
    %48 = vector.load %arg12[%c0_39, %c0_40] : memref<8x1xf32, #tpu.memory_space<vmem>>, vector<8x1xf32>
    %c0_41 = arith.constant 0 : index
    %c3 = arith.constant 3 : index
    %49 = vector.load %arg19[%c0_41, %c3] : memref<8x140xbf16, #tpu.memory_space<vmem>>, vector<8x128xbf16>
    %c0_42 = arith.constant 0 : index
    %c6_43 = arith.constant 6 : index
    %50 = vector.load %arg19[%c0_42, %c6_43] : memref<8x140xbf16, #tpu.memory_space<vmem>>, vector<8x128xbf16>
    %c0_44 = arith.constant 0 : index
    %c9 = arith.constant 9 : index
    %51 = vector.load %arg19[%c0_44, %c9] : memref<8x140xbf16, #tpu.memory_space<vmem>>, vector<8x128xbf16>
    %52 = tpu.concatenate %49, %50, %51 in 0 : vector<8x128xbf16>, vector<8x128xbf16>, vector<8x128xbf16> -> vector<24x128xbf16>
    %cst_45 = arith.constant dense<0.000000e+00> : vector<8x128xf32>
    %53 = tpu.matmul %47, %52, %cst_45 {dimension_numbers = #tpu.dot_dimension_numbers<[1], [0], [0], [1], [0, 0, 1, 1], [], []>} : vector<8x24xbf16>, vector<24x128xbf16>, vector<8x128xf32> -> vector<8x128xf32>
    %54 = vector.broadcast %48 : vector<8x1xf32> to vector<8x128xf32>
    %55 = arith.addf %53, %54 : vector<8x128xf32>
    %cst_46 = arith.constant 0.000000e+00 : f32
    %56 = vector.broadcast %cst_46 : f32 to vector<8x128xf32>
    %57 = arith.cmpf oge, %55, %56 : vector<8x128xf32>
    %cst_47 = arith.constant 1.000000e-01 : f32
    %58 = vector.broadcast %cst_47 : f32 to vector<8x128xf32>
    %59 = arith.mulf %55, %58 : vector<8x128xf32>
    %60 = arith.select %57, %55, %59 : vector<8x128xi1>, vector<8x128xf32>
    %61 = arith.truncf %60 : vector<8x128xf32> to vector<8x128xbf16>
    %c0_48 = arith.constant 0 : index
    %c6_49 = arith.constant 6 : index
    %62 = vector.load %arg19[%c0_48, %c6_49] : memref<8x140xbf16, #tpu.memory_space<vmem>>, vector<8x128xbf16>
    tpu.vector_store %arg19[%c0_48, %c6_49], %61 {strides = array<i32>} : memref<8x140xbf16, #tpu.memory_space<vmem>>, vector<8x128xbf16>,
    %c0_50 = arith.constant 0 : index
    %c0_51 = arith.constant 0 : index
    %63 = vector.load %arg5[%c0_50, %c0_51] : memref<8x24xbf16, #tpu.memory_space<vmem>>, vector<8x24xbf16>
    %c0_52 = arith.constant 0 : index
    %c0_53 = arith.constant 0 : index
    %64 = vector.load %arg13[%c0_52, %c0_53] : memref<8x1xf32, #tpu.memory_space<vmem>>, vector<8x1xf32>
    %c0_54 = arith.constant 0 : index
    %c5_55 = arith.constant 5 : index
    %65 = vector.load %arg19[%c0_54, %c5_55] : memref<8x140xbf16, #tpu.memory_space<vmem>>, vector<8x128xbf16>
    %c0_56 = arith.constant 0 : index
    %c6_57 = arith.constant 6 : index
    %66 = vector.load %arg19[%c0_56, %c6_57] : memref<8x140xbf16, #tpu.memory_space<vmem>>, vector<8x128xbf16>
    %c0_58 = arith.constant 0 : index
    %c7_59 = arith.constant 7 : index
    %67 = vector.load %arg19[%c0_58, %c7_59] : memref<8x140xbf16, #tpu.memory_space<vmem>>, vector<8x128xbf16>
    %68 = tpu.concatenate %65, %66, %67 in 0 : vector<8x128xbf16>, vector<8x128xbf16>, vector<8x128xbf16> -> vector<24x128xbf16>
    %cst_60 = arith.constant dense<0.000000e+00> : vector<8x128xf32>
    %69 = tpu.matmul %63, %68, %cst_60 {dimension_numbers = #tpu.dot_dimension_numbers<[1], [0], [0], [1], [0, 0, 1, 1], [], []>} : vector<8x24xbf16>, vector<24x128xbf16>, vector<8x128xf32> -> vector<8x128xf32>
    %70 = vector.broadcast %64 : vector<8x1xf32> to vector<8x128xf32>
    %71 = arith.addf %69, %70 : vector<8x128xf32>
    %72 = arith.addf %71, %39 : vector<8x128xf32>
    %cst_61 = arith.constant 0.000000e+00 : f32
    %73 = vector.broadcast %cst_61 : f32 to vector<8x128xf32>
    %74 = arith.cmpf oge, %6, %73 : vector<8x128xf32>
    %cst_62 = arith.constant 1.000000e-01 : f32
    %75 = vector.broadcast %cst_62 : f32 to vector<8x128xf32>
    %76 = arith.mulf %6, %75 : vector<8x128xf32>
    %77 = arith.select %74, %6, %76 : vector<8x128xi1>, vector<8x128xf32>
    %78 = arith.truncf %77 : vector<8x128xf32> to vector<8x128xbf16>
    %c0_63 = arith.constant 0 : index
    %c6_64 = arith.constant 6 : index
    %79 = vector.load %arg19[%c0_63, %c6_64] : memref<8x140xbf16, #tpu.memory_space<vmem>>, vector<8x128xbf16>
    tpu.vector_store %arg19[%c0_63, %c6_64], %78 {strides = array<i32>} : memref<8x140xbf16, #tpu.memory_space<vmem>>, vector<8x128xbf16>,
    %c0_65 = arith.constant 0 : index
    %c0_66 = arith.constant 0 : index
    %80 = vector.load %arg6[%c0_65, %c0_66] : memref<8x40xbf16, #tpu.memory_space<vmem>>, vector<8x40xbf16>
    %c0_67 = arith.constant 0 : index
    %c0_68 = arith.constant 0 : index
    %81 = vector.load %arg14[%c0_67, %c0_68] : memref<8x1xf32, #tpu.memory_space<vmem>>, vector<8x1xf32>
    %c0_69 = arith.constant 0 : index
    %c4 = arith.constant 4 : index
    %82 = vector.load %arg19[%c0_69, %c4] : memref<8x140xbf16, #tpu.memory_space<vmem>>, vector<8x128xbf16>
    %c0_70 = arith.constant 0 : index
    %c5_71 = arith.constant 5 : index
    %83 = vector.load %arg19[%c0_70, %c5_71] : memref<8x140xbf16, #tpu.memory_space<vmem>>, vector<8x128xbf16>
    %c0_72 = arith.constant 0 : index
    %c6_73 = arith.constant 6 : index
    %84 = vector.load %arg19[%c0_72, %c6_73] : memref<8x140xbf16, #tpu.memory_space<vmem>>, vector<8x128xbf16>
    %c0_74 = arith.constant 0 : index
    %c7_75 = arith.constant 7 : index
    %85 = vector.load %arg19[%c0_74, %c7_75] : memref<8x140xbf16, #tpu.memory_space<vmem>>, vector<8x128xbf16>
    %c0_76 = arith.constant 0 : index
    %c8 = arith.constant 8 : index
    %86 = vector.load %arg19[%c0_76, %c8] : memref<8x140xbf16, #tpu.memory_space<vmem>>, vector<8x128xbf16>
    %87 = tpu.concatenate %82, %83, %84, %85, %86 in 0 : vector<8x128xbf16>, vector<8x128xbf16>, vector<8x128xbf16>, vector<8x128xbf16>, vector<8x128xbf16> -> vector<40x128xbf16>
    %cst_77 = arith.constant dense<0.000000e+00> : vector<8x128xf32>
    %88 = tpu.matmul %80, %87, %cst_77 {dimension_numbers = #tpu.dot_dimension_numbers<[1], [0], [0], [1], [0, 0, 1, 1], [], []>} : vector<8x40xbf16>, vector<40x128xbf16>, vector<8x128xf32> -> vector<8x128xf32>
    %89 = vector.broadcast %81 : vector<8x1xf32> to vector<8x128xf32>
    %90 = arith.addf %88, %89 : vector<8x128xf32>
    %cst_78 = arith.constant 0.000000e+00 : f32
    %91 = vector.broadcast %cst_78 : f32 to vector<8x128xf32>
    %92 = arith.cmpf oge, %90, %91 : vector<8x128xf32>
    %cst_79 = arith.constant 1.000000e-01 : f32
    %93 = vector.broadcast %cst_79 : f32 to vector<8x128xf32>
    %94 = arith.mulf %90, %93 : vector<8x128xf32>
    %95 = arith.select %92, %90, %94 : vector<8x128xi1>, vector<8x128xf32>
    %96 = arith.truncf %95 : vector<8x128xf32> to vector<8x128xbf16>
    %c0_80 = arith.constant 0 : index
    %c6_81 = arith.constant 6 : index
    %97 = vector.load %arg19[%c0_80, %c6_81] : memref<8x140xbf16, #tpu.memory_space<vmem>>, vector<8x128xbf16>
    tpu.vector_store %arg19[%c0_80, %c6_81], %96 {strides = array<i32>} : memref<8x140xbf16, #tpu.memory_space<vmem>>, vector<8x128xbf16>,
    %c0_82 = arith.constant 0 : index
    %c0_83 = arith.constant 0 : index
    %98 = vector.load %arg7[%c0_82, %c0_83] : memref<8x40xbf16, #tpu.memory_space<vmem>>, vector<8x40xbf16>
    %c0_84 = arith.constant 0 : index
    %c0_85 = arith.constant 0 : index
    %99 = vector.load %arg15[%c0_84, %c0_85] : memref<8x1xf32, #tpu.memory_space<vmem>>, vector<8x1xf32>
    %c0_86 = arith.constant 0 : index
    %c4_87 = arith.constant 4 : index
    %100 = vector.load %arg19[%c0_86, %c4_87] : memref<8x140xbf16, #tpu.memory_space<vmem>>, vector<8x128xbf16>
    %c0_88 = arith.constant 0 : index
    %c5_89 = arith.constant 5 : index
    %101 = vector.load %arg19[%c0_88, %c5_89] : memref<8x140xbf16, #tpu.memory_space<vmem>>, vector<8x128xbf16>
    %c0_90 = arith.constant 0 : index
    %c6_91 = arith.constant 6 : index
    %102 = vector.load %arg19[%c0_90, %c6_91] : memref<8x140xbf16, #tpu.memory_space<vmem>>, vector<8x128xbf16>
    %c0_92 = arith.constant 0 : index
    %c7_93 = arith.constant 7 : index
    %103 = vector.load %arg19[%c0_92, %c7_93] : memref<8x140xbf16, #tpu.memory_space<vmem>>, vector<8x128xbf16>
    %c0_94 = arith.constant 0 : index
    %c8_95 = arith.constant 8 : index
    %104 = vector.load %arg19[%c0_94, %c8_95] : memref<8x140xbf16, #tpu.memory_space<vmem>>, vector<8x128xbf16>
    %105 = tpu.concatenate %100, %101, %102, %103, %104 in 0 : vector<8x128xbf16>, vector<8x128xbf16>, vector<8x128xbf16>, vector<8x128xbf16>, vector<8x128xbf16> -> vector<40x128xbf16>
    %cst_96 = arith.constant dense<0.000000e+00> : vector<8x128xf32>
    %106 = tpu.matmul %98, %105, %cst_96 {dimension_numbers = #tpu.dot_dimension_numbers<[1], [0], [0], [1], [0, 0, 1, 1], [], []>} : vector<8x40xbf16>, vector<40x128xbf16>, vector<8x128xf32> -> vector<8x128xf32>
    %107 = vector.broadcast %99 : vector<8x1xf32> to vector<8x128xf32>
    %108 = arith.addf %106, %107 : vector<8x128xf32>
    %109 = arith.addf %108, %6 : vector<8x128xf32>
    %cst_97 = arith.constant 0.000000e+00 : f32
    %110 = vector.broadcast %cst_97 : f32 to vector<8x128xf32>
    %111 = arith.cmpf oge, %109, %110 : vector<8x128xf32>
    %cst_98 = arith.constant 1.000000e-01 : f32
    %112 = vector.broadcast %cst_98 : f32 to vector<8x128xf32>
    %113 = arith.mulf %109, %112 : vector<8x128xf32>
    %114 = arith.select %111, %109, %113 : vector<8x128xi1>, vector<8x128xf32>
    %115 = arith.truncf %114 : vector<8x128xf32> to vector<8x128xbf16>
    %c0_99 = arith.constant 0 : index
    %c6_100 = arith.constant 6 : index
    %116 = vector.load %arg19[%c0_99, %c6_100] : memref<8x140xbf16, #tpu.memory_space<vmem>>, vector<8x128xbf16>
    tpu.vector_store %arg19[%c0_99, %c6_100], %115 {strides = array<i32>} : memref<8x140xbf16, #tpu.memory_space<vmem>>, vector<8x128xbf16>,
    %c0_101 = arith.constant 0 : index
    %c0_102 = arith.constant 0 : index
    %117 = vector.load %arg8[%c0_101, %c0_102] : memref<8x40xbf16, #tpu.memory_space<vmem>>, vector<8x40xbf16>
    %c0_103 = arith.constant 0 : index
    %c0_104 = arith.constant 0 : index
    %118 = vector.load %arg16[%c0_103, %c0_104] : memref<8x1xf32, #tpu.memory_space<vmem>>, vector<8x1xf32>
    %c0_105 = arith.constant 0 : index
    %c0_106 = arith.constant 0 : index
    %119 = vector.load %arg19[%c0_105, %c0_106] : memref<8x140xbf16, #tpu.memory_space<vmem>>, vector<8x128xbf16>
    %c0_107 = arith.constant 0 : index
    %c3_108 = arith.constant 3 : index
    %120 = vector.load %arg19[%c0_107, %c3_108] : memref<8x140xbf16, #tpu.memory_space<vmem>>, vector<8x128xbf16>
    %c0_109 = arith.constant 0 : index
    %c6_110 = arith.constant 6 : index
    %121 = vector.load %arg19[%c0_109, %c6_110] : memref<8x140xbf16, #tpu.memory_space<vmem>>, vector<8x128xbf16>
    %c0_111 = arith.constant 0 : index
    %c9_112 = arith.constant 9 : index
    %122 = vector.load %arg19[%c0_111, %c9_112] : memref<8x140xbf16, #tpu.memory_space<vmem>>, vector<8x128xbf16>
    %c0_113 = arith.constant 0 : index
    %c12 = arith.constant 12 : index
    %123 = vector.load %arg19[%c0_113, %c12] : memref<8x140xbf16, #tpu.memory_space<vmem>>, vector<8x128xbf16>
    %124 = tpu.concatenate %119, %120, %121, %122, %123 in 0 : vector<8x128xbf16>, vector<8x128xbf16>, vector<8x128xbf16>, vector<8x128xbf16>, vector<8x128xbf16> -> vector<40x128xbf16>
    %cst_114 = arith.constant dense<0.000000e+00> : vector<8x128xf32>
    %125 = tpu.matmul %117, %124, %cst_114 {dimension_numbers = #tpu.dot_dimension_numbers<[1], [0], [0], [1], [0, 0, 1, 1], [], []>} : vector<8x40xbf16>, vector<40x128xbf16>, vector<8x128xf32> -> vector<8x128xf32>
    %126 = vector.broadcast %118 : vector<8x1xf32> to vector<8x128xf32>
    %127 = arith.addf %125, %126 : vector<8x128xf32>
    %cst_115 = arith.constant 0.000000e+00 : f32
    %128 = vector.broadcast %cst_115 : f32 to vector<8x128xf32>
    %129 = arith.cmpf oge, %127, %128 : vector<8x128xf32>
    %cst_116 = arith.constant 1.000000e-01 : f32
    %130 = vector.broadcast %cst_116 : f32 to vector<8x128xf32>
    %131 = arith.mulf %127, %130 : vector<8x128xf32>
    %132 = arith.select %129, %127, %131 : vector<8x128xi1>, vector<8x128xf32>
    %133 = arith.truncf %132 : vector<8x128xf32> to vector<8x128xbf16>
    %c0_117 = arith.constant 0 : index
    %c6_118 = arith.constant 6 : index
    %134 = vector.load %arg19[%c0_117, %c6_118] : memref<8x140xbf16, #tpu.memory_space<vmem>>, vector<8x128xbf16>
    tpu.vector_store %arg19[%c0_117, %c6_118], %133 {strides = array<i32>} : memref<8x140xbf16, #tpu.memory_space<vmem>>, vector<8x128xbf16>,
    %c0_119 = arith.constant 0 : index
    %c0_120 = arith.constant 0 : index
    %135 = vector.load %arg9[%c0_119, %c0_120] : memref<8x40xbf16, #tpu.memory_space<vmem>>, vector<8x40xbf16>
    %c0_121 = arith.constant 0 : index
    %c0_122 = arith.constant 0 : index
    %136 = vector.load %arg17[%c0_121, %c0_122] : memref<8x1xf32, #tpu.memory_space<vmem>>, vector<8x1xf32>
    %c0_123 = arith.constant 0 : index
    %c4_124 = arith.constant 4 : index
    %137 = vector.load %arg19[%c0_123, %c4_124] : memref<8x140xbf16, #tpu.memory_space<vmem>>, vector<8x128xbf16>
    %c0_125 = arith.constant 0 : index
    %c5_126 = arith.constant 5 : index
    %138 = vector.load %arg19[%c0_125, %c5_126] : memref<8x140xbf16, #tpu.memory_space<vmem>>, vector<8x128xbf16>
    %c0_127 = arith.constant 0 : index
    %c6_128 = arith.constant 6 : index
    %139 = vector.load %arg19[%c0_127, %c6_128] : memref<8x140xbf16, #tpu.memory_space<vmem>>, vector<8x128xbf16>
    %c0_129 = arith.constant 0 : index
    %c7_130 = arith.constant 7 : index
    %140 = vector.load %arg19[%c0_129, %c7_130] : memref<8x140xbf16, #tpu.memory_space<vmem>>, vector<8x128xbf16>
    %c0_131 = arith.constant 0 : index
    %c8_132 = arith.constant 8 : index
    %141 = vector.load %arg19[%c0_131, %c8_132] : memref<8x140xbf16, #tpu.memory_space<vmem>>, vector<8x128xbf16>
    %142 = tpu.concatenate %137, %138, %139, %140, %141 in 0 : vector<8x128xbf16>, vector<8x128xbf16>, vector<8x128xbf16>, vector<8x128xbf16>, vector<8x128xbf16> -> vector<40x128xbf16>
    %cst_133 = arith.constant dense<0.000000e+00> : vector<8x128xf32>
    %143 = tpu.matmul %135, %142, %cst_133 {dimension_numbers = #tpu.dot_dimension_numbers<[1], [0], [0], [1], [0, 0, 1, 1], [], []>} : vector<8x40xbf16>, vector<40x128xbf16>, vector<8x128xf32> -> vector<8x128xf32>
    %144 = vector.broadcast %136 : vector<8x1xf32> to vector<8x128xf32>
    %145 = arith.addf %143, %144 : vector<8x128xf32>
    %146 = arith.addf %145, %109 : vector<8x128xf32>
    %147 = arith.addf %72, %146 : vector<8x128xf32>
    %cst_134 = arith.constant 5.000000e-01 : f32
    %148 = vector.broadcast %cst_134 : f32 to vector<8x128xf32>
    %149 = arith.mulf %147, %148 : vector<8x128xf32>
    %150 = arith.truncf %149 : vector<8x128xf32> to vector<8x128xbf16>
    %c0_135 = arith.constant 0 : index
    %c0_136 = arith.constant 0 : index
    %c0_137 = arith.constant 0 : index
    %151 = vector.load %arg18[%c0_135, %c0_136, %c0_137] : memref<1x8x128xbf16, #tpu.memory_space<vmem>>, vector<1x8x128xbf16>
    %152 = vector.shape_cast %151 : vector<1x8x128xbf16> to vector<8x128xbf16>
    %153 = vector.shape_cast %150 : vector<8x128xbf16> to vector<1x8x128xbf16>
    tpu.vector_store %arg18[%c0_135, %c0_136, %c0_137], %153 {strides = array<i32>} : memref<1x8x128xbf16, #tpu.memory_space<vmem>>, vector<1x8x128xbf16>,
    return
  }
  func.func @transform_0(%arg0: i32) -> (i32, i32, i32) {
    %c0_i32 = arith.constant 0 : i32
    %c0_i32_0 = arith.constant 0 : i32
    %c0_i32_1 = arith.constant 0 : i32
    return %arg0, %c0_i32, %c0_i32_0 : i32, i32, i32
  }
  func.func @transform_1(%arg0: i32) -> (i32, i32) {
    %c0_i32 = arith.constant 0 : i32
    %c0_i32_0 = arith.constant 0 : i32
    %c0_i32_1 = arith.constant 0 : i32
    return %c0_i32, %c0_i32_0 : i32, i32
  }
  func.func @transform_2(%arg0: i32) -> (i32, i32) {
    %c0_i32 = arith.constant 0 : i32
    %c0_i32_0 = arith.constant 0 : i32
    %c0_i32_1 = arith.constant 0 : i32
    return %c0_i32, %c0_i32_0 : i32, i32
  }
  func.func @transform_3(%arg0: i32) -> (i32, i32) {
    %c0_i32 = arith.constant 0 : i32
    %c0_i32_0 = arith.constant 0 : i32
    %c0_i32_1 = arith.constant 0 : i32
    return %c0_i32, %c0_i32_0 : i32, i32
  }
  func.func @transform_4(%arg0: i32) -> (i32, i32) {
    %c0_i32 = arith.constant 0 : i32
    %c0_i32_0 = arith.constant 0 : i32
    %c0_i32_1 = arith.constant 0 : i32
    return %c0_i32, %c0_i32_0 : i32, i32
  }
  func.func @transform_5(%arg0: i32) -> (i32, i32) {
    %c0_i32 = arith.constant 0 : i32
    %c0_i32_0 = arith.constant 0 : i32
    %c0_i32_1 = arith.constant 0 : i32
    return %c0_i32, %c0_i32_0 : i32, i32
  }
  func.func @transform_6(%arg0: i32) -> (i32, i32) {
    %c0_i32 = arith.constant 0 : i32
    %c0_i32_0 = arith.constant 0 : i32
    %c0_i32_1 = arith.constant 0 : i32
    return %c0_i32, %c0_i32_0 : i32, i32
  }
  func.func @transform_7(%arg0: i32) -> (i32, i32) {
    %c0_i32 = arith.constant 0 : i32
    %c0_i32_0 = arith.constant 0 : i32
    %c0_i32_1 = arith.constant 0 : i32
    return %c0_i32, %c0_i32_0 : i32, i32
  }
  func.func @transform_8(%arg0: i32) -> (i32, i32) {
    %c0_i32 = arith.constant 0 : i32
    %c0_i32_0 = arith.constant 0 : i32
    %c0_i32_1 = arith.constant 0 : i32
    return %c0_i32, %c0_i32_0 : i32, i32
  }
  func.func @transform_9(%arg0: i32) -> (i32, i32) {
    %c0_i32 = arith.constant 0 : i32
    %c0_i32_0 = arith.constant 0 : i32
    %c0_i32_1 = arith.constant 0 : i32
    return %c0_i32, %c0_i32_0 : i32, i32
  }
  func.func @transform_10(%arg0: i32) -> (i32, i32) {
    %c0_i32 = arith.constant 0 : i32
    %c0_i32_0 = arith.constant 0 : i32
    %c0_i32_1 = arith.constant 0 : i32
    return %c0_i32, %c0_i32_0 : i32, i32
  }
  func.func @transform_11(%arg0: i32) -> (i32, i32) {
    %c0_i32 = arith.constant 0 : i32
    %c0_i32_0 = arith.constant 0 : i32
    %c0_i32_1 = arith.constant 0 : i32
    return %c0_i32, %c0_i32_0 : i32, i32
  }
  func.func @transform_12(%arg0: i32) -> (i32, i32) {
    %c0_i32 = arith.constant 0 : i32
    %c0_i32_0 = arith.constant 0 : i32
    %c0_i32_1 = arith.constant 0 : i32
    return %c0_i32, %c0_i32_0 : i32, i32
  }
  func.func @transform_13(%arg0: i32) -> (i32, i32) {
    %c0_i32 = arith.constant 0 : i32
    %c0_i32_0 = arith.constant 0 : i32
    %c0_i32_1 = arith.constant 0 : i32
    return %c0_i32, %c0_i32_0 : i32, i32
  }
  func.func @transform_14(%arg0: i32) -> (i32, i32) {
    %c0_i32 = arith.constant 0 : i32
    %c0_i32_0 = arith.constant 0 : i32
    %c0_i32_1 = arith.constant 0 : i32
    return %c0_i32, %c0_i32_0 : i32, i32
  }
  func.func @transform_15(%arg0: i32) -> (i32, i32) {
    %c0_i32 = arith.constant 0 : i32
    %c0_i32_0 = arith.constant 0 : i32
    %c0_i32_1 = arith.constant 0 : i32
    return %c0_i32, %c0_i32_0 : i32, i32
  }
  func.func @transform_16(%arg0: i32) -> (i32, i32) {
    %c0_i32 = arith.constant 0 : i32
    %c0_i32_0 = arith.constant 0 : i32
    %c0_i32_1 = arith.constant 0 : i32
    return %c0_i32, %c0_i32_0 : i32, i32
  }
  func.func @transform_17(%arg0: i32) -> (i32, i32, i32) {
    %c0_i32 = arith.constant 0 : i32
    %c0_i32_0 = arith.constant 0 : i32
    %c0_i32_1 = arith.constant 0 : i32
    return %arg0, %c0_i32, %c0_i32_0 : i32, i32, i32
  }
}

module attributes {stable_mosaic.version = 11 : i64} {
  func.func @_conv_post_kernel(%arg0: i32, %arg1: memref<1x8x128xbf16, #tpu.memory_space<vmem>>, %arg2: memref<9x56xf32, #tpu.memory_space<vmem>>, %arg3: memref<9x1xf32, #tpu.memory_space<vmem>>, %arg4: memref<9x56xf32, #tpu.memory_space<vmem>>, %arg5: memref<9x1xf32, #tpu.memory_space<vmem>>, %arg6: memref<1x9x129xf32, #tpu.memory_space<vmem>>, %arg7: memref<1x9x129xf32, #tpu.memory_space<vmem>>, %arg8: memref<8x135xf32, #tpu.memory_space<vmem>>) attributes {dimension_semantics = [#tpu.dimension_semantics<parallel>], iteration_bounds = array<i64: 2>, scalar_prefetch = 0 : i64, scratch_operands = 1 : i64, tpu.core_type = #tpu.core_type<tc>, window_params = [{transform_indices = @transform_0, window_bounds = array<i64: 1, 8, 128>}, {pipeline_mode = #tpu.pipeline_mode<synchronous>, transform_indices = @transform_1, window_bounds = array<i64: 9, 56>}, {pipeline_mode = #tpu.pipeline_mode<synchronous>, transform_indices = @transform_2, window_bounds = array<i64: 9, 1>}, {pipeline_mode = #tpu.pipeline_mode<synchronous>, transform_indices = @transform_3, window_bounds = array<i64: 9, 56>}, {pipeline_mode = #tpu.pipeline_mode<synchronous>, transform_indices = @transform_4, window_bounds = array<i64: 9, 1>}, {transform_indices = @transform_5, window_bounds = array<i64: 1, 9, 129>}, {transform_indices = @transform_6, window_bounds = array<i64: 1, 9, 129>}]} {
    %c0 = arith.constant 0 : index
    %c0_0 = arith.constant 0 : index
    %c0_1 = arith.constant 0 : index
    %0 = vector.load %arg1[%c0, %c0_0, %c0_1] : memref<1x8x128xbf16, #tpu.memory_space<vmem>>, vector<1x8x128xbf16>
    %1 = vector.shape_cast %0 : vector<1x8x128xbf16> to vector<8x128xbf16>
    %2 = arith.extf %1 : vector<8x128xbf16> to vector<8x128xf32>
    %cst = arith.constant 0.000000e+00 : f32
    %3 = vector.broadcast %cst : f32 to vector<8x128xf32>
    %4 = arith.cmpf oge, %2, %3 : vector<8x128xf32>
    %cst_2 = arith.constant 0.00999999977 : f32
    %5 = vector.broadcast %cst_2 : f32 to vector<8x128xf32>
    %6 = arith.mulf %2, %5 : vector<8x128xf32>
    %7 = arith.select %4, %2, %6 : vector<8x128xi1>, vector<8x128xf32>
    %cst_3 = arith.constant 0.000000e+00 : f32
    %8 = vector.broadcast %cst_3 : f32 to vector<8x3xf32>
    %c0_4 = arith.constant 0 : index
    %c0_5 = arith.constant 0 : index
    %9 = vector.load %arg8[%c0_4, %c0_5] : memref<8x135xf32, #tpu.memory_space<vmem>>, vector<8x3xf32>
    tpu.vector_store %arg8[%c0_4, %c0_5], %8 {strides = array<i32>} : memref<8x135xf32, #tpu.memory_space<vmem>>, vector<8x3xf32>,
    %cst_6 = arith.constant 0.000000e+00 : f32
    %10 = vector.broadcast %cst_6 : f32 to vector<8x3xf32>
    %c0_7 = arith.constant 0 : index
    %c132 = arith.constant 132 : index
    %11 = vector.load %arg8[%c0_7, %c132] : memref<8x135xf32, #tpu.memory_space<vmem>>, vector<8x3xf32>
    tpu.vector_store %arg8[%c0_7, %c132], %10 {strides = array<i32>} : memref<8x135xf32, #tpu.memory_space<vmem>>, vector<8x3xf32>,
    %12 = vector.extract_strided_slice %7 {offsets = [0, 1], sizes = [8, 1], strides = [1, 1]} : vector<8x128xf32> to vector<8x1xf32>
    %c0_8 = arith.constant 0 : index
    %c3 = arith.constant 3 : index
    %13 = vector.load %arg8[%c0_8, %c3] : memref<8x135xf32, #tpu.memory_space<vmem>>, vector<8x1xf32>
    tpu.vector_store %arg8[%c0_8, %c3], %12 {strides = array<i32>} : memref<8x135xf32, #tpu.memory_space<vmem>>, vector<8x1xf32>,
    %c0_9 = arith.constant 0 : index
    %c4 = arith.constant 4 : index
    %14 = vector.load %arg8[%c0_9, %c4] : memref<8x135xf32, #tpu.memory_space<vmem>>, vector<8x128xf32>
    tpu.vector_store %arg8[%c0_9, %c4], %7 {strides = array<i32>} : memref<8x135xf32, #tpu.memory_space<vmem>>, vector<8x128xf32>,
    %c0_10 = arith.constant 0 : index
    %c0_11 = arith.constant 0 : index
    %15 = vector.load %arg8[%c0_10, %c0_11] : memref<8x135xf32, #tpu.memory_space<vmem>>, vector<8x129xf32>
    %c0_12 = arith.constant 0 : index
    %c1 = arith.constant 1 : index
    %16 = vector.load %arg8[%c0_12, %c1] : memref<8x135xf32, #tpu.memory_space<vmem>>, vector<8x129xf32>
    %c0_13 = arith.constant 0 : index
    %c2 = arith.constant 2 : index
    %17 = vector.load %arg8[%c0_13, %c2] : memref<8x135xf32, #tpu.memory_space<vmem>>, vector<8x129xf32>
    %c0_14 = arith.constant 0 : index
    %c3_15 = arith.constant 3 : index
    %18 = vector.load %arg8[%c0_14, %c3_15] : memref<8x135xf32, #tpu.memory_space<vmem>>, vector<8x129xf32>
    %c0_16 = arith.constant 0 : index
    %c4_17 = arith.constant 4 : index
    %19 = vector.load %arg8[%c0_16, %c4_17] : memref<8x135xf32, #tpu.memory_space<vmem>>, vector<8x129xf32>
    %c0_18 = arith.constant 0 : index
    %c5 = arith.constant 5 : index
    %20 = vector.load %arg8[%c0_18, %c5] : memref<8x135xf32, #tpu.memory_space<vmem>>, vector<8x129xf32>
    %c0_19 = arith.constant 0 : index
    %c6 = arith.constant 6 : index
    %21 = vector.load %arg8[%c0_19, %c6] : memref<8x135xf32, #tpu.memory_space<vmem>>, vector<8x129xf32>
    %22 = tpu.concatenate %15, %16, %17, %18, %19, %20, %21 in 0 : vector<8x129xf32>, vector<8x129xf32>, vector<8x129xf32>, vector<8x129xf32>, vector<8x129xf32>, vector<8x129xf32>, vector<8x129xf32> -> vector<56x129xf32>
    %c0_20 = arith.constant 0 : index
    %c0_21 = arith.constant 0 : index
    %23 = vector.load %arg2[%c0_20, %c0_21] : memref<9x56xf32, #tpu.memory_space<vmem>>, vector<9x56xf32>
    %cst_22 = arith.constant dense<0.000000e+00> : vector<9x129xf32>
    %24 = tpu.matmul %23, %22, %cst_22 {dimension_numbers = #tpu.dot_dimension_numbers<[1], [0], [0], [1], [0, 0, 1, 1], [], []>} : vector<9x56xf32>, vector<56x129xf32>, vector<9x129xf32> -> vector<9x129xf32>
    %c0_23 = arith.constant 0 : index
    %c0_24 = arith.constant 0 : index
    %25 = vector.load %arg3[%c0_23, %c0_24] : memref<9x1xf32, #tpu.memory_space<vmem>>, vector<9x1xf32>
    %26 = vector.broadcast %25 : vector<9x1xf32> to vector<9x129xf32>
    %27 = arith.addf %24, %26 : vector<9x129xf32>
    %28 = math.exp %27 : vector<9x129xf32>
    %c0_25 = arith.constant 0 : index
    %c0_26 = arith.constant 0 : index
    %c0_27 = arith.constant 0 : index
    %29 = vector.load %arg6[%c0_25, %c0_26, %c0_27] : memref<1x9x129xf32, #tpu.memory_space<vmem>>, vector<1x9x129xf32>
    %30 = vector.shape_cast %29 : vector<1x9x129xf32> to vector<9x129xf32>
    %31 = vector.shape_cast %28 : vector<9x129xf32> to vector<1x9x129xf32>
    tpu.vector_store %arg6[%c0_25, %c0_26, %c0_27], %31 {strides = array<i32>} : memref<1x9x129xf32, #tpu.memory_space<vmem>>, vector<1x9x129xf32>,
    %c0_28 = arith.constant 0 : index
    %c0_29 = arith.constant 0 : index
    %32 = vector.load %arg4[%c0_28, %c0_29] : memref<9x56xf32, #tpu.memory_space<vmem>>, vector<9x56xf32>
    %cst_30 = arith.constant dense<0.000000e+00> : vector<9x129xf32>
    %33 = tpu.matmul %32, %22, %cst_30 {dimension_numbers = #tpu.dot_dimension_numbers<[1], [0], [0], [1], [0, 0, 1, 1], [], []>} : vector<9x56xf32>, vector<56x129xf32>, vector<9x129xf32> -> vector<9x129xf32>
    %c0_31 = arith.constant 0 : index
    %c0_32 = arith.constant 0 : index
    %34 = vector.load %arg5[%c0_31, %c0_32] : memref<9x1xf32, #tpu.memory_space<vmem>>, vector<9x1xf32>
    %35 = vector.broadcast %34 : vector<9x1xf32> to vector<9x129xf32>
    %36 = arith.addf %33, %35 : vector<9x129xf32>
    %37 = math.sin %36 : vector<9x129xf32>
    %c0_33 = arith.constant 0 : index
    %c0_34 = arith.constant 0 : index
    %c0_35 = arith.constant 0 : index
    %38 = vector.load %arg7[%c0_33, %c0_34, %c0_35] : memref<1x9x129xf32, #tpu.memory_space<vmem>>, vector<1x9x129xf32>
    %39 = vector.shape_cast %38 : vector<1x9x129xf32> to vector<9x129xf32>
    %40 = vector.shape_cast %37 : vector<9x129xf32> to vector<1x9x129xf32>
    tpu.vector_store %arg7[%c0_33, %c0_34, %c0_35], %40 {strides = array<i32>} : memref<1x9x129xf32, #tpu.memory_space<vmem>>, vector<1x9x129xf32>,
    return
  }
  func.func @transform_0(%arg0: i32) -> (i32, i32, i32) {
    %c0_i32 = arith.constant 0 : i32
    %c0_i32_0 = arith.constant 0 : i32
    %c0_i32_1 = arith.constant 0 : i32
    return %arg0, %c0_i32, %c0_i32_0 : i32, i32, i32
  }
  func.func @transform_1(%arg0: i32) -> (i32, i32) {
    %c0_i32 = arith.constant 0 : i32
    %c0_i32_0 = arith.constant 0 : i32
    %c0_i32_1 = arith.constant 0 : i32
    return %c0_i32, %c0_i32_0 : i32, i32
  }
  func.func @transform_2(%arg0: i32) -> (i32, i32) {
    %c0_i32 = arith.constant 0 : i32
    %c0_i32_0 = arith.constant 0 : i32
    %c0_i32_1 = arith.constant 0 : i32
    return %c0_i32, %c0_i32_0 : i32, i32
  }
  func.func @transform_3(%arg0: i32) -> (i32, i32) {
    %c0_i32 = arith.constant 0 : i32
    %c0_i32_0 = arith.constant 0 : i32
    %c0_i32_1 = arith.constant 0 : i32
    return %c0_i32, %c0_i32_0 : i32, i32
  }
  func.func @transform_4(%arg0: i32) -> (i32, i32) {
    %c0_i32 = arith.constant 0 : i32
    %c0_i32_0 = arith.constant 0 : i32
    %c0_i32_1 = arith.constant 0 : i32
    return %c0_i32, %c0_i32_0 : i32, i32
  }
  func.func @transform_5(%arg0: i32) -> (i32, i32, i32) {
    %c0_i32 = arith.constant 0 : i32
    %c0_i32_0 = arith.constant 0 : i32
    %c0_i32_1 = arith.constant 0 : i32
    return %arg0, %c0_i32, %c0_i32_0 : i32, i32, i32
  }
  func.func @transform_6(%arg0: i32) -> (i32, i32, i32) {
    %c0_i32 = arith.constant 0 : i32
    %c0_i32_0 = arith.constant 0 : i32
    %c0_i32_1 = arith.constant 0 : i32
    return %arg0, %c0_i32, %c0_i32_0 : i32, i32, i32
  }
}

</mosaic_0001>

<llo_original>
// kernel: istft_forward.6
$region0: #{istft_forward.6}
  #allocation0 [shape = 'u32[]', space=smem, size = 0x4, offset = 0x4, fixed_abs, tag = 'smem constant byte address 0x4 - core index']
  #allocation1 [shape = 'u32[144,128]{1,0:T(1,128)}', space=vmem, size = 0x12000, scoped, tag = 'internal scratch']
  #allocation2 [shape = 'bf16[80,14]{1,0:T(16,128)(2,1)}', space=vmem, size = 0x5000, scoped, tag = 'scratch operand']
  %s0 = inlined_call_operand.vmem [shape: f32[2,80,8], index: 0, kind: input, shape index: {}]
  %s1 = inlined_call_operand.vmem [shape: bf16[32,560], index: 1, kind: input, shape index: {}]
  %s2 = inlined_call_operand.vmem [shape: f32[32,1], index: 2, kind: input, shape index: {}]
  %s3 = inlined_call_operand.vmem [shape: bf16[2,32,8], index: 3, kind: output, shape index: {}]
  %s4 = sld [smem:[#allocation0]]
  $region45: #{istft_forward.6} parent=0
    _
  %s6 = ssub.s32 1, %s4
  %s7 = scalar_select 0, %s6, %s4
  loop: start=0, step=1, limit=4
  $region2: #{istft_forward.6} parent=0 // loop_pre_header
    _
  $region3: #{istft_forward.6} parent=0 // loop_header
    %s9 = sphi 0, %s13
    %p10 = scmp.ge.s32.totalorder %s9, 4
    %s19 = sphi 0, %s21
    %s22 = sphi 0, %s19
    %s23 = sphi 0, %s22
    %s39 = sphi 0, %s23
    %s43 = sphi 0, %s43
    %s45 = sphi 0, %s43
    %s46 = sphi 0, %s45
    %s60 = sphi 0, %s46
    %s64 = sphi 0, %s64
    %s66 = sphi 0, %s64
    %s67 = sphi 0, %s66
    %s81 = sphi 0, %s67
    %s87 = sphi 0, %s89
    %s90 = sphi 0, %s87
    %s91 = sphi 0, %s90
    %s107 = sphi 0, %s91
  $region4: #{istft_forward.6} parent=0 // loop_header_branch
    %12 = sbr.rel (%p10) target = $region8
  $region5: #{istft_forward.6} parent=0 // loop_body
    %s14 = ssub.s32 %s9, 1
    %s15 = ssub.s32 %s9, 2
    %s16 = sadd.s32 %s9, 1
    %s17 = ssub.s32 %s9, %s16
    %p18 = scmp.eq.s32.totalorder %s17, 0
    %s20 = sadd.s32 %s19, 1
    %s21 = scalar_select %p18, %s19, %s20
    %p24 = pneg %p18
    %p25 = scmp.eq.s32.totalorder %s9, 1
    %p26 = por %p24, %p25
    %p27 = scmp.ne.s32.totalorder %s19, %s22
    %p28 = scmp.eq.s32.totalorder %s9, 0
    %p29 = por %p27, %p28
    %p30 = scmp.ne.s32.totalorder %s19, %s22
    %p31 = scmp.eq.s32.totalorder %s14, 1
    %p32 = por %p30, %p31
    %p33 = scmp.ne.s32.totalorder %s22, %s23
    %p34 = scmp.eq.s32.totalorder %s14, 0
    %p35 = por %p33, %p34
    %p36 = scmp.ne.s32.totalorder %s22, %s23
    %p37 = scmp.eq.s32.totalorder %s15, 1
    %p38 = por %p36, %p37
    %p40 = scmp.ne.s32.totalorder %s23, %s39
    %p41 = scmp.eq.s32.totalorder %s15, 0
    %p42 = por %p40, %p41
    %s44 = sadd.s32 %s43, 1
    %p47 = scmp.eq.s32.totalorder %s9, 1
    %p48 = scmp.ne.s32.totalorder %s43, %s45
    %p49 = scmp.eq.s32.totalorder %s9, 0
    %p50 = por %p48, %p49
    %p51 = scmp.ne.s32.totalorder %s43, %s45
    %p52 = scmp.eq.s32.totalorder %s14, 1
    %p53 = por %p51, %p52
    %p54 = scmp.ne.s32.totalorder %s45, %s46
    %p55 = scmp.eq.s32.totalorder %s14, 0
    %p56 = por %p54, %p55
    %p57 = scmp.ne.s32.totalorder %s45, %s46
    %p58 = scmp.eq.s32.totalorder %s15, 1
    %p59 = por %p57, %p58
    %p61 = scmp.ne.s32.totalorder %s46, %s60
    %p62 = scmp.eq.s32.totalorder %s15, 0
    %p63 = por %p61, %p62
    %s65 = sadd.s32 %s64, 1
    %p68 = scmp.eq.s32.totalorder %s9, 1
    %p69 = scmp.ne.s32.totalorder %s64, %s66
    %p70 = scmp.eq.s32.totalorder %s9, 0
    %p71 = por %p69, %p70
    %p72 = scmp.ne.s32.totalorder %s64, %s66
    %p73 = scmp.eq.s32.totalorder %s14, 1
    %p74 = por %p72, %p73
    %p75 = scmp.ne.s32.totalorder %s66, %s67
    %p76 = scmp.eq.s32.totalorder %s14, 0
    %p77 = por %p75, %p76
    %p78 = scmp.ne.s32.totalorder %s66, %s67
    %p79 = scmp.eq.s32.totalorder %s15, 1
    %p80 = por %p78, %p79
    %p82 = scmp.ne.s32.totalorder %s67, %s81
    %p83 = scmp.eq.s32.totalorder %s15, 0
    %p84 = por %p82, %p83
    %s85 = ssub.s32 %s9, %s16
    %p86 = scmp.eq.s32.totalorder %s85, 0
    %s88 = sadd.s32 %s87, 1
    %s89 = scalar_select %p86, %s87, %s88
    %p92 = pneg %p86
    %p93 = scmp.eq.s32.totalorder %s9, 1
    %p94 = por %p92, %p93
    %p95 = scmp.ne.s32.totalorder %s87, %s90
    %p96 = scmp.eq.s32.totalorder %s9, 0
    %p97 = por %p95, %p96
    %p98 = scmp.ne.s32.totalorder %s87, %s90
    %p99 = scmp.eq.s32.totalorder %s14, 1
    %p100 = por %p98, %p99
    %p101 = scmp.ne.s32.totalorder %s90, %s91
    %p102 = scmp.eq.s32.totalorder %s14, 0
    %p103 = por %p101, %p102
    %p104 = scmp.ne.s32.totalorder %s90, %s91
    %p105 = scmp.eq.s32.totalorder %s15, 1
    %p106 = por %p104, %p105
    %p108 = scmp.ne.s32.totalorder %s91, %s107
    %p109 = scmp.eq.s32.totalorder %s15, 0
    %p110 = por %p108, %p109
    %p111 = scmp.le.s32.totalorder 1, %s9
    %p112 = scmp.lt.s32.totalorder %s9, 3
    %p113 = pnand %p111, %p112
    %p114 = pneg %p113
    // Predicated region
    $region9: #{istft_forward.6} parent=5 // pred_check
      _
    $region10: #{istft_forward.6} parent=5 // pred_check_branch
      %116 = sbr.rel (%p113) target = $region12
    $region11: #{istft_forward.6} parent=5 // pred_region
      %s117 = ssub.s32 %s9, 1
      // Predicated region
      $region13: #{istft_forward.6} parent=11 // pred_check
        %p118 = pneg %p56
      $region14: #{istft_forward.6} parent=11 // pred_check_branch
        %120 = sbr.rel (%p118) target = $region16
      $region15: #{istft_forward.6} parent=11 // pred_region
        _
      $region16: #{istft_forward.6} parent=11 // pred_fallthru
        _
      // Predicated region
      $region17: #{istft_forward.6} parent=11 // pred_check
        %p121 = pneg %p77
      $region18: #{istft_forward.6} parent=11 // pred_check_branch
        %123 = sbr.rel (%p121) target = $region20
      $region19: #{istft_forward.6} parent=11 // pred_region
        _
      $region20: #{istft_forward.6} parent=11 // pred_fallthru
        _
    $region12: #{istft_forward.6} parent=5 // pred_fallthru
      _
    %p124 = scmp.lt.s32.totalorder %s9, 2
    // Predicated region
    $region21: #{istft_forward.6} parent=5 // pred_check
      %p125 = pneg %p124
    $region22: #{istft_forward.6} parent=5 // pred_check_branch
      %127 = sbr.rel (%p125) target = $region24
    $region23: #{istft_forward.6} parent=5 // pred_region
      // Predicated region
      $region25: #{istft_forward.6} parent=23 // pred_check
        %p128 = pneg %p29
      $region26: #{istft_forward.6} parent=23 // pred_check_branch
        %130 = sbr.rel (%p128) target = $region28
      $region27: #{istft_forward.6} parent=23 // pred_region
        %p131 = scmp.lt.s32.totalorder %s9, 1
        %s132 = scalar_select %p131, %s9, 1
        %s133 = smul.addr %s132, 10
        %s134 = smul.addr %s133, 8
        %s135 = scalar_lea.vmem %s0, %s134
      $region28: #{istft_forward.6} parent=23 // pred_fallthru
        _
    $region24: #{istft_forward.6} parent=5 // pred_fallthru
      _
    %p136 = scmp.le.s32.totalorder 1, %s9
    %p137 = scmp.lt.s32.totalorder %s9, 3
    %p138 = pnand %p136, %p137
    %p139 = pneg %p138
    // Predicated region
    $region29: #{istft_forward.6} parent=5 // pred_check
      _
    $region30: #{istft_forward.6} parent=5 // pred_check_branch
      %141 = sbr.rel (%p138) target = $region32
    $region31: #{istft_forward.6} parent=5 // pred_region
      %s142 = ssub.s32 %s9, 1
      %p143 = scmp.lt.s32.totalorder %s14, 1
      %s144 = scalar_select %p143, %s14, 1
      %s145 = smul.addr %s144, 10
      %s146 = smul.addr %s145, 8
      %s147 = scalar_lea.vmem %s0, %s146
      %p148 = pneg %p35
      %p149 = pneg %p32
      %p150 = pneg %p56
      %p151 = pneg %p53
      %p152 = pneg %p77
      %p153 = pneg %p74
      %p154 = pneg %p103
      %p155 = pneg %p100
      %p156 = scmp.lt.s32.totalorder %s14, 1
      %s157 = scalar_select %p156, %s14, 1
      %s158 = smul.addr %s157, 4
      %s159 = smul.addr %s158, 4
      %s160 = scalar_lea.vmem %s3, %s159
      %p161 = scmp.lt.s32.totalorder %s14, 1
      %s162 = scalar_select %p161, %s14, 1
      %s163 = smul.addr %s162, 10
      %s164 = smul.addr %s163, 8
      %s165 = scalar_lea.vmem %s0, %s164
      %p166 = scmp.lt.s32.totalorder %s14, 1
      %s167 = scalar_select %p166, %s14, 1
      %s168 = smul.addr %s167, 4
      %s169 = smul.addr %s168, 4
      %s170 = scalar_lea.vmem %s3, %s169
      %vm172 = vcmask 23552
      %173 = vst.msk [vmem:[#allocation2] sm:$0xff] %vm172, 0
      %174 = vst.msk [vmem:[#allocation2 + $0x8] sm:$0xff] %vm172, 0
      %175 = vst.msk [vmem:[#allocation2 + $0x10] sm:$0xff] %vm172, 0
      %176 = vst.msk [vmem:[#allocation2 + $0x18] sm:$0xff] %vm172, 0
      %177 = vst.msk [vmem:[#allocation2 + $0x20] sm:$0xff] %vm172, 0
      %vm178 = vcmask 113752
      %179 = vst.msk [vmem:[#allocation2] sm:$0xff] %vm178, 0
      %180 = vst.msk [vmem:[#allocation2 + $0x8] sm:$0xff] %vm178, 0
      %181 = vst.msk [vmem:[#allocation2 + $0x10] sm:$0xff] %vm178, 0
      %182 = vst.msk [vmem:[#allocation2 + $0x18] sm:$0xff] %vm178, 0
      %183 = vst.msk [vmem:[#allocation2 + $0x20] sm:$0xff] %vm178, 0
      %v184 = vld [vmem:[%s165] sm:$0xff]
      %v185 = vld [vmem:[%s165 + $0x8] sm:$0xff]
      %v186 = vld [vmem:[%s165 + $0x10] sm:$0xff]
      %v187 = vld [vmem:[%s165 + $0x18] sm:$0xff]
      %v188 = vld [vmem:[%s165 + $0x20] sm:$0xff]
      %v189 = vld [vmem:[%s165 + $0x28] sm:$0xff]
      %v190 = vld [vmem:[%s165 + $0x30] sm:$0xff]
      %v191 = vld [vmem:[%s165 + $0x38] sm:$0xff]
      %v192 = vld [vmem:[%s165 + $0x40] sm:$0xff]
      %v193 = vld [vmem:[%s165 + $0x48] sm:$0xff]
      %v194 = vpack.c.bf16 %v185, %v184
      %v195 = vpack.c.bf16 %v187, %v186
      %v196 = vpack.c.bf16 %v189, %v188
      %v197 = vpack.c.bf16 %v191, %v190
      %v198 = vpack.c.bf16 %v193, %v192
      %204 = vrot.lane.b32.xlu0 %v194, 3
      %v205 = vpop.permute.xlu0 %204
      %206 = vrot.lane.b32.xlu0 %v195, 3
      %v207 = vpop.permute.xlu0 %206
      %208 = vrot.lane.b32.xlu0 %v196, 3
      %v209 = vpop.permute.xlu0 %208
      %210 = vrot.lane.b32.xlu0 %v197, 3
      %v211 = vpop.permute.xlu0 %210
      %212 = vrot.lane.b32.xlu0 %v198, 3
      %v213 = vpop.permute.xlu0 %212
      %vm219 = vcmask 89112
      %220 = vst.msk [vmem:[#allocation2] sm:$0xff] %vm219, %v205
      %221 = vst.msk [vmem:[#allocation2 + $0x8] sm:$0xff] %vm219, %v207
      %222 = vst.msk [vmem:[#allocation2 + $0x10] sm:$0xff] %vm219, %v209
      %223 = vst.msk [vmem:[#allocation2 + $0x18] sm:$0xff] %vm219, %v211
      %224 = vst.msk [vmem:[#allocation2 + $0x20] sm:$0xff] %vm219, %v213
      %v225 = vld [vmem:[%s1] sm:$0xff]
      %v226 = vld [vmem:[%s1 + $0x8] sm:$0xff]
      %v227 = vld [vmem:[%s1 + $0x10] sm:$0xf]
      %v228 = vld [vmem:[%s1 + $0x14] sm:$0xff]
      %v229 = vld [vmem:[%s1 + $0x1c] sm:$0xff]
      %v230 = vld [vmem:[%s1 + $0x24] sm:$0xf]
      %v231 = vld [vmem:[%s1 + $0x28] sm:$0xff]
      %v232 = vld [vmem:[%s1 + $0x30] sm:$0xff]
      %v233 = vld [vmem:[%s1 + $0x38] sm:$0xf]
      %v234 = vld [vmem:[%s1 + $0x3c] sm:$0xff]
      %v235 = vld [vmem:[%s1 + $0x44] sm:$0xff]
      %v236 = vld [vmem:[%s1 + $0x4c] sm:$0xf]
      %v237 = vld [vmem:[%s2] sm:$0xff]
      %v238 = vld [vmem:[%s2 + $0x8] sm:$0xff]
      %v239 = vld [vmem:[%s2 + $0x10] sm:$0xff]
      %v240 = vld [vmem:[%s2 + $0x18] sm:$0xff]
      %v241 = vld [vmem:[#allocation2] sm:$0xff]
      %v242 = vld [vmem:[#allocation2 + $0x8] sm:$0xff]
      %v243 = vld [vmem:[#allocation2 + $0x10] sm:$0xff]
      %v244 = vld [vmem:[#allocation2 + $0x18] sm:$0xff]
      %v245 = vld [vmem:[#allocation2 + $0x20] sm:$0xff]
      %251 = vrot.lane.b32.xlu0 %v241, 127
      %v252 = vpop.permute.xlu0 %251
      %253 = vrot.lane.b32.xlu0 %v242, 127
      %v254 = vpop.permute.xlu0 %253
      %255 = vrot.lane.b32.xlu0 %v243, 127
      %v256 = vpop.permute.xlu0 %255
      %257 = vrot.lane.b32.xlu0 %v244, 127
      %v258 = vpop.permute.xlu0 %257
      %259 = vrot.lane.b32.xlu0 %v245, 127
      %v260 = vpop.permute.xlu0 %259
      %266 = vrot.lane.b32.xlu0 %v241, 126
      %v267 = vpop.permute.xlu0 %266
      %268 = vrot.lane.b32.xlu0 %v242, 126
      %v269 = vpop.permute.xlu0 %268
      %270 = vrot.lane.b32.xlu0 %v243, 126
      %v271 = vpop.permute.xlu0 %270
      %272 = vrot.lane.b32.xlu0 %v244, 126
      %v273 = vpop.permute.xlu0 %272
      %274 = vrot.lane.b32.xlu0 %v245, 126
      %v275 = vpop.permute.xlu0 %274
      %281 = vrot.lane.b32.xlu0 %v241, 125
      %v282 = vpop.permute.xlu0 %281
      %283 = vrot.lane.b32.xlu0 %v242, 125
      %v284 = vpop.permute.xlu0 %283
      %285 = vrot.lane.b32.xlu0 %v243, 125
      %v286 = vpop.permute.xlu0 %285
      %287 = vrot.lane.b32.xlu0 %v244, 125
      %v288 = vpop.permute.xlu0 %287
      %289 = vrot.lane.b32.xlu0 %v245, 125
      %v290 = vpop.permute.xlu0 %289
      %296 = vrot.lane.b32.xlu0 %v241, 124
      %v297 = vpop.permute.xlu0 %296
      %298 = vrot.lane.b32.xlu0 %v242, 124
      %v299 = vpop.permute.xlu0 %298
      %300 = vrot.lane.b32.xlu0 %v243, 124
      %v301 = vpop.permute.xlu0 %300
      %302 = vrot.lane.b32.xlu0 %v244, 124
      %v303 = vpop.permute.xlu0 %302
      %304 = vrot.lane.b32.xlu0 %v245, 124
      %v305 = vpop.permute.xlu0 %304
      %311 = vrot.lane.b32.xlu0 %v241, 123
      %v312 = vpop.permute.xlu0 %311
      %313 = vrot.lane.b32.xlu0 %v242, 123
      %v314 = vpop.permute.xlu0 %313
      %315 = vrot.lane.b32.xlu0 %v243, 123
      %v316 = vpop.permute.xlu0 %315
      %317 = vrot.lane.b32.xlu0 %v244, 123
      %v318 = vpop.permute.xlu0 %317
      %319 = vrot.lane.b32.xlu0 %v245, 123
      %v320 = vpop.permute.xlu0 %319
      %326 = vrot.lane.b32.xlu0 %v241, 122
      %v327 = vpop.permute.xlu0 %326
      %328 = vrot.lane.b32.xlu0 %v242, 122
      %v329 = vpop.permute.xlu0 %328
      %330 = vrot.lane.b32.xlu0 %v243, 122
      %v331 = vpop.permute.xlu0 %330
      %332 = vrot.lane.b32.xlu0 %v244, 122
      %v333 = vpop.permute.xlu0 %332
      %334 = vrot.lane.b32.xlu0 %v245, 122
      %v335 = vpop.permute.xlu0 %334
      %342 = vset.pattern.permute.xlu0 0
      %343 = vperm.xlu0 %342, %v237
      %v344 = vpop.permute.xlu0 %343
      %347 = vset.pattern.permute.xlu0 0
      %348 = vperm.xlu0 %347, %v238
      %v349 = vpop.permute.xlu0 %348
      %352 = vset.pattern.permute.xlu0 0
      %353 = vperm.xlu0 %352, %v239
      %v354 = vpop.permute.xlu0 %353
      %357 = vset.pattern.permute.xlu0 0
      %358 = vperm.xlu0 %357, %v240
      %v359 = vpop.permute.xlu0 %358
      %v373 = vunpack.c.l.b16 %v225
      %v374 = vunpack.c.h.b16 %v225
      %v375 = vunpack.c.l.b16 %v226
      %v376 = vunpack.c.h.b16 %v226
      %v377 = vunpack.c.l.b16 %v227
      %v378 = vunpack.c.l.b16 %v228
      %v379 = vunpack.c.h.b16 %v228
      %v380 = vunpack.c.l.b16 %v229
      %v381 = vunpack.c.h.b16 %v229
      %v382 = vunpack.c.l.b16 %v230
      %v383 = vunpack.c.l.b16 %v231
      %v384 = vunpack.c.h.b16 %v231
      %v385 = vunpack.c.l.b16 %v232
      %v386 = vunpack.c.h.b16 %v232
      %v387 = vunpack.c.l.b16 %v233
      %v388 = vunpack.c.l.b16 %v234
      %v389 = vunpack.c.h.b16 %v234
      %v390 = vunpack.c.l.b16 %v235
      %v391 = vunpack.c.h.b16 %v235
      %v392 = vunpack.c.l.b16 %v236
      %v393 = vpack.c.b16 %v378, %v373
      %v394 = vpack.c.b16 %v379, %v374
      %v395 = vpack.c.b16 %v380, %v375
      %v396 = vpack.c.b16 %v381, %v376
      %v397 = vpack.c.b16 %v382, %v377
      %v398 = vpack.c.b16 %v388, %v383
      %v399 = vpack.c.b16 %v389, %v384
      %v400 = vpack.c.b16 %v390, %v385
      %v401 = vpack.c.b16 %v391, %v386
      %v402 = vpack.c.b16 %v392, %v387
      %vm411 = vcmask 392192
      %v413 = vsel %vm411, %v397, 0
      %v416 = vsel %vm411, %v402, 0
      %418 = vmatprep.subr.bf16.mxu0 0
      %419 = vmatpush1.bf16.msra.mxu0 %v241
      %420 = vmatprep.subr.bf16.mxu0 0
      %421 = vmatpush1.bf16.msra.mxu0 %v242
      %422 = vmatprep.subr.bf16.mxu0 0
      %423 = vmatpush1.bf16.msra.mxu0 %v243
      %424 = vmatprep.subr.bf16.mxu0 0
      %425 = vmatpush1.bf16.msra.mxu0 %v244
      %426 = vmatprep.subr.bf16.mxu0 0
      %427 = vmatpush1.bf16.msra.mxu0 %v245
      %428 = vmatprep.subr.bf16.mxu0 0
      %429 = vmatpush1.bf16.msra.mxu0 %v252
      %430 = vmatprep.subr.bf16.mxu0 0
      %431 = vmatpush1.bf16.msra.mxu0 %v254
      %432 = vmatprep.subr.bf16.mxu0 0
      %433 = vmatpush1.bf16.msra.mxu0 %v256
      %434 = vmatprep.subr.bf16.mxu0 0
      %435 = vmatpush1.bf16.msra.mxu0 %v258
      %436 = vmatprep.subr.bf16.mxu0 0
      %437 = vmatpush1.bf16.msra.mxu0 %v260
      %438 = vmatprep.subr.bf16.mxu0 0
      %439 = vmatpush1.bf16.msra.mxu0 %v267
      %440 = vmatprep.subr.bf16.mxu0 0
      %441 = vmatpush1.bf16.msra.mxu0 %v269
      %442 = vmatprep.subr.bf16.mxu0 0
      %443 = vmatpush1.bf16.msra.mxu0 %v271
      %444 = vmatprep.subr.bf16.mxu0 0
      %445 = vmatpush1.bf16.msra.mxu0 %v273
      %446 = vmatprep.subr.bf16.mxu0 0
      %447 = vmatpush1.bf16.msra.mxu0 %v275
      %448 = vmatprep.subr.bf16.mxu0 0
      %449 = vmatpush1.bf16.msra.mxu0 %v282
      %450 = vmatprep.mubr.bf16.mxu0 %v394
      %451 = vmatmul.mubr.bf16.gmra.mrb[0].mxu0 %v393
      %v452 = vpop.f32.mrb[0].mxu0
      %v453 = vadd.f32 %v344, %v452
      %v454 = vpop.f32.mrb[0].mxu0
      %v455 = vpop.f32.mrb[0].mxu0
      %v456 = vadd.f32 %v349, %v455
      %v457 = vpop.f32.mrb[0].mxu0
      %458 = vmatprep.mubr.bf16.mxu0 %v399
      %459 = vmatmul.mubr.bf16.gmra.mrb[0].mxu0 %v398
      %v460 = vpop.f32.mrb[0].mxu0
      %v461 = vadd.f32 %v354, %v460
      %v462 = vpop.f32.mrb[0].mxu0
      %v463 = vpop.f32.mrb[0].mxu0
      %v464 = vadd.f32 %v359, %v463
      %v465 = vpop.f32.mrb[0].mxu0
      %466 = vdwg.mxu0
      %467 = vmatprep.subr.bf16.mxu0 0
      %468 = vmatpush1.bf16.msra.mxu0 %v284
      %469 = vmatprep.subr.bf16.mxu0 0
      %470 = vmatpush1.bf16.msra.mxu0 %v286
      %471 = vmatprep.subr.bf16.mxu0 0
      %472 = vmatpush1.bf16.msra.mxu0 %v288
      %473 = vmatprep.subr.bf16.mxu0 0
      %474 = vmatpush1.bf16.msra.mxu0 %v290
      %475 = vmatprep.subr.bf16.mxu0 0
      %476 = vmatpush1.bf16.msra.mxu0 %v297
      %477 = vmatprep.subr.bf16.mxu0 0
      %478 = vmatpush1.bf16.msra.mxu0 %v299
      %479 = vmatprep.subr.bf16.mxu0 0
      %480 = vmatpush1.bf16.msra.mxu0 %v301
      %481 = vmatprep.subr.bf16.mxu0 0
      %482 = vmatpush1.bf16.msra.mxu0 %v303
      %483 = vmatprep.subr.bf16.mxu0 0
      %484 = vmatpush1.bf16.msra.mxu0 %v305
      %485 = vmatprep.subr.bf16.mxu0 0
      %486 = vmatpush1.bf16.msra.mxu0 %v312
      %487 = vmatprep.subr.bf16.mxu0 0
      %488 = vmatpush1.bf16.msra.mxu0 %v314
      %489 = vmatprep.subr.bf16.mxu0 0
      %490 = vmatpush1.bf16.msra.mxu0 %v316
      %491 = vmatprep.subr.bf16.mxu0 0
      %492 = vmatpush1.bf16.msra.mxu0 %v318
      %493 = vmatprep.subr.bf16.mxu0 0
      %494 = vmatpush1.bf16.msra.mxu0 %v320
      %495 = vmatprep.subr.bf16.mxu0 0
      %496 = vmatpush1.bf16.msra.mxu0 %v327
      %497 = vmatprep.subr.bf16.mxu0 0
      %498 = vmatpush1.bf16.msra.mxu0 %v329
      %499 = vmatprep.mubr.bf16.mxu0 %v396
      %500 = vmatmul.mubr.bf16.gmra.mrb[0].mxu0 %v395
      %v501 = vpop.f32.mrb[0].mxu0
      %v502 = vadd.f32 %v453, %v501
      %v503 = vpop.f32.mrb[0].mxu0
      %v504 = vpop.f32.mrb[0].mxu0
      %v505 = vadd.f32 %v456, %v504
      %v506 = vpop.f32.mrb[0].mxu0
      %507 = vmatprep.mubr.bf16.mxu0 %v401
      %508 = vmatmul.mubr.bf16.gmra.mrb[0].mxu0 %v400
      %v509 = vpop.f32.mrb[0].mxu0
      %v510 = vadd.f32 %v461, %v509
      %v511 = vpop.f32.mrb[0].mxu0
      %v512 = vpop.f32.mrb[0].mxu0
      %v513 = vadd.f32 %v464, %v512
      %v514 = vpop.f32.mrb[0].mxu0
      %515 = vdwg.mxu0
      %516 = vmatprep.subr.bf16.mxu0 0
      %517 = vmatpush1.bf16.msra.mxu0 %v331
      %518 = vmatprep.subr.bf16.mxu0 0
      %519 = vmatpush1.bf16.msra.mxu0 %v333
      %520 = vmatprep.subr.bf16.mxu0 0
      %521 = vmatpush1.bf16.msra.mxu0 %v335
      %522 = vmatprep.subr.bf16.mxu0 0
      %523 = vmatpush1.bf16.msra.mxu0 0
      %524 = vmatprep.subr.bf16.mxu0 0
      %525 = vmatpush1.bf16.msra.mxu0 0
      %526 = vmatprep.subr.bf16.mxu0 0
      %527 = vmatpush1.bf16.msra.mxu0 0
      %528 = vmatprep.subr.bf16.mxu0 0
      %529 = vmatpush1.bf16.msra.mxu0 0
      %530 = vmatprep.subr.bf16.mxu0 0
      %531 = vmatpush1.bf16.msra.mxu0 0
      %532 = vmatprep.subr.bf16.mxu0 0
      %533 = vmatpush1.bf16.msra.mxu0 0
      %534 = vmatprep.subr.bf16.mxu0 0
      %535 = vmatpush1.bf16.msra.mxu0 0
      %536 = vmatprep.subr.bf16.mxu0 0
      %537 = vmatpush1.bf16.msra.mxu0 0
      %538 = vmatprep.subr.bf16.mxu0 0
      %539 = vmatpush1.bf16.msra.mxu0 0
      %540 = vmatprep.subr.bf16.mxu0 0
      %541 = vmatpush1.bf16.msra.mxu0 0
      %542 = vmatprep.subr.bf16.mxu0 0
      %543 = vmatpush1.bf16.msra.mxu0 0
      %544 = vmatprep.subr.bf16.mxu0 0
      %545 = vmatpush1.bf16.msra.mxu0 0
      %546 = vmatprep.subr.bf16.mxu0 0
      %547 = vmatpush1.bf16.msra.mxu0 0
      %548 = vmatprep.mubr.bf16.mxu0 0
      %549 = vmatmul.mubr.bf16.gmra.mrb[0].mxu0 %v413
      %v550 = vpop.f32.mrb[0].mxu0
      %v551 = vadd.f32 %v502, %v550
      %v552 = vpop.f32.mrb[0].mxu0
      %v553 = vpop.f32.mrb[0].mxu0
      %v554 = vadd.f32 %v505, %v553
      %v555 = vpop.f32.mrb[0].mxu0
      %556 = vmatprep.mubr.bf16.mxu0 0
      %557 = vmatmul.mubr.bf16.gmra.mrb[0].mxu0 %v416
      %v558 = vpop.f32.mrb[0].mxu0
      %v559 = vadd.f32 %v510, %v558
      %v560 = vpop.f32.mrb[0].mxu0
      %v561 = vpop.f32.mrb[0].mxu0
      %v562 = vadd.f32 %v513, %v561
      %v563 = vpop.f32.mrb[0].mxu0
      %564 = vdwg.mxu0
      %v565 = vpack.c.bf16 %v554, %v551
      %v566 = vpack.c.bf16 %v562, %v559
      %v569 = vunpack.c.l.b16 %v565
      %v570 = vunpack.c.h.b16 %v565
      %v571 = vunpack.c.l.b16 %v566
      %v572 = vunpack.c.h.b16 %v566
      %v573 = vpack.c.b16 %v569, %v569
      %v574 = vpack.c.b16 %v570, %v570
      %v575 = vpack.c.b16 %v571, %v571
      %v576 = vpack.c.b16 %v572, %v572
      %vm581 = vcmask 60416
      %582 = vst.msk [vmem:[%s170] sm:$0xf] %vm581, %v573
      %583 = vst.msk [vmem:[%s170 + $0x4] sm:$0xf] %vm581, %v574
      %584 = vst.msk [vmem:[%s170 + $0x8] sm:$0xf] %vm581, %v575
      %585 = vst.msk [vmem:[%s170 + $0xc] sm:$0xf] %vm581, %v576
      %p586 = scmp.lt.s32.totalorder %s14, 1
      %s587 = scalar_select %p586, %s14, 1
      %s588 = smul.addr %s587, 4
      %s589 = smul.addr %s588, 4
      %s590 = scalar_lea.vmem %s3, %s589
      // Predicated region
      $region33: #{istft_forward.6} parent=31 // pred_check
        %p591 = pneg %p100
      $region34: #{istft_forward.6} parent=31 // pred_check_branch
        %593 = sbr.rel (%p591) target = $region36
      $region35: #{istft_forward.6} parent=31 // pred_region
        _
      $region36: #{istft_forward.6} parent=31 // pred_fallthru
        _
    $region32: #{istft_forward.6} parent=5 // pred_fallthru
      _
    %p594 = scmp.le.s32.totalorder 2, %s9
    // Predicated region
    $region37: #{istft_forward.6} parent=5 // pred_check
      %p595 = pneg %p594
    $region38: #{istft_forward.6} parent=5 // pred_check_branch
      %597 = sbr.rel (%p595) target = $region40
    $region39: #{istft_forward.6} parent=5 // pred_region
      %s598 = ssub.s32 %s9, 2
      // Predicated region
      $region41: #{istft_forward.6} parent=39 // pred_check
        %p599 = pneg %p106
      $region42: #{istft_forward.6} parent=39 // pred_check_branch
        %601 = sbr.rel (%p599) target = $region44
      $region43: #{istft_forward.6} parent=39 // pred_region
        %p602 = scmp.lt.s32.totalorder %s15, 1
        %s603 = scalar_select %p602, %s15, 1
        %s604 = smul.addr %s603, 4
        %s605 = smul.addr %s604, 4
        %s606 = scalar_lea.vmem %s3, %s605
      $region44: #{istft_forward.6} parent=39 // pred_fallthru
        _
    $region40: #{istft_forward.6} parent=5 // pred_fallthru
      _
  $region6: #{istft_forward.6} parent=0 // loop_footer
    %s13 = sadd.s32 1, %s9
  $region7: #{istft_forward.6} parent=0 // loop_footer_branch
    %8 = sbr.rel target = $region3
  $region8: #{istft_forward.6} parent=0 // loop_exit
    _

// kernel: istft_forward.7
$region0: #{istft_forward.7}
  #allocation0 [shape = 'u32[]', space=smem, size = 0x4, offset = 0x4, fixed_abs, tag = 'smem constant byte address 0x4 - core index']
  #allocation1 [shape = 'u32[144,128]{1,0:T(1,128)}', space=vmem, size = 0x12000, scoped, tag = 'internal scratch']
  #allocation2 [shape = 'bf16[32,10]{1,0:T(16,128)(2,1)}', space=vmem, size = 0x2000, scoped, tag = 'scratch operand']
  %s0 = inlined_call_operand.vmem [shape: bf16[2,32,8], index: 0, kind: input, shape index: {}]
  %s1 = inlined_call_operand.vmem [shape: bf16[4,16,64], index: 1, kind: input, shape index: {}]
  %s2 = inlined_call_operand.vmem [shape: f32[16,1], index: 2, kind: input, shape index: {}]
  %s3 = inlined_call_operand.vmem [shape: bf16[2,4,16,8], index: 3, kind: output, shape index: {}]
  %s4 = sld [smem:[#allocation0]]
  $region45: #{istft_forward.7} parent=0
    _
  %s6 = ssub.s32 1, %s4
  %s7 = scalar_select 0, %s6, %s4
  loop: start=0, step=1, limit=4
  $region2: #{istft_forward.7} parent=0 // loop_pre_header
    _
  $region3: #{istft_forward.7} parent=0 // loop_header
    %s9 = sphi 0, %s13
    %p10 = scmp.ge.s32.totalorder %s9, 4
    %s19 = sphi 0, %s21
    %s22 = sphi 0, %s19
    %s23 = sphi 0, %s22
    %s39 = sphi 0, %s23
    %s43 = sphi 0, %s43
    %s45 = sphi 0, %s43
    %s46 = sphi 0, %s45
    %s60 = sphi 0, %s46
    %s64 = sphi 0, %s64
    %s66 = sphi 0, %s64
    %s67 = sphi 0, %s66
    %s81 = sphi 0, %s67
    %s87 = sphi 0, %s89
    %s90 = sphi 0, %s87
    %s91 = sphi 0, %s90
    %s107 = sphi 0, %s91
  $region4: #{istft_forward.7} parent=0 // loop_header_branch
    %12 = sbr.rel (%p10) target = $region8
  $region5: #{istft_forward.7} parent=0 // loop_body
    %s14 = ssub.s32 %s9, 1
    %s15 = ssub.s32 %s9, 2
    %s16 = sadd.s32 %s9, 1
    %s17 = ssub.s32 %s9, %s16
    %p18 = scmp.eq.s32.totalorder %s17, 0
    %s20 = sadd.s32 %s19, 1
    %s21 = scalar_select %p18, %s19, %s20
    %p24 = pneg %p18
    %p25 = scmp.eq.s32.totalorder %s9, 1
    %p26 = por %p24, %p25
    %p27 = scmp.ne.s32.totalorder %s19, %s22
    %p28 = scmp.eq.s32.totalorder %s9, 0
    %p29 = por %p27, %p28
    %p30 = scmp.ne.s32.totalorder %s19, %s22
    %p31 = scmp.eq.s32.totalorder %s14, 1
    %p32 = por %p30, %p31
    %p33 = scmp.ne.s32.totalorder %s22, %s23
    %p34 = scmp.eq.s32.totalorder %s14, 0
    %p35 = por %p33, %p34
    %p36 = scmp.ne.s32.totalorder %s22, %s23
    %p37 = scmp.eq.s32.totalorder %s15, 1
    %p38 = por %p36, %p37
    %p40 = scmp.ne.s32.totalorder %s23, %s39
    %p41 = scmp.eq.s32.totalorder %s15, 0
    %p42 = por %p40, %p41
    %s44 = sadd.s32 %s43, 1
    %p47 = scmp.eq.s32.totalorder %s9, 1
    %p48 = scmp.ne.s32.totalorder %s43, %s45
    %p49 = scmp.eq.s32.totalorder %s9, 0
    %p50 = por %p48, %p49
    %p51 = scmp.ne.s32.totalorder %s43, %s45
    %p52 = scmp.eq.s32.totalorder %s14, 1
    %p53 = por %p51, %p52
    %p54 = scmp.ne.s32.totalorder %s45, %s46
    %p55 = scmp.eq.s32.totalorder %s14, 0
    %p56 = por %p54, %p55
    %p57 = scmp.ne.s32.totalorder %s45, %s46
    %p58 = scmp.eq.s32.totalorder %s15, 1
    %p59 = por %p57, %p58
    %p61 = scmp.ne.s32.totalorder %s46, %s60
    %p62 = scmp.eq.s32.totalorder %s15, 0
    %p63 = por %p61, %p62
    %s65 = sadd.s32 %s64, 1
    %p68 = scmp.eq.s32.totalorder %s9, 1
    %p69 = scmp.ne.s32.totalorder %s64, %s66
    %p70 = scmp.eq.s32.totalorder %s9, 0
    %p71 = por %p69, %p70
    %p72 = scmp.ne.s32.totalorder %s64, %s66
    %p73 = scmp.eq.s32.totalorder %s14, 1
    %p74 = por %p72, %p73
    %p75 = scmp.ne.s32.totalorder %s66, %s67
    %p76 = scmp.eq.s32.totalorder %s14, 0
    %p77 = por %p75, %p76
    %p78 = scmp.ne.s32.totalorder %s66, %s67
    %p79 = scmp.eq.s32.totalorder %s15, 1
    %p80 = por %p78, %p79
    %p82 = scmp.ne.s32.totalorder %s67, %s81
    %p83 = scmp.eq.s32.totalorder %s15, 0
    %p84 = por %p82, %p83
    %s85 = ssub.s32 %s9, %s16
    %p86 = scmp.eq.s32.totalorder %s85, 0
    %s88 = sadd.s32 %s87, 1
    %s89 = scalar_select %p86, %s87, %s88
    %p92 = pneg %p86
    %p93 = scmp.eq.s32.totalorder %s9, 1
    %p94 = por %p92, %p93
    %p95 = scmp.ne.s32.totalorder %s87, %s90
    %p96 = scmp.eq.s32.totalorder %s9, 0
    %p97 = por %p95, %p96
    %p98 = scmp.ne.s32.totalorder %s87, %s90
    %p99 = scmp.eq.s32.totalorder %s14, 1
    %p100 = por %p98, %p99
    %p101 = scmp.ne.s32.totalorder %s90, %s91
    %p102 = scmp.eq.s32.totalorder %s14, 0
    %p103 = por %p101, %p102
    %p104 = scmp.ne.s32.totalorder %s90, %s91
    %p105 = scmp.eq.s32.totalorder %s15, 1
    %p106 = por %p104, %p105
    %p108 = scmp.ne.s32.totalorder %s91, %s107
    %p109 = scmp.eq.s32.totalorder %s15, 0
    %p110 = por %p108, %p109
    %p111 = scmp.le.s32.totalorder 1, %s9
    %p112 = scmp.lt.s32.totalorder %s9, 3
    %p113 = pnand %p111, %p112
    %p114 = pneg %p113
    // Predicated region
    $region9: #{istft_forward.7} parent=5 // pred_check
      _
    $region10: #{istft_forward.7} parent=5 // pred_check_branch
      %116 = sbr.rel (%p113) target = $region12
    $region11: #{istft_forward.7} parent=5 // pred_region
      %s117 = ssub.s32 %s9, 1
      // Predicated region
      $region13: #{istft_forward.7} parent=11 // pred_check
        %p118 = pneg %p56
      $region14: #{istft_forward.7} parent=11 // pred_check_branch
        %120 = sbr.rel (%p118) target = $region16
      $region15: #{istft_forward.7} parent=11 // pred_region
        _
      $region16: #{istft_forward.7} parent=11 // pred_fallthru
        _
      // Predicated region
      $region17: #{istft_forward.7} parent=11 // pred_check
        %p121 = pneg %p77
      $region18: #{istft_forward.7} parent=11 // pred_check_branch
        %123 = sbr.rel (%p121) target = $region20
      $region19: #{istft_forward.7} parent=11 // pred_region
        _
      $region20: #{istft_forward.7} parent=11 // pred_fallthru
        _
    $region12: #{istft_forward.7} parent=5 // pred_fallthru
      _
    %p124 = scmp.lt.s32.totalorder %s9, 2
    // Predicated region
    $region21: #{istft_forward.7} parent=5 // pred_check
      %p125 = pneg %p124
    $region22: #{istft_forward.7} parent=5 // pred_check_branch
      %127 = sbr.rel (%p125) target = $region24
    $region23: #{istft_forward.7} parent=5 // pred_region
      // Predicated region
      $region25: #{istft_forward.7} parent=23 // pred_check
        %p128 = pneg %p29
      $region26: #{istft_forward.7} parent=23 // pred_check_branch
        %130 = sbr.rel (%p128) target = $region28
      $region27: #{istft_forward.7} parent=23 // pred_region
        %p131 = scmp.lt.s32.totalorder %s9, 1
        %s132 = scalar_select %p131, %s9, 1
        %s133 = smul.addr %s132, 4
        %s134 = smul.addr %s133, 4
        %s135 = scalar_lea.vmem %s0, %s134
      $region28: #{istft_forward.7} parent=23 // pred_fallthru
        _
    $region24: #{istft_forward.7} parent=5 // pred_fallthru
      _
    %p136 = scmp.le.s32.totalorder 1, %s9
    %p137 = scmp.lt.s32.totalorder %s9, 3
    %p138 = pnand %p136, %p137
    %p139 = pneg %p138
    // Predicated region
    $region29: #{istft_forward.7} parent=5 // pred_check
      _
    $region30: #{istft_forward.7} parent=5 // pred_check_branch
      %141 = sbr.rel (%p138) target = $region32
    $region31: #{istft_forward.7} parent=5 // pred_region
      %s142 = ssub.s32 %s9, 1
      %p143 = scmp.lt.s32.totalorder %s14, 1
      %s144 = scalar_select %p143, %s14, 1
      %s145 = smul.addr %s144, 4
      %s146 = smul.addr %s145, 4
      %s147 = scalar_lea.vmem %s0, %s146
      %p148 = pneg %p35
      %p149 = pneg %p32
      %p150 = pneg %p56
      %p151 = pneg %p53
      %p152 = pneg %p77
      %p153 = pneg %p74
      %p154 = pneg %p103
      %p155 = pneg %p100
      %p156 = scmp.lt.s32.totalorder %s14, 1
      %s157 = scalar_select %p156, %s14, 1
      %s158 = smul.addr %s157, 8
      %s159 = smul.addr %s158, 4
      %s160 = scalar_lea.vmem %s3, %s159
      %p161 = scmp.lt.s32.totalorder %s14, 1
      %s162 = scalar_select %p161, %s14, 1
      %s163 = smul.addr %s162, 4
      %s164 = smul.addr %s163, 4
      %s165 = scalar_lea.vmem %s0, %s164
      %p166 = scmp.lt.s32.totalorder %s14, 1
      %s167 = scalar_select %p166, %s14, 1
      %s168 = smul.addr %s167, 8
      %s169 = smul.addr %s168, 4
      %s170 = scalar_lea.vmem %s3, %s169
      %v172 = vld [vmem:[%s165] sm:$0xf]
      %v173 = vld [vmem:[%s165 + $0x4] sm:$0xf]
      %v174 = vld [vmem:[%s165 + $0x8] sm:$0xf]
      %v175 = vld [vmem:[%s165 + $0xc] sm:$0xf]
      %v176 = vunpack.c.l.bf16 %v172
      %v177 = vunpack.c.l.bf16 %v173
      %v178 = vunpack.c.l.bf16 %v174
      %v179 = vunpack.c.l.bf16 %v175
      %vm180 = vcmp.ge.f32.partialorder %v176, 0.0
      %vm181 = vcmp.ge.f32.partialorder %v177, 0.0
      %vm182 = vcmp.ge.f32.partialorder %v178, 0.0
      %vm183 = vcmp.ge.f32.partialorder %v179, 0.0
      %v184 = vmul.f32 %v176, 0.1
      %v185 = vmul.f32 %v177, 0.1
      %v186 = vmul.f32 %v178, 0.1
      %v187 = vmul.f32 %v179, 0.1
      %v188 = vsel %vm180, %v176, %v184
      %v189 = vsel %vm181, %v177, %v185
      %v190 = vsel %vm182, %v178, %v186
      %v191 = vsel %vm183, %v179, %v187
      %vm192 = vcmask 7168
      %193 = vst.msk [vmem:[#allocation2] sm:$0xff] %vm192, 0
      %194 = vst.msk [vmem:[#allocation2 + $0x8] sm:$0xff] %vm192, 0
      %vm195 = vcmask 80968
      %196 = vst.msk [vmem:[#allocation2] sm:$0xff] %vm195, 0
      %197 = vst.msk [vmem:[#allocation2 + $0x8] sm:$0xff] %vm195, 0
      %v198 = vpack.c.bf16 %v189, %v188
      %v199 = vpack.c.bf16 %v191, %v190
      %202 = vrot.lane.b32.xlu0 %v198, 1
      %v203 = vpop.permute.xlu0 %202
      %204 = vrot.lane.b32.xlu0 %v199, 1
      %v205 = vpop.permute.xlu0 %204
      %vm208 = vcmask 72712
      %209 = vst.msk [vmem:[#allocation2] sm:$0xff] %vm208, %v203
      %210 = vst.msk [vmem:[#allocation2 + $0x8] sm:$0xff] %vm208, %v205
      %v211 = vld [vmem:[%s2] sm:$0xff]
      %v212 = vld [vmem:[%s2 + $0x8] sm:$0xff]
      %v213 = vld [vmem:[#allocation2] sm:$0xff]
      %v214 = vld [vmem:[#allocation2 + $0x8] sm:$0xff]
      %217 = vrot.lane.b32.xlu0 %v213, 1
      %v218 = vpop.permute.xlu0 %217
      %219 = vrot.lane.b32.xlu0 %v214, 1
      %v220 = vpop.permute.xlu0 %219
      %v221 = vld [vmem:[%s1] sm:$0xf]
      %v222 = vld [vmem:[%s1 + $0x4] sm:$0xf]
      %224 = vset.pattern.permute.xlu0 0
      %225 = vperm.xlu0 %224, %v211
      %v226 = vpop.permute.xlu0 %225
      %229 = vset.pattern.permute.xlu0 0
      %230 = vperm.xlu0 %229, %v212
      %v231 = vpop.permute.xlu0 %230
      %v235 = vunpack.c.l.b16 %v221
      %v236 = vunpack.c.l.b16 %v222
      %v237 = vpack.c.b16 %v236, %v235
      %238 = vrot.lane.b32.xlu0 %v213, 127
      %v239 = vpop.permute.xlu0 %238
      %240 = vrot.lane.b32.xlu0 %v214, 127
      %v241 = vpop.permute.xlu0 %240
      %242 = vrot.lane.b32.xlu0 %v218, 127
      %v243 = vpop.permute.xlu0 %242
      %244 = vrot.lane.b32.xlu0 %v220, 127
      %v245 = vpop.permute.xlu0 %244
      %vm250 = vcmask 523264
      %v252 = vsel %vm250, %v237, 0
      %254 = vmatprep.subr.bf16.mxu0 0
      %255 = vmatpush1.bf16.msra.mxu0 %v239
      %256 = vmatprep.subr.bf16.mxu0 0
      %257 = vmatpush1.bf16.msra.mxu0 %v241
      %258 = vmatprep.subr.bf16.mxu0 0
      %259 = vmatpush1.bf16.msra.mxu0 %v243
      %260 = vmatprep.subr.bf16.mxu0 0
      %261 = vmatpush1.bf16.msra.mxu0 %v245
      %262 = vmatprep.subr.bf16.mxu0 0
      %263 = vmatpush1.bf16.msra.mxu0 0
      %264 = vmatprep.subr.bf16.mxu0 0
      %265 = vmatpush1.bf16.msra.mxu0 0
      %266 = vmatprep.subr.bf16.mxu0 0
      %267 = vmatpush1.bf16.msra.mxu0 0
      %268 = vmatprep.subr.bf16.mxu0 0
      %269 = vmatpush1.bf16.msra.mxu0 0
      %270 = vmatprep.subr.bf16.mxu0 0
      %271 = vmatpush1.bf16.msra.mxu0 0
      %272 = vmatprep.subr.bf16.mxu0 0
      %273 = vmatpush1.bf16.msra.mxu0 0
      %274 = vmatprep.subr.bf16.mxu0 0
      %275 = vmatpush1.bf16.msra.mxu0 0
      %276 = vmatprep.subr.bf16.mxu0 0
      %277 = vmatpush1.bf16.msra.mxu0 0
      %278 = vmatprep.subr.bf16.mxu0 0
      %279 = vmatpush1.bf16.msra.mxu0 0
      %280 = vmatprep.subr.bf16.mxu0 0
      %281 = vmatpush1.bf16.msra.mxu0 0
      %282 = vmatprep.subr.bf16.mxu0 0
      %283 = vmatpush1.bf16.msra.mxu0 0
      %284 = vmatprep.subr.bf16.mxu0 0
      %285 = vmatpush1.bf16.msra.mxu0 0
      %286 = vmatprep.mubr.bf16.mxu0 0
      %287 = vmatmul.mubr.bf16.gmra.mrb[0].mxu0 %v252
      %v288 = vpop.f32.mrb[0].mxu0
      %v289 = vadd.f32 %v226, %v288
      %v290 = vpop.f32.mrb[0].mxu0
      %v291 = vpop.f32.mrb[0].mxu0
      %v292 = vadd.f32 %v231, %v291
      %v293 = vpop.f32.mrb[0].mxu0
      %294 = vdwg.mxu0
      %v295 = vpack.c.bf16 %v292, %v289
      %v297 = vunpack.c.l.b16 %v295
      %v298 = vunpack.c.h.b16 %v295
      %v299 = vpack.c.b16 %v297, %v297
      %v300 = vpack.c.b16 %v298, %v298
      %vm303 = vcmask 60416
      %304 = vst.msk [vmem:[%s170] sm:$0xf] %vm303, %v299
      %305 = vst.msk [vmem:[%s170 + $0x4] sm:$0xf] %vm303, %v300
      %v306 = vld [vmem:[#allocation2] sm:$0xff]
      %v307 = vld [vmem:[#allocation2 + $0x8] sm:$0xff]
      %310 = vrot.lane.b32.xlu0 %v306, 1
      %v311 = vpop.permute.xlu0 %310
      %312 = vrot.lane.b32.xlu0 %v307, 1
      %v313 = vpop.permute.xlu0 %312
      %s314 = scalar_lea.vmem %s1, 8
      %v315 = vld [vmem:[%s314] sm:$0xf]
      %v316 = vld [vmem:[%s314 + $0x4] sm:$0xf]
      %v319 = vunpack.c.l.b16 %v315
      %v320 = vunpack.c.l.b16 %v316
      %v321 = vpack.c.b16 %v320, %v319
      %322 = vrot.lane.b32.xlu0 %v306, 127
      %v323 = vpop.permute.xlu0 %322
      %324 = vrot.lane.b32.xlu0 %v307, 127
      %v325 = vpop.permute.xlu0 %324
      %326 = vrot.lane.b32.xlu0 %v311, 127
      %v327 = vpop.permute.xlu0 %326
      %328 = vrot.lane.b32.xlu0 %v313, 127
      %v329 = vpop.permute.xlu0 %328
      %v335 = vsel %vm250, %v321, 0
      %337 = vmatprep.subr.bf16.mxu0 0
      %338 = vmatpush1.bf16.msra.mxu0 %v323
      %339 = vmatprep.subr.bf16.mxu0 0
      %340 = vmatpush1.bf16.msra.mxu0 %v325
      %341 = vmatprep.subr.bf16.mxu0 0
      %342 = vmatpush1.bf16.msra.mxu0 %v327
      %343 = vmatprep.subr.bf16.mxu0 0
      %344 = vmatpush1.bf16.msra.mxu0 %v329
      %345 = vmatprep.subr.bf16.mxu0 0
      %346 = vmatpush1.bf16.msra.mxu0 0
      %347 = vmatprep.subr.bf16.mxu0 0
      %348 = vmatpush1.bf16.msra.mxu0 0
      %349 = vmatprep.subr.bf16.mxu0 0
      %350 = vmatpush1.bf16.msra.mxu0 0
      %351 = vmatprep.subr.bf16.mxu0 0
      %352 = vmatpush1.bf16.msra.mxu0 0
      %353 = vmatprep.subr.bf16.mxu0 0
      %354 = vmatpush1.bf16.msra.mxu0 0
      %355 = vmatprep.subr.bf16.mxu0 0
      %356 = vmatpush1.bf16.msra.mxu0 0
      %357 = vmatprep.subr.bf16.mxu0 0
      %358 = vmatpush1.bf16.msra.mxu0 0
      %359 = vmatprep.subr.bf16.mxu0 0
      %360 = vmatpush1.bf16.msra.mxu0 0
      %361 = vmatprep.subr.bf16.mxu0 0
      %362 = vmatpush1.bf16.msra.mxu0 0
      %363 = vmatprep.subr.bf16.mxu0 0
      %364 = vmatpush1.bf16.msra.mxu0 0
      %365 = vmatprep.subr.bf16.mxu0 0
      %366 = vmatpush1.bf16.msra.mxu0 0
      %367 = vmatprep.subr.bf16.mxu0 0
      %368 = vmatpush1.bf16.msra.mxu0 0
      %369 = vmatprep.mubr.bf16.mxu0 0
      %370 = vmatmul.mubr.bf16.gmra.mrb[0].mxu0 %v335
      %v371 = vpop.f32.mrb[0].mxu0
      %v372 = vadd.f32 %v226, %v371
      %v373 = vpop.f32.mrb[0].mxu0
      %v374 = vpop.f32.mrb[0].mxu0
      %v375 = vadd.f32 %v231, %v374
      %v376 = vpop.f32.mrb[0].mxu0
      %377 = vdwg.mxu0
      %v378 = vpack.c.bf16 %v375, %v372
      %v380 = vunpack.c.l.b16 %v378
      %v381 = vunpack.c.h.b16 %v378
      %v382 = vpack.c.b16 %v380, %v380
      %v383 = vpack.c.b16 %v381, %v381
      %s386 = scalar_lea.vmem %s170, 8
      %387 = vst.msk [vmem:[%s386] sm:$0xf] %vm303, %v382
      %388 = vst.msk [vmem:[%s386 + $0x4] sm:$0xf] %vm303, %v383
      %v389 = vld [vmem:[#allocation2] sm:$0xff]
      %v390 = vld [vmem:[#allocation2 + $0x8] sm:$0xff]
      %393 = vrot.lane.b32.xlu0 %v389, 1
      %v394 = vpop.permute.xlu0 %393
      %395 = vrot.lane.b32.xlu0 %v390, 1
      %v396 = vpop.permute.xlu0 %395
      %s397 = scalar_lea.vmem %s1, 16
      %v398 = vld [vmem:[%s397] sm:$0xf]
      %v399 = vld [vmem:[%s397 + $0x4] sm:$0xf]
      %v402 = vunpack.c.l.b16 %v398
      %v403 = vunpack.c.l.b16 %v399
      %v404 = vpack.c.b16 %v403, %v402
      %405 = vrot.lane.b32.xlu0 %v389, 126
      %v406 = vpop.permute.xlu0 %405
      %407 = vrot.lane.b32.xlu0 %v390, 126
      %v408 = vpop.permute.xlu0 %407
      %409 = vrot.lane.b32.xlu0 %v394, 126
      %v410 = vpop.permute.xlu0 %409
      %411 = vrot.lane.b32.xlu0 %v396, 126
      %v412 = vpop.permute.xlu0 %411
      %v418 = vsel %vm250, %v404, 0
      %420 = vmatprep.subr.bf16.mxu0 0
      %421 = vmatpush1.bf16.msra.mxu0 %v406
      %422 = vmatprep.subr.bf16.mxu0 0
      %423 = vmatpush1.bf16.msra.mxu0 %v408
      %424 = vmatprep.subr.bf16.mxu0 0
      %425 = vmatpush1.bf16.msra.mxu0 %v410
      %426 = vmatprep.subr.bf16.mxu0 0
      %427 = vmatpush1.bf16.msra.mxu0 %v412
      %428 = vmatprep.subr.bf16.mxu0 0
      %429 = vmatpush1.bf16.msra.mxu0 0
      %430 = vmatprep.subr.bf16.mxu0 0
      %431 = vmatpush1.bf16.msra.mxu0 0
      %432 = vmatprep.subr.bf16.mxu0 0
      %433 = vmatpush1.bf16.msra.mxu0 0
      %434 = vmatprep.subr.bf16.mxu0 0
      %435 = vmatpush1.bf16.msra.mxu0 0
      %436 = vmatprep.subr.bf16.mxu0 0
      %437 = vmatpush1.bf16.msra.mxu0 0
      %438 = vmatprep.subr.bf16.mxu0 0
      %439 = vmatpush1.bf16.msra.mxu0 0
      %440 = vmatprep.subr.bf16.mxu0 0
      %441 = vmatpush1.bf16.msra.mxu0 0
      %442 = vmatprep.subr.bf16.mxu0 0
      %443 = vmatpush1.bf16.msra.mxu0 0
      %444 = vmatprep.subr.bf16.mxu0 0
      %445 = vmatpush1.bf16.msra.mxu0 0
      %446 = vmatprep.subr.bf16.mxu0 0
      %447 = vmatpush1.bf16.msra.mxu0 0
      %448 = vmatprep.subr.bf16.mxu0 0
      %449 = vmatpush1.bf16.msra.mxu0 0
      %450 = vmatprep.subr.bf16.mxu0 0
      %451 = vmatpush1.bf16.msra.mxu0 0
      %452 = vmatprep.mubr.bf16.mxu0 0
      %453 = vmatmul.mubr.bf16.gmra.mrb[0].mxu0 %v418
      %v454 = vpop.f32.mrb[0].mxu0
      %v455 = vadd.f32 %v226, %v454
      %v456 = vpop.f32.mrb[0].mxu0
      %v457 = vpop.f32.mrb[0].mxu0
      %v458 = vadd.f32 %v231, %v457
      %v459 = vpop.f32.mrb[0].mxu0
      %460 = vdwg.mxu0
      %v461 = vpack.c.bf16 %v458, %v455
      %v463 = vunpack.c.l.b16 %v461
      %v464 = vunpack.c.h.b16 %v461
      %v465 = vpack.c.b16 %v463, %v463
      %v466 = vpack.c.b16 %v464, %v464
      %s469 = scalar_lea.vmem %s170, 16
      %470 = vst.msk [vmem:[%s469] sm:$0xf] %vm303, %v465
      %471 = vst.msk [vmem:[%s469 + $0x4] sm:$0xf] %vm303, %v466
      %v472 = vld [vmem:[#allocation2] sm:$0xff]
      %v473 = vld [vmem:[#allocation2 + $0x8] sm:$0xff]
      %476 = vrot.lane.b32.xlu0 %v472, 1
      %v477 = vpop.permute.xlu0 %476
      %478 = vrot.lane.b32.xlu0 %v473, 1
      %v479 = vpop.permute.xlu0 %478
      %s480 = scalar_lea.vmem %s1, 24
      %v481 = vld [vmem:[%s480] sm:$0xf]
      %v482 = vld [vmem:[%s480 + $0x4] sm:$0xf]
      %v485 = vunpack.c.l.b16 %v481
      %v486 = vunpack.c.l.b16 %v482
      %v487 = vpack.c.b16 %v486, %v485
      %488 = vrot.lane.b32.xlu0 %v472, 126
      %v489 = vpop.permute.xlu0 %488
      %490 = vrot.lane.b32.xlu0 %v473, 126
      %v491 = vpop.permute.xlu0 %490
      %492 = vrot.lane.b32.xlu0 %v477, 126
      %v493 = vpop.permute.xlu0 %492
      %494 = vrot.lane.b32.xlu0 %v479, 126
      %v495 = vpop.permute.xlu0 %494
      %v501 = vsel %vm250, %v487, 0
      %503 = vmatprep.subr.bf16.mxu0 0
      %504 = vmatpush1.bf16.msra.mxu0 %v489
      %505 = vmatprep.subr.bf16.mxu0 0
      %506 = vmatpush1.bf16.msra.mxu0 %v491
      %507 = vmatprep.subr.bf16.mxu0 0
      %508 = vmatpush1.bf16.msra.mxu0 %v493
      %509 = vmatprep.subr.bf16.mxu0 0
      %510 = vmatpush1.bf16.msra.mxu0 %v495
      %511 = vmatprep.subr.bf16.mxu0 0
      %512 = vmatpush1.bf16.msra.mxu0 0
      %513 = vmatprep.subr.bf16.mxu0 0
      %514 = vmatpush1.bf16.msra.mxu0 0
      %515 = vmatprep.subr.bf16.mxu0 0
      %516 = vmatpush1.bf16.msra.mxu0 0
      %517 = vmatprep.subr.bf16.mxu0 0
      %518 = vmatpush1.bf16.msra.mxu0 0
      %519 = vmatprep.subr.bf16.mxu0 0
      %520 = vmatpush1.bf16.msra.mxu0 0
      %521 = vmatprep.subr.bf16.mxu0 0
      %522 = vmatpush1.bf16.msra.mxu0 0
      %523 = vmatprep.subr.bf16.mxu0 0
      %524 = vmatpush1.bf16.msra.mxu0 0
      %525 = vmatprep.subr.bf16.mxu0 0
      %526 = vmatpush1.bf16.msra.mxu0 0
      %527 = vmatprep.subr.bf16.mxu0 0
      %528 = vmatpush1.bf16.msra.mxu0 0
      %529 = vmatprep.subr.bf16.mxu0 0
      %530 = vmatpush1.bf16.msra.mxu0 0
      %531 = vmatprep.subr.bf16.mxu0 0
      %532 = vmatpush1.bf16.msra.mxu0 0
      %533 = vmatprep.subr.bf16.mxu0 0
      %534 = vmatpush1.bf16.msra.mxu0 0
      %535 = vmatprep.mubr.bf16.mxu0 0
      %536 = vmatmul.mubr.bf16.gmra.mrb[0].mxu0 %v501
      %v537 = vpop.f32.mrb[0].mxu0
      %v538 = vadd.f32 %v226, %v537
      %v539 = vpop.f32.mrb[0].mxu0
      %v540 = vpop.f32.mrb[0].mxu0
      %v541 = vadd.f32 %v231, %v540
      %v542 = vpop.f32.mrb[0].mxu0
      %543 = vdwg.mxu0
      %v544 = vpack.c.bf16 %v541, %v538
      %v546 = vunpack.c.l.b16 %v544
      %v547 = vunpack.c.h.b16 %v544
      %v548 = vpack.c.b16 %v546, %v546
      %v549 = vpack.c.b16 %v547, %v547
      %s552 = scalar_lea.vmem %s170, 24
      %553 = vst.msk [vmem:[%s552] sm:$0xf] %vm303, %v548
      %554 = vst.msk [vmem:[%s552 + $0x4] sm:$0xf] %vm303, %v549
      %p555 = scmp.lt.s32.totalorder %s14, 1
      %s556 = scalar_select %p555, %s14, 1
      %s557 = smul.addr %s556, 8
      %s558 = smul.addr %s557, 4
      %s559 = scalar_lea.vmem %s3, %s558
      // Predicated region
      $region33: #{istft_forward.7} parent=31 // pred_check
        %p560 = pneg %p100
      $region34: #{istft_forward.7} parent=31 // pred_check_branch
        %562 = sbr.rel (%p560) target = $region36
      $region35: #{istft_forward.7} parent=31 // pred_region
        _
      $region36: #{istft_forward.7} parent=31 // pred_fallthru
        _
    $region32: #{istft_forward.7} parent=5 // pred_fallthru
      _
    %p563 = scmp.le.s32.totalorder 2, %s9
    // Predicated region
    $region37: #{istft_forward.7} parent=5 // pred_check
      %p564 = pneg %p563
    $region38: #{istft_forward.7} parent=5 // pred_check_branch
      %566 = sbr.rel (%p564) target = $region40
    $region39: #{istft_forward.7} parent=5 // pred_region
      %s567 = ssub.s32 %s9, 2
      // Predicated region
      $region41: #{istft_forward.7} parent=39 // pred_check
        %p568 = pneg %p106
      $region42: #{istft_forward.7} parent=39 // pred_check_branch
        %570 = sbr.rel (%p568) target = $region44
      $region43: #{istft_forward.7} parent=39 // pred_region
        %p571 = scmp.lt.s32.totalorder %s15, 1
        %s572 = scalar_select %p571, %s15, 1
        %s573 = smul.addr %s572, 8
        %s574 = smul.addr %s573, 4
        %s575 = scalar_lea.vmem %s3, %s574
      $region44: #{istft_forward.7} parent=39 // pred_fallthru
        _
    $region40: #{istft_forward.7} parent=5 // pred_fallthru
      _
  $region6: #{istft_forward.7} parent=0 // loop_footer
    %s13 = sadd.s32 1, %s9
  $region7: #{istft_forward.7} parent=0 // loop_footer_branch
    %8 = sbr.rel target = $region3
  $region8: #{istft_forward.7} parent=0 // loop_exit
    _

// kernel: istft_forward.8
$region0: #{istft_forward.8}
  #allocation0 [shape = 'u32[]', space=smem, size = 0x4, offset = 0x4, fixed_abs, tag = 'smem constant byte address 0x4 - core index']
  #allocation1 [shape = 'u32[144,128]{1,0:T(1,128)}', space=vmem, size = 0x12000, scoped, tag = 'internal scratch']
  #allocation2 [shape = 'bf16[16,44]{1,0:T(16,128)(2,1)}', space=vmem, size = 0x1000, scoped, tag = 'scratch operand']
  %s0 = inlined_call_operand.vmem [shape: bf16[2,16,32], index: 0, kind: input, shape index: {}, may-alias: {0,17}]
  %s1 = inlined_call_operand.vmem [shape: bf16[16,48], index: 1, kind: input, shape index: {}]
  %s2 = inlined_call_operand.vmem [shape: bf16[16,48], index: 2, kind: input, shape index: {}]
  %s3 = inlined_call_operand.vmem [shape: bf16[16,48], index: 3, kind: input, shape index: {}]
  %s4 = inlined_call_operand.vmem [shape: bf16[16,48], index: 4, kind: input, shape index: {}]
  %s5 = inlined_call_operand.vmem [shape: bf16[16,80], index: 5, kind: input, shape index: {}]
  %s6 = inlined_call_operand.vmem [shape: bf16[16,80], index: 6, kind: input, shape index: {}]
  %s7 = inlined_call_operand.vmem [shape: bf16[16,80], index: 7, kind: input, shape index: {}]
  %s8 = inlined_call_operand.vmem [shape: bf16[16,80], index: 8, kind: input, shape index: {}]
  %s9 = inlined_call_operand.vmem [shape: f32[16,1], index: 9, kind: input, shape index: {}]
  %s10 = inlined_call_operand.vmem [shape: f32[16,1], index: 10, kind: input, shape index: {}]
  %s11 = inlined_call_operand.vmem [shape: f32[16,1], index: 11, kind: input, shape index: {}]
  %s12 = inlined_call_operand.vmem [shape: f32[16,1], index: 12, kind: input, shape index: {}]
  %s13 = inlined_call_operand.vmem [shape: f32[16,1], index: 13, kind: input, shape index: {}]
  %s14 = inlined_call_operand.vmem [shape: f32[16,1], index: 14, kind: input, shape index: {}]
  %s15 = inlined_call_operand.vmem [shape: f32[16,1], index: 15, kind: input, shape index: {}]
  %s16 = inlined_call_operand.vmem [shape: f32[16,1], index: 16, kind: input, shape index: {}]
  %s17 = inlined_call_operand.vmem [shape: bf16[2,16,32], index: 17, kind: output, shape index: {}, may-alias: {0,17}]
  %s18 = sld [smem:[#allocation0]]
  $region101: #{istft_forward.8} parent=0
    _
  %s20 = ssub.s32 1, %s18
  %s21 = scalar_select 0, %s20, %s18
  loop: start=0, step=1, limit=4
  $region2: #{istft_forward.8} parent=0 // loop_pre_header
    _
  $region3: #{istft_forward.8} parent=0 // loop_header
    %s23 = sphi 0, %s27
    %p24 = scmp.ge.s32.totalorder %s23, 4
    %s33 = sphi 0, %s35
    %s36 = sphi 0, %s33
    %s37 = sphi 0, %s36
    %s53 = sphi 0, %s37
    %s57 = sphi 0, %s57
    %s59 = sphi 0, %s57
    %s60 = sphi 0, %s59
    %s74 = sphi 0, %s60
    %s78 = sphi 0, %s78
    %s80 = sphi 0, %s78
    %s81 = sphi 0, %s80
    %s95 = sphi 0, %s81
    %s99 = sphi 0, %s99
    %s101 = sphi 0, %s99
    %s102 = sphi 0, %s101
    %s116 = sphi 0, %s102
    %s120 = sphi 0, %s120
    %s122 = sphi 0, %s120
    %s123 = sphi 0, %s122
    %s137 = sphi 0, %s123
    %s141 = sphi 0, %s141
    %s143 = sphi 0, %s141
    %s144 = sphi 0, %s143
    %s158 = sphi 0, %s144
    %s162 = sphi 0, %s162
    %s164 = sphi 0, %s162
    %s165 = sphi 0, %s164
    %s179 = sphi 0, %s165
    %s183 = sphi 0, %s183
    %s185 = sphi 0, %s183
    %s186 = sphi 0, %s185
    %s200 = sphi 0, %s186
    %s204 = sphi 0, %s204
    %s206 = sphi 0, %s204
    %s207 = sphi 0, %s206
    %s221 = sphi 0, %s207
    %s225 = sphi 0, %s225
    %s227 = sphi 0, %s225
    %s228 = sphi 0, %s227
    %s242 = sphi 0, %s228
    %s246 = sphi 0, %s246
    %s248 = sphi 0, %s246
    %s249 = sphi 0, %s248
    %s263 = sphi 0, %s249
    %s267 = sphi 0, %s267
    %s269 = sphi 0, %s267
    %s270 = sphi 0, %s269
    %s284 = sphi 0, %s270
    %s288 = sphi 0, %s288
    %s290 = sphi 0, %s288
    %s291 = sphi 0, %s290
    %s305 = sphi 0, %s291
    %s309 = sphi 0, %s309
    %s311 = sphi 0, %s309
    %s312 = sphi 0, %s311
    %s326 = sphi 0, %s312
    %s330 = sphi 0, %s330
    %s332 = sphi 0, %s330
    %s333 = sphi 0, %s332
    %s347 = sphi 0, %s333
    %s351 = sphi 0, %s351
    %s353 = sphi 0, %s351
    %s354 = sphi 0, %s353
    %s368 = sphi 0, %s354
    %s372 = sphi 0, %s372
    %s374 = sphi 0, %s372
    %s375 = sphi 0, %s374
    %s389 = sphi 0, %s375
    %s395 = sphi 0, %s397
    %s398 = sphi 0, %s395
    %s399 = sphi 0, %s398
    %s415 = sphi 0, %s399
  $region4: #{istft_forward.8} parent=0 // loop_header_branch
    %26 = sbr.rel (%p24) target = $region8
  $region5: #{istft_forward.8} parent=0 // loop_body
    %s28 = ssub.s32 %s23, 1
    %s29 = ssub.s32 %s23, 2
    %s30 = sadd.s32 %s23, 1
    %s31 = ssub.s32 %s23, %s30
    %p32 = scmp.eq.s32.totalorder %s31, 0
    %s34 = sadd.s32 %s33, 1
    %s35 = scalar_select %p32, %s33, %s34
    %p38 = pneg %p32
    %p39 = scmp.eq.s32.totalorder %s23, 1
    %p40 = por %p38, %p39
    %p41 = scmp.ne.s32.totalorder %s33, %s36
    %p42 = scmp.eq.s32.totalorder %s23, 0
    %p43 = por %p41, %p42
    %p44 = scmp.ne.s32.totalorder %s33, %s36
    %p45 = scmp.eq.s32.totalorder %s28, 1
    %p46 = por %p44, %p45
    %p47 = scmp.ne.s32.totalorder %s36, %s37
    %p48 = scmp.eq.s32.totalorder %s28, 0
    %p49 = por %p47, %p48
    %p50 = scmp.ne.s32.totalorder %s36, %s37
    %p51 = scmp.eq.s32.totalorder %s29, 1
    %p52 = por %p50, %p51
    %p54 = scmp.ne.s32.totalorder %s37, %s53
    %p55 = scmp.eq.s32.totalorder %s29, 0
    %p56 = por %p54, %p55
    %s58 = sadd.s32 %s57, 1
    %p61 = scmp.eq.s32.totalorder %s23, 1
    %p62 = scmp.ne.s32.totalorder %s57, %s59
    %p63 = scmp.eq.s32.totalorder %s23, 0
    %p64 = por %p62, %p63
    %p65 = scmp.ne.s32.totalorder %s57, %s59
    %p66 = scmp.eq.s32.totalorder %s28, 1
    %p67 = por %p65, %p66
    %p68 = scmp.ne.s32.totalorder %s59, %s60
    %p69 = scmp.eq.s32.totalorder %s28, 0
    %p70 = por %p68, %p69
    %p71 = scmp.ne.s32.totalorder %s59, %s60
    %p72 = scmp.eq.s32.totalorder %s29, 1
    %p73 = por %p71, %p72
    %p75 = scmp.ne.s32.totalorder %s60, %s74
    %p76 = scmp.eq.s32.totalorder %s29, 0
    %p77 = por %p75, %p76
    %s79 = sadd.s32 %s78, 1
    %p82 = scmp.eq.s32.totalorder %s23, 1
    %p83 = scmp.ne.s32.totalorder %s78, %s80
    %p84 = scmp.eq.s32.totalorder %s23, 0
    %p85 = por %p83, %p84
    %p86 = scmp.ne.s32.totalorder %s78, %s80
    %p87 = scmp.eq.s32.totalorder %s28, 1
    %p88 = por %p86, %p87
    %p89 = scmp.ne.s32.totalorder %s80, %s81
    %p90 = scmp.eq.s32.totalorder %s28, 0
    %p91 = por %p89, %p90
    %p92 = scmp.ne.s32.totalorder %s80, %s81
    %p93 = scmp.eq.s32.totalorder %s29, 1
    %p94 = por %p92, %p93
    %p96 = scmp.ne.s32.totalorder %s81, %s95
    %p97 = scmp.eq.s32.totalorder %s29, 0
    %p98 = por %p96, %p97
    %s100 = sadd.s32 %s99, 1
    %p103 = scmp.eq.s32.totalorder %s23, 1
    %p104 = scmp.ne.s32.totalorder %s99, %s101
    %p105 = scmp.eq.s32.totalorder %s23, 0
    %p106 = por %p104, %p105
    %p107 = scmp.ne.s32.totalorder %s99, %s101
    %p108 = scmp.eq.s32.totalorder %s28, 1
    %p109 = por %p107, %p108
    %p110 = scmp.ne.s32.totalorder %s101, %s102
    %p111 = scmp.eq.s32.totalorder %s28, 0
    %p112 = por %p110, %p111
    %p113 = scmp.ne.s32.totalorder %s101, %s102
    %p114 = scmp.eq.s32.totalorder %s29, 1
    %p115 = por %p113, %p114
    %p117 = scmp.ne.s32.totalorder %s102, %s116
    %p118 = scmp.eq.s32.totalorder %s29, 0
    %p119 = por %p117, %p118
    %s121 = sadd.s32 %s120, 1
    %p124 = scmp.eq.s32.totalorder %s23, 1
    %p125 = scmp.ne.s32.totalorder %s120, %s122
    %p126 = scmp.eq.s32.totalorder %s23, 0
    %p127 = por %p125, %p126
    %p128 = scmp.ne.s32.totalorder %s120, %s122
    %p129 = scmp.eq.s32.totalorder %s28, 1
    %p130 = por %p128, %p129
    %p131 = scmp.ne.s32.totalorder %s122, %s123
    %p132 = scmp.eq.s32.totalorder %s28, 0
    %p133 = por %p131, %p132
    %p134 = scmp.ne.s32.totalorder %s122, %s123
    %p135 = scmp.eq.s32.totalorder %s29, 1
    %p136 = por %p134, %p135
    %p138 = scmp.ne.s32.totalorder %s123, %s137
    %p139 = scmp.eq.s32.totalorder %s29, 0
    %p140 = por %p138, %p139
    %s142 = sadd.s32 %s141, 1
    %p145 = scmp.eq.s32.totalorder %s23, 1
    %p146 = scmp.ne.s32.totalorder %s141, %s143
    %p147 = scmp.eq.s32.totalorder %s23, 0
    %p148 = por %p146, %p147
    %p149 = scmp.ne.s32.totalorder %s141, %s143
    %p150 = scmp.eq.s32.totalorder %s28, 1
    %p151 = por %p149, %p150
    %p152 = scmp.ne.s32.totalorder %s143, %s144
    %p153 = scmp.eq.s32.totalorder %s28, 0
    %p154 = por %p152, %p153
    %p155 = scmp.ne.s32.totalorder %s143, %s144
    %p156 = scmp.eq.s32.totalorder %s29, 1
    %p157 = por %p155, %p156
    %p159 = scmp.ne.s32.totalorder %s144, %s158
    %p160 = scmp.eq.s32.totalorder %s29, 0
    %p161 = por %p159, %p160
    %s163 = sadd.s32 %s162, 1
    %p166 = scmp.eq.s32.totalorder %s23, 1
    %p167 = scmp.ne.s32.totalorder %s162, %s164
    %p168 = scmp.eq.s32.totalorder %s23, 0
    %p169 = por %p167, %p168
    %p170 = scmp.ne.s32.totalorder %s162, %s164
    %p171 = scmp.eq.s32.totalorder %s28, 1
    %p172 = por %p170, %p171
    %p173 = scmp.ne.s32.totalorder %s164, %s165
    %p174 = scmp.eq.s32.totalorder %s28, 0
    %p175 = por %p173, %p174
    %p176 = scmp.ne.s32.totalorder %s164, %s165
    %p177 = scmp.eq.s32.totalorder %s29, 1
    %p178 = por %p176, %p177
    %p180 = scmp.ne.s32.totalorder %s165, %s179
    %p181 = scmp.eq.s32.totalorder %s29, 0
    %p182 = por %p180, %p181
    %s184 = sadd.s32 %s183, 1
    %p187 = scmp.eq.s32.totalorder %s23, 1
    %p188 = scmp.ne.s32.totalorder %s183, %s185
    %p189 = scmp.eq.s32.totalorder %s23, 0
    %p190 = por %p188, %p189
    %p191 = scmp.ne.s32.totalorder %s183, %s185
    %p192 = scmp.eq.s32.totalorder %s28, 1
    %p193 = por %p191, %p192
    %p194 = scmp.ne.s32.totalorder %s185, %s186
    %p195 = scmp.eq.s32.totalorder %s28, 0
    %p196 = por %p194, %p195
    %p197 = scmp.ne.s32.totalorder %s185, %s186
    %p198 = scmp.eq.s32.totalorder %s29, 1
    %p199 = por %p197, %p198
    %p201 = scmp.ne.s32.totalorder %s186, %s200
    %p202 = scmp.eq.s32.totalorder %s29, 0
    %p203 = por %p201, %p202
    %s205 = sadd.s32 %s204, 1
    %p208 = scmp.eq.s32.totalorder %s23, 1
    %p209 = scmp.ne.s32.totalorder %s204, %s206
    %p210 = scmp.eq.s32.totalorder %s23, 0
    %p211 = por %p209, %p210
    %p212 = scmp.ne.s32.totalorder %s204, %s206
    %p213 = scmp.eq.s32.totalorder %s28, 1
    %p214 = por %p212, %p213
    %p215 = scmp.ne.s32.totalorder %s206, %s207
    %p216 = scmp.eq.s32.totalorder %s28, 0
    %p217 = por %p215, %p216
    %p218 = scmp.ne.s32.totalorder %s206, %s207
    %p219 = scmp.eq.s32.totalorder %s29, 1
    %p220 = por %p218, %p219
    %p222 = scmp.ne.s32.totalorder %s207, %s221
    %p223 = scmp.eq.s32.totalorder %s29, 0
    %p224 = por %p222, %p223
    %s226 = sadd.s32 %s225, 1
    %p229 = scmp.eq.s32.totalorder %s23, 1
    %p230 = scmp.ne.s32.totalorder %s225, %s227
    %p231 = scmp.eq.s32.totalorder %s23, 0
    %p232 = por %p230, %p231
    %p233 = scmp.ne.s32.totalorder %s225, %s227
    %p234 = scmp.eq.s32.totalorder %s28, 1
    %p235 = por %p233, %p234
    %p236 = scmp.ne.s32.totalorder %s227, %s228
    %p237 = scmp.eq.s32.totalorder %s28, 0
    %p238 = por %p236, %p237
    %p239 = scmp.ne.s32.totalorder %s227, %s228
    %p240 = scmp.eq.s32.totalorder %s29, 1
    %p241 = por %p239, %p240
    %p243 = scmp.ne.s32.totalorder %s228, %s242
    %p244 = scmp.eq.s32.totalorder %s29, 0
    %p245 = por %p243, %p244
    %s247 = sadd.s32 %s246, 1
    %p250 = scmp.eq.s32.totalorder %s23, 1
    %p251 = scmp.ne.s32.totalorder %s246, %s248
    %p252 = scmp.eq.s32.totalorder %s23, 0
    %p253 = por %p251, %p252
    %p254 = scmp.ne.s32.totalorder %s246, %s248
    %p255 = scmp.eq.s32.totalorder %s28, 1
    %p256 = por %p254, %p255
    %p257 = scmp.ne.s32.totalorder %s248, %s249
    %p258 = scmp.eq.s32.totalorder %s28, 0
    %p259 = por %p257, %p258
    %p260 = scmp.ne.s32.totalorder %s248, %s249
    %p261 = scmp.eq.s32.totalorder %s29, 1
    %p262 = por %p260, %p261
    %p264 = scmp.ne.s32.totalorder %s249, %s263
    %p265 = scmp.eq.s32.totalorder %s29, 0
    %p266 = por %p264, %p265
    %s268 = sadd.s32 %s267, 1
    %p271 = scmp.eq.s32.totalorder %s23, 1
    %p272 = scmp.ne.s32.totalorder %s267, %s269
    %p273 = scmp.eq.s32.totalorder %s23, 0
    %p274 = por %p272, %p273
    %p275 = scmp.ne.s32.totalorder %s267, %s269
    %p276 = scmp.eq.s32.totalorder %s28, 1
    %p277 = por %p275, %p276
    %p278 = scmp.ne.s32.totalorder %s269, %s270
    %p279 = scmp.eq.s32.totalorder %s28, 0
    %p280 = por %p278, %p279
    %p281 = scmp.ne.s32.totalorder %s269, %s270
    %p282 = scmp.eq.s32.totalorder %s29, 1
    %p283 = por %p281, %p282
    %p285 = scmp.ne.s32.totalorder %s270, %s284
    %p286 = scmp.eq.s32.totalorder %s29, 0
    %p287 = por %p285, %p286
    %s289 = sadd.s32 %s288, 1
    %p292 = scmp.eq.s32.totalorder %s23, 1
    %p293 = scmp.ne.s32.totalorder %s288, %s290
    %p294 = scmp.eq.s32.totalorder %s23, 0
    %p295 = por %p293, %p294
    %p296 = scmp.ne.s32.totalorder %s288, %s290
    %p297 = scmp.eq.s32.totalorder %s28, 1
    %p298 = por %p296, %p297
    %p299 = scmp.ne.s32.totalorder %s290, %s291
    %p300 = scmp.eq.s32.totalorder %s28, 0
    %p301 = por %p299, %p300
    %p302 = scmp.ne.s32.totalorder %s290, %s291
    %p303 = scmp.eq.s32.totalorder %s29, 1
    %p304 = por %p302, %p303
    %p306 = scmp.ne.s32.totalorder %s291, %s305
    %p307 = scmp.eq.s32.totalorder %s29, 0
    %p308 = por %p306, %p307
    %s310 = sadd.s32 %s309, 1
    %p313 = scmp.eq.s32.totalorder %s23, 1
    %p314 = scmp.ne.s32.totalorder %s309, %s311
    %p315 = scmp.eq.s32.totalorder %s23, 0
    %p316 = por %p314, %p315
    %p317 = scmp.ne.s32.totalorder %s309, %s311
    %p318 = scmp.eq.s32.totalorder %s28, 1
    %p319 = por %p317, %p318
    %p320 = scmp.ne.s32.totalorder %s311, %s312
    %p321 = scmp.eq.s32.totalorder %s28, 0
    %p322 = por %p320, %p321
    %p323 = scmp.ne.s32.totalorder %s311, %s312
    %p324 = scmp.eq.s32.totalorder %s29, 1
    %p325 = por %p323, %p324
    %p327 = scmp.ne.s32.totalorder %s312, %s326
    %p328 = scmp.eq.s32.totalorder %s29, 0
    %p329 = por %p327, %p328
    %s331 = sadd.s32 %s330, 1
    %p334 = scmp.eq.s32.totalorder %s23, 1
    %p335 = scmp.ne.s32.totalorder %s330, %s332
    %p336 = scmp.eq.s32.totalorder %s23, 0
    %p337 = por %p335, %p336
    %p338 = scmp.ne.s32.totalorder %s330, %s332
    %p339 = scmp.eq.s32.totalorder %s28, 1
    %p340 = por %p338, %p339
    %p341 = scmp.ne.s32.totalorder %s332, %s333
    %p342 = scmp.eq.s32.totalorder %s28, 0
    %p343 = por %p341, %p342
    %p344 = scmp.ne.s32.totalorder %s332, %s333
    %p345 = scmp.eq.s32.totalorder %s29, 1
    %p346 = por %p344, %p345
    %p348 = scmp.ne.s32.totalorder %s333, %s347
    %p349 = scmp.eq.s32.totalorder %s29, 0
    %p350 = por %p348, %p349
    %s352 = sadd.s32 %s351, 1
    %p355 = scmp.eq.s32.totalorder %s23, 1
    %p356 = scmp.ne.s32.totalorder %s351, %s353
    %p357 = scmp.eq.s32.totalorder %s23, 0
    %p358 = por %p356, %p357
    %p359 = scmp.ne.s32.totalorder %s351, %s353
    %p360 = scmp.eq.s32.totalorder %s28, 1
    %p361 = por %p359, %p360
    %p362 = scmp.ne.s32.totalorder %s353, %s354
    %p363 = scmp.eq.s32.totalorder %s28, 0
    %p364 = por %p362, %p363
    %p365 = scmp.ne.s32.totalorder %s353, %s354
    %p366 = scmp.eq.s32.totalorder %s29, 1
    %p367 = por %p365, %p366
    %p369 = scmp.ne.s32.totalorder %s354, %s368
    %p370 = scmp.eq.s32.totalorder %s29, 0
    %p371 = por %p369, %p370
    %s373 = sadd.s32 %s372, 1
    %p376 = scmp.eq.s32.totalorder %s23, 1
    %p377 = scmp.ne.s32.totalorder %s372, %s374
    %p378 = scmp.eq.s32.totalorder %s23, 0
    %p379 = por %p377, %p378
    %p380 = scmp.ne.s32.totalorder %s372, %s374
    %p381 = scmp.eq.s32.totalorder %s28, 1
    %p382 = por %p380, %p381
    %p383 = scmp.ne.s32.totalorder %s374, %s375
    %p384 = scmp.eq.s32.totalorder %s28, 0
    %p385 = por %p383, %p384
    %p386 = scmp.ne.s32.totalorder %s374, %s375
    %p387 = scmp.eq.s32.totalorder %s29, 1
    %p388 = por %p386, %p387
    %p390 = scmp.ne.s32.totalorder %s375, %s389
    %p391 = scmp.eq.s32.totalorder %s29, 0
    %p392 = por %p390, %p391
    %s393 = ssub.s32 %s23, %s30
    %p394 = scmp.eq.s32.totalorder %s393, 0
    %s396 = sadd.s32 %s395, 1
    %s397 = scalar_select %p394, %s395, %s396
    %p400 = pneg %p394
    %p401 = scmp.eq.s32.totalorder %s23, 1
    %p402 = por %p400, %p401
    %p403 = scmp.ne.s32.totalorder %s395, %s398
    %p404 = scmp.eq.s32.totalorder %s23, 0
    %p405 = por %p403, %p404
    %p406 = scmp.ne.s32.totalorder %s395, %s398
    %p407 = scmp.eq.s32.totalorder %s28, 1
    %p408 = por %p406, %p407
    %p409 = scmp.ne.s32.totalorder %s398, %s399
    %p410 = scmp.eq.s32.totalorder %s28, 0
    %p411 = por %p409, %p410
    %p412 = scmp.ne.s32.totalorder %s398, %s399
    %p413 = scmp.eq.s32.totalorder %s29, 1
    %p414 = por %p412, %p413
    %p416 = scmp.ne.s32.totalorder %s399, %s415
    %p417 = scmp.eq.s32.totalorder %s29, 0
    %p418 = por %p416, %p417
    %p419 = scmp.le.s32.totalorder 1, %s23
    %p420 = scmp.lt.s32.totalorder %s23, 3
    %p421 = pnand %p419, %p420
    %p422 = pneg %p421
    // Predicated region
    $region9: #{istft_forward.8} parent=5 // pred_check
      _
    $region10: #{istft_forward.8} parent=5 // pred_check_branch
      %424 = sbr.rel (%p421) target = $region12
    $region11: #{istft_forward.8} parent=5 // pred_region
      %s425 = ssub.s32 %s23, 1
      // Predicated region
      $region13: #{istft_forward.8} parent=11 // pred_check
        %p426 = pneg %p70
      $region14: #{istft_forward.8} parent=11 // pred_check_branch
        %428 = sbr.rel (%p426) target = $region16
      $region15: #{istft_forward.8} parent=11 // pred_region
        _
      $region16: #{istft_forward.8} parent=11 // pred_fallthru
        _
      // Predicated region
      $region17: #{istft_forward.8} parent=11 // pred_check
        %p429 = pneg %p91
      $region18: #{istft_forward.8} parent=11 // pred_check_branch
        %431 = sbr.rel (%p429) target = $region20
      $region19: #{istft_forward.8} parent=11 // pred_region
        _
      $region20: #{istft_forward.8} parent=11 // pred_fallthru
        _
      // Predicated region
      $region21: #{istft_forward.8} parent=11 // pred_check
        %p432 = pneg %p112
      $region22: #{istft_forward.8} parent=11 // pred_check_branch
        %434 = sbr.rel (%p432) target = $region24
      $region23: #{istft_forward.8} parent=11 // pred_region
        _
      $region24: #{istft_forward.8} parent=11 // pred_fallthru
        _
      // Predicated region
      $region25: #{istft_forward.8} parent=11 // pred_check
        %p435 = pneg %p133
      $region26: #{istft_forward.8} parent=11 // pred_check_branch
        %437 = sbr.rel (%p435) target = $region28
      $region27: #{istft_forward.8} parent=11 // pred_region
        _
      $region28: #{istft_forward.8} parent=11 // pred_fallthru
        _
      // Predicated region
      $region29: #{istft_forward.8} parent=11 // pred_check
        %p438 = pneg %p154
      $region30: #{istft_forward.8} parent=11 // pred_check_branch
        %440 = sbr.rel (%p438) target = $region32
      $region31: #{istft_forward.8} parent=11 // pred_region
        _
      $region32: #{istft_forward.8} parent=11 // pred_fallthru
        _
      // Predicated region
      $region33: #{istft_forward.8} parent=11 // pred_check
        %p441 = pneg %p175
      $region34: #{istft_forward.8} parent=11 // pred_check_branch
        %443 = sbr.rel (%p441) target = $region36
      $region35: #{istft_forward.8} parent=11 // pred_region
        _
      $region36: #{istft_forward.8} parent=11 // pred_fallthru
        _
      // Predicated region
      $region37: #{istft_forward.8} parent=11 // pred_check
        %p444 = pneg %p196
      $region38: #{istft_forward.8} parent=11 // pred_check_branch
        %446 = sbr.rel (%p444) target = $region40
      $region39: #{istft_forward.8} parent=11 // pred_region
        _
      $region40: #{istft_forward.8} parent=11 // pred_fallthru
        _
      // Predicated region
      $region41: #{istft_forward.8} parent=11 // pred_check
        %p447 = pneg %p217
      $region42: #{istft_forward.8} parent=11 // pred_check_branch
        %449 = sbr.rel (%p447) target = $region44
      $region43: #{istft_forward.8} parent=11 // pred_region
        _
      $region44: #{istft_forward.8} parent=11 // pred_fallthru
        _
      // Predicated region
      $region45: #{istft_forward.8} parent=11 // pred_check
        %p450 = pneg %p238
      $region46: #{istft_forward.8} parent=11 // pred_check_branch
        %452 = sbr.rel (%p450) target = $region48
      $region47: #{istft_forward.8} parent=11 // pred_region
        _
      $region48: #{istft_forward.8} parent=11 // pred_fallthru
        _
      // Predicated region
      $region49: #{istft_forward.8} parent=11 // pred_check
        %p453 = pneg %p259
      $region50: #{istft_forward.8} parent=11 // pred_check_branch
        %455 = sbr.rel (%p453) target = $region52
      $region51: #{istft_forward.8} parent=11 // pred_region
        _
      $region52: #{istft_forward.8} parent=11 // pred_fallthru
        _
      // Predicated region
      $region53: #{istft_forward.8} parent=11 // pred_check
        %p456 = pneg %p280
      $region54: #{istft_forward.8} parent=11 // pred_check_branch
        %458 = sbr.rel (%p456) target = $region56
      $region55: #{istft_forward.8} parent=11 // pred_region
        _
      $region56: #{istft_forward.8} parent=11 // pred_fallthru
        _
      // Predicated region
      $region57: #{istft_forward.8} parent=11 // pred_check
        %p459 = pneg %p301
      $region58: #{istft_forward.8} parent=11 // pred_check_branch
        %461 = sbr.rel (%p459) target = $region60
      $region59: #{istft_forward.8} parent=11 // pred_region
        _
      $region60: #{istft_forward.8} parent=11 // pred_fallthru
        _
      // Predicated region
      $region61: #{istft_forward.8} parent=11 // pred_check
        %p462 = pneg %p322
      $region62: #{istft_forward.8} parent=11 // pred_check_branch
        %464 = sbr.rel (%p462) target = $region64
      $region63: #{istft_forward.8} parent=11 // pred_region
        _
      $region64: #{istft_forward.8} parent=11 // pred_fallthru
        _
      // Predicated region
      $region65: #{istft_forward.8} parent=11 // pred_check
        %p465 = pneg %p343
      $region66: #{istft_forward.8} parent=11 // pred_check_branch
        %467 = sbr.rel (%p465) target = $region68
      $region67: #{istft_forward.8} parent=11 // pred_region
        _
      $region68: #{istft_forward.8} parent=11 // pred_fallthru
        _
      // Predicated region
      $region69: #{istft_forward.8} parent=11 // pred_check
        %p468 = pneg %p364
      $region70: #{istft_forward.8} parent=11 // pred_check_branch
        %470 = sbr.rel (%p468) target = $region72
      $region71: #{istft_forward.8} parent=11 // pred_region
        _
      $region72: #{istft_forward.8} parent=11 // pred_fallthru
        _
      // Predicated region
      $region73: #{istft_forward.8} parent=11 // pred_check
        %p471 = pneg %p385
      $region74: #{istft_forward.8} parent=11 // pred_check_branch
        %473 = sbr.rel (%p471) target = $region76
      $region75: #{istft_forward.8} parent=11 // pred_region
        _
      $region76: #{istft_forward.8} parent=11 // pred_fallthru
        _
    $region12: #{istft_forward.8} parent=5 // pred_fallthru
      _
    %p474 = scmp.lt.s32.totalorder %s23, 2
    // Predicated region
    $region77: #{istft_forward.8} parent=5 // pred_check
      %p475 = pneg %p474
    $region78: #{istft_forward.8} parent=5 // pred_check_branch
      %477 = sbr.rel (%p475) target = $region80
    $region79: #{istft_forward.8} parent=5 // pred_region
      // Predicated region
      $region81: #{istft_forward.8} parent=79 // pred_check
        %p478 = pneg %p43
      $region82: #{istft_forward.8} parent=79 // pred_check_branch
        %480 = sbr.rel (%p478) target = $region84
      $region83: #{istft_forward.8} parent=79 // pred_region
        %p481 = scmp.lt.s32.totalorder %s23, 1
        %s482 = scalar_select %p481, %s23, 1
        %s483 = smul.addr %s482, 2
        %s484 = smul.addr %s483, 4
        %s485 = scalar_lea.vmem %s0, %s484
      $region84: #{istft_forward.8} parent=79 // pred_fallthru
        _
    $region80: #{istft_forward.8} parent=5 // pred_fallthru
      _
    %p486 = scmp.le.s32.totalorder 1, %s23
    %p487 = scmp.lt.s32.totalorder %s23, 3
    %p488 = pnand %p486, %p487
    %p489 = pneg %p488
    // Predicated region
    $region85: #{istft_forward.8} parent=5 // pred_check
      _
    $region86: #{istft_forward.8} parent=5 // pred_check_branch
      %491 = sbr.rel (%p488) target = $region88
    $region87: #{istft_forward.8} parent=5 // pred_region
      %s492 = ssub.s32 %s23, 1
      %p493 = scmp.lt.s32.totalorder %s28, 1
      %s494 = scalar_select %p493, %s28, 1
      %s495 = smul.addr %s494, 2
      %s496 = smul.addr %s495, 4
      %s497 = scalar_lea.vmem %s0, %s496
      %p498 = pneg %p49
      %p499 = pneg %p46
      %p500 = pneg %p70
      %p501 = pneg %p67
      %p502 = pneg %p91
      %p503 = pneg %p88
      %p504 = pneg %p112
      %p505 = pneg %p109
      %p506 = pneg %p133
      %p507 = pneg %p130
      %p508 = pneg %p154
      %p509 = pneg %p151
      %p510 = pneg %p175
      %p511 = pneg %p172
      %p512 = pneg %p196
      %p513 = pneg %p193
      %p514 = pneg %p217
      %p515 = pneg %p214
      %p516 = pneg %p238
      %p517 = pneg %p235
      %p518 = pneg %p259
      %p519 = pneg %p256
      %p520 = pneg %p280
      %p521 = pneg %p277
      %p522 = pneg %p301
      %p523 = pneg %p298
      %p524 = pneg %p322
      %p525 = pneg %p319
      %p526 = pneg %p343
      %p527 = pneg %p340
      %p528 = pneg %p364
      %p529 = pneg %p361
      %p530 = pneg %p385
      %p531 = pneg %p382
      %p532 = pneg %p411
      %p533 = pneg %p408
      %p534 = scmp.lt.s32.totalorder %s28, 1
      %s535 = scalar_select %p534, %s28, 1
      %s536 = smul.addr %s535, 2
      %s537 = smul.addr %s536, 4
      %s538 = scalar_lea.vmem %s17, %s537
      %p539 = scmp.lt.s32.totalorder %s28, 1
      %s540 = scalar_select %p539, %s28, 1
      %s541 = smul.addr %s540, 2
      %s542 = smul.addr %s541, 4
      %s543 = scalar_lea.vmem %s0, %s542
      %p544 = scmp.lt.s32.totalorder %s28, 1
      %s545 = scalar_select %p544, %s28, 1
      %s546 = smul.addr %s545, 2
      %s547 = smul.addr %s546, 4
      %s548 = scalar_lea.vmem %s17, %s547
      %vm550 = vcmask 48128
      %551 = vst.msk [vmem:[#allocation2] sm:$0xff] %vm550, 0
      %vm552 = vcmask 359728
      %553 = vst.msk [vmem:[#allocation2] sm:$0xff] %vm552, 0
      %v554 = vld [vmem:[%s543] sm:$0xf]
      %v555 = vld [vmem:[%s543 + $0x4] sm:$0xf]
      %v556 = vunpack.c.l.bf16 %v554
      %v557 = vunpack.c.l.bf16 %v555
      %vm558 = vcmp.ge.f32.partialorder %v556, 0.0
      %vm559 = vcmp.ge.f32.partialorder %v557, 0.0
      %v560 = vmul.f32 %v556, 0.1
      %v561 = vmul.f32 %v557, 0.1
      %v562 = vsel %vm558, %v556, %v560
      %v563 = vsel %vm559, %v557, %v561
      %v564 = vpack.c.bf16 %v563, %v562
      %566 = vrot.lane.b32.xlu0 %v564, 6
      %v567 = vpop.permute.xlu0 %566
      %vm569 = vcmask 310320
      %570 = vst.msk [vmem:[#allocation2] sm:$0xff] %vm569, %v567
      %v571 = vld [vmem:[%s1] sm:$0xf]
      %v572 = vld [vmem:[%s1 + $0x4] sm:$0xf]
      %v573 = vld [vmem:[%s9] sm:$0xff]
      %v574 = vld [vmem:[%s9 + $0x8] sm:$0xff]
      %v575 = vld [vmem:[#allocation2] sm:$0xff]
      %577 = vrot.lane.b32.xlu0 %v575, 127
      %v578 = vpop.permute.xlu0 %577
      %579 = vrot.lane.b32.xlu0 %v575, 126
      %v580 = vpop.permute.xlu0 %579
      %582 = vset.pattern.permute.xlu0 0
      %583 = vperm.xlu0 %582, %v573
      %v584 = vpop.permute.xlu0 %583
      %587 = vset.pattern.permute.xlu0 0
      %588 = vperm.xlu0 %587, %v574
      %v589 = vpop.permute.xlu0 %588
      %v593 = vunpack.c.l.b16 %v571
      %v594 = vunpack.c.l.b16 %v572
      %v595 = vpack.c.b16 %v594, %v593
      %596 = vrot.lane.b32.xlu0 %v575, 123
      %v597 = vpop.permute.xlu0 %596
      %598 = vrot.lane.b32.xlu0 %v578, 123
      %v599 = vpop.permute.xlu0 %598
      %600 = vrot.lane.b32.xlu0 %v580, 123
      %v601 = vpop.permute.xlu0 %600
      %vm605 = vcmask 392192
      %v607 = vsel %vm605, %v595, 0
      %609 = vmatprep.subr.bf16.mxu0 0
      %610 = vmatpush1.bf16.msra.mxu0 %v597
      %611 = vmatprep.subr.bf16.mxu0 0
      %612 = vmatpush1.bf16.msra.mxu0 %v599
      %613 = vmatprep.subr.bf16.mxu0 0
      %614 = vmatpush1.bf16.msra.mxu0 %v601
      %615 = vmatprep.subr.bf16.mxu0 0
      %616 = vmatpush1.bf16.msra.mxu0 0
      %617 = vmatprep.subr.bf16.mxu0 0
      %618 = vmatpush1.bf16.msra.mxu0 0
      %619 = vmatprep.subr.bf16.mxu0 0
      %620 = vmatpush1.bf16.msra.mxu0 0
      %621 = vmatprep.subr.bf16.mxu0 0
      %622 = vmatpush1.bf16.msra.mxu0 0
      %623 = vmatprep.subr.bf16.mxu0 0
      %624 = vmatpush1.bf16.msra.mxu0 0
      %625 = vmatprep.subr.bf16.mxu0 0
      %626 = vmatpush1.bf16.msra.mxu0 0
      %627 = vmatprep.subr.bf16.mxu0 0
      %628 = vmatpush1.bf16.msra.mxu0 0
      %629 = vmatprep.subr.bf16.mxu0 0
      %630 = vmatpush1.bf16.msra.mxu0 0
      %631 = vmatprep.subr.bf16.mxu0 0
      %632 = vmatpush1.bf16.msra.mxu0 0
      %633 = vmatprep.subr.bf16.mxu0 0
      %634 = vmatpush1.bf16.msra.mxu0 0
      %635 = vmatprep.subr.bf16.mxu0 0
      %636 = vmatpush1.bf16.msra.mxu0 0
      %637 = vmatprep.subr.bf16.mxu0 0
      %638 = vmatpush1.bf16.msra.mxu0 0
      %639 = vmatprep.subr.bf16.mxu0 0
      %640 = vmatpush1.bf16.msra.mxu0 0
      %641 = vmatprep.mubr.bf16.mxu0 0
      %642 = vmatmul.mubr.bf16.gmra.mrb[0].mxu0 %v607
      %v643 = vpop.f32.mrb[0].mxu0
      %v644 = vadd.f32 %v584, %v643
      %v645 = vpop.f32.mrb[0].mxu0
      %v646 = vpop.f32.mrb[0].mxu0
      %v647 = vadd.f32 %v589, %v646
      %v648 = vpop.f32.mrb[0].mxu0
      %649 = vdwg.mxu0
      %vm650 = vcmp.ge.f32.partialorder %v644, 0.0
      %vm651 = vcmp.ge.f32.partialorder %v647, 0.0
      %v652 = vmul.f32 %v644, 0.1
      %v653 = vmul.f32 %v647, 0.1
      %v654 = vsel %vm650, %v644, %v652
      %v655 = vsel %vm651, %v647, %v653
      %v656 = vpack.c.bf16 %v655, %v654
      %658 = vrot.lane.b32.xlu0 %v656, 6
      %v659 = vpop.permute.xlu0 %658
      %661 = vst.msk [vmem:[#allocation2] sm:$0xff] %vm569, %v659
      %v662 = vld [vmem:[%s2] sm:$0xf]
      %v663 = vld [vmem:[%s2 + $0x4] sm:$0xf]
      %v664 = vld [vmem:[%s10] sm:$0xff]
      %v665 = vld [vmem:[%s10 + $0x8] sm:$0xff]
      %v666 = vld [vmem:[#allocation2] sm:$0xff]
      %668 = vrot.lane.b32.xlu0 %v666, 127
      %v669 = vpop.permute.xlu0 %668
      %670 = vrot.lane.b32.xlu0 %v666, 126
      %v671 = vpop.permute.xlu0 %670
      %673 = vset.pattern.permute.xlu0 0
      %674 = vperm.xlu0 %673, %v664
      %v675 = vpop.permute.xlu0 %674
      %678 = vset.pattern.permute.xlu0 0
      %679 = vperm.xlu0 %678, %v665
      %v680 = vpop.permute.xlu0 %679
      %v684 = vunpack.c.l.b16 %v662
      %v685 = vunpack.c.l.b16 %v663
      %v686 = vpack.c.b16 %v685, %v684
      %687 = vrot.lane.b32.xlu0 %v666, 123
      %v688 = vpop.permute.xlu0 %687
      %689 = vrot.lane.b32.xlu0 %v669, 123
      %v690 = vpop.permute.xlu0 %689
      %691 = vrot.lane.b32.xlu0 %v671, 123
      %v692 = vpop.permute.xlu0 %691
      %v697 = vsel %vm605, %v686, 0
      %699 = vmatprep.subr.bf16.mxu0 0
      %700 = vmatpush1.bf16.msra.mxu0 %v688
      %701 = vmatprep.subr.bf16.mxu0 0
      %702 = vmatpush1.bf16.msra.mxu0 %v690
      %703 = vmatprep.subr.bf16.mxu0 0
      %704 = vmatpush1.bf16.msra.mxu0 %v692
      %705 = vmatprep.subr.bf16.mxu0 0
      %706 = vmatpush1.bf16.msra.mxu0 0
      %707 = vmatprep.subr.bf16.mxu0 0
      %708 = vmatpush1.bf16.msra.mxu0 0
      %709 = vmatprep.subr.bf16.mxu0 0
      %710 = vmatpush1.bf16.msra.mxu0 0
      %711 = vmatprep.subr.bf16.mxu0 0
      %712 = vmatpush1.bf16.msra.mxu0 0
      %713 = vmatprep.subr.bf16.mxu0 0
      %714 = vmatpush1.bf16.msra.mxu0 0
      %715 = vmatprep.subr.bf16.mxu0 0
      %716 = vmatpush1.bf16.msra.mxu0 0
      %717 = vmatprep.subr.bf16.mxu0 0
      %718 = vmatpush1.bf16.msra.mxu0 0
      %719 = vmatprep.subr.bf16.mxu0 0
      %720 = vmatpush1.bf16.msra.mxu0 0
      %721 = vmatprep.subr.bf16.mxu0 0
      %722 = vmatpush1.bf16.msra.mxu0 0
      %723 = vmatprep.subr.bf16.mxu0 0
      %724 = vmatpush1.bf16.msra.mxu0 0
      %725 = vmatprep.subr.bf16.mxu0 0
      %726 = vmatpush1.bf16.msra.mxu0 0
      %727 = vmatprep.subr.bf16.mxu0 0
      %728 = vmatpush1.bf16.msra.mxu0 0
      %729 = vmatprep.subr.bf16.mxu0 0
      %730 = vmatpush1.bf16.msra.mxu0 0
      %731 = vmatprep.mubr.bf16.mxu0 0
      %732 = vmatmul.mubr.bf16.gmra.mrb[0].mxu0 %v697
      %v733 = vpop.f32.mrb[0].mxu0
      %v734 = vadd.f32 %v675, %v733
      %v735 = vpop.f32.mrb[0].mxu0
      %v736 = vpop.f32.mrb[0].mxu0
      %v737 = vadd.f32 %v680, %v736
      %v738 = vpop.f32.mrb[0].mxu0
      %739 = vdwg.mxu0
      %v740 = vadd.f32 %v734, %v556
      %v741 = vadd.f32 %v737, %v557
      %vm742 = vcmp.ge.f32.partialorder %v740, 0.0
      %vm743 = vcmp.ge.f32.partialorder %v741, 0.0
      %v744 = vmul.f32 %v740, 0.1
      %v745 = vmul.f32 %v741, 0.1
      %v746 = vsel %vm742, %v740, %v744
      %v747 = vsel %vm743, %v741, %v745
      %v748 = vpack.c.bf16 %v747, %v746
      %750 = vrot.lane.b32.xlu0 %v748, 6
      %v751 = vpop.permute.xlu0 %750
      %753 = vst.msk [vmem:[#allocation2] sm:$0xff] %vm569, %v751
      %v754 = vld [vmem:[%s3] sm:$0xf]
      %v755 = vld [vmem:[%s3 + $0x4] sm:$0xf]
      %v756 = vld [vmem:[%s11] sm:$0xff]
      %v757 = vld [vmem:[%s11 + $0x8] sm:$0xff]
      %v758 = vld [vmem:[#allocation2] sm:$0xff]
      %760 = vrot.lane.b32.xlu0 %v758, 125
      %v761 = vpop.permute.xlu0 %760
      %762 = vrot.lane.b32.xlu0 %v758, 122
      %v763 = vpop.permute.xlu0 %762
      %765 = vset.pattern.permute.xlu0 0
      %766 = vperm.xlu0 %765, %v756
      %v767 = vpop.permute.xlu0 %766
      %770 = vset.pattern.permute.xlu0 0
      %771 = vperm.xlu0 %770, %v757
      %v772 = vpop.permute.xlu0 %771
      %v776 = vunpack.c.l.b16 %v754
      %v777 = vunpack.c.l.b16 %v755
      %v778 = vpack.c.b16 %v777, %v776
      %779 = vrot.lane.b32.xlu0 %v761, 125
      %v780 = vpop.permute.xlu0 %779
      %781 = vrot.lane.b32.xlu0 %v763, 125
      %v782 = vpop.permute.xlu0 %781
      %v787 = vsel %vm605, %v778, 0
      %789 = vmatprep.subr.bf16.mxu0 0
      %790 = vmatpush1.bf16.msra.mxu0 %v761
      %791 = vmatprep.subr.bf16.mxu0 0
      %792 = vmatpush1.bf16.msra.mxu0 %v780
      %793 = vmatprep.subr.bf16.mxu0 0
      %794 = vmatpush1.bf16.msra.mxu0 %v782
      %795 = vmatprep.subr.bf16.mxu0 0
      %796 = vmatpush1.bf16.msra.mxu0 0
      %797 = vmatprep.subr.bf16.mxu0 0
      %798 = vmatpush1.bf16.msra.mxu0 0
      %799 = vmatprep.subr.bf16.mxu0 0
      %800 = vmatpush1.bf16.msra.mxu0 0
      %801 = vmatprep.subr.bf16.mxu0 0
      %802 = vmatpush1.bf16.msra.mxu0 0
      %803 = vmatprep.subr.bf16.mxu0 0
      %804 = vmatpush1.bf16.msra.mxu0 0
      %805 = vmatprep.subr.bf16.mxu0 0
      %806 = vmatpush1.bf16.msra.mxu0 0
      %807 = vmatprep.subr.bf16.mxu0 0
      %808 = vmatpush1.bf16.msra.mxu0 0
      %809 = vmatprep.subr.bf16.mxu0 0
      %810 = vmatpush1.bf16.msra.mxu0 0
      %811 = vmatprep.subr.bf16.mxu0 0
      %812 = vmatpush1.bf16.msra.mxu0 0
      %813 = vmatprep.subr.bf16.mxu0 0
      %814 = vmatpush1.bf16.msra.mxu0 0
      %815 = vmatprep.subr.bf16.mxu0 0
      %816 = vmatpush1.bf16.msra.mxu0 0
      %817 = vmatprep.subr.bf16.mxu0 0
      %818 = vmatpush1.bf16.msra.mxu0 0
      %819 = vmatprep.subr.bf16.mxu0 0
      %820 = vmatpush1.bf16.msra.mxu0 0
      %821 = vmatprep.mubr.bf16.mxu0 0
      %822 = vmatmul.mubr.bf16.gmra.mrb[0].mxu0 %v787
      %v823 = vpop.f32.mrb[0].mxu0
      %v824 = vadd.f32 %v767, %v823
      %v825 = vpop.f32.mrb[0].mxu0
      %v826 = vpop.f32.mrb[0].mxu0
      %v827 = vadd.f32 %v772, %v826
      %v828 = vpop.f32.mrb[0].mxu0
      %829 = vdwg.mxu0
      %vm830 = vcmp.ge.f32.partialorder %v824, 0.0
      %vm831 = vcmp.ge.f32.partialorder %v827, 0.0
      %v832 = vmul.f32 %v824, 0.1
      %v833 = vmul.f32 %v827, 0.1
      %v834 = vsel %vm830, %v824, %v832
      %v835 = vsel %vm831, %v827, %v833
      %v836 = vpack.c.bf16 %v835, %v834
      %838 = vrot.lane.b32.xlu0 %v836, 6
      %v839 = vpop.permute.xlu0 %838
      %841 = vst.msk [vmem:[#allocation2] sm:$0xff] %vm569, %v839
      %v842 = vld [vmem:[%s4] sm:$0xf]
      %v843 = vld [vmem:[%s4 + $0x4] sm:$0xf]
      %v844 = vld [vmem:[%s12] sm:$0xff]
      %v845 = vld [vmem:[%s12 + $0x8] sm:$0xff]
      %v846 = vld [vmem:[#allocation2] sm:$0xff]
      %848 = vrot.lane.b32.xlu0 %v846, 127
      %v849 = vpop.permute.xlu0 %848
      %850 = vrot.lane.b32.xlu0 %v846, 126
      %v851 = vpop.permute.xlu0 %850
      %853 = vset.pattern.permute.xlu0 0
      %854 = vperm.xlu0 %853, %v844
      %v855 = vpop.permute.xlu0 %854
      %858 = vset.pattern.permute.xlu0 0
      %859 = vperm.xlu0 %858, %v845
      %v860 = vpop.permute.xlu0 %859
      %v864 = vunpack.c.l.b16 %v842
      %v865 = vunpack.c.l.b16 %v843
      %v866 = vpack.c.b16 %v865, %v864
      %867 = vrot.lane.b32.xlu0 %v846, 123
      %v868 = vpop.permute.xlu0 %867
      %869 = vrot.lane.b32.xlu0 %v849, 123
      %v870 = vpop.permute.xlu0 %869
      %871 = vrot.lane.b32.xlu0 %v851, 123
      %v872 = vpop.permute.xlu0 %871
      %v877 = vsel %vm605, %v866, 0
      %879 = vmatprep.subr.bf16.mxu0 0
      %880 = vmatpush1.bf16.msra.mxu0 %v868
      %881 = vmatprep.subr.bf16.mxu0 0
      %882 = vmatpush1.bf16.msra.mxu0 %v870
      %883 = vmatprep.subr.bf16.mxu0 0
      %884 = vmatpush1.bf16.msra.mxu0 %v872
      %885 = vmatprep.subr.bf16.mxu0 0
      %886 = vmatpush1.bf16.msra.mxu0 0
      %887 = vmatprep.subr.bf16.mxu0 0
      %888 = vmatpush1.bf16.msra.mxu0 0
      %889 = vmatprep.subr.bf16.mxu0 0
      %890 = vmatpush1.bf16.msra.mxu0 0
      %891 = vmatprep.subr.bf16.mxu0 0
      %892 = vmatpush1.bf16.msra.mxu0 0
      %893 = vmatprep.subr.bf16.mxu0 0
      %894 = vmatpush1.bf16.msra.mxu0 0
      %895 = vmatprep.subr.bf16.mxu0 0
      %896 = vmatpush1.bf16.msra.mxu0 0
      %897 = vmatprep.subr.bf16.mxu0 0
      %898 = vmatpush1.bf16.msra.mxu0 0
      %899 = vmatprep.subr.bf16.mxu0 0
      %900 = vmatpush1.bf16.msra.mxu0 0
      %901 = vmatprep.subr.bf16.mxu0 0
      %902 = vmatpush1.bf16.msra.mxu0 0
      %903 = vmatprep.subr.bf16.mxu0 0
      %904 = vmatpush1.bf16.msra.mxu0 0
      %905 = vmatprep.subr.bf16.mxu0 0
      %906 = vmatpush1.bf16.msra.mxu0 0
      %907 = vmatprep.subr.bf16.mxu0 0
      %908 = vmatpush1.bf16.msra.mxu0 0
      %909 = vmatprep.subr.bf16.mxu0 0
      %910 = vmatpush1.bf16.msra.mxu0 0
      %911 = vmatprep.mubr.bf16.mxu0 0
      %912 = vmatmul.mubr.bf16.gmra.mrb[0].mxu0 %v877
      %v913 = vpop.f32.mrb[0].mxu0
      %v914 = vadd.f32 %v855, %v913
      %v915 = vpop.f32.mrb[0].mxu0
      %v916 = vpop.f32.mrb[0].mxu0
      %v917 = vadd.f32 %v860, %v916
      %v918 = vpop.f32.mrb[0].mxu0
      %919 = vdwg.mxu0
      %v920 = vadd.f32 %v914, %v740
      %v921 = vadd.f32 %v917, %v741
      %922 = vst.msk [vmem:[#allocation2] sm:$0xff] %vm569, %v567
      %v923 = vld [vmem:[%s5] sm:$0xf]
      %v924 = vld [vmem:[%s5 + $0x4] sm:$0xf]
      %v925 = vld [vmem:[%s13] sm:$0xff]
      %v926 = vld [vmem:[%s13 + $0x8] sm:$0xff]
      %v927 = vld [vmem:[#allocation2] sm:$0xff]
      %929 = vrot.lane.b32.xlu0 %v927, 127
      %v930 = vpop.permute.xlu0 %929
      %931 = vrot.lane.b32.xlu0 %v927, 126
      %v932 = vpop.permute.xlu0 %931
      %933 = vrot.lane.b32.xlu0 %v927, 125
      %v934 = vpop.permute.xlu0 %933
      %935 = vrot.lane.b32.xlu0 %v927, 124
      %v936 = vpop.permute.xlu0 %935
      %938 = vset.pattern.permute.xlu0 0
      %939 = vperm.xlu0 %938, %v925
      %v940 = vpop.permute.xlu0 %939
      %943 = vset.pattern.permute.xlu0 0
      %944 = vperm.xlu0 %943, %v926
      %v945 = vpop.permute.xlu0 %944
      %v949 = vunpack.c.l.b16 %v923
      %v950 = vunpack.c.l.b16 %v924
      %v951 = vpack.c.b16 %v950, %v949
      %952 = vrot.lane.b32.xlu0 %v930, 124
      %v953 = vpop.permute.xlu0 %952
      %954 = vrot.lane.b32.xlu0 %v932, 124
      %v955 = vpop.permute.xlu0 %954
      %956 = vrot.lane.b32.xlu0 %v934, 124
      %v957 = vpop.permute.xlu0 %956
      %958 = vrot.lane.b32.xlu0 %v936, 124
      %v959 = vpop.permute.xlu0 %958
      %vm965 = vcmask 654336
      %v967 = vsel %vm965, %v951, 0
      %969 = vmatprep.subr.bf16.mxu0 0
      %970 = vmatpush1.bf16.msra.mxu0 %v936
      %971 = vmatprep.subr.bf16.mxu0 0
      %972 = vmatpush1.bf16.msra.mxu0 %v953
      %973 = vmatprep.subr.bf16.mxu0 0
      %974 = vmatpush1.bf16.msra.mxu0 %v955
      %975 = vmatprep.subr.bf16.mxu0 0
      %976 = vmatpush1.bf16.msra.mxu0 %v957
      %977 = vmatprep.subr.bf16.mxu0 0
      %978 = vmatpush1.bf16.msra.mxu0 %v959
      %979 = vmatprep.subr.bf16.mxu0 0
      %980 = vmatpush1.bf16.msra.mxu0 0
      %981 = vmatprep.subr.bf16.mxu0 0
      %982 = vmatpush1.bf16.msra.mxu0 0
      %983 = vmatprep.subr.bf16.mxu0 0
      %984 = vmatpush1.bf16.msra.mxu0 0
      %985 = vmatprep.subr.bf16.mxu0 0
      %986 = vmatpush1.bf16.msra.mxu0 0
      %987 = vmatprep.subr.bf16.mxu0 0
      %988 = vmatpush1.bf16.msra.mxu0 0
      %989 = vmatprep.subr.bf16.mxu0 0
      %990 = vmatpush1.bf16.msra.mxu0 0
      %991 = vmatprep.subr.bf16.mxu0 0
      %992 = vmatpush1.bf16.msra.mxu0 0
      %993 = vmatprep.subr.bf16.mxu0 0
      %994 = vmatpush1.bf16.msra.mxu0 0
      %995 = vmatprep.subr.bf16.mxu0 0
      %996 = vmatpush1.bf16.msra.mxu0 0
      %997 = vmatprep.subr.bf16.mxu0 0
      %998 = vmatpush1.bf16.msra.mxu0 0
      %999 = vmatprep.subr.bf16.mxu0 0
      %1000 = vmatpush1.bf16.msra.mxu0 0
      %1001 = vmatprep.mubr.bf16.mxu0 0
      %1002 = vmatmul.mubr.bf16.gmra.mrb[0].mxu0 %v967
      %v1003 = vpop.f32.mrb[0].mxu0
      %v1004 = vadd.f32 %v940, %v1003
      %v1005 = vpop.f32.mrb[0].mxu0
      %v1006 = vpop.f32.mrb[0].mxu0
      %v1007 = vadd.f32 %v945, %v1006
      %v1008 = vpop.f32.mrb[0].mxu0
      %1009 = vdwg.mxu0
      %vm1010 = vcmp.ge.f32.partialorder %v1004, 0.0
      %vm1011 = vcmp.ge.f32.partialorder %v1007, 0.0
      %v1012 = vmul.f32 %v1004, 0.1
      %v1013 = vmul.f32 %v1007, 0.1
      %v1014 = vsel %vm1010, %v1004, %v1012
      %v1015 = vsel %vm1011, %v1007, %v1013
      %v1016 = vpack.c.bf16 %v1015, %v1014
      %1018 = vrot.lane.b32.xlu0 %v1016, 6
      %v1019 = vpop.permute.xlu0 %1018
      %1021 = vst.msk [vmem:[#allocation2] sm:$0xff] %vm569, %v1019
      %v1022 = vld [vmem:[%s6] sm:$0xf]
      %v1023 = vld [vmem:[%s6 + $0x4] sm:$0xf]
      %v1024 = vld [vmem:[%s14] sm:$0xff]
      %v1025 = vld [vmem:[%s14 + $0x8] sm:$0xff]
      %v1026 = vld [vmem:[#allocation2] sm:$0xff]
      %1028 = vrot.lane.b32.xlu0 %v1026, 127
      %v1029 = vpop.permute.xlu0 %1028
      %1030 = vrot.lane.b32.xlu0 %v1026, 126
      %v1031 = vpop.permute.xlu0 %1030
      %1032 = vrot.lane.b32.xlu0 %v1026, 125
      %v1033 = vpop.permute.xlu0 %1032
      %1034 = vrot.lane.b32.xlu0 %v1026, 124
      %v1035 = vpop.permute.xlu0 %1034
      %1037 = vset.pattern.permute.xlu0 0
      %1038 = vperm.xlu0 %1037, %v1024
      %v1039 = vpop.permute.xlu0 %1038
      %1042 = vset.pattern.permute.xlu0 0
      %1043 = vperm.xlu0 %1042, %v1025
      %v1044 = vpop.permute.xlu0 %1043
      %v1048 = vunpack.c.l.b16 %v1022
      %v1049 = vunpack.c.l.b16 %v1023
      %v1050 = vpack.c.b16 %v1049, %v1048
      %1051 = vrot.lane.b32.xlu0 %v1029, 124
      %v1052 = vpop.permute.xlu0 %1051
      %1053 = vrot.lane.b32.xlu0 %v1031, 124
      %v1054 = vpop.permute.xlu0 %1053
      %1055 = vrot.lane.b32.xlu0 %v1033, 124
      %v1056 = vpop.permute.xlu0 %1055
      %1057 = vrot.lane.b32.xlu0 %v1035, 124
      %v1058 = vpop.permute.xlu0 %1057
      %v1065 = vsel %vm965, %v1050, 0
      %1067 = vmatprep.subr.bf16.mxu0 0
      %1068 = vmatpush1.bf16.msra.mxu0 %v1035
      %1069 = vmatprep.subr.bf16.mxu0 0
      %1070 = vmatpush1.bf16.msra.mxu0 %v1052
      %1071 = vmatprep.subr.bf16.mxu0 0
      %1072 = vmatpush1.bf16.msra.mxu0 %v1054
      %1073 = vmatprep.subr.bf16.mxu0 0
      %1074 = vmatpush1.bf16.msra.mxu0 %v1056
      %1075 = vmatprep.subr.bf16.mxu0 0
      %1076 = vmatpush1.bf16.msra.mxu0 %v1058
      %1077 = vmatprep.subr.bf16.mxu0 0
      %1078 = vmatpush1.bf16.msra.mxu0 0
      %1079 = vmatprep.subr.bf16.mxu0 0
      %1080 = vmatpush1.bf16.msra.mxu0 0
      %1081 = vmatprep.subr.bf16.mxu0 0
      %1082 = vmatpush1.bf16.msra.mxu0 0
      %1083 = vmatprep.subr.bf16.mxu0 0
      %1084 = vmatpush1.bf16.msra.mxu0 0
      %1085 = vmatprep.subr.bf16.mxu0 0
      %1086 = vmatpush1.bf16.msra.mxu0 0
      %1087 = vmatprep.subr.bf16.mxu0 0
      %1088 = vmatpush1.bf16.msra.mxu0 0
      %1089 = vmatprep.subr.bf16.mxu0 0
      %1090 = vmatpush1.bf16.msra.mxu0 0
      %1091 = vmatprep.subr.bf16.mxu0 0
      %1092 = vmatpush1.bf16.msra.mxu0 0
      %1093 = vmatprep.subr.bf16.mxu0 0
      %1094 = vmatpush1.bf16.msra.mxu0 0
      %1095 = vmatprep.subr.bf16.mxu0 0
      %1096 = vmatpush1.bf16.msra.mxu0 0
      %1097 = vmatprep.subr.bf16.mxu0 0
      %1098 = vmatpush1.bf16.msra.mxu0 0
      %1099 = vmatprep.mubr.bf16.mxu0 0
      %1100 = vmatmul.mubr.bf16.gmra.mrb[0].mxu0 %v1065
      %v1101 = vpop.f32.mrb[0].mxu0
      %v1102 = vadd.f32 %v1039, %v1101
      %v1103 = vpop.f32.mrb[0].mxu0
      %v1104 = vpop.f32.mrb[0].mxu0
      %v1105 = vadd.f32 %v1044, %v1104
      %v1106 = vpop.f32.mrb[0].mxu0
      %1107 = vdwg.mxu0
      %v1108 = vadd.f32 %v1102, %v556
      %v1109 = vadd.f32 %v1105, %v557
      %vm1110 = vcmp.ge.f32.partialorder %v1108, 0.0
      %vm1111 = vcmp.ge.f32.partialorder %v1109, 0.0
      %v1112 = vmul.f32 %v1108, 0.1
      %v1113 = vmul.f32 %v1109, 0.1
      %v1114 = vsel %vm1110, %v1108, %v1112
      %v1115 = vsel %vm1111, %v1109, %v1113
      %v1116 = vpack.c.bf16 %v1115, %v1114
      %1118 = vrot.lane.b32.xlu0 %v1116, 6
      %v1119 = vpop.permute.xlu0 %1118
      %1121 = vst.msk [vmem:[#allocation2] sm:$0xff] %vm569, %v1119
      %v1122 = vld [vmem:[%s7] sm:$0xf]
      %v1123 = vld [vmem:[%s7 + $0x4] sm:$0xf]
      %v1124 = vld [vmem:[%s15] sm:$0xff]
      %v1125 = vld [vmem:[%s15 + $0x8] sm:$0xff]
      %v1126 = vld [vmem:[#allocation2] sm:$0xff]
      %1128 = vrot.lane.b32.xlu0 %v1126, 125
      %v1129 = vpop.permute.xlu0 %1128
      %1131 = vrot.lane.b32.xlu0 %v1126, 122
      %v1132 = vpop.permute.xlu0 %1131
      %1134 = vrot.lane.b32.xlu0 %v1126, 119
      %v1135 = vpop.permute.xlu0 %1134
      %1137 = vrot.lane.b32.xlu0 %v1126, 116
      %v1138 = vpop.permute.xlu0 %1137
      %1141 = vset.pattern.permute.xlu0 0
      %1142 = vperm.xlu0 %1141, %v1124
      %v1143 = vpop.permute.xlu0 %1142
      %1146 = vset.pattern.permute.xlu0 0
      %1147 = vperm.xlu0 %1146, %v1125
      %v1148 = vpop.permute.xlu0 %1147
      %v1152 = vunpack.c.l.b16 %v1122
      %v1153 = vunpack.c.l.b16 %v1123
      %v1154 = vpack.c.b16 %v1153, %v1152
      %v1156 = vsel %vm965, %v1154, 0
      %1158 = vmatprep.subr.bf16.mxu0 0
      %1159 = vmatpush1.bf16.msra.mxu0 %v1126
      %1160 = vmatprep.subr.bf16.mxu0 0
      %1161 = vmatpush1.bf16.msra.mxu0 %v1129
      %1162 = vmatprep.subr.bf16.mxu0 0
      %1163 = vmatpush1.bf16.msra.mxu0 %v1132
      %1164 = vmatprep.subr.bf16.mxu0 0
      %1165 = vmatpush1.bf16.msra.mxu0 %v1135
      %1166 = vmatprep.subr.bf16.mxu0 0
      %1167 = vmatpush1.bf16.msra.mxu0 %v1138
      %1168 = vmatprep.subr.bf16.mxu0 0
      %1169 = vmatpush1.bf16.msra.mxu0 0
      %1170 = vmatprep.subr.bf16.mxu0 0
      %1171 = vmatpush1.bf16.msra.mxu0 0
      %1172 = vmatprep.subr.bf16.mxu0 0
      %1173 = vmatpush1.bf16.msra.mxu0 0
      %1174 = vmatprep.subr.bf16.mxu0 0
      %1175 = vmatpush1.bf16.msra.mxu0 0
      %1176 = vmatprep.subr.bf16.mxu0 0
      %1177 = vmatpush1.bf16.msra.mxu0 0
      %1178 = vmatprep.subr.bf16.mxu0 0
      %1179 = vmatpush1.bf16.msra.mxu0 0
      %1180 = vmatprep.subr.bf16.mxu0 0
      %1181 = vmatpush1.bf16.msra.mxu0 0
      %1182 = vmatprep.subr.bf16.mxu0 0
      %1183 = vmatpush1.bf16.msra.mxu0 0
      %1184 = vmatprep.subr.bf16.mxu0 0
      %1185 = vmatpush1.bf16.msra.mxu0 0
      %1186 = vmatprep.subr.bf16.mxu0 0
      %1187 = vmatpush1.bf16.msra.mxu0 0
      %1188 = vmatprep.subr.bf16.mxu0 0
      %1189 = vmatpush1.bf16.msra.mxu0 0
      %1190 = vmatprep.mubr.bf16.mxu0 0
      %1191 = vmatmul.mubr.bf16.gmra.mrb[0].mxu0 %v1156
      %v1192 = vpop.f32.mrb[0].mxu0
      %v1193 = vadd.f32 %v1143, %v1192
      %v1194 = vpop.f32.mrb[0].mxu0
      %v1195 = vpop.f32.mrb[0].mxu0
      %v1196 = vadd.f32 %v1148, %v1195
      %v1197 = vpop.f32.mrb[0].mxu0
      %1198 = vdwg.mxu0
      %vm1199 = vcmp.ge.f32.partialorder %v1193, 0.0
      %vm1200 = vcmp.ge.f32.partialorder %v1196, 0.0
      %v1201 = vmul.f32 %v1193, 0.1
      %v1202 = vmul.f32 %v1196, 0.1
      %v1203 = vsel %vm1199, %v1193, %v1201
      %v1204 = vsel %vm1200, %v1196, %v1202
      %v1205 = vpack.c.bf16 %v1204, %v1203
      %1207 = vrot.lane.b32.xlu0 %v1205, 6
      %v1208 = vpop.permute.xlu0 %1207
      %1210 = vst.msk [vmem:[#allocation2] sm:$0xff] %vm569, %v1208
      %v1211 = vld [vmem:[%s8] sm:$0xf]
      %v1212 = vld [vmem:[%s8 + $0x4] sm:$0xf]
      %v1213 = vld [vmem:[%s16] sm:$0xff]
      %v1214 = vld [vmem:[%s16 + $0x8] sm:$0xff]
      %v1215 = vld [vmem:[#allocation2] sm:$0xff]
      %1217 = vrot.lane.b32.xlu0 %v1215, 127
      %v1218 = vpop.permute.xlu0 %1217
      %1219 = vrot.lane.b32.xlu0 %v1215, 126
      %v1220 = vpop.permute.xlu0 %1219
      %1221 = vrot.lane.b32.xlu0 %v1215, 125
      %v1222 = vpop.permute.xlu0 %1221
      %1223 = vrot.lane.b32.xlu0 %v1215, 124
      %v1224 = vpop.permute.xlu0 %1223
      %1226 = vset.pattern.permute.xlu0 0
      %1227 = vperm.xlu0 %1226, %v1213
      %v1228 = vpop.permute.xlu0 %1227
      %1231 = vset.pattern.permute.xlu0 0
      %1232 = vperm.xlu0 %1231, %v1214
      %v1233 = vpop.permute.xlu0 %1232
      %v1237 = vunpack.c.l.b16 %v1211
      %v1238 = vunpack.c.l.b16 %v1212
      %v1239 = vpack.c.b16 %v1238, %v1237
      %1240 = vrot.lane.b32.xlu0 %v1218, 124
      %v1241 = vpop.permute.xlu0 %1240
      %1242 = vrot.lane.b32.xlu0 %v1220, 124
      %v1243 = vpop.permute.xlu0 %1242
      %1244 = vrot.lane.b32.xlu0 %v1222, 124
      %v1245 = vpop.permute.xlu0 %1244
      %1246 = vrot.lane.b32.xlu0 %v1224, 124
      %v1247 = vpop.permute.xlu0 %1246
      %v1254 = vsel %vm965, %v1239, 0
      %1256 = vmatprep.subr.bf16.mxu0 0
      %1257 = vmatpush1.bf16.msra.mxu0 %v1224
      %1258 = vmatprep.subr.bf16.mxu0 0
      %1259 = vmatpush1.bf16.msra.mxu0 %v1241
      %1260 = vmatprep.subr.bf16.mxu0 0
      %1261 = vmatpush1.bf16.msra.mxu0 %v1243
      %1262 = vmatprep.subr.bf16.mxu0 0
      %1263 = vmatpush1.bf16.msra.mxu0 %v1245
      %1264 = vmatprep.subr.bf16.mxu0 0
      %1265 = vmatpush1.bf16.msra.mxu0 %v1247
      %1266 = vmatprep.subr.bf16.mxu0 0
      %1267 = vmatpush1.bf16.msra.mxu0 0
      %1268 = vmatprep.subr.bf16.mxu0 0
      %1269 = vmatpush1.bf16.msra.mxu0 0
      %1270 = vmatprep.subr.bf16.mxu0 0
      %1271 = vmatpush1.bf16.msra.mxu0 0
      %1272 = vmatprep.subr.bf16.mxu0 0
      %1273 = vmatpush1.bf16.msra.mxu0 0
      %1274 = vmatprep.subr.bf16.mxu0 0
      %1275 = vmatpush1.bf16.msra.mxu0 0
      %1276 = vmatprep.subr.bf16.mxu0 0
      %1277 = vmatpush1.bf16.msra.mxu0 0
      %1278 = vmatprep.subr.bf16.mxu0 0
      %1279 = vmatpush1.bf16.msra.mxu0 0
      %1280 = vmatprep.subr.bf16.mxu0 0
      %1281 = vmatpush1.bf16.msra.mxu0 0
      %1282 = vmatprep.subr.bf16.mxu0 0
      %1283 = vmatpush1.bf16.msra.mxu0 0
      %1284 = vmatprep.subr.bf16.mxu0 0
      %1285 = vmatpush1.bf16.msra.mxu0 0
      %1286 = vmatprep.subr.bf16.mxu0 0
      %1287 = vmatpush1.bf16.msra.mxu0 0
      %1288 = vmatprep.mubr.bf16.mxu0 0
      %1289 = vmatmul.mubr.bf16.gmra.mrb[0].mxu0 %v1254
      %v1290 = vpop.f32.mrb[0].mxu0
      %v1291 = vadd.f32 %v1228, %v1290
      %v1292 = vpop.f32.mrb[0].mxu0
      %v1293 = vpop.f32.mrb[0].mxu0
      %v1294 = vadd.f32 %v1233, %v1293
      %v1295 = vpop.f32.mrb[0].mxu0
      %1296 = vdwg.mxu0
      %v1297 = vadd.f32 %v1291, %v1108
      %v1298 = vadd.f32 %v1294, %v1109
      %v1299 = vadd.f32 %v920, %v1297
      %v1300 = vadd.f32 %v921, %v1298
      %v1301 = vmul.f32 %v1299, 0.5
      %v1302 = vmul.f32 %v1300, 0.5
      %v1303 = vpack.c.bf16 %v1302, %v1301
      %v1305 = vunpack.c.l.b16 %v1303
      %v1306 = vunpack.c.h.b16 %v1303
      %v1307 = vpack.c.b16 %v1305, %v1305
      %v1308 = vpack.c.b16 %v1306, %v1306
      %vm1311 = vcmask 257024
      %1312 = vst.msk [vmem:[%s548] sm:$0xf] %vm1311, %v1307
      %1313 = vst.msk [vmem:[%s548 + $0x4] sm:$0xf] %vm1311, %v1308
      %p1314 = scmp.lt.s32.totalorder %s28, 1
      %s1315 = scalar_select %p1314, %s28, 1
      %s1316 = smul.addr %s1315, 2
      %s1317 = smul.addr %s1316, 4
      %s1318 = scalar_lea.vmem %s17, %s1317
      // Predicated region
      $region89: #{istft_forward.8} parent=87 // pred_check
        %p1319 = pneg %p408
      $region90: #{istft_forward.8} parent=87 // pred_check_branch
        %1321 = sbr.rel (%p1319) target = $region92
      $region91: #{istft_forward.8} parent=87 // pred_region
        _
      $region92: #{istft_forward.8} parent=87 // pred_fallthru
        _
    $region88: #{istft_forward.8} parent=5 // pred_fallthru
      _
    %p1322 = scmp.le.s32.totalorder 2, %s23
    // Predicated region
    $region93: #{istft_forward.8} parent=5 // pred_check
      %p1323 = pneg %p1322
    $region94: #{istft_forward.8} parent=5 // pred_check_branch
      %1325 = sbr.rel (%p1323) target = $region96
    $region95: #{istft_forward.8} parent=5 // pred_region
      %s1326 = ssub.s32 %s23, 2
      // Predicated region
      $region97: #{istft_forward.8} parent=95 // pred_check
        %p1327 = pneg %p414
      $region98: #{istft_forward.8} parent=95 // pred_check_branch
        %1329 = sbr.rel (%p1327) target = $region100
      $region99: #{istft_forward.8} parent=95 // pred_region
        %p1330 = scmp.lt.s32.totalorder %s29, 1
        %s1331 = scalar_select %p1330, %s29, 1
        %s1332 = smul.addr %s1331, 2
        %s1333 = smul.addr %s1332, 4
        %s1334 = scalar_lea.vmem %s17, %s1333
      $region100: #{istft_forward.8} parent=95 // pred_fallthru
        _
    $region96: #{istft_forward.8} parent=5 // pred_fallthru
      _
  $region6: #{istft_forward.8} parent=0 // loop_footer
    %s27 = sadd.s32 1, %s23
  $region7: #{istft_forward.8} parent=0 // loop_footer_branch
    %22 = sbr.rel target = $region3
  $region8: #{istft_forward.8} parent=0 // loop_exit
    _

// kernel: istft_forward.9
$region0: #{istft_forward.9}
  #allocation0 [shape = 'u32[]', space=smem, size = 0x4, offset = 0x4, fixed_abs, tag = 'smem constant byte address 0x4 - core index']
  #allocation1 [shape = 'u32[144,128]{1,0:T(1,128)}', space=vmem, size = 0x12000, scoped, tag = 'internal scratch']
  #allocation2 [shape = 'bf16[16,34]{1,0:T(16,128)(2,1)}', space=vmem, size = 0x1000, scoped, tag = 'scratch operand']
  %s0 = inlined_call_operand.vmem [shape: bf16[2,16,32], index: 0, kind: input, shape index: {}]
  %s1 = inlined_call_operand.vmem [shape: bf16[4,8,32], index: 1, kind: input, shape index: {}]
  %s2 = inlined_call_operand.vmem [shape: f32[8,1], index: 2, kind: input, shape index: {}]
  %s3 = inlined_call_operand.vmem [shape: bf16[2,4,8,32], index: 3, kind: output, shape index: {}]
  %s4 = sld [smem:[#allocation0]]
  $region45: #{istft_forward.9} parent=0
    _
  %s6 = ssub.s32 1, %s4
  %s7 = scalar_select 0, %s6, %s4
  loop: start=0, step=1, limit=4
  $region2: #{istft_forward.9} parent=0 // loop_pre_header
    _
  $region3: #{istft_forward.9} parent=0 // loop_header
    %s9 = sphi 0, %s13
    %p10 = scmp.ge.s32.totalorder %s9, 4
    %s19 = sphi 0, %s21
    %s22 = sphi 0, %s19
    %s23 = sphi 0, %s22
    %s39 = sphi 0, %s23
    %s43 = sphi 0, %s43
    %s45 = sphi 0, %s43
    %s46 = sphi 0, %s45
    %s60 = sphi 0, %s46
    %s64 = sphi 0, %s64
    %s66 = sphi 0, %s64
    %s67 = sphi 0, %s66
    %s81 = sphi 0, %s67
    %s87 = sphi 0, %s89
    %s90 = sphi 0, %s87
    %s91 = sphi 0, %s90
    %s107 = sphi 0, %s91
  $region4: #{istft_forward.9} parent=0 // loop_header_branch
    %12 = sbr.rel (%p10) target = $region8
  $region5: #{istft_forward.9} parent=0 // loop_body
    %s14 = ssub.s32 %s9, 1
    %s15 = ssub.s32 %s9, 2
    %s16 = sadd.s32 %s9, 1
    %s17 = ssub.s32 %s9, %s16
    %p18 = scmp.eq.s32.totalorder %s17, 0
    %s20 = sadd.s32 %s19, 1
    %s21 = scalar_select %p18, %s19, %s20
    %p24 = pneg %p18
    %p25 = scmp.eq.s32.totalorder %s9, 1
    %p26 = por %p24, %p25
    %p27 = scmp.ne.s32.totalorder %s19, %s22
    %p28 = scmp.eq.s32.totalorder %s9, 0
    %p29 = por %p27, %p28
    %p30 = scmp.ne.s32.totalorder %s19, %s22
    %p31 = scmp.eq.s32.totalorder %s14, 1
    %p32 = por %p30, %p31
    %p33 = scmp.ne.s32.totalorder %s22, %s23
    %p34 = scmp.eq.s32.totalorder %s14, 0
    %p35 = por %p33, %p34
    %p36 = scmp.ne.s32.totalorder %s22, %s23
    %p37 = scmp.eq.s32.totalorder %s15, 1
    %p38 = por %p36, %p37
    %p40 = scmp.ne.s32.totalorder %s23, %s39
    %p41 = scmp.eq.s32.totalorder %s15, 0
    %p42 = por %p40, %p41
    %s44 = sadd.s32 %s43, 1
    %p47 = scmp.eq.s32.totalorder %s9, 1
    %p48 = scmp.ne.s32.totalorder %s43, %s45
    %p49 = scmp.eq.s32.totalorder %s9, 0
    %p50 = por %p48, %p49
    %p51 = scmp.ne.s32.totalorder %s43, %s45
    %p52 = scmp.eq.s32.totalorder %s14, 1
    %p53 = por %p51, %p52
    %p54 = scmp.ne.s32.totalorder %s45, %s46
    %p55 = scmp.eq.s32.totalorder %s14, 0
    %p56 = por %p54, %p55
    %p57 = scmp.ne.s32.totalorder %s45, %s46
    %p58 = scmp.eq.s32.totalorder %s15, 1
    %p59 = por %p57, %p58
    %p61 = scmp.ne.s32.totalorder %s46, %s60
    %p62 = scmp.eq.s32.totalorder %s15, 0
    %p63 = por %p61, %p62
    %s65 = sadd.s32 %s64, 1
    %p68 = scmp.eq.s32.totalorder %s9, 1
    %p69 = scmp.ne.s32.totalorder %s64, %s66
    %p70 = scmp.eq.s32.totalorder %s9, 0
    %p71 = por %p69, %p70
    %p72 = scmp.ne.s32.totalorder %s64, %s66
    %p73 = scmp.eq.s32.totalorder %s14, 1
    %p74 = por %p72, %p73
    %p75 = scmp.ne.s32.totalorder %s66, %s67
    %p76 = scmp.eq.s32.totalorder %s14, 0
    %p77 = por %p75, %p76
    %p78 = scmp.ne.s32.totalorder %s66, %s67
    %p79 = scmp.eq.s32.totalorder %s15, 1
    %p80 = por %p78, %p79
    %p82 = scmp.ne.s32.totalorder %s67, %s81
    %p83 = scmp.eq.s32.totalorder %s15, 0
    %p84 = por %p82, %p83
    %s85 = ssub.s32 %s9, %s16
    %p86 = scmp.eq.s32.totalorder %s85, 0
    %s88 = sadd.s32 %s87, 1
    %s89 = scalar_select %p86, %s87, %s88
    %p92 = pneg %p86
    %p93 = scmp.eq.s32.totalorder %s9, 1
    %p94 = por %p92, %p93
    %p95 = scmp.ne.s32.totalorder %s87, %s90
    %p96 = scmp.eq.s32.totalorder %s9, 0
    %p97 = por %p95, %p96
    %p98 = scmp.ne.s32.totalorder %s87, %s90
    %p99 = scmp.eq.s32.totalorder %s14, 1
    %p100 = por %p98, %p99
    %p101 = scmp.ne.s32.totalorder %s90, %s91
    %p102 = scmp.eq.s32.totalorder %s14, 0
    %p103 = por %p101, %p102
    %p104 = scmp.ne.s32.totalorder %s90, %s91
    %p105 = scmp.eq.s32.totalorder %s15, 1
    %p106 = por %p104, %p105
    %p108 = scmp.ne.s32.totalorder %s91, %s107
    %p109 = scmp.eq.s32.totalorder %s15, 0
    %p110 = por %p108, %p109
    %p111 = scmp.le.s32.totalorder 1, %s9
    %p112 = scmp.lt.s32.totalorder %s9, 3
    %p113 = pnand %p111, %p112
    %p114 = pneg %p113
    // Predicated region
    $region9: #{istft_forward.9} parent=5 // pred_check
      _
    $region10: #{istft_forward.9} parent=5 // pred_check_branch
      %116 = sbr.rel (%p113) target = $region12
    $region11: #{istft_forward.9} parent=5 // pred_region
      %s117 = ssub.s32 %s9, 1
      // Predicated region
      $region13: #{istft_forward.9} parent=11 // pred_check
        %p118 = pneg %p56
      $region14: #{istft_forward.9} parent=11 // pred_check_branch
        %120 = sbr.rel (%p118) target = $region16
      $region15: #{istft_forward.9} parent=11 // pred_region
        _
      $region16: #{istft_forward.9} parent=11 // pred_fallthru
        _
      // Predicated region
      $region17: #{istft_forward.9} parent=11 // pred_check
        %p121 = pneg %p77
      $region18: #{istft_forward.9} parent=11 // pred_check_branch
        %123 = sbr.rel (%p121) target = $region20
      $region19: #{istft_forward.9} parent=11 // pred_region
        _
      $region20: #{istft_forward.9} parent=11 // pred_fallthru
        _
    $region12: #{istft_forward.9} parent=5 // pred_fallthru
      _
    %p124 = scmp.lt.s32.totalorder %s9, 2
    // Predicated region
    $region21: #{istft_forward.9} parent=5 // pred_check
      %p125 = pneg %p124
    $region22: #{istft_forward.9} parent=5 // pred_check_branch
      %127 = sbr.rel (%p125) target = $region24
    $region23: #{istft_forward.9} parent=5 // pred_region
      // Predicated region
      $region25: #{istft_forward.9} parent=23 // pred_check
        %p128 = pneg %p29
      $region26: #{istft_forward.9} parent=23 // pred_check_branch
        %130 = sbr.rel (%p128) target = $region28
      $region27: #{istft_forward.9} parent=23 // pred_region
        %p131 = scmp.lt.s32.totalorder %s9, 1
        %s132 = scalar_select %p131, %s9, 1
        %s133 = smul.addr %s132, 2
        %s134 = smul.addr %s133, 4
        %s135 = scalar_lea.vmem %s0, %s134
      $region28: #{istft_forward.9} parent=23 // pred_fallthru
        _
    $region24: #{istft_forward.9} parent=5 // pred_fallthru
      _
    %p136 = scmp.le.s32.totalorder 1, %s9
    %p137 = scmp.lt.s32.totalorder %s9, 3
    %p138 = pnand %p136, %p137
    %p139 = pneg %p138
    // Predicated region
    $region29: #{istft_forward.9} parent=5 // pred_check
      _
    $region30: #{istft_forward.9} parent=5 // pred_check_branch
      %141 = sbr.rel (%p138) target = $region32
    $region31: #{istft_forward.9} parent=5 // pred_region
      %s142 = ssub.s32 %s9, 1
      %p143 = scmp.lt.s32.totalorder %s14, 1
      %s144 = scalar_select %p143, %s14, 1
      %s145 = smul.addr %s144, 2
      %s146 = smul.addr %s145, 4
      %s147 = scalar_lea.vmem %s0, %s146
      %p148 = pneg %p35
      %p149 = pneg %p32
      %p150 = pneg %p56
      %p151 = pneg %p53
      %p152 = pneg %p77
      %p153 = pneg %p74
      %p154 = pneg %p103
      %p155 = pneg %p100
      %p156 = scmp.lt.s32.totalorder %s14, 1
      %s157 = scalar_select %p156, %s14, 1
      %s158 = smul.addr %s157, 4
      %s159 = smul.addr %s158, 4
      %s160 = scalar_lea.vmem %s3, %s159
      %p161 = scmp.lt.s32.totalorder %s14, 1
      %s162 = scalar_select %p161, %s14, 1
      %s163 = smul.addr %s162, 2
      %s164 = smul.addr %s163, 4
      %s165 = scalar_lea.vmem %s0, %s164
      %p166 = scmp.lt.s32.totalorder %s14, 1
      %s167 = scalar_select %p166, %s14, 1
      %s168 = smul.addr %s167, 4
      %s169 = smul.addr %s168, 4
      %s170 = scalar_lea.vmem %s3, %s169
      %v172 = vld [vmem:[%s165] sm:$0xf]
      %v173 = vld [vmem:[%s165 + $0x4] sm:$0xf]
      %v174 = vunpack.c.l.bf16 %v172
      %v175 = vunpack.c.l.bf16 %v173
      %vm176 = vcmp.ge.f32.partialorder %v174, 0.0
      %vm177 = vcmp.ge.f32.partialorder %v175, 0.0
      %v178 = vmul.f32 %v174, 0.1
      %v179 = vmul.f32 %v175, 0.1
      %v180 = vsel %vm176, %v174, %v178
      %v181 = vsel %vm177, %v175, %v179
      %vm182 = vcmask 7168
      %183 = vst.msk [vmem:[#allocation2] sm:$0xff] %vm182, 0
      %vm184 = vcmask 277768
      %185 = vst.msk [vmem:[#allocation2] sm:$0xff] %vm184, 0
      %v186 = vpack.c.bf16 %v181, %v180
      %188 = vrot.lane.b32.xlu0 %v186, 1
      %v189 = vpop.permute.xlu0 %188
      %vm191 = vcmask 269320
      %192 = vst.msk [vmem:[#allocation2] sm:$0xff] %vm191, %v189
      %v193 = vld [vmem:[%s2] sm:$0xff]
      %v194 = vld [vmem:[#allocation2] sm:$0xff]
      %196 = vrot.lane.b32.xlu0 %v194, 1
      %v197 = vpop.permute.xlu0 %196
      %v198 = vld [vmem:[%s1] sm:$0xf]
      %200 = vset.pattern.permute.xlu0 0
      %201 = vperm.xlu0 %200, %v193
      %v202 = vpop.permute.xlu0 %201
      %204 = vrot.lane.b32.xlu0 %v194, 127
      %v205 = vpop.permute.xlu0 %204
      %206 = vrot.lane.b32.xlu0 %v197, 127
      %v207 = vpop.permute.xlu0 %206
      %vm210 = vcmask 261120
      %v212 = vsel %vm210, %v198, 0
      %214 = vmatprep.subr.bf16.mxu0 0
      %215 = vmatpush1.bf16.msra.mxu0 %v205
      %216 = vmatprep.subr.bf16.mxu0 0
      %217 = vmatpush1.bf16.msra.mxu0 %v207
      %218 = vmatprep.subr.bf16.mxu0 0
      %219 = vmatpush1.bf16.msra.mxu0 0
      %220 = vmatprep.subr.bf16.mxu0 0
      %221 = vmatpush1.bf16.msra.mxu0 0
      %222 = vmatprep.subr.bf16.mxu0 0
      %223 = vmatpush1.bf16.msra.mxu0 0
      %224 = vmatprep.subr.bf16.mxu0 0
      %225 = vmatpush1.bf16.msra.mxu0 0
      %226 = vmatprep.subr.bf16.mxu0 0
      %227 = vmatpush1.bf16.msra.mxu0 0
      %228 = vmatprep.subr.bf16.mxu0 0
      %229 = vmatpush1.bf16.msra.mxu0 0
      %230 = vmatprep.subr.bf16.mxu0 0
      %231 = vmatpush1.bf16.msra.mxu0 0
      %232 = vmatprep.subr.bf16.mxu0 0
      %233 = vmatpush1.bf16.msra.mxu0 0
      %234 = vmatprep.subr.bf16.mxu0 0
      %235 = vmatpush1.bf16.msra.mxu0 0
      %236 = vmatprep.subr.bf16.mxu0 0
      %237 = vmatpush1.bf16.msra.mxu0 0
      %238 = vmatprep.subr.bf16.mxu0 0
      %239 = vmatpush1.bf16.msra.mxu0 0
      %240 = vmatprep.subr.bf16.mxu0 0
      %241 = vmatpush1.bf16.msra.mxu0 0
      %242 = vmatprep.subr.bf16.mxu0 0
      %243 = vmatpush1.bf16.msra.mxu0 0
      %244 = vmatprep.subr.bf16.mxu0 0
      %245 = vmatpush1.bf16.msra.mxu0 0
      %246 = vmatprep.mubr.bf16.mxu0 0
      %247 = vmatmul.mubr.bf16.gmra.mrb[0].mxu0 %v212
      %v248 = vpop.f32.mrb[0].mxu0
      %v249 = vadd.f32 %v202, %v248
      %v250 = vpop.f32.mrb[0].mxu0
      %v251 = vpop.f32.mrb[0].mxu0
      %v252 = vpop.f32.mrb[0].mxu0
      %253 = vdwg.mxu0
      %v254 = vpack.c.bf16 %v249, %v249
      %vm255 = vcmask 257024
      %256 = vst.msk [vmem:[%s170] sm:$0xf] %vm255, %v254
      %v257 = vld [vmem:[#allocation2] sm:$0xff]
      %259 = vrot.lane.b32.xlu0 %v257, 1
      %v260 = vpop.permute.xlu0 %259
      %s261 = scalar_lea.vmem %s1, 4
      %v262 = vld [vmem:[%s261] sm:$0xf]
      %263 = vrot.lane.b32.xlu0 %v257, 127
      %v264 = vpop.permute.xlu0 %263
      %265 = vrot.lane.b32.xlu0 %v260, 127
      %v266 = vpop.permute.xlu0 %265
      %v270 = vsel %vm210, %v262, 0
      %272 = vmatprep.subr.bf16.mxu0 0
      %273 = vmatpush1.bf16.msra.mxu0 %v264
      %274 = vmatprep.subr.bf16.mxu0 0
      %275 = vmatpush1.bf16.msra.mxu0 %v266
      %276 = vmatprep.subr.bf16.mxu0 0
      %277 = vmatpush1.bf16.msra.mxu0 0
      %278 = vmatprep.subr.bf16.mxu0 0
      %279 = vmatpush1.bf16.msra.mxu0 0
      %280 = vmatprep.subr.bf16.mxu0 0
      %281 = vmatpush1.bf16.msra.mxu0 0
      %282 = vmatprep.subr.bf16.mxu0 0
      %283 = vmatpush1.bf16.msra.mxu0 0
      %284 = vmatprep.subr.bf16.mxu0 0
      %285 = vmatpush1.bf16.msra.mxu0 0
      %286 = vmatprep.subr.bf16.mxu0 0
      %287 = vmatpush1.bf16.msra.mxu0 0
      %288 = vmatprep.subr.bf16.mxu0 0
      %289 = vmatpush1.bf16.msra.mxu0 0
      %290 = vmatprep.subr.bf16.mxu0 0
      %291 = vmatpush1.bf16.msra.mxu0 0
      %292 = vmatprep.subr.bf16.mxu0 0
      %293 = vmatpush1.bf16.msra.mxu0 0
      %294 = vmatprep.subr.bf16.mxu0 0
      %295 = vmatpush1.bf16.msra.mxu0 0
      %296 = vmatprep.subr.bf16.mxu0 0
      %297 = vmatpush1.bf16.msra.mxu0 0
      %298 = vmatprep.subr.bf16.mxu0 0
      %299 = vmatpush1.bf16.msra.mxu0 0
      %300 = vmatprep.subr.bf16.mxu0 0
      %301 = vmatpush1.bf16.msra.mxu0 0
      %302 = vmatprep.subr.bf16.mxu0 0
      %303 = vmatpush1.bf16.msra.mxu0 0
      %304 = vmatprep.mubr.bf16.mxu0 0
      %305 = vmatmul.mubr.bf16.gmra.mrb[0].mxu0 %v270
      %v306 = vpop.f32.mrb[0].mxu0
      %v307 = vadd.f32 %v202, %v306
      %v308 = vpop.f32.mrb[0].mxu0
      %v309 = vpop.f32.mrb[0].mxu0
      %v310 = vpop.f32.mrb[0].mxu0
      %311 = vdwg.mxu0
      %v312 = vpack.c.bf16 %v307, %v307
      %s313 = scalar_lea.vmem %s170, 4
      %314 = vst.msk [vmem:[%s313] sm:$0xf] %vm255, %v312
      %v315 = vld [vmem:[#allocation2] sm:$0xff]
      %317 = vrot.lane.b32.xlu0 %v315, 1
      %v318 = vpop.permute.xlu0 %317
      %s319 = scalar_lea.vmem %s1, 8
      %v320 = vld [vmem:[%s319] sm:$0xf]
      %321 = vrot.lane.b32.xlu0 %v315, 126
      %v322 = vpop.permute.xlu0 %321
      %323 = vrot.lane.b32.xlu0 %v318, 126
      %v324 = vpop.permute.xlu0 %323
      %v328 = vsel %vm210, %v320, 0
      %330 = vmatprep.subr.bf16.mxu0 0
      %331 = vmatpush1.bf16.msra.mxu0 %v322
      %332 = vmatprep.subr.bf16.mxu0 0
      %333 = vmatpush1.bf16.msra.mxu0 %v324
      %334 = vmatprep.subr.bf16.mxu0 0
      %335 = vmatpush1.bf16.msra.mxu0 0
      %336 = vmatprep.subr.bf16.mxu0 0
      %337 = vmatpush1.bf16.msra.mxu0 0
      %338 = vmatprep.subr.bf16.mxu0 0
      %339 = vmatpush1.bf16.msra.mxu0 0
      %340 = vmatprep.subr.bf16.mxu0 0
      %341 = vmatpush1.bf16.msra.mxu0 0
      %342 = vmatprep.subr.bf16.mxu0 0
      %343 = vmatpush1.bf16.msra.mxu0 0
      %344 = vmatprep.subr.bf16.mxu0 0
      %345 = vmatpush1.bf16.msra.mxu0 0
      %346 = vmatprep.subr.bf16.mxu0 0
      %347 = vmatpush1.bf16.msra.mxu0 0
      %348 = vmatprep.subr.bf16.mxu0 0
      %349 = vmatpush1.bf16.msra.mxu0 0
      %350 = vmatprep.subr.bf16.mxu0 0
      %351 = vmatpush1.bf16.msra.mxu0 0
      %352 = vmatprep.subr.bf16.mxu0 0
      %353 = vmatpush1.bf16.msra.mxu0 0
      %354 = vmatprep.subr.bf16.mxu0 0
      %355 = vmatpush1.bf16.msra.mxu0 0
      %356 = vmatprep.subr.bf16.mxu0 0
      %357 = vmatpush1.bf16.msra.mxu0 0
      %358 = vmatprep.subr.bf16.mxu0 0
      %359 = vmatpush1.bf16.msra.mxu0 0
      %360 = vmatprep.subr.bf16.mxu0 0
      %361 = vmatpush1.bf16.msra.mxu0 0
      %362 = vmatprep.mubr.bf16.mxu0 0
      %363 = vmatmul.mubr.bf16.gmra.mrb[0].mxu0 %v328
      %v364 = vpop.f32.mrb[0].mxu0
      %v365 = vadd.f32 %v202, %v364
      %v366 = vpop.f32.mrb[0].mxu0
      %v367 = vpop.f32.mrb[0].mxu0
      %v368 = vpop.f32.mrb[0].mxu0
      %369 = vdwg.mxu0
      %v370 = vpack.c.bf16 %v365, %v365
      %s371 = scalar_lea.vmem %s170, 8
      %372 = vst.msk [vmem:[%s371] sm:$0xf] %vm255, %v370
      %v373 = vld [vmem:[#allocation2] sm:$0xff]
      %375 = vrot.lane.b32.xlu0 %v373, 1
      %v376 = vpop.permute.xlu0 %375
      %s377 = scalar_lea.vmem %s1, 12
      %v378 = vld [vmem:[%s377] sm:$0xf]
      %379 = vrot.lane.b32.xlu0 %v373, 126
      %v380 = vpop.permute.xlu0 %379
      %381 = vrot.lane.b32.xlu0 %v376, 126
      %v382 = vpop.permute.xlu0 %381
      %v386 = vsel %vm210, %v378, 0
      %388 = vmatprep.subr.bf16.mxu0 0
      %389 = vmatpush1.bf16.msra.mxu0 %v380
      %390 = vmatprep.subr.bf16.mxu0 0
      %391 = vmatpush1.bf16.msra.mxu0 %v382
      %392 = vmatprep.subr.bf16.mxu0 0
      %393 = vmatpush1.bf16.msra.mxu0 0
      %394 = vmatprep.subr.bf16.mxu0 0
      %395 = vmatpush1.bf16.msra.mxu0 0
      %396 = vmatprep.subr.bf16.mxu0 0
      %397 = vmatpush1.bf16.msra.mxu0 0
      %398 = vmatprep.subr.bf16.mxu0 0
      %399 = vmatpush1.bf16.msra.mxu0 0
      %400 = vmatprep.subr.bf16.mxu0 0
      %401 = vmatpush1.bf16.msra.mxu0 0
      %402 = vmatprep.subr.bf16.mxu0 0
      %403 = vmatpush1.bf16.msra.mxu0 0
      %404 = vmatprep.subr.bf16.mxu0 0
      %405 = vmatpush1.bf16.msra.mxu0 0
      %406 = vmatprep.subr.bf16.mxu0 0
      %407 = vmatpush1.bf16.msra.mxu0 0
      %408 = vmatprep.subr.bf16.mxu0 0
      %409 = vmatpush1.bf16.msra.mxu0 0
      %410 = vmatprep.subr.bf16.mxu0 0
      %411 = vmatpush1.bf16.msra.mxu0 0
      %412 = vmatprep.subr.bf16.mxu0 0
      %413 = vmatpush1.bf16.msra.mxu0 0
      %414 = vmatprep.subr.bf16.mxu0 0
      %415 = vmatpush1.bf16.msra.mxu0 0
      %416 = vmatprep.subr.bf16.mxu0 0
      %417 = vmatpush1.bf16.msra.mxu0 0
      %418 = vmatprep.subr.bf16.mxu0 0
      %419 = vmatpush1.bf16.msra.mxu0 0
      %420 = vmatprep.mubr.bf16.mxu0 0
      %421 = vmatmul.mubr.bf16.gmra.mrb[0].mxu0 %v386
      %v422 = vpop.f32.mrb[0].mxu0
      %v423 = vadd.f32 %v202, %v422
      %v424 = vpop.f32.mrb[0].mxu0
      %v425 = vpop.f32.mrb[0].mxu0
      %v426 = vpop.f32.mrb[0].mxu0
      %427 = vdwg.mxu0
      %v428 = vpack.c.bf16 %v423, %v423
      %s429 = scalar_lea.vmem %s170, 12
      %430 = vst.msk [vmem:[%s429] sm:$0xf] %vm255, %v428
      %p431 = scmp.lt.s32.totalorder %s14, 1
      %s432 = scalar_select %p431, %s14, 1
      %s433 = smul.addr %s432, 4
      %s434 = smul.addr %s433, 4
      %s435 = scalar_lea.vmem %s3, %s434
      // Predicated region
      $region33: #{istft_forward.9} parent=31 // pred_check
        %p436 = pneg %p100
      $region34: #{istft_forward.9} parent=31 // pred_check_branch
        %438 = sbr.rel (%p436) target = $region36
      $region35: #{istft_forward.9} parent=31 // pred_region
        _
      $region36: #{istft_forward.9} parent=31 // pred_fallthru
        _
    $region32: #{istft_forward.9} parent=5 // pred_fallthru
      _
    %p439 = scmp.le.s32.totalorder 2, %s9
    // Predicated region
    $region37: #{istft_forward.9} parent=5 // pred_check
      %p440 = pneg %p439
    $region38: #{istft_forward.9} parent=5 // pred_check_branch
      %442 = sbr.rel (%p440) target = $region40
    $region39: #{istft_forward.9} parent=5 // pred_region
      %s443 = ssub.s32 %s9, 2
      // Predicated region
      $region41: #{istft_forward.9} parent=39 // pred_check
        %p444 = pneg %p106
      $region42: #{istft_forward.9} parent=39 // pred_check_branch
        %446 = sbr.rel (%p444) target = $region44
      $region43: #{istft_forward.9} parent=39 // pred_region
        %p447 = scmp.lt.s32.totalorder %s15, 1
        %s448 = scalar_select %p447, %s15, 1
        %s449 = smul.addr %s448, 4
        %s450 = smul.addr %s449, 4
        %s451 = scalar_lea.vmem %s3, %s450
      $region44: #{istft_forward.9} parent=39 // pred_fallthru
        _
    $region40: #{istft_forward.9} parent=5 // pred_fallthru
      _
  $region6: #{istft_forward.9} parent=0 // loop_footer
    %s13 = sadd.s32 1, %s9
  $region7: #{istft_forward.9} parent=0 // loop_footer_branch
    %8 = sbr.rel target = $region3
  $region8: #{istft_forward.9} parent=0 // loop_exit
    _

// kernel: istft_forward.11
$region0: #{istft_forward.11}
  #allocation0 [shape = 'u32[]', space=smem, size = 0x4, offset = 0x4, fixed_abs, tag = 'smem constant byte address 0x4 - core index']
  #allocation1 [shape = 'u32[144,128]{1,0:T(1,128)}', space=vmem, size = 0x12000, scoped, tag = 'internal scratch']
  #allocation2 [shape = 'f32[8,135]{1,0:T(8,128)}', space=vmem, size = 0x2000, scoped, tag = 'scratch operand']
  %s0 = inlined_call_operand.vmem [shape: bf16[2,8,128], index: 0, kind: input, shape index: {}]
  %s1 = inlined_call_operand.vmem [shape: f32[9,56], index: 1, kind: input, shape index: {}]
  %s2 = inlined_call_operand.vmem [shape: f32[9,1], index: 2, kind: input, shape index: {}]
  %s3 = inlined_call_operand.vmem [shape: f32[9,56], index: 3, kind: input, shape index: {}]
  %s4 = inlined_call_operand.vmem [shape: f32[9,1], index: 4, kind: input, shape index: {}]
  %s5 = inlined_call_operand.vmem [shape: f32[2,9,129], index: 5, kind: output, shape index: {0}]
  %s6 = inlined_call_operand.vmem [shape: f32[2,9,129], index: 6, kind: output, shape index: {1}]
  %7 = xla_tuple %s5, %s6
  %s8 = sld [smem:[#allocation0]]
  $region61: #{istft_forward.11} parent=0
    _
  %s10 = ssub.s32 1, %s8
  %s11 = scalar_select 0, %s10, %s8
  loop: start=0, step=1, limit=4
  $region2: #{istft_forward.11} parent=0 // loop_pre_header
    _
  $region3: #{istft_forward.11} parent=0 // loop_header
    %s13 = sphi 0, %s17
    %p14 = scmp.ge.s32.totalorder %s13, 4
    %s23 = sphi 0, %s25
    %s26 = sphi 0, %s23
    %s27 = sphi 0, %s26
    %s43 = sphi 0, %s27
    %s47 = sphi 0, %s47
    %s49 = sphi 0, %s47
    %s50 = sphi 0, %s49
    %s64 = sphi 0, %s50
    %s68 = sphi 0, %s68
    %s70 = sphi 0, %s68
    %s71 = sphi 0, %s70
    %s85 = sphi 0, %s71
    %s89 = sphi 0, %s89
    %s91 = sphi 0, %s89
    %s92 = sphi 0, %s91
    %s106 = sphi 0, %s92
    %s110 = sphi 0, %s110
    %s112 = sphi 0, %s110
    %s113 = sphi 0, %s112
    %s127 = sphi 0, %s113
    %s133 = sphi 0, %s135
    %s136 = sphi 0, %s133
    %s137 = sphi 0, %s136
    %s153 = sphi 0, %s137
    %s159 = sphi 0, %s161
    %s162 = sphi 0, %s159
    %s163 = sphi 0, %s162
    %s179 = sphi 0, %s163
  $region4: #{istft_forward.11} parent=0 // loop_header_branch
    %16 = sbr.rel (%p14) target = $region8
  $region5: #{istft_forward.11} parent=0 // loop_body
    %s18 = ssub.s32 %s13, 1
    %s19 = ssub.s32 %s13, 2
    %s20 = sadd.s32 %s13, 1
    %s21 = ssub.s32 %s13, %s20
    %p22 = scmp.eq.s32.totalorder %s21, 0
    %s24 = sadd.s32 %s23, 1
    %s25 = scalar_select %p22, %s23, %s24
    %p28 = pneg %p22
    %p29 = scmp.eq.s32.totalorder %s13, 1
    %p30 = por %p28, %p29
    %p31 = scmp.ne.s32.totalorder %s23, %s26
    %p32 = scmp.eq.s32.totalorder %s13, 0
    %p33 = por %p31, %p32
    %p34 = scmp.ne.s32.totalorder %s23, %s26
    %p35 = scmp.eq.s32.totalorder %s18, 1
    %p36 = por %p34, %p35
    %p37 = scmp.ne.s32.totalorder %s26, %s27
    %p38 = scmp.eq.s32.totalorder %s18, 0
    %p39 = por %p37, %p38
    %p40 = scmp.ne.s32.totalorder %s26, %s27
    %p41 = scmp.eq.s32.totalorder %s19, 1
    %p42 = por %p40, %p41
    %p44 = scmp.ne.s32.totalorder %s27, %s43
    %p45 = scmp.eq.s32.totalorder %s19, 0
    %p46 = por %p44, %p45
    %s48 = sadd.s32 %s47, 1
    %p51 = scmp.eq.s32.totalorder %s13, 1
    %p52 = scmp.ne.s32.totalorder %s47, %s49
    %p53 = scmp.eq.s32.totalorder %s13, 0
    %p54 = por %p52, %p53
    %p55 = scmp.ne.s32.totalorder %s47, %s49
    %p56 = scmp.eq.s32.totalorder %s18, 1
    %p57 = por %p55, %p56
    %p58 = scmp.ne.s32.totalorder %s49, %s50
    %p59 = scmp.eq.s32.totalorder %s18, 0
    %p60 = por %p58, %p59
    %p61 = scmp.ne.s32.totalorder %s49, %s50
    %p62 = scmp.eq.s32.totalorder %s19, 1
    %p63 = por %p61, %p62
    %p65 = scmp.ne.s32.totalorder %s50, %s64
    %p66 = scmp.eq.s32.totalorder %s19, 0
    %p67 = por %p65, %p66
    %s69 = sadd.s32 %s68, 1
    %p72 = scmp.eq.s32.totalorder %s13, 1
    %p73 = scmp.ne.s32.totalorder %s68, %s70
    %p74 = scmp.eq.s32.totalorder %s13, 0
    %p75 = por %p73, %p74
    %p76 = scmp.ne.s32.totalorder %s68, %s70
    %p77 = scmp.eq.s32.totalorder %s18, 1
    %p78 = por %p76, %p77
    %p79 = scmp.ne.s32.totalorder %s70, %s71
    %p80 = scmp.eq.s32.totalorder %s18, 0
    %p81 = por %p79, %p80
    %p82 = scmp.ne.s32.totalorder %s70, %s71
    %p83 = scmp.eq.s32.totalorder %s19, 1
    %p84 = por %p82, %p83
    %p86 = scmp.ne.s32.totalorder %s71, %s85
    %p87 = scmp.eq.s32.totalorder %s19, 0
    %p88 = por %p86, %p87
    %s90 = sadd.s32 %s89, 1
    %p93 = scmp.eq.s32.totalorder %s13, 1
    %p94 = scmp.ne.s32.totalorder %s89, %s91
    %p95 = scmp.eq.s32.totalorder %s13, 0
    %p96 = por %p94, %p95
    %p97 = scmp.ne.s32.totalorder %s89, %s91
    %p98 = scmp.eq.s32.totalorder %s18, 1
    %p99 = por %p97, %p98
    %p100 = scmp.ne.s32.totalorder %s91, %s92
    %p101 = scmp.eq.s32.totalorder %s18, 0
    %p102 = por %p100, %p101
    %p103 = scmp.ne.s32.totalorder %s91, %s92
    %p104 = scmp.eq.s32.totalorder %s19, 1
    %p105 = por %p103, %p104
    %p107 = scmp.ne.s32.totalorder %s92, %s106
    %p108 = scmp.eq.s32.totalorder %s19, 0
    %p109 = por %p107, %p108
    %s111 = sadd.s32 %s110, 1
    %p114 = scmp.eq.s32.totalorder %s13, 1
    %p115 = scmp.ne.s32.totalorder %s110, %s112
    %p116 = scmp.eq.s32.totalorder %s13, 0
    %p117 = por %p115, %p116
    %p118 = scmp.ne.s32.totalorder %s110, %s112
    %p119 = scmp.eq.s32.totalorder %s18, 1
    %p120 = por %p118, %p119
    %p121 = scmp.ne.s32.totalorder %s112, %s113
    %p122 = scmp.eq.s32.totalorder %s18, 0
    %p123 = por %p121, %p122
    %p124 = scmp.ne.s32.totalorder %s112, %s113
    %p125 = scmp.eq.s32.totalorder %s19, 1
    %p126 = por %p124, %p125
    %p128 = scmp.ne.s32.totalorder %s113, %s127
    %p129 = scmp.eq.s32.totalorder %s19, 0
    %p130 = por %p128, %p129
    %s131 = ssub.s32 %s13, %s20
    %p132 = scmp.eq.s32.totalorder %s131, 0
    %s134 = sadd.s32 %s133, 1
    %s135 = scalar_select %p132, %s133, %s134
    %p138 = pneg %p132
    %p139 = scmp.eq.s32.totalorder %s13, 1
    %p140 = por %p138, %p139
    %p141 = scmp.ne.s32.totalorder %s133, %s136
    %p142 = scmp.eq.s32.totalorder %s13, 0
    %p143 = por %p141, %p142
    %p144 = scmp.ne.s32.totalorder %s133, %s136
    %p145 = scmp.eq.s32.totalorder %s18, 1
    %p146 = por %p144, %p145
    %p147 = scmp.ne.s32.totalorder %s136, %s137
    %p148 = scmp.eq.s32.totalorder %s18, 0
    %p149 = por %p147, %p148
    %p150 = scmp.ne.s32.totalorder %s136, %s137
    %p151 = scmp.eq.s32.totalorder %s19, 1
    %p152 = por %p150, %p151
    %p154 = scmp.ne.s32.totalorder %s137, %s153
    %p155 = scmp.eq.s32.totalorder %s19, 0
    %p156 = por %p154, %p155
    %s157 = ssub.s32 %s13, %s20
    %p158 = scmp.eq.s32.totalorder %s157, 0
    %s160 = sadd.s32 %s159, 1
    %s161 = scalar_select %p158, %s159, %s160
    %p164 = pneg %p158
    %p165 = scmp.eq.s32.totalorder %s13, 1
    %p166 = por %p164, %p165
    %p167 = scmp.ne.s32.totalorder %s159, %s162
    %p168 = scmp.eq.s32.totalorder %s13, 0
    %p169 = por %p167, %p168
    %p170 = scmp.ne.s32.totalorder %s159, %s162
    %p171 = scmp.eq.s32.totalorder %s18, 1
    %p172 = por %p170, %p171
    %p173 = scmp.ne.s32.totalorder %s162, %s163
    %p174 = scmp.eq.s32.totalorder %s18, 0
    %p175 = por %p173, %p174
    %p176 = scmp.ne.s32.totalorder %s162, %s163
    %p177 = scmp.eq.s32.totalorder %s19, 1
    %p178 = por %p176, %p177
    %p180 = scmp.ne.s32.totalorder %s163, %s179
    %p181 = scmp.eq.s32.totalorder %s19, 0
    %p182 = por %p180, %p181
    %p183 = scmp.le.s32.totalorder 1, %s13
    %p184 = scmp.lt.s32.totalorder %s13, 3
    %p185 = pnand %p183, %p184
    %p186 = pneg %p185
    // Predicated region
    $region9: #{istft_forward.11} parent=5 // pred_check
      _
    $region10: #{istft_forward.11} parent=5 // pred_check_branch
      %188 = sbr.rel (%p185) target = $region12
    $region11: #{istft_forward.11} parent=5 // pred_region
      %s189 = ssub.s32 %s13, 1
      // Predicated region
      $region13: #{istft_forward.11} parent=11 // pred_check
        %p190 = pneg %p60
      $region14: #{istft_forward.11} parent=11 // pred_check_branch
        %192 = sbr.rel (%p190) target = $region16
      $region15: #{istft_forward.11} parent=11 // pred_region
        _
      $region16: #{istft_forward.11} parent=11 // pred_fallthru
        _
      // Predicated region
      $region17: #{istft_forward.11} parent=11 // pred_check
        %p193 = pneg %p81
      $region18: #{istft_forward.11} parent=11 // pred_check_branch
        %195 = sbr.rel (%p193) target = $region20
      $region19: #{istft_forward.11} parent=11 // pred_region
        _
      $region20: #{istft_forward.11} parent=11 // pred_fallthru
        _
      // Predicated region
      $region21: #{istft_forward.11} parent=11 // pred_check
        %p196 = pneg %p102
      $region22: #{istft_forward.11} parent=11 // pred_check_branch
        %198 = sbr.rel (%p196) target = $region24
      $region23: #{istft_forward.11} parent=11 // pred_region
        _
      $region24: #{istft_forward.11} parent=11 // pred_fallthru
        _
      // Predicated region
      $region25: #{istft_forward.11} parent=11 // pred_check
        %p199 = pneg %p123
      $region26: #{istft_forward.11} parent=11 // pred_check_branch
        %201 = sbr.rel (%p199) target = $region28
      $region27: #{istft_forward.11} parent=11 // pred_region
        _
      $region28: #{istft_forward.11} parent=11 // pred_fallthru
        _
    $region12: #{istft_forward.11} parent=5 // pred_fallthru
      _
    %p202 = scmp.lt.s32.totalorder %s13, 2
    // Predicated region
    $region29: #{istft_forward.11} parent=5 // pred_check
      %p203 = pneg %p202
    $region30: #{istft_forward.11} parent=5 // pred_check_branch
      %205 = sbr.rel (%p203) target = $region32
    $region31: #{istft_forward.11} parent=5 // pred_region
      // Predicated region
      $region33: #{istft_forward.11} parent=31 // pred_check
        %p206 = pneg %p33
      $region34: #{istft_forward.11} parent=31 // pred_check_branch
        %208 = sbr.rel (%p206) target = $region36
      $region35: #{istft_forward.11} parent=31 // pred_region
        %p209 = scmp.lt.s32.totalorder %s13, 1
        %s210 = scalar_select %p209, %s13, 1
        %s211 = smul.addr %s210, 4
        %s212 = scalar_lea.vmem %s0, %s211
      $region36: #{istft_forward.11} parent=31 // pred_fallthru
        _
    $region32: #{istft_forward.11} parent=5 // pred_fallthru
      _
    %p213 = scmp.le.s32.totalorder 1, %s13
    %p214 = scmp.lt.s32.totalorder %s13, 3
    %p215 = pnand %p213, %p214
    %p216 = pneg %p215
    // Predicated region
    $region37: #{istft_forward.11} parent=5 // pred_check
      _
    $region38: #{istft_forward.11} parent=5 // pred_check_branch
      %218 = sbr.rel (%p215) target = $region40
    $region39: #{istft_forward.11} parent=5 // pred_region
      %s219 = ssub.s32 %s13, 1
      %p220 = scmp.lt.s32.totalorder %s18, 1
      %s221 = scalar_select %p220, %s18, 1
      %s222 = smul.addr %s221, 4
      %s223 = scalar_lea.vmem %s0, %s222
      %p224 = pneg %p39
      %p225 = pneg %p36
      %p226 = pneg %p60
      %p227 = pneg %p57
      %p228 = pneg %p81
      %p229 = pneg %p78
      %p230 = pneg %p102
      %p231 = pneg %p99
      %p232 = pneg %p123
      %p233 = pneg %p120
      %p234 = pneg %p149
      %p235 = pneg %p146
      %p236 = scmp.lt.s32.totalorder %s18, 1
      %s237 = scalar_select %p236, %s18, 1
      %s238 = smul.addr %s237, 4
      %s239 = smul.addr %s238, 8
      %s240 = scalar_lea.vmem %s5, %s239
      %p241 = pneg %p175
      %p242 = pneg %p172
      %p243 = scmp.lt.s32.totalorder %s18, 1
      %s244 = scalar_select %p243, %s18, 1
      %s245 = smul.addr %s244, 4
      %s246 = smul.addr %s245, 8
      %s247 = scalar_lea.vmem %s6, %s246
      %p248 = scmp.lt.s32.totalorder %s18, 1
      %s249 = scalar_select %p248, %s18, 1
      %s250 = smul.addr %s249, 4
      %s251 = scalar_lea.vmem %s0, %s250
      %p252 = scmp.lt.s32.totalorder %s18, 1
      %s253 = scalar_select %p252, %s18, 1
      %s254 = smul.addr %s253, 4
      %s255 = smul.addr %s254, 8
      %s256 = scalar_lea.vmem %s5, %s255
      %p257 = scmp.lt.s32.totalorder %s18, 1
      %s258 = scalar_select %p257, %s18, 1
      %s259 = smul.addr %s258, 4
      %s260 = smul.addr %s259, 8
      %s261 = scalar_lea.vmem %s6, %s260
      %v262 = vld [vmem:[%s251] sm:$0xf]
      %v263 = vunpack.c.l.bf16 %v262
      %vm264 = vcmp.ge.f32.partialorder %v263, 0.0
      %v265 = vmul.f32 %v263, 0.01
      %v266 = vsel %vm264, %v263, %v265
      %vm267 = vcmask 23552
      %268 = vst.msk [vmem:[#allocation2] sm:$0xff] %vm267, 0.0
      %vm269 = vcmask 56352
      %270 = vst.msk [vmem:[#allocation2 + $0x8] sm:$0xff] %vm269, 0.0
      %272 = vrot.lane.b32.xlu0 %v266, 2
      %v273 = vpop.permute.xlu0 %272
      %vm275 = vcmask 31768
      %276 = vst.msk [vmem:[#allocation2] sm:$0xff] %vm275, %v273
      %277 = vrot.lane.b32.xlu0 %v266, 4
      %v278 = vpop.permute.xlu0 %277
      %vm280 = vcmask 1047584
      %281 = vst.msk [vmem:[#allocation2] sm:$0xff] %vm280, %v278
      %vm282 = vcmask 31744
      %283 = vst.msk [vmem:[#allocation2 + $0x8] sm:$0xff] %vm282, %v278
      %v284 = vld [vmem:[#allocation2] sm:$0xff]
      %v285 = vld [vmem:[#allocation2 + $0x8] sm:$0xff]
      %288 = vrot.lane.b32.xlu0 %v284, 127
      %v289 = vpop.permute.xlu0 %288
      %290 = vrot.lane.b32.xlu0 %v285, 127
      %v291 = vpop.permute.xlu0 %290
      %vm292 = vcmask 1039360
      %v293 = vsel %vm292, %v289, %v291
      %296 = vrot.lane.b32.xlu0 %v284, 126
      %v297 = vpop.permute.xlu0 %296
      %298 = vrot.lane.b32.xlu0 %v285, 126
      %v299 = vpop.permute.xlu0 %298
      %vm300 = vcmask 1031168
      %v301 = vsel %vm300, %v297, %v299
      %304 = vrot.lane.b32.xlu0 %v284, 125
      %v305 = vpop.permute.xlu0 %304
      %306 = vrot.lane.b32.xlu0 %v285, 125
      %v307 = vpop.permute.xlu0 %306
      %vm308 = vcmask 1022976
      %v309 = vsel %vm308, %v305, %v307
      %312 = vrot.lane.b32.xlu0 %v284, 124
      %v313 = vpop.permute.xlu0 %312
      %314 = vrot.lane.b32.xlu0 %v285, 124
      %v315 = vpop.permute.xlu0 %314
      %vm316 = vcmask 1014784
      %v317 = vsel %vm316, %v313, %v315
      %320 = vrot.lane.b32.xlu0 %v284, 123
      %v321 = vpop.permute.xlu0 %320
      %322 = vrot.lane.b32.xlu0 %v285, 123
      %v323 = vpop.permute.xlu0 %322
      %vm324 = vcmask 1006592
      %v325 = vsel %vm324, %v321, %v323
      %328 = vrot.lane.b32.xlu0 %v284, 122
      %v329 = vpop.permute.xlu0 %328
      %330 = vrot.lane.b32.xlu0 %v285, 122
      %v331 = vpop.permute.xlu0 %330
      %vm332 = vcmask 998400
      %v333 = vsel %vm332, %v329, %v331
      %v336 = vld [vmem:[%s1] sm:$0xff]
      %v337 = vld [vmem:[%s1 + $0x8] sm:$0x1]
      %v338 = vld [vmem:[%s2] sm:$0xff]
      %v339 = vld [vmem:[%s2 + $0x8] sm:$0x1]
      %341 = vset.pattern.permute.xlu0 0
      %342 = vperm.xlu0 %341, %v338
      %v343 = vpop.permute.xlu0 %342
      %346 = vset.pattern.permute.xlu0 0
      %347 = vperm.xlu0 %346, %v339
      %v348 = vpop.permute.xlu0 %347
      %vm350 = vcmask 457728
      %v352 = vsel %vm350, %v336, 0
      %v355 = vsel %vm350, %v337, 0
      %357 = vmatprep.subr.mxu0 %v285
      %358 = vmatpush1.msra.mxu0 %v284
      %359 = vmatprep.subr.mxu0 %v291
      %360 = vmatpush1.msra.mxu0 %v293
      %361 = vmatprep.subr.mxu0 %v299
      %362 = vmatpush1.msra.mxu0 %v301
      %363 = vmatprep.subr.mxu0 %v307
      %364 = vmatpush1.msra.mxu0 %v309
      %365 = vmatprep.subr.mxu0 %v315
      %366 = vmatpush1.msra.mxu0 %v317
      %367 = vmatprep.subr.mxu0 %v323
      %368 = vmatpush1.msra.mxu0 %v325
      %369 = vmatprep.subr.mxu0 %v331
      %370 = vmatpush1.msra.mxu0 %v333
      %371 = vmatprep.subr.mxu0 0.0
      %372 = vmatpush1.msra.mxu0 0.0
      %373 = vmatprep.subr.mxu0 0.0
      %374 = vmatpush1.msra.mxu0 0.0
      %375 = vmatprep.subr.mxu0 0.0
      %376 = vmatpush1.msra.mxu0 0.0
      %377 = vmatprep.subr.mxu0 0.0
      %378 = vmatpush1.msra.mxu0 0.0
      %379 = vmatprep.subr.mxu0 0.0
      %380 = vmatpush1.msra.mxu0 0.0
      %381 = vmatprep.subr.mxu0 0.0
      %382 = vmatpush1.msra.mxu0 0.0
      %383 = vmatprep.subr.mxu0 0.0
      %384 = vmatpush1.msra.mxu0 0.0
      %385 = vmatprep.subr.mxu0 0.0
      %386 = vmatpush1.msra.mxu0 0.0
      %387 = vmatprep.subr.mxu0 0.0
      %388 = vmatpush1.msra.mxu0 0.0
      %389 = vmatprep.subr.mxu0 0.0
      %390 = vmatpush1.msra.mxu0 0.0
      %391 = vmatprep.subr.mxu0 0.0
      %392 = vmatpush1.msra.mxu0 0.0
      %393 = vmatprep.subr.mxu0 0.0
      %394 = vmatpush1.msra.mxu0 0.0
      %395 = vmatprep.subr.mxu0 0.0
      %396 = vmatpush1.msra.mxu0 0.0
      %397 = vmatprep.subr.mxu0 0.0
      %398 = vmatpush1.msra.mxu0 0.0
      %399 = vmatprep.subr.mxu0 0.0
      %400 = vmatpush1.msra.mxu0 0.0
      %401 = vmatprep.subr.mxu0 0.0
      %402 = vmatpush1.msra.mxu0 0.0
      %403 = vmatprep.subr.mxu0 0.0
      %404 = vmatpush1.msra.mxu0 0.0
      %405 = vmatprep.subr.mxu0 0.0
      %406 = vmatpush1.msra.mxu0 0.0
      %407 = vmatprep.subr.mxu0 0.0
      %408 = vmatpush1.msra.mxu0 0.0
      %409 = vmatprep.subr.mxu0 0.0
      %410 = vmatpush1.msra.mxu0 0.0
      %411 = vmatprep.subr.mxu0 0.0
      %412 = vmatpush1.msra.mxu0 0.0
      %413 = vmatprep.subr.mxu0 0.0
      %414 = vmatpush1.msra.mxu0 0.0
      %415 = vmatprep.subr.mxu0 0.0
      %416 = vmatpush1.msra.mxu0 0.0
      %417 = vmatprep.subr.mxu0 0.0
      %418 = vmatpush1.msra.mxu0 0.0
      %419 = vmatprep.subr.mxu0 0.0
      %420 = vmatpush1.msra.mxu0 0.0
      %421 = vmatprep.mubr.f32.mxu0 0.0
      %422 = vmatmul.mubr.f32.gmra.mrb[0].mxu0 %v352
      %v423 = vpop.f32.mrb[0].mxu0
      %v424 = vadd.f32 %v343, %v423
      %v425 = vpop.f32.mrb[0].mxu0
      %v426 = vadd.f32 %v343, %v425
      %427 = vmatprep.mubr.f32.mxu0 0.0
      %428 = vmatmul.mubr.f32.gmra.mrb[0].mxu0 %v355
      %v429 = vpop.f32.mrb[0].mxu0
      %v430 = vadd.f32 %v348, %v429
      %v431 = vpop.f32.mrb[0].mxu0
      %v432 = vadd.f32 %v348, %v431
      %433 = vdwg.mxu0
      %v434 = vmul.f32 %v424, 1.442695
      %v435 = vpow.pop %v434
      %v436 = vmul.f32 %v426, 1.442695
      %v437 = vpow.pop %v436
      %v438 = vmul.f32 %v430, 1.442695
      %v439 = vpow.pop %v438
      %v440 = vmul.f32 %v432, 1.442695
      %v441 = vpow.pop %v440
      %442 = vst [vmem:[%s256] sm:$0xff] %v435
      %vm443 = vcmask 7168
      %444 = vst.msk [vmem:[%s256 + $0x8] sm:$0xff] %vm443, %v437
      %445 = vst [vmem:[%s256 + $0x10] sm:$0x1] %v439
      %vm446 = vcmask 0
      %447 = vst.msk [vmem:[%s256 + $0x18] sm:$0x1] %vm446, %v441
      %v448 = vld [vmem:[%s3] sm:$0xff]
      %v449 = vld [vmem:[%s3 + $0x8] sm:$0x1]
      %v450 = vld [vmem:[%s4] sm:$0xff]
      %v451 = vld [vmem:[%s4 + $0x8] sm:$0x1]
      %453 = vset.pattern.permute.xlu0 0
      %454 = vperm.xlu0 %453, %v450
      %v455 = vpop.permute.xlu0 %454
      %458 = vset.pattern.permute.xlu0 0
      %459 = vperm.xlu0 %458, %v451
      %v460 = vpop.permute.xlu0 %459
      %v463 = vsel %vm350, %v448, 0
      %v466 = vsel %vm350, %v449, 0
      %468 = vmatprep.subr.mxu0 %v285
      %469 = vmatpush1.msra.mxu0 %v284
      %470 = vmatprep.subr.mxu0 %v291
      %471 = vmatpush1.msra.mxu0 %v293
      %472 = vmatprep.subr.mxu0 %v299
      %473 = vmatpush1.msra.mxu0 %v301
      %474 = vmatprep.subr.mxu0 %v307
      %475 = vmatpush1.msra.mxu0 %v309
      %476 = vmatprep.subr.mxu0 %v315
      %477 = vmatpush1.msra.mxu0 %v317
      %478 = vmatprep.subr.mxu0 %v323
      %479 = vmatpush1.msra.mxu0 %v325
      %480 = vmatprep.subr.mxu0 %v331
      %481 = vmatpush1.msra.mxu0 %v333
      %482 = vmatprep.subr.mxu0 0.0
      %483 = vmatpush1.msra.mxu0 0.0
      %484 = vmatprep.subr.mxu0 0.0
      %485 = vmatpush1.msra.mxu0 0.0
      %486 = vmatprep.subr.mxu0 0.0
      %487 = vmatpush1.msra.mxu0 0.0
      %488 = vmatprep.subr.mxu0 0.0
      %489 = vmatpush1.msra.mxu0 0.0
      %490 = vmatprep.subr.mxu0 0.0
      %491 = vmatpush1.msra.mxu0 0.0
      %492 = vmatprep.subr.mxu0 0.0
      %493 = vmatpush1.msra.mxu0 0.0
      %494 = vmatprep.subr.mxu0 0.0
      %495 = vmatpush1.msra.mxu0 0.0
      %496 = vmatprep.subr.mxu0 0.0
      %497 = vmatpush1.msra.mxu0 0.0
      %498 = vmatprep.subr.mxu0 0.0
      %499 = vmatpush1.msra.mxu0 0.0
      %500 = vmatprep.subr.mxu0 0.0
      %501 = vmatpush1.msra.mxu0 0.0
      %502 = vmatprep.subr.mxu0 0.0
      %503 = vmatpush1.msra.mxu0 0.0
      %504 = vmatprep.subr.mxu0 0.0
      %505 = vmatpush1.msra.mxu0 0.0
      %506 = vmatprep.subr.mxu0 0.0
      %507 = vmatpush1.msra.mxu0 0.0
      %508 = vmatprep.subr.mxu0 0.0
      %509 = vmatpush1.msra.mxu0 0.0
      %510 = vmatprep.subr.mxu0 0.0
      %511 = vmatpush1.msra.mxu0 0.0
      %512 = vmatprep.subr.mxu0 0.0
      %513 = vmatpush1.msra.mxu0 0.0
      %514 = vmatprep.subr.mxu0 0.0
      %515 = vmatpush1.msra.mxu0 0.0
      %516 = vmatprep.subr.mxu0 0.0
      %517 = vmatpush1.msra.mxu0 0.0
      %518 = vmatprep.subr.mxu0 0.0
      %519 = vmatpush1.msra.mxu0 0.0
      %520 = vmatprep.subr.mxu0 0.0
      %521 = vmatpush1.msra.mxu0 0.0
      %522 = vmatprep.subr.mxu0 0.0
      %523 = vmatpush1.msra.mxu0 0.0
      %524 = vmatprep.subr.mxu0 0.0
      %525 = vmatpush1.msra.mxu0 0.0
      %526 = vmatprep.subr.mxu0 0.0
      %527 = vmatpush1.msra.mxu0 0.0
      %528 = vmatprep.subr.mxu0 0.0
      %529 = vmatpush1.msra.mxu0 0.0
      %530 = vmatprep.subr.mxu0 0.0
      %531 = vmatpush1.msra.mxu0 0.0
      %532 = vmatprep.mubr.f32.mxu0 0.0
      %533 = vmatmul.mubr.f32.gmra.mrb[0].mxu0 %v463
      %v534 = vpop.f32.mrb[0].mxu0
      %v535 = vadd.f32 %v455, %v534
      %v536 = vpop.f32.mrb[0].mxu0
      %v537 = vadd.f32 %v455, %v536
      %538 = vmatprep.mubr.f32.mxu0 0.0
      %539 = vmatmul.mubr.f32.gmra.mrb[0].mxu0 %v466
      %v540 = vpop.f32.mrb[0].mxu0
      %v541 = vadd.f32 %v460, %v540
      %v542 = vpop.f32.mrb[0].mxu0
      %v543 = vadd.f32 %v460, %v542
      %544 = vdwg.mxu0
      %v545 = vand.u32 2147483647, %v535
      %vm546 = vcmp.le.f32.partialorder %v545, 0.7853982
      %vm547 = vcmp.lt.s32.totalorder %v535, 0
      %v548 = vand.u32 %v535, 2139095040
      %v549 = vshrl.u32 %v548, 23
      %v550 = vsub.s32 %v549, 127
      %v551 = vand.u32 2147483647, %v535
      %v552 = vand.u32 %v551, 8388607
      %v553 = vor.u32 %v552, 8388608
      %v554 = vsub.s32 0, %v553
      %v555 = vadd.s32 %v550, 1
      %vm556 = vcmp.gt.s32.totalorder %v555, 0
      %v557 = vsel %vm556, %v555, 0
      %v558 = vshrl.u32 %v557, 5
      %v559 = vand.u32 %v557, 31
      %v560 = vsub.s32 32, %v559
      %v561 = vshrl.u32 683565275, %v560
      %v562 = vshll.u32 683565275, %v559
      %v563 = vshrl.u32 2475754826, %v560
      %v564 = vor.u32 %v562, %v563
      %v565 = vshll.u32 2475754826, %v559
      %v566 = vshrl.u32 2131351028, %v560
      %v567 = vor.u32 %v565, %v566
      %v568 = vshll.u32 2131351028, %v559
      %v569 = vshrl.u32 2102212464, %v560
      %v570 = vor.u32 %v568, %v569
      %v571 = vshll.u32 2102212464, %v559
      %v572 = vshrl.u32 920167782, %v560
      %v573 = vor.u32 %v571, %v572
      %v574 = vshll.u32 920167782, %v559
      %v575 = vshrl.u32 1326507024, %v560
      %v576 = vor.u32 %v574, %v575
      %vm577 = vcmp.lt.s32.totalorder %v558, 1
      %vm578 = vcmp.lt.s32.totalorder %v558, 2
      %vm579 = vcmp.lt.s32.totalorder %v558, 3
      %vm580 = vcmp.lt.s32.totalorder %v558, 4
      %v581 = vsel %vm577, %v561, %v564
      %v582 = vsel %vm580, %v570, 2102212464
      %v583 = vsel %vm579, %v567, %v582
      %v584 = vsel %vm578, %v581, %v583
      %v585 = vsel %vm577, %v564, %v567
      %v586 = vsel %vm580, %v573, 920167782
      %v587 = vsel %vm579, %v570, %v586
      %v588 = vsel %vm578, %v585, %v587
      %v589 = vsel %vm577, %v567, %v570
      %v590 = vsel %vm580, %v576, 1326507024
      %v591 = vsel %vm579, %v573, %v590
      %v592 = vsel %vm578, %v589, %v591
      %v593 = vshll.u32 %v553, 8
      %v594 = vmul.u32.u64.compose %v593, %v592
      %v595 = vextract.low.u32 %v594
      %v596 = vextract.high.u32 %v594
      %v597 = vmul.u32.u64.compose %v593, %v588
      %v598 = vextract.low.u32 %v597
      %v599 = vextract.high.u32 %v597
      %v600 = vmul.u32 %v593, %v584
      %v601 = vadd.s32 %v596, %v598
      %vm602 = vc.u32 %v596, %v598
      %v603 = vadd.s32 %v599, 1
      %v604 = vsel %vm602, %v603, %v599
      %v605 = vadd.s32 %v600, %v604
      %v606 = vadd.s32 %v605, 536870912
      %v607 = vshrl.u32 %v606, 30
      %v608 = vshll.u32 %v607, 30
      %v609 = vsub.s32 %v605, %v608
      %vm610 = vcmp.lt.s32.totalorder %v609, 0
      %v611 = vsub.s32 0, %v609
      %v612 = vsel %vm610, %v611, %v609
      %v613 = vclz %v612
      %v614 = vsub.s32 %v613, 2
      %vm615 = vcmp.gt.s32.totalorder 0, %v614
      %v616 = vsel %vm615, 0, %v614
      %v617 = vsub.s32 32, %v616
      %v618 = vshll.u32 %v609, %v616
      %v619 = vshrl.u32 %v601, %v617
      %v620 = vor.u32 %v618, %v619
      %v621 = vsub.s32 4294967266, %v616
      %v622 = vadd.s32 %v621, 127
      %v623 = vshll.u32 %v622, 23
      %v624 = vor.u32 4788187, %v623
      %v625 = vand.u32 2147483647, %v624
      %v627 = vcvt.s32.f32 %v620
      %v628 = vmul.f32 %v627, %v625
      %v629 = vxor.u32 %v628, 2147483648
      %v630 = vsel %vm547, %v629, %v628
      %v631 = vsub.s32 4, %v607
      %v632 = vsel %vm547, %v631, %v607
      %v633 = vsel %vm546, %v535, %v630
      %v634 = vsel %vm546, 0, %v632
      %v635 = vcosq.f32.pop %v633
      %v636 = vsinq.f32.pop %v633
      %vm637 = vweird.f32 %v535
      %v638 = vadd.s32 %v634, 3
      %v639 = vand.u32 %v638, 3
      %vm640 = vcmp.lt.s32.totalorder %v639, 2
      %vm641 = vcmp.eq.s32.totalorder %v639, 0
      %v642 = vxor.u32 %v636, 2147483648
      %v643 = vsel %vm641, %v635, %v642
      %vm644 = vcmp.eq.s32.totalorder %v639, 2
      %v645 = vxor.u32 %v635, 2147483648
      %v646 = vsel %vm644, %v645, %v636
      %v647 = vsel %vm640, %v643, %v646
      %v648 = vsel %vm637, nan, %v647
      %v649 = vand.u32 2147483647, %v537
      %vm650 = vcmp.le.f32.partialorder %v649, 0.7853982
      %vm651 = vcmp.lt.s32.totalorder %v537, 0
      %v652 = vand.u32 %v537, 2139095040
      %v653 = vshrl.u32 %v652, 23
      %v654 = vsub.s32 %v653, 127
      %v655 = vand.u32 2147483647, %v537
      %v656 = vand.u32 %v655, 8388607
      %v657 = vor.u32 %v656, 8388608
      %v658 = vsub.s32 0, %v657
      %v659 = vadd.s32 %v654, 1
      %vm660 = vcmp.gt.s32.totalorder %v659, 0
      %v661 = vsel %vm660, %v659, 0
      %v662 = vshrl.u32 %v661, 5
      %v663 = vand.u32 %v661, 31
      %v664 = vsub.s32 32, %v663
      %v665 = vshrl.u32 683565275, %v664
      %v666 = vshll.u32 683565275, %v663
      %v667 = vshrl.u32 2475754826, %v664
      %v668 = vor.u32 %v666, %v667
      %v669 = vshll.u32 2475754826, %v663
      %v670 = vshrl.u32 2131351028, %v664
      %v671 = vor.u32 %v669, %v670
      %v672 = vshll.u32 2131351028, %v663
      %v673 = vshrl.u32 2102212464, %v664
      %v674 = vor.u32 %v672, %v673
      %v675 = vshll.u32 2102212464, %v663
      %v676 = vshrl.u32 920167782, %v664
      %v677 = vor.u32 %v675, %v676
      %v678 = vshll.u32 920167782, %v663
      %v679 = vshrl.u32 1326507024, %v664
      %v680 = vor.u32 %v678, %v679
      %vm681 = vcmp.lt.s32.totalorder %v662, 1
      %vm682 = vcmp.lt.s32.totalorder %v662, 2
      %vm683 = vcmp.lt.s32.totalorder %v662, 3
      %vm684 = vcmp.lt.s32.totalorder %v662, 4
      %v685 = vsel %vm681, %v665, %v668
      %v686 = vsel %vm684, %v674, 2102212464
      %v687 = vsel %vm683, %v671, %v686
      %v688 = vsel %vm682, %v685, %v687
      %v689 = vsel %vm681, %v668, %v671
      %v690 = vsel %vm684, %v677, 920167782
      %v691 = vsel %vm683, %v674, %v690
      %v692 = vsel %vm682, %v689, %v691
      %v693 = vsel %vm681, %v671, %v674
      %v694 = vsel %vm684, %v680, 1326507024
      %v695 = vsel %vm683, %v677, %v694
      %v696 = vsel %vm682, %v693, %v695
      %v697 = vshll.u32 %v657, 8
      %v698 = vmul.u32.u64.compose %v697, %v696
      %v699 = vextract.low.u32 %v698
      %v700 = vextract.high.u32 %v698
      %v701 = vmul.u32.u64.compose %v697, %v692
      %v702 = vextract.low.u32 %v701
      %v703 = vextract.high.u32 %v701
      %v704 = vmul.u32 %v697, %v688
      %v705 = vadd.s32 %v700, %v702
      %vm706 = vc.u32 %v700, %v702
      %v707 = vadd.s32 %v703, 1
      %v708 = vsel %vm706, %v707, %v703
      %v709 = vadd.s32 %v704, %v708
      %v710 = vadd.s32 %v709, 536870912
      %v711 = vshrl.u32 %v710, 30
      %v712 = vshll.u32 %v711, 30
      %v713 = vsub.s32 %v709, %v712
      %vm714 = vcmp.lt.s32.totalorder %v713, 0
      %v715 = vsub.s32 0, %v713
      %v716 = vsel %vm714, %v715, %v713
      %v717 = vclz %v716
      %v718 = vsub.s32 %v717, 2
      %vm719 = vcmp.gt.s32.totalorder 0, %v718
      %v720 = vsel %vm719, 0, %v718
      %v721 = vsub.s32 32, %v720
      %v722 = vshll.u32 %v713, %v720
      %v723 = vshrl.u32 %v705, %v721
      %v724 = vor.u32 %v722, %v723
      %v725 = vsub.s32 4294967266, %v720
      %v726 = vadd.s32 %v725, 127
      %v727 = vshll.u32 %v726, 23
      %v728 = vor.u32 4788187, %v727
      %v729 = vand.u32 2147483647, %v728
      %v731 = vcvt.s32.f32 %v724
      %v732 = vmul.f32 %v731, %v729
      %v733 = vxor.u32 %v732, 2147483648
      %v734 = vsel %vm651, %v733, %v732
      %v735 = vsub.s32 4, %v711
      %v736 = vsel %vm651, %v735, %v711
      %v737 = vsel %vm650, %v537, %v734
      %v738 = vsel %vm650, 0, %v736
      %v739 = vcosq.f32.pop %v737
      %v740 = vsinq.f32.pop %v737
      %vm741 = vweird.f32 %v537
      %v742 = vadd.s32 %v738, 3
      %v743 = vand.u32 %v742, 3
      %vm744 = vcmp.lt.s32.totalorder %v743, 2
      %vm745 = vcmp.eq.s32.totalorder %v743, 0
      %v746 = vxor.u32 %v740, 2147483648
      %v747 = vsel %vm745, %v739, %v746
      %vm748 = vcmp.eq.s32.totalorder %v743, 2
      %v749 = vxor.u32 %v739, 2147483648
      %v750 = vsel %vm748, %v749, %v740
      %v751 = vsel %vm744, %v747, %v750
      %v752 = vsel %vm741, nan, %v751
      %v753 = vand.u32 2147483647, %v541
      %vm754 = vcmp.le.f32.partialorder %v753, 0.7853982
      %vm755 = vcmp.lt.s32.totalorder %v541, 0
      %v756 = vand.u32 %v541, 2139095040
      %v757 = vshrl.u32 %v756, 23
      %v758 = vsub.s32 %v757, 127
      %v759 = vand.u32 2147483647, %v541
      %v760 = vand.u32 %v759, 8388607
      %v761 = vor.u32 %v760, 8388608
      %v762 = vsub.s32 0, %v761
      %v763 = vadd.s32 %v758, 1
      %vm764 = vcmp.gt.s32.totalorder %v763, 0
      %v765 = vsel %vm764, %v763, 0
      %v766 = vshrl.u32 %v765, 5
      %v767 = vand.u32 %v765, 31
      %v768 = vsub.s32 32, %v767
      %v769 = vshrl.u32 683565275, %v768
      %v770 = vshll.u32 683565275, %v767
      %v771 = vshrl.u32 2475754826, %v768
      %v772 = vor.u32 %v770, %v771
      %v773 = vshll.u32 2475754826, %v767
      %v774 = vshrl.u32 2131351028, %v768
      %v775 = vor.u32 %v773, %v774
      %v776 = vshll.u32 2131351028, %v767
      %v777 = vshrl.u32 2102212464, %v768
      %v778 = vor.u32 %v776, %v777
      %v779 = vshll.u32 2102212464, %v767
      %v780 = vshrl.u32 920167782, %v768
      %v781 = vor.u32 %v779, %v780
      %v782 = vshll.u32 920167782, %v767
      %v783 = vshrl.u32 1326507024, %v768
      %v784 = vor.u32 %v782, %v783
      %vm785 = vcmp.lt.s32.totalorder %v766, 1
      %vm786 = vcmp.lt.s32.totalorder %v766, 2
      %vm787 = vcmp.lt.s32.totalorder %v766, 3
      %vm788 = vcmp.lt.s32.totalorder %v766, 4
      %v789 = vsel %vm785, %v769, %v772
      %v790 = vsel %vm788, %v778, 2102212464
      %v791 = vsel %vm787, %v775, %v790
      %v792 = vsel %vm786, %v789, %v791
      %v793 = vsel %vm785, %v772, %v775
      %v794 = vsel %vm788, %v781, 920167782
      %v795 = vsel %vm787, %v778, %v794
      %v796 = vsel %vm786, %v793, %v795
      %v797 = vsel %vm785, %v775, %v778
      %v798 = vsel %vm788, %v784, 1326507024
      %v799 = vsel %vm787, %v781, %v798
      %v800 = vsel %vm786, %v797, %v799
      %v801 = vshll.u32 %v761, 8
      %v802 = vmul.u32.u64.compose %v801, %v800
      %v803 = vextract.low.u32 %v802
      %v804 = vextract.high.u32 %v802
      %v805 = vmul.u32.u64.compose %v801, %v796
      %v806 = vextract.low.u32 %v805
      %v807 = vextract.high.u32 %v805
      %v808 = vmul.u32 %v801, %v792
      %v809 = vadd.s32 %v804, %v806
      %vm810 = vc.u32 %v804, %v806
      %v811 = vadd.s32 %v807, 1
      %v812 = vsel %vm810, %v811, %v807
      %v813 = vadd.s32 %v808, %v812
      %v814 = vadd.s32 %v813, 536870912
      %v815 = vshrl.u32 %v814, 30
      %v816 = vshll.u32 %v815, 30
      %v817 = vsub.s32 %v813, %v816
      %vm818 = vcmp.lt.s32.totalorder %v817, 0
      %v819 = vsub.s32 0, %v817
      %v820 = vsel %vm818, %v819, %v817
      %v821 = vclz %v820
      %v822 = vsub.s32 %v821, 2
      %vm823 = vcmp.gt.s32.totalorder 0, %v822
      %v824 = vsel %vm823, 0, %v822
      %v825 = vsub.s32 32, %v824
      %v826 = vshll.u32 %v817, %v824
      %v827 = vshrl.u32 %v809, %v825
      %v828 = vor.u32 %v826, %v827
      %v829 = vsub.s32 4294967266, %v824
      %v830 = vadd.s32 %v829, 127
      %v831 = vshll.u32 %v830, 23
      %v832 = vor.u32 4788187, %v831
      %v833 = vand.u32 2147483647, %v832
      %v835 = vcvt.s32.f32 %v828
      %v836 = vmul.f32 %v835, %v833
      %v837 = vxor.u32 %v836, 2147483648
      %v838 = vsel %vm755, %v837, %v836
      %v839 = vsub.s32 4, %v815
      %v840 = vsel %vm755, %v839, %v815
      %v841 = vsel %vm754, %v541, %v838
      %v842 = vsel %vm754, 0, %v840
      %v843 = vcosq.f32.pop %v841
      %v844 = vsinq.f32.pop %v841
      %vm845 = vweird.f32 %v541
      %v846 = vadd.s32 %v842, 3
      %v847 = vand.u32 %v846, 3
      %vm848 = vcmp.lt.s32.totalorder %v847, 2
      %vm849 = vcmp.eq.s32.totalorder %v847, 0
      %v850 = vxor.u32 %v844, 2147483648
      %v851 = vsel %vm849, %v843, %v850
      %vm852 = vcmp.eq.s32.totalorder %v847, 2
      %v853 = vxor.u32 %v843, 2147483648
      %v854 = vsel %vm852, %v853, %v844
      %v855 = vsel %vm848, %v851, %v854
      %v856 = vsel %vm845, nan, %v855
      %v857 = vand.u32 2147483647, %v543
      %vm858 = vcmp.le.f32.partialorder %v857, 0.7853982
      %vm859 = vcmp.lt.s32.totalorder %v543, 0
      %v860 = vand.u32 %v543, 2139095040
      %v861 = vshrl.u32 %v860, 23
      %v862 = vsub.s32 %v861, 127
      %v863 = vand.u32 2147483647, %v543
      %v864 = vand.u32 %v863, 8388607
      %v865 = vor.u32 %v864, 8388608
      %v866 = vsub.s32 0, %v865
      %v867 = vadd.s32 %v862, 1
      %vm868 = vcmp.gt.s32.totalorder %v867, 0
      %v869 = vsel %vm868, %v867, 0
      %v870 = vshrl.u32 %v869, 5
      %v871 = vand.u32 %v869, 31
      %v872 = vsub.s32 32, %v871
      %v873 = vshrl.u32 683565275, %v872
      %v874 = vshll.u32 683565275, %v871
      %v875 = vshrl.u32 2475754826, %v872
      %v876 = vor.u32 %v874, %v875
      %v877 = vshll.u32 2475754826, %v871
      %v878 = vshrl.u32 2131351028, %v872
      %v879 = vor.u32 %v877, %v878
      %v880 = vshll.u32 2131351028, %v871
      %v881 = vshrl.u32 2102212464, %v872
      %v882 = vor.u32 %v880, %v881
      %v883 = vshll.u32 2102212464, %v871
      %v884 = vshrl.u32 920167782, %v872
      %v885 = vor.u32 %v883, %v884
      %v886 = vshll.u32 920167782, %v871
      %v887 = vshrl.u32 1326507024, %v872
      %v888 = vor.u32 %v886, %v887
      %vm889 = vcmp.lt.s32.totalorder %v870, 1
      %vm890 = vcmp.lt.s32.totalorder %v870, 2
      %vm891 = vcmp.lt.s32.totalorder %v870, 3
      %vm892 = vcmp.lt.s32.totalorder %v870, 4
      %v893 = vsel %vm889, %v873, %v876
      %v894 = vsel %vm892, %v882, 2102212464
      %v895 = vsel %vm891, %v879, %v894
      %v896 = vsel %vm890, %v893, %v895
      %v897 = vsel %vm889, %v876, %v879
      %v898 = vsel %vm892, %v885, 920167782
      %v899 = vsel %vm891, %v882, %v898
      %v900 = vsel %vm890, %v897, %v899
      %v901 = vsel %vm889, %v879, %v882
      %v902 = vsel %vm892, %v888, 1326507024
      %v903 = vsel %vm891, %v885, %v902
      %v904 = vsel %vm890, %v901, %v903
      %v905 = vshll.u32 %v865, 8
      %v906 = vmul.u32.u64.compose %v905, %v904
      %v907 = vextract.low.u32 %v906
      %v908 = vextract.high.u32 %v906
      %v909 = vmul.u32.u64.compose %v905, %v900
      %v910 = vextract.low.u32 %v909
      %v911 = vextract.high.u32 %v909
      %v912 = vmul.u32 %v905, %v896
      %v913 = vadd.s32 %v908, %v910
      %vm914 = vc.u32 %v908, %v910
      %v915 = vadd.s32 %v911, 1
      %v916 = vsel %vm914, %v915, %v911
      %v917 = vadd.s32 %v912, %v916
      %v918 = vadd.s32 %v917, 536870912
      %v919 = vshrl.u32 %v918, 30
      %v920 = vshll.u32 %v919, 30
      %v921 = vsub.s32 %v917, %v920
      %vm922 = vcmp.lt.s32.totalorder %v921, 0
      %v923 = vsub.s32 0, %v921
      %v924 = vsel %vm922, %v923, %v921
      %v925 = vclz %v924
      %v926 = vsub.s32 %v925, 2
      %vm927 = vcmp.gt.s32.totalorder 0, %v926
      %v928 = vsel %vm927, 0, %v926
      %v929 = vsub.s32 32, %v928
      %v930 = vshll.u32 %v921, %v928
      %v931 = vshrl.u32 %v913, %v929
      %v932 = vor.u32 %v930, %v931
      %v933 = vsub.s32 4294967266, %v928
      %v934 = vadd.s32 %v933, 127
      %v935 = vshll.u32 %v934, 23
      %v936 = vor.u32 4788187, %v935
      %v937 = vand.u32 2147483647, %v936
      %v939 = vcvt.s32.f32 %v932
      %v940 = vmul.f32 %v939, %v937
      %v941 = vxor.u32 %v940, 2147483648
      %v942 = vsel %vm859, %v941, %v940
      %v943 = vsub.s32 4, %v919
      %v944 = vsel %vm859, %v943, %v919
      %v945 = vsel %vm858, %v543, %v942
      %v946 = vsel %vm858, 0, %v944
      %v947 = vcosq.f32.pop %v945
      %v948 = vsinq.f32.pop %v945
      %vm949 = vweird.f32 %v543
      %v950 = vadd.s32 %v946, 3
      %v951 = vand.u32 %v950, 3
      %vm952 = vcmp.lt.s32.totalorder %v951, 2
      %vm953 = vcmp.eq.s32.totalorder %v951, 0
      %v954 = vxor.u32 %v948, 2147483648
      %v955 = vsel %vm953, %v947, %v954
      %vm956 = vcmp.eq.s32.totalorder %v951, 2
      %v957 = vxor.u32 %v947, 2147483648
      %v958 = vsel %vm956, %v957, %v948
      %v959 = vsel %vm952, %v955, %v958
      %v960 = vsel %vm949, nan, %v959
      %961 = vst [vmem:[%s261] sm:$0xff] %v648
      %962 = vst.msk [vmem:[%s261 + $0x8] sm:$0xff] %vm443, %v752
      %963 = vst [vmem:[%s261 + $0x10] sm:$0x1] %v856
      %964 = vst.msk [vmem:[%s261 + $0x18] sm:$0x1] %vm446, %v960
      %p965 = scmp.lt.s32.totalorder %s18, 1
      %s966 = scalar_select %p965, %s18, 1
      %s967 = smul.addr %s966, 4
      %s968 = smul.addr %s967, 8
      %s969 = scalar_lea.vmem %s5, %s968
      %p970 = scmp.lt.s32.totalorder %s18, 1
      %s971 = scalar_select %p970, %s18, 1
      %s972 = smul.addr %s971, 4
      %s973 = smul.addr %s972, 8
      %s974 = scalar_lea.vmem %s6, %s973
      // Predicated region
      $region41: #{istft_forward.11} parent=39 // pred_check
        %p975 = pneg %p146
      $region42: #{istft_forward.11} parent=39 // pred_check_branch
        %977 = sbr.rel (%p975) target = $region44
      $region43: #{istft_forward.11} parent=39 // pred_region
        _
      $region44: #{istft_forward.11} parent=39 // pred_fallthru
        _
      // Predicated region
      $region45: #{istft_forward.11} parent=39 // pred_check
        %p978 = pneg %p172
      $region46: #{istft_forward.11} parent=39 // pred_check_branch
        %980 = sbr.rel (%p978) target = $region48
      $region47: #{istft_forward.11} parent=39 // pred_region
        _
      $region48: #{istft_forward.11} parent=39 // pred_fallthru
        _
    $region40: #{istft_forward.11} parent=5 // pred_fallthru
      _
    %p981 = scmp.le.s32.totalorder 2, %s13
    // Predicated region
    $region49: #{istft_forward.11} parent=5 // pred_check
      %p982 = pneg %p981
    $region50: #{istft_forward.11} parent=5 // pred_check_branch
      %984 = sbr.rel (%p982) target = $region52
    $region51: #{istft_forward.11} parent=5 // pred_region
      %s985 = ssub.s32 %s13, 2
      // Predicated region
      $region53: #{istft_forward.11} parent=51 // pred_check
        %p986 = pneg %p152
      $region54: #{istft_forward.11} parent=51 // pred_check_branch
        %988 = sbr.rel (%p986) target = $region56
      $region55: #{istft_forward.11} parent=51 // pred_region
        %p989 = scmp.lt.s32.totalorder %s19, 1
        %s990 = scalar_select %p989, %s19, 1
        %s991 = smul.addr %s990, 4
        %s992 = smul.addr %s991, 8
        %s993 = scalar_lea.vmem %s5, %s992
      $region56: #{istft_forward.11} parent=51 // pred_fallthru
        _
      // Predicated region
      $region57: #{istft_forward.11} parent=51 // pred_check
        %p994 = pneg %p178
      $region58: #{istft_forward.11} parent=51 // pred_check_branch
        %996 = sbr.rel (%p994) target = $region60
      $region59: #{istft_forward.11} parent=51 // pred_region
        %p997 = scmp.lt.s32.totalorder %s19, 1
        %s998 = scalar_select %p997, %s19, 1
        %s999 = smul.addr %s998, 4
        %s1000 = smul.addr %s999, 8
        %s1001 = scalar_lea.vmem %s6, %s1000
      $region60: #{istft_forward.11} parent=51 // pred_fallthru
        _
    $region52: #{istft_forward.11} parent=5 // pred_fallthru
      _
  $region6: #{istft_forward.11} parent=0 // loop_footer
    %s17 = sadd.s32 1, %s13
  $region7: #{istft_forward.11} parent=0 // loop_footer_branch
    %12 = sbr.rel target = $region3
  $region8: #{istft_forward.11} parent=0 // loop_exit
    _

// kernel: istft_forward.10
$region0: #{istft_forward.10}
  #allocation0 [shape = 'u32[]', space=smem, size = 0x4, offset = 0x4, fixed_abs, tag = 'smem constant byte address 0x4 - core index']
  #allocation1 [shape = 'u32[144,128]{1,0:T(1,128)}', space=vmem, size = 0x12000, scoped, tag = 'internal scratch']
  #allocation2 [shape = 'bf16[8,140]{1,0:T(8,128)(2,1)}', space=vmem, size = 0x1000, scoped, tag = 'scratch operand']
  %s0 = inlined_call_operand.vmem [shape: bf16[2,8,128], index: 0, kind: input, shape index: {}, may-alias: {0,17}]
  %s1 = inlined_call_operand.vmem [shape: bf16[8,24], index: 1, kind: input, shape index: {}]
  %s2 = inlined_call_operand.vmem [shape: bf16[8,24], index: 2, kind: input, shape index: {}]
  %s3 = inlined_call_operand.vmem [shape: bf16[8,24], index: 3, kind: input, shape index: {}]
  %s4 = inlined_call_operand.vmem [shape: bf16[8,24], index: 4, kind: input, shape index: {}]
  %s5 = inlined_call_operand.vmem [shape: bf16[8,40], index: 5, kind: input, shape index: {}]
  %s6 = inlined_call_operand.vmem [shape: bf16[8,40], index: 6, kind: input, shape index: {}]
  %s7 = inlined_call_operand.vmem [shape: bf16[8,40], index: 7, kind: input, shape index: {}]
  %s8 = inlined_call_operand.vmem [shape: bf16[8,40], index: 8, kind: input, shape index: {}]
  %s9 = inlined_call_operand.vmem [shape: f32[8,1], index: 9, kind: input, shape index: {}]
  %s10 = inlined_call_operand.vmem [shape: f32[8,1], index: 10, kind: input, shape index: {}]
  %s11 = inlined_call_operand.vmem [shape: f32[8,1], index: 11, kind: input, shape index: {}]
  %s12 = inlined_call_operand.vmem [shape: f32[8,1], index: 12, kind: input, shape index: {}]
  %s13 = inlined_call_operand.vmem [shape: f32[8,1], index: 13, kind: input, shape index: {}]
  %s14 = inlined_call_operand.vmem [shape: f32[8,1], index: 14, kind: input, shape index: {}]
  %s15 = inlined_call_operand.vmem [shape: f32[8,1], index: 15, kind: input, shape index: {}]
  %s16 = inlined_call_operand.vmem [shape: f32[8,1], index: 16, kind: input, shape index: {}]
  %s17 = inlined_call_operand.vmem [shape: bf16[2,8,128], index: 17, kind: output, shape index: {}, may-alias: {0,17}]
  %s18 = sld [smem:[#allocation0]]
  $region101: #{istft_forward.10} parent=0
    _
  %s20 = ssub.s32 1, %s18
  %s21 = scalar_select 0, %s20, %s18
  loop: start=0, step=1, limit=4
  $region2: #{istft_forward.10} parent=0 // loop_pre_header
    _
  $region3: #{istft_forward.10} parent=0 // loop_header
    %s23 = sphi 0, %s27
    %p24 = scmp.ge.s32.totalorder %s23, 4
    %s33 = sphi 0, %s35
    %s36 = sphi 0, %s33
    %s37 = sphi 0, %s36
    %s53 = sphi 0, %s37
    %s57 = sphi 0, %s57
    %s59 = sphi 0, %s57
    %s60 = sphi 0, %s59
    %s74 = sphi 0, %s60
    %s78 = sphi 0, %s78
    %s80 = sphi 0, %s78
    %s81 = sphi 0, %s80
    %s95 = sphi 0, %s81
    %s99 = sphi 0, %s99
    %s101 = sphi 0, %s99
    %s102 = sphi 0, %s101
    %s116 = sphi 0, %s102
    %s120 = sphi 0, %s120
    %s122 = sphi 0, %s120
    %s123 = sphi 0, %s122
    %s137 = sphi 0, %s123
    %s141 = sphi 0, %s141
    %s143 = sphi 0, %s141
    %s144 = sphi 0, %s143
    %s158 = sphi 0, %s144
    %s162 = sphi 0, %s162
    %s164 = sphi 0, %s162
    %s165 = sphi 0, %s164
    %s179 = sphi 0, %s165
    %s183 = sphi 0, %s183
    %s185 = sphi 0, %s183
    %s186 = sphi 0, %s185
    %s200 = sphi 0, %s186
    %s204 = sphi 0, %s204
    %s206 = sphi 0, %s204
    %s207 = sphi 0, %s206
    %s221 = sphi 0, %s207
    %s225 = sphi 0, %s225
    %s227 = sphi 0, %s225
    %s228 = sphi 0, %s227
    %s242 = sphi 0, %s228
    %s246 = sphi 0, %s246
    %s248 = sphi 0, %s246
    %s249 = sphi 0, %s248
    %s263 = sphi 0, %s249
    %s267 = sphi 0, %s267
    %s269 = sphi 0, %s267
    %s270 = sphi 0, %s269
    %s284 = sphi 0, %s270
    %s288 = sphi 0, %s288
    %s290 = sphi 0, %s288
    %s291 = sphi 0, %s290
    %s305 = sphi 0, %s291
    %s309 = sphi 0, %s309
    %s311 = sphi 0, %s309
    %s312 = sphi 0, %s311
    %s326 = sphi 0, %s312
    %s330 = sphi 0, %s330
    %s332 = sphi 0, %s330
    %s333 = sphi 0, %s332
    %s347 = sphi 0, %s333
    %s351 = sphi 0, %s351
    %s353 = sphi 0, %s351
    %s354 = sphi 0, %s353
    %s368 = sphi 0, %s354
    %s372 = sphi 0, %s372
    %s374 = sphi 0, %s372
    %s375 = sphi 0, %s374
    %s389 = sphi 0, %s375
    %s395 = sphi 0, %s397
    %s398 = sphi 0, %s395
    %s399 = sphi 0, %s398
    %s415 = sphi 0, %s399
  $region4: #{istft_forward.10} parent=0 // loop_header_branch
    %26 = sbr.rel (%p24) target = $region8
  $region5: #{istft_forward.10} parent=0 // loop_body
    %s28 = ssub.s32 %s23, 1
    %s29 = ssub.s32 %s23, 2
    %s30 = sadd.s32 %s23, 1
    %s31 = ssub.s32 %s23, %s30
    %p32 = scmp.eq.s32.totalorder %s31, 0
    %s34 = sadd.s32 %s33, 1
    %s35 = scalar_select %p32, %s33, %s34
    %p38 = pneg %p32
    %p39 = scmp.eq.s32.totalorder %s23, 1
    %p40 = por %p38, %p39
    %p41 = scmp.ne.s32.totalorder %s33, %s36
    %p42 = scmp.eq.s32.totalorder %s23, 0
    %p43 = por %p41, %p42
    %p44 = scmp.ne.s32.totalorder %s33, %s36
    %p45 = scmp.eq.s32.totalorder %s28, 1
    %p46 = por %p44, %p45
    %p47 = scmp.ne.s32.totalorder %s36, %s37
    %p48 = scmp.eq.s32.totalorder %s28, 0
    %p49 = por %p47, %p48
    %p50 = scmp.ne.s32.totalorder %s36, %s37
    %p51 = scmp.eq.s32.totalorder %s29, 1
    %p52 = por %p50, %p51
    %p54 = scmp.ne.s32.totalorder %s37, %s53
    %p55 = scmp.eq.s32.totalorder %s29, 0
    %p56 = por %p54, %p55
    %s58 = sadd.s32 %s57, 1
    %p61 = scmp.eq.s32.totalorder %s23, 1
    %p62 = scmp.ne.s32.totalorder %s57, %s59
    %p63 = scmp.eq.s32.totalorder %s23, 0
    %p64 = por %p62, %p63
    %p65 = scmp.ne.s32.totalorder %s57, %s59
    %p66 = scmp.eq.s32.totalorder %s28, 1
    %p67 = por %p65, %p66
    %p68 = scmp.ne.s32.totalorder %s59, %s60
    %p69 = scmp.eq.s32.totalorder %s28, 0
    %p70 = por %p68, %p69
    %p71 = scmp.ne.s32.totalorder %s59, %s60
    %p72 = scmp.eq.s32.totalorder %s29, 1
    %p73 = por %p71, %p72
    %p75 = scmp.ne.s32.totalorder %s60, %s74
    %p76 = scmp.eq.s32.totalorder %s29, 0
    %p77 = por %p75, %p76
    %s79 = sadd.s32 %s78, 1
    %p82 = scmp.eq.s32.totalorder %s23, 1
    %p83 = scmp.ne.s32.totalorder %s78, %s80
    %p84 = scmp.eq.s32.totalorder %s23, 0
    %p85 = por %p83, %p84
    %p86 = scmp.ne.s32.totalorder %s78, %s80
    %p87 = scmp.eq.s32.totalorder %s28, 1
    %p88 = por %p86, %p87
    %p89 = scmp.ne.s32.totalorder %s80, %s81
    %p90 = scmp.eq.s32.totalorder %s28, 0
    %p91 = por %p89, %p90
    %p92 = scmp.ne.s32.totalorder %s80, %s81
    %p93 = scmp.eq.s32.totalorder %s29, 1
    %p94 = por %p92, %p93
    %p96 = scmp.ne.s32.totalorder %s81, %s95
    %p97 = scmp.eq.s32.totalorder %s29, 0
    %p98 = por %p96, %p97
    %s100 = sadd.s32 %s99, 1
    %p103 = scmp.eq.s32.totalorder %s23, 1
    %p104 = scmp.ne.s32.totalorder %s99, %s101
    %p105 = scmp.eq.s32.totalorder %s23, 0
    %p106 = por %p104, %p105
    %p107 = scmp.ne.s32.totalorder %s99, %s101
    %p108 = scmp.eq.s32.totalorder %s28, 1
    %p109 = por %p107, %p108
    %p110 = scmp.ne.s32.totalorder %s101, %s102
    %p111 = scmp.eq.s32.totalorder %s28, 0
    %p112 = por %p110, %p111
    %p113 = scmp.ne.s32.totalorder %s101, %s102
    %p114 = scmp.eq.s32.totalorder %s29, 1
    %p115 = por %p113, %p114
    %p117 = scmp.ne.s32.totalorder %s102, %s116
    %p118 = scmp.eq.s32.totalorder %s29, 0
    %p119 = por %p117, %p118
    %s121 = sadd.s32 %s120, 1
    %p124 = scmp.eq.s32.totalorder %s23, 1
    %p125 = scmp.ne.s32.totalorder %s120, %s122
    %p126 = scmp.eq.s32.totalorder %s23, 0
    %p127 = por %p125, %p126
    %p128 = scmp.ne.s32.totalorder %s120, %s122
    %p129 = scmp.eq.s32.totalorder %s28, 1
    %p130 = por %p128, %p129
    %p131 = scmp.ne.s32.totalorder %s122, %s123
    %p132 = scmp.eq.s32.totalorder %s28, 0
    %p133 = por %p131, %p132
    %p134 = scmp.ne.s32.totalorder %s122, %s123
    %p135 = scmp.eq.s32.totalorder %s29, 1
    %p136 = por %p134, %p135
    %p138 = scmp.ne.s32.totalorder %s123, %s137
    %p139 = scmp.eq.s32.totalorder %s29, 0
    %p140 = por %p138, %p139
    %s142 = sadd.s32 %s141, 1
    %p145 = scmp.eq.s32.totalorder %s23, 1
    %p146 = scmp.ne.s32.totalorder %s141, %s143
    %p147 = scmp.eq.s32.totalorder %s23, 0
    %p148 = por %p146, %p147
    %p149 = scmp.ne.s32.totalorder %s141, %s143
    %p150 = scmp.eq.s32.totalorder %s28, 1
    %p151 = por %p149, %p150
    %p152 = scmp.ne.s32.totalorder %s143, %s144
    %p153 = scmp.eq.s32.totalorder %s28, 0
    %p154 = por %p152, %p153
    %p155 = scmp.ne.s32.totalorder %s143, %s144
    %p156 = scmp.eq.s32.totalorder %s29, 1
    %p157 = por %p155, %p156
    %p159 = scmp.ne.s32.totalorder %s144, %s158
    %p160 = scmp.eq.s32.totalorder %s29, 0
    %p161 = por %p159, %p160
    %s163 = sadd.s32 %s162, 1
    %p166 = scmp.eq.s32.totalorder %s23, 1
    %p167 = scmp.ne.s32.totalorder %s162, %s164
    %p168 = scmp.eq.s32.totalorder %s23, 0
    %p169 = por %p167, %p168
    %p170 = scmp.ne.s32.totalorder %s162, %s164
    %p171 = scmp.eq.s32.totalorder %s28, 1
    %p172 = por %p170, %p171
    %p173 = scmp.ne.s32.totalorder %s164, %s165
    %p174 = scmp.eq.s32.totalorder %s28, 0
    %p175 = por %p173, %p174
    %p176 = scmp.ne.s32.totalorder %s164, %s165
    %p177 = scmp.eq.s32.totalorder %s29, 1
    %p178 = por %p176, %p177
    %p180 = scmp.ne.s32.totalorder %s165, %s179
    %p181 = scmp.eq.s32.totalorder %s29, 0
    %p182 = por %p180, %p181
    %s184 = sadd.s32 %s183, 1
    %p187 = scmp.eq.s32.totalorder %s23, 1
    %p188 = scmp.ne.s32.totalorder %s183, %s185
    %p189 = scmp.eq.s32.totalorder %s23, 0
    %p190 = por %p188, %p189
    %p191 = scmp.ne.s32.totalorder %s183, %s185
    %p192 = scmp.eq.s32.totalorder %s28, 1
    %p193 = por %p191, %p192
    %p194 = scmp.ne.s32.totalorder %s185, %s186
    %p195 = scmp.eq.s32.totalorder %s28, 0
    %p196 = por %p194, %p195
    %p197 = scmp.ne.s32.totalorder %s185, %s186
    %p198 = scmp.eq.s32.totalorder %s29, 1
    %p199 = por %p197, %p198
    %p201 = scmp.ne.s32.totalorder %s186, %s200
    %p202 = scmp.eq.s32.totalorder %s29, 0
    %p203 = por %p201, %p202
    %s205 = sadd.s32 %s204, 1
    %p208 = scmp.eq.s32.totalorder %s23, 1
    %p209 = scmp.ne.s32.totalorder %s204, %s206
    %p210 = scmp.eq.s32.totalorder %s23, 0
    %p211 = por %p209, %p210
    %p212 = scmp.ne.s32.totalorder %s204, %s206
    %p213 = scmp.eq.s32.totalorder %s28, 1
    %p214 = por %p212, %p213
    %p215 = scmp.ne.s32.totalorder %s206, %s207
    %p216 = scmp.eq.s32.totalorder %s28, 0
    %p217 = por %p215, %p216
    %p218 = scmp.ne.s32.totalorder %s206, %s207
    %p219 = scmp.eq.s32.totalorder %s29, 1
    %p220 = por %p218, %p219
    %p222 = scmp.ne.s32.totalorder %s207, %s221
    %p223 = scmp.eq.s32.totalorder %s29, 0
    %p224 = por %p222, %p223
    %s226 = sadd.s32 %s225, 1
    %p229 = scmp.eq.s32.totalorder %s23, 1
    %p230 = scmp.ne.s32.totalorder %s225, %s227
    %p231 = scmp.eq.s32.totalorder %s23, 0
    %p232 = por %p230, %p231
    %p233 = scmp.ne.s32.totalorder %s225, %s227
    %p234 = scmp.eq.s32.totalorder %s28, 1
    %p235 = por %p233, %p234
    %p236 = scmp.ne.s32.totalorder %s227, %s228
    %p237 = scmp.eq.s32.totalorder %s28, 0
    %p238 = por %p236, %p237
    %p239 = scmp.ne.s32.totalorder %s227, %s228
    %p240 = scmp.eq.s32.totalorder %s29, 1
    %p241 = por %p239, %p240
    %p243 = scmp.ne.s32.totalorder %s228, %s242
    %p244 = scmp.eq.s32.totalorder %s29, 0
    %p245 = por %p243, %p244
    %s247 = sadd.s32 %s246, 1
    %p250 = scmp.eq.s32.totalorder %s23, 1
    %p251 = scmp.ne.s32.totalorder %s246, %s248
    %p252 = scmp.eq.s32.totalorder %s23, 0
    %p253 = por %p251, %p252
    %p254 = scmp.ne.s32.totalorder %s246, %s248
    %p255 = scmp.eq.s32.totalorder %s28, 1
    %p256 = por %p254, %p255
    %p257 = scmp.ne.s32.totalorder %s248, %s249
    %p258 = scmp.eq.s32.totalorder %s28, 0
    %p259 = por %p257, %p258
    %p260 = scmp.ne.s32.totalorder %s248, %s249
    %p261 = scmp.eq.s32.totalorder %s29, 1
    %p262 = por %p260, %p261
    %p264 = scmp.ne.s32.totalorder %s249, %s263
    %p265 = scmp.eq.s32.totalorder %s29, 0
    %p266 = por %p264, %p265
    %s268 = sadd.s32 %s267, 1
    %p271 = scmp.eq.s32.totalorder %s23, 1
    %p272 = scmp.ne.s32.totalorder %s267, %s269
    %p273 = scmp.eq.s32.totalorder %s23, 0
    %p274 = por %p272, %p273
    %p275 = scmp.ne.s32.totalorder %s267, %s269
    %p276 = scmp.eq.s32.totalorder %s28, 1
    %p277 = por %p275, %p276
    %p278 = scmp.ne.s32.totalorder %s269, %s270
    %p279 = scmp.eq.s32.totalorder %s28, 0
    %p280 = por %p278, %p279
    %p281 = scmp.ne.s32.totalorder %s269, %s270
    %p282 = scmp.eq.s32.totalorder %s29, 1
    %p283 = por %p281, %p282
    %p285 = scmp.ne.s32.totalorder %s270, %s284
    %p286 = scmp.eq.s32.totalorder %s29, 0
    %p287 = por %p285, %p286
    %s289 = sadd.s32 %s288, 1
    %p292 = scmp.eq.s32.totalorder %s23, 1
    %p293 = scmp.ne.s32.totalorder %s288, %s290
    %p294 = scmp.eq.s32.totalorder %s23, 0
    %p295 = por %p293, %p294
    %p296 = scmp.ne.s32.totalorder %s288, %s290
    %p297 = scmp.eq.s32.totalorder %s28, 1
    %p298 = por %p296, %p297
    %p299 = scmp.ne.s32.totalorder %s290, %s291
    %p300 = scmp.eq.s32.totalorder %s28, 0
    %p301 = por %p299, %p300
    %p302 = scmp.ne.s32.totalorder %s290, %s291
    %p303 = scmp.eq.s32.totalorder %s29, 1
    %p304 = por %p302, %p303
    %p306 = scmp.ne.s32.totalorder %s291, %s305
    %p307 = scmp.eq.s32.totalorder %s29, 0
    %p308 = por %p306, %p307
    %s310 = sadd.s32 %s309, 1
    %p313 = scmp.eq.s32.totalorder %s23, 1
    %p314 = scmp.ne.s32.totalorder %s309, %s311
    %p315 = scmp.eq.s32.totalorder %s23, 0
    %p316 = por %p314, %p315
    %p317 = scmp.ne.s32.totalorder %s309, %s311
    %p318 = scmp.eq.s32.totalorder %s28, 1
    %p319 = por %p317, %p318
    %p320 = scmp.ne.s32.totalorder %s311, %s312
    %p321 = scmp.eq.s32.totalorder %s28, 0
    %p322 = por %p320, %p321
    %p323 = scmp.ne.s32.totalorder %s311, %s312
    %p324 = scmp.eq.s32.totalorder %s29, 1
    %p325 = por %p323, %p324
    %p327 = scmp.ne.s32.totalorder %s312, %s326
    %p328 = scmp.eq.s32.totalorder %s29, 0
    %p329 = por %p327, %p328
    %s331 = sadd.s32 %s330, 1
    %p334 = scmp.eq.s32.totalorder %s23, 1
    %p335 = scmp.ne.s32.totalorder %s330, %s332
    %p336 = scmp.eq.s32.totalorder %s23, 0
    %p337 = por %p335, %p336
    %p338 = scmp.ne.s32.totalorder %s330, %s332
    %p339 = scmp.eq.s32.totalorder %s28, 1
    %p340 = por %p338, %p339
    %p341 = scmp.ne.s32.totalorder %s332, %s333
    %p342 = scmp.eq.s32.totalorder %s28, 0
    %p343 = por %p341, %p342
    %p344 = scmp.ne.s32.totalorder %s332, %s333
    %p345 = scmp.eq.s32.totalorder %s29, 1
    %p346 = por %p344, %p345
    %p348 = scmp.ne.s32.totalorder %s333, %s347
    %p349 = scmp.eq.s32.totalorder %s29, 0
    %p350 = por %p348, %p349
    %s352 = sadd.s32 %s351, 1
    %p355 = scmp.eq.s32.totalorder %s23, 1
    %p356 = scmp.ne.s32.totalorder %s351, %s353
    %p357 = scmp.eq.s32.totalorder %s23, 0
    %p358 = por %p356, %p357
    %p359 = scmp.ne.s32.totalorder %s351, %s353
    %p360 = scmp.eq.s32.totalorder %s28, 1
    %p361 = por %p359, %p360
    %p362 = scmp.ne.s32.totalorder %s353, %s354
    %p363 = scmp.eq.s32.totalorder %s28, 0
    %p364 = por %p362, %p363
    %p365 = scmp.ne.s32.totalorder %s353, %s354
    %p366 = scmp.eq.s32.totalorder %s29, 1
    %p367 = por %p365, %p366
    %p369 = scmp.ne.s32.totalorder %s354, %s368
    %p370 = scmp.eq.s32.totalorder %s29, 0
    %p371 = por %p369, %p370
    %s373 = sadd.s32 %s372, 1
    %p376 = scmp.eq.s32.totalorder %s23, 1
    %p377 = scmp.ne.s32.totalorder %s372, %s374
    %p378 = scmp.eq.s32.totalorder %s23, 0
    %p379 = por %p377, %p378
    %p380 = scmp.ne.s32.totalorder %s372, %s374
    %p381 = scmp.eq.s32.totalorder %s28, 1
    %p382 = por %p380, %p381
    %p383 = scmp.ne.s32.totalorder %s374, %s375
    %p384 = scmp.eq.s32.totalorder %s28, 0
    %p385 = por %p383, %p384
    %p386 = scmp.ne.s32.totalorder %s374, %s375
    %p387 = scmp.eq.s32.totalorder %s29, 1
    %p388 = por %p386, %p387
    %p390 = scmp.ne.s32.totalorder %s375, %s389
    %p391 = scmp.eq.s32.totalorder %s29, 0
    %p392 = por %p390, %p391
    %s393 = ssub.s32 %s23, %s30
    %p394 = scmp.eq.s32.totalorder %s393, 0
    %s396 = sadd.s32 %s395, 1
    %s397 = scalar_select %p394, %s395, %s396
    %p400 = pneg %p394
    %p401 = scmp.eq.s32.totalorder %s23, 1
    %p402 = por %p400, %p401
    %p403 = scmp.ne.s32.totalorder %s395, %s398
    %p404 = scmp.eq.s32.totalorder %s23, 0
    %p405 = por %p403, %p404
    %p406 = scmp.ne.s32.totalorder %s395, %s398
    %p407 = scmp.eq.s32.totalorder %s28, 1
    %p408 = por %p406, %p407
    %p409 = scmp.ne.s32.totalorder %s398, %s399
    %p410 = scmp.eq.s32.totalorder %s28, 0
    %p411 = por %p409, %p410
    %p412 = scmp.ne.s32.totalorder %s398, %s399
    %p413 = scmp.eq.s32.totalorder %s29, 1
    %p414 = por %p412, %p413
    %p416 = scmp.ne.s32.totalorder %s399, %s415
    %p417 = scmp.eq.s32.totalorder %s29, 0
    %p418 = por %p416, %p417
    %p419 = scmp.le.s32.totalorder 1, %s23
    %p420 = scmp.lt.s32.totalorder %s23, 3
    %p421 = pnand %p419, %p420
    %p422 = pneg %p421
    // Predicated region
    $region9: #{istft_forward.10} parent=5 // pred_check
      _
    $region10: #{istft_forward.10} parent=5 // pred_check_branch
      %424 = sbr.rel (%p421) target = $region12
    $region11: #{istft_forward.10} parent=5 // pred_region
      %s425 = ssub.s32 %s23, 1
      // Predicated region
      $region13: #{istft_forward.10} parent=11 // pred_check
        %p426 = pneg %p70
      $region14: #{istft_forward.10} parent=11 // pred_check_branch
        %428 = sbr.rel (%p426) target = $region16
      $region15: #{istft_forward.10} parent=11 // pred_region
        _
      $region16: #{istft_forward.10} parent=11 // pred_fallthru
        _
      // Predicated region
      $region17: #{istft_forward.10} parent=11 // pred_check
        %p429 = pneg %p91
      $region18: #{istft_forward.10} parent=11 // pred_check_branch
        %431 = sbr.rel (%p429) target = $region20
      $region19: #{istft_forward.10} parent=11 // pred_region
        _
      $region20: #{istft_forward.10} parent=11 // pred_fallthru
        _
      // Predicated region
      $region21: #{istft_forward.10} parent=11 // pred_check
        %p432 = pneg %p112
      $region22: #{istft_forward.10} parent=11 // pred_check_branch
        %434 = sbr.rel (%p432) target = $region24
      $region23: #{istft_forward.10} parent=11 // pred_region
        _
      $region24: #{istft_forward.10} parent=11 // pred_fallthru
        _
      // Predicated region
      $region25: #{istft_forward.10} parent=11 // pred_check
        %p435 = pneg %p133
      $region26: #{istft_forward.10} parent=11 // pred_check_branch
        %437 = sbr.rel (%p435) target = $region28
      $region27: #{istft_forward.10} parent=11 // pred_region
        _
      $region28: #{istft_forward.10} parent=11 // pred_fallthru
        _
      // Predicated region
      $region29: #{istft_forward.10} parent=11 // pred_check
        %p438 = pneg %p154
      $region30: #{istft_forward.10} parent=11 // pred_check_branch
        %440 = sbr.rel (%p438) target = $region32
      $region31: #{istft_forward.10} parent=11 // pred_region
        _
      $region32: #{istft_forward.10} parent=11 // pred_fallthru
        _
      // Predicated region
      $region33: #{istft_forward.10} parent=11 // pred_check
        %p441 = pneg %p175
      $region34: #{istft_forward.10} parent=11 // pred_check_branch
        %443 = sbr.rel (%p441) target = $region36
      $region35: #{istft_forward.10} parent=11 // pred_region
        _
      $region36: #{istft_forward.10} parent=11 // pred_fallthru
        _
      // Predicated region
      $region37: #{istft_forward.10} parent=11 // pred_check
        %p444 = pneg %p196
      $region38: #{istft_forward.10} parent=11 // pred_check_branch
        %446 = sbr.rel (%p444) target = $region40
      $region39: #{istft_forward.10} parent=11 // pred_region
        _
      $region40: #{istft_forward.10} parent=11 // pred_fallthru
        _
      // Predicated region
      $region41: #{istft_forward.10} parent=11 // pred_check
        %p447 = pneg %p217
      $region42: #{istft_forward.10} parent=11 // pred_check_branch
        %449 = sbr.rel (%p447) target = $region44
      $region43: #{istft_forward.10} parent=11 // pred_region
        _
      $region44: #{istft_forward.10} parent=11 // pred_fallthru
        _
      // Predicated region
      $region45: #{istft_forward.10} parent=11 // pred_check
        %p450 = pneg %p238
      $region46: #{istft_forward.10} parent=11 // pred_check_branch
        %452 = sbr.rel (%p450) target = $region48
      $region47: #{istft_forward.10} parent=11 // pred_region
        _
      $region48: #{istft_forward.10} parent=11 // pred_fallthru
        _
      // Predicated region
      $region49: #{istft_forward.10} parent=11 // pred_check
        %p453 = pneg %p259
      $region50: #{istft_forward.10} parent=11 // pred_check_branch
        %455 = sbr.rel (%p453) target = $region52
      $region51: #{istft_forward.10} parent=11 // pred_region
        _
      $region52: #{istft_forward.10} parent=11 // pred_fallthru
        _
      // Predicated region
      $region53: #{istft_forward.10} parent=11 // pred_check
        %p456 = pneg %p280
      $region54: #{istft_forward.10} parent=11 // pred_check_branch
        %458 = sbr.rel (%p456) target = $region56
      $region55: #{istft_forward.10} parent=11 // pred_region
        _
      $region56: #{istft_forward.10} parent=11 // pred_fallthru
        _
      // Predicated region
      $region57: #{istft_forward.10} parent=11 // pred_check
        %p459 = pneg %p301
      $region58: #{istft_forward.10} parent=11 // pred_check_branch
        %461 = sbr.rel (%p459) target = $region60
      $region59: #{istft_forward.10} parent=11 // pred_region
        _
      $region60: #{istft_forward.10} parent=11 // pred_fallthru
        _
      // Predicated region
      $region61: #{istft_forward.10} parent=11 // pred_check
        %p462 = pneg %p322
      $region62: #{istft_forward.10} parent=11 // pred_check_branch
        %464 = sbr.rel (%p462) target = $region64
      $region63: #{istft_forward.10} parent=11 // pred_region
        _
      $region64: #{istft_forward.10} parent=11 // pred_fallthru
        _
      // Predicated region
      $region65: #{istft_forward.10} parent=11 // pred_check
        %p465 = pneg %p343
      $region66: #{istft_forward.10} parent=11 // pred_check_branch
        %467 = sbr.rel (%p465) target = $region68
      $region67: #{istft_forward.10} parent=11 // pred_region
        _
      $region68: #{istft_forward.10} parent=11 // pred_fallthru
        _
      // Predicated region
      $region69: #{istft_forward.10} parent=11 // pred_check
        %p468 = pneg %p364
      $region70: #{istft_forward.10} parent=11 // pred_check_branch
        %470 = sbr.rel (%p468) target = $region72
      $region71: #{istft_forward.10} parent=11 // pred_region
        _
      $region72: #{istft_forward.10} parent=11 // pred_fallthru
        _
      // Predicated region
      $region73: #{istft_forward.10} parent=11 // pred_check
        %p471 = pneg %p385
      $region74: #{istft_forward.10} parent=11 // pred_check_branch
        %473 = sbr.rel (%p471) target = $region76
      $region75: #{istft_forward.10} parent=11 // pred_region
        _
      $region76: #{istft_forward.10} parent=11 // pred_fallthru
        _
    $region12: #{istft_forward.10} parent=5 // pred_fallthru
      _
    %p474 = scmp.lt.s32.totalorder %s23, 2
    // Predicated region
    $region77: #{istft_forward.10} parent=5 // pred_check
      %p475 = pneg %p474
    $region78: #{istft_forward.10} parent=5 // pred_check_branch
      %477 = sbr.rel (%p475) target = $region80
    $region79: #{istft_forward.10} parent=5 // pred_region
      // Predicated region
      $region81: #{istft_forward.10} parent=79 // pred_check
        %p478 = pneg %p43
      $region82: #{istft_forward.10} parent=79 // pred_check_branch
        %480 = sbr.rel (%p478) target = $region84
      $region83: #{istft_forward.10} parent=79 // pred_region
        %p481 = scmp.lt.s32.totalorder %s23, 1
        %s482 = scalar_select %p481, %s23, 1
        %s483 = smul.addr %s482, 4
        %s484 = scalar_lea.vmem %s0, %s483
      $region84: #{istft_forward.10} parent=79 // pred_fallthru
        _
    $region80: #{istft_forward.10} parent=5 // pred_fallthru
      _
    %p485 = scmp.le.s32.totalorder 1, %s23
    %p486 = scmp.lt.s32.totalorder %s23, 3
    %p487 = pnand %p485, %p486
    %p488 = pneg %p487
    // Predicated region
    $region85: #{istft_forward.10} parent=5 // pred_check
      _
    $region86: #{istft_forward.10} parent=5 // pred_check_branch
      %490 = sbr.rel (%p487) target = $region88
    $region87: #{istft_forward.10} parent=5 // pred_region
      %s491 = ssub.s32 %s23, 1
      %p492 = scmp.lt.s32.totalorder %s28, 1
      %s493 = scalar_select %p492, %s28, 1
      %s494 = smul.addr %s493, 4
      %s495 = scalar_lea.vmem %s0, %s494
      %p496 = pneg %p49
      %p497 = pneg %p46
      %p498 = pneg %p70
      %p499 = pneg %p67
      %p500 = pneg %p91
      %p501 = pneg %p88
      %p502 = pneg %p112
      %p503 = pneg %p109
      %p504 = pneg %p133
      %p505 = pneg %p130
      %p506 = pneg %p154
      %p507 = pneg %p151
      %p508 = pneg %p175
      %p509 = pneg %p172
      %p510 = pneg %p196
      %p511 = pneg %p193
      %p512 = pneg %p217
      %p513 = pneg %p214
      %p514 = pneg %p238
      %p515 = pneg %p235
      %p516 = pneg %p259
      %p517 = pneg %p256
      %p518 = pneg %p280
      %p519 = pneg %p277
      %p520 = pneg %p301
      %p521 = pneg %p298
      %p522 = pneg %p322
      %p523 = pneg %p319
      %p524 = pneg %p343
      %p525 = pneg %p340
      %p526 = pneg %p364
      %p527 = pneg %p361
      %p528 = pneg %p385
      %p529 = pneg %p382
      %p530 = pneg %p411
      %p531 = pneg %p408
      %p532 = scmp.lt.s32.totalorder %s28, 1
      %s533 = scalar_select %p532, %s28, 1
      %s534 = smul.addr %s533, 4
      %s535 = scalar_lea.vmem %s17, %s534
      %p536 = scmp.lt.s32.totalorder %s28, 1
      %s537 = scalar_select %p536, %s28, 1
      %s538 = smul.addr %s537, 4
      %s539 = scalar_lea.vmem %s0, %s538
      %p540 = scmp.lt.s32.totalorder %s28, 1
      %s541 = scalar_select %p540, %s28, 1
      %s542 = smul.addr %s541, 4
      %s543 = scalar_lea.vmem %s17, %s542
      %vm545 = vcmask 44032
      %546 = vst.msk [vmem:[#allocation2] sm:$0xf] %vm545, 0
      %vm547 = vcmask 93232
      %548 = vst.msk [vmem:[#allocation2 + $0x4] sm:$0xf] %vm547, 0
      %v549 = vld [vmem:[%s539] sm:$0xf]
      %v550 = vunpack.c.l.bf16 %v549
      %vm551 = vcmp.ge.f32.partialorder %v550, 0.0
      %v552 = vmul.f32 %v550, 0.1
      %v553 = vsel %vm551, %v550, %v552
      %v554 = vpack.c.bf16 %v553, %v553
      %v556 = vunpack.c.l.b16 %v554
      %v557 = vpack.c.b16 %v556, %v556
      %558 = vrot.lane.b32.xlu0 %v557, 6
      %v559 = vpop.permute.xlu0 %558
      %v560 = vrot.slane %v559, 4
      %vm561 = vcmask 48128
      %v562 = vsel %vm561, %v560, %v559
      %vm564 = vcmask 1043504
      %vm565 = vcmask 48132
      %vm566 = vmor %vm565, %vm564
      %567 = vst.msk [vmem:[#allocation2] sm:$0xff] %vm566, %v562
      %v568 = vld [vmem:[%s1] sm:$0xf]
      %v569 = vld [vmem:[%s9] sm:$0xff]
      %v570 = vld [vmem:[#allocation2] sm:$0xff]
      %v572 = vunpack.c.l.b16 %v570
      %v573 = vunpack.c.h.b16 %v570
      %v574 = vpack.c.b16 %v572, %v572
      %v575 = vpack.c.b16 %v573, %v573
      %576 = vrot.lane.b32.xlu0 %v574, 127
      %v577 = vpop.permute.xlu0 %576
      %578 = vrot.lane.b32.xlu0 %v575, 127
      %v579 = vpop.permute.xlu0 %578
      %vm580 = vcmask 1039360
      %v581 = vsel %vm580, %v577, %v579
      %582 = vrot.lane.b32.xlu0 %v574, 126
      %v583 = vpop.permute.xlu0 %582
      %584 = vrot.lane.b32.xlu0 %v575, 126
      %v585 = vpop.permute.xlu0 %584
      %vm586 = vcmask 1031168
      %v587 = vsel %vm586, %v583, %v585
      %vm588 = vcmask 1043456
      %v591 = vsel %vm588, %v574, %v581
      %v594 = vsel %vm588, %v575, %v579
      %596 = vset.pattern.permute.xlu0 0
      %597 = vperm.xlu0 %596, %v569
      %v598 = vpop.permute.xlu0 %597
      %602 = vrot.lane.b32.xlu0 %v591, 123
      %v603 = vpop.permute.xlu0 %602
      %604 = vrot.lane.b32.xlu0 %v594, 123
      %v605 = vpop.permute.xlu0 %604
      %606 = vrot.lane.b32.xlu0 %v587, 123
      %v607 = vpop.permute.xlu0 %606
      %608 = vrot.lane.b32.xlu0 %v585, 123
      %v609 = vpop.permute.xlu0 %608
      %vm610 = vcmask 1006592
      %v611 = vsel %vm610, %v603, %v605
      %v612 = vsel %vm610, %v607, %v609
      %vm614 = vcmask 195584
      %v616 = vsel %vm614, %v568, 0
      %v619 = vsel %vm588, %v612, 0
      %621 = vmatprep.subr.bf16.mxu0 0
      %622 = vmatpush1.bf16.msra.mxu0 %v611
      %623 = vmatprep.subr.bf16.mxu0 0
      %624 = vmatpush1.bf16.msra.mxu0 %v619
      %625 = vmatprep.subr.bf16.mxu0 0
      %626 = vmatpush1.bf16.msra.mxu0 0
      %627 = vmatprep.subr.bf16.mxu0 0
      %628 = vmatpush1.bf16.msra.mxu0 0
      %629 = vmatprep.subr.bf16.mxu0 0
      %630 = vmatpush1.bf16.msra.mxu0 0
      %631 = vmatprep.subr.bf16.mxu0 0
      %632 = vmatpush1.bf16.msra.mxu0 0
      %633 = vmatprep.subr.bf16.mxu0 0
      %634 = vmatpush1.bf16.msra.mxu0 0
      %635 = vmatprep.subr.bf16.mxu0 0
      %636 = vmatpush1.bf16.msra.mxu0 0
      %637 = vmatprep.subr.bf16.mxu0 0
      %638 = vmatpush1.bf16.msra.mxu0 0
      %639 = vmatprep.subr.bf16.mxu0 0
      %640 = vmatpush1.bf16.msra.mxu0 0
      %641 = vmatprep.subr.bf16.mxu0 0
      %642 = vmatpush1.bf16.msra.mxu0 0
      %643 = vmatprep.subr.bf16.mxu0 0
      %644 = vmatpush1.bf16.msra.mxu0 0
      %645 = vmatprep.subr.bf16.mxu0 0
      %646 = vmatpush1.bf16.msra.mxu0 0
      %647 = vmatprep.subr.bf16.mxu0 0
      %648 = vmatpush1.bf16.msra.mxu0 0
      %649 = vmatprep.subr.bf16.mxu0 0
      %650 = vmatpush1.bf16.msra.mxu0 0
      %651 = vmatprep.subr.bf16.mxu0 0
      %652 = vmatpush1.bf16.msra.mxu0 0
      %653 = vmatprep.mubr.bf16.mxu0 0
      %654 = vmatmul.mubr.bf16.gmra.mrb[0].mxu0 %v616
      %v655 = vpop.f32.mrb[0].mxu0
      %v656 = vadd.f32 %v598, %v655
      %v657 = vpop.f32.mrb[0].mxu0
      %v658 = vpop.f32.mrb[0].mxu0
      %v659 = vpop.f32.mrb[0].mxu0
      %660 = vdwg.mxu0
      %vm661 = vcmp.ge.f32.partialorder %v656, 0.0
      %v662 = vmul.f32 %v656, 0.1
      %v663 = vsel %vm661, %v656, %v662
      %v664 = vpack.c.bf16 %v663, %v663
      %v666 = vunpack.c.l.b16 %v664
      %v667 = vpack.c.b16 %v666, %v666
      %668 = vrot.lane.b32.xlu0 %v667, 6
      %v669 = vpop.permute.xlu0 %668
      %v670 = vrot.slane %v669, 4
      %v671 = vsel %vm561, %v670, %v669
      %673 = vst.msk [vmem:[#allocation2] sm:$0xff] %vm566, %v671
      %v674 = vld [vmem:[%s2] sm:$0xf]
      %v675 = vld [vmem:[%s10] sm:$0xff]
      %v676 = vld [vmem:[#allocation2] sm:$0xff]
      %v678 = vunpack.c.l.b16 %v676
      %v679 = vunpack.c.h.b16 %v676
      %v680 = vpack.c.b16 %v678, %v678
      %v681 = vpack.c.b16 %v679, %v679
      %682 = vrot.lane.b32.xlu0 %v680, 127
      %v683 = vpop.permute.xlu0 %682
      %684 = vrot.lane.b32.xlu0 %v681, 127
      %v685 = vpop.permute.xlu0 %684
      %v686 = vsel %vm580, %v683, %v685
      %687 = vrot.lane.b32.xlu0 %v680, 126
      %v688 = vpop.permute.xlu0 %687
      %689 = vrot.lane.b32.xlu0 %v681, 126
      %v690 = vpop.permute.xlu0 %689
      %v691 = vsel %vm586, %v688, %v690
      %v694 = vsel %vm588, %v680, %v686
      %v697 = vsel %vm588, %v681, %v685
      %699 = vset.pattern.permute.xlu0 0
      %700 = vperm.xlu0 %699, %v675
      %v701 = vpop.permute.xlu0 %700
      %705 = vrot.lane.b32.xlu0 %v694, 123
      %v706 = vpop.permute.xlu0 %705
      %707 = vrot.lane.b32.xlu0 %v697, 123
      %v708 = vpop.permute.xlu0 %707
      %709 = vrot.lane.b32.xlu0 %v691, 123
      %v710 = vpop.permute.xlu0 %709
      %711 = vrot.lane.b32.xlu0 %v690, 123
      %v712 = vpop.permute.xlu0 %711
      %v713 = vsel %vm610, %v706, %v708
      %v714 = vsel %vm610, %v710, %v712
      %v717 = vsel %vm614, %v674, 0
      %v720 = vsel %vm588, %v714, 0
      %722 = vmatprep.subr.bf16.mxu0 0
      %723 = vmatpush1.bf16.msra.mxu0 %v713
      %724 = vmatprep.subr.bf16.mxu0 0
      %725 = vmatpush1.bf16.msra.mxu0 %v720
      %726 = vmatprep.subr.bf16.mxu0 0
      %727 = vmatpush1.bf16.msra.mxu0 0
      %728 = vmatprep.subr.bf16.mxu0 0
      %729 = vmatpush1.bf16.msra.mxu0 0
      %730 = vmatprep.subr.bf16.mxu0 0
      %731 = vmatpush1.bf16.msra.mxu0 0
      %732 = vmatprep.subr.bf16.mxu0 0
      %733 = vmatpush1.bf16.msra.mxu0 0
      %734 = vmatprep.subr.bf16.mxu0 0
      %735 = vmatpush1.bf16.msra.mxu0 0
      %736 = vmatprep.subr.bf16.mxu0 0
      %737 = vmatpush1.bf16.msra.mxu0 0
      %738 = vmatprep.subr.bf16.mxu0 0
      %739 = vmatpush1.bf16.msra.mxu0 0
      %740 = vmatprep.subr.bf16.mxu0 0
      %741 = vmatpush1.bf16.msra.mxu0 0
      %742 = vmatprep.subr.bf16.mxu0 0
      %743 = vmatpush1.bf16.msra.mxu0 0
      %744 = vmatprep.subr.bf16.mxu0 0
      %745 = vmatpush1.bf16.msra.mxu0 0
      %746 = vmatprep.subr.bf16.mxu0 0
      %747 = vmatpush1.bf16.msra.mxu0 0
      %748 = vmatprep.subr.bf16.mxu0 0
      %749 = vmatpush1.bf16.msra.mxu0 0
      %750 = vmatprep.subr.bf16.mxu0 0
      %751 = vmatpush1.bf16.msra.mxu0 0
      %752 = vmatprep.subr.bf16.mxu0 0
      %753 = vmatpush1.bf16.msra.mxu0 0
      %754 = vmatprep.mubr.bf16.mxu0 0
      %755 = vmatmul.mubr.bf16.gmra.mrb[0].mxu0 %v717
      %v756 = vpop.f32.mrb[0].mxu0
      %v757 = vadd.f32 %v701, %v756
      %v758 = vpop.f32.mrb[0].mxu0
      %v759 = vpop.f32.mrb[0].mxu0
      %v760 = vpop.f32.mrb[0].mxu0
      %761 = vdwg.mxu0
      %v762 = vadd.f32 %v757, %v550
      %vm763 = vcmp.ge.f32.partialorder %v762, 0.0
      %v764 = vmul.f32 %v762, 0.1
      %v765 = vsel %vm763, %v762, %v764
      %v766 = vpack.c.bf16 %v765, %v765
      %v768 = vunpack.c.l.b16 %v766
      %v769 = vpack.c.b16 %v768, %v768
      %770 = vrot.lane.b32.xlu0 %v769, 6
      %v771 = vpop.permute.xlu0 %770
      %v772 = vrot.slane %v771, 4
      %v773 = vsel %vm561, %v772, %v771
      %775 = vst.msk [vmem:[#allocation2] sm:$0xff] %vm566, %v773
      %v776 = vld [vmem:[%s3] sm:$0xf]
      %v777 = vld [vmem:[%s11] sm:$0xff]
      %v778 = vld [vmem:[#allocation2] sm:$0xff]
      %v780 = vunpack.c.l.b16 %v778
      %v781 = vunpack.c.h.b16 %v778
      %v782 = vpack.c.b16 %v780, %v780
      %v783 = vpack.c.b16 %v781, %v781
      %784 = vrot.lane.b32.xlu0 %v782, 125
      %v785 = vpop.permute.xlu0 %784
      %786 = vrot.lane.b32.xlu0 %v783, 125
      %v787 = vpop.permute.xlu0 %786
      %vm788 = vcmask 1022976
      %v789 = vsel %vm788, %v785, %v787
      %790 = vrot.lane.b32.xlu0 %v782, 122
      %v791 = vpop.permute.xlu0 %790
      %792 = vrot.lane.b32.xlu0 %v783, 122
      %v793 = vpop.permute.xlu0 %792
      %vm794 = vcmask 998400
      %v795 = vsel %vm794, %v791, %v793
      %v798 = vsel %vm588, %v782, %v789
      %v801 = vsel %vm588, %v783, %v787
      %803 = vset.pattern.permute.xlu0 0
      %804 = vperm.xlu0 %803, %v777
      %v805 = vpop.permute.xlu0 %804
      %809 = vrot.lane.b32.xlu0 %v798, 125
      %v810 = vpop.permute.xlu0 %809
      %811 = vrot.lane.b32.xlu0 %v801, 125
      %v812 = vpop.permute.xlu0 %811
      %813 = vrot.lane.b32.xlu0 %v795, 125
      %v814 = vpop.permute.xlu0 %813
      %815 = vrot.lane.b32.xlu0 %v793, 125
      %v816 = vpop.permute.xlu0 %815
      %v817 = vsel %vm788, %v810, %v812
      %v818 = vsel %vm788, %v814, %v816
      %v821 = vsel %vm614, %v776, 0
      %v824 = vsel %vm588, %v818, 0
      %826 = vmatprep.subr.bf16.mxu0 0
      %827 = vmatpush1.bf16.msra.mxu0 %v817
      %828 = vmatprep.subr.bf16.mxu0 0
      %829 = vmatpush1.bf16.msra.mxu0 %v824
      %830 = vmatprep.subr.bf16.mxu0 0
      %831 = vmatpush1.bf16.msra.mxu0 0
      %832 = vmatprep.subr.bf16.mxu0 0
      %833 = vmatpush1.bf16.msra.mxu0 0
      %834 = vmatprep.subr.bf16.mxu0 0
      %835 = vmatpush1.bf16.msra.mxu0 0
      %836 = vmatprep.subr.bf16.mxu0 0
      %837 = vmatpush1.bf16.msra.mxu0 0
      %838 = vmatprep.subr.bf16.mxu0 0
      %839 = vmatpush1.bf16.msra.mxu0 0
      %840 = vmatprep.subr.bf16.mxu0 0
      %841 = vmatpush1.bf16.msra.mxu0 0
      %842 = vmatprep.subr.bf16.mxu0 0
      %843 = vmatpush1.bf16.msra.mxu0 0
      %844 = vmatprep.subr.bf16.mxu0 0
      %845 = vmatpush1.bf16.msra.mxu0 0
      %846 = vmatprep.subr.bf16.mxu0 0
      %847 = vmatpush1.bf16.msra.mxu0 0
      %848 = vmatprep.subr.bf16.mxu0 0
      %849 = vmatpush1.bf16.msra.mxu0 0
      %850 = vmatprep.subr.bf16.mxu0 0
      %851 = vmatpush1.bf16.msra.mxu0 0
      %852 = vmatprep.subr.bf16.mxu0 0
      %853 = vmatpush1.bf16.msra.mxu0 0
      %854 = vmatprep.subr.bf16.mxu0 0
      %855 = vmatpush1.bf16.msra.mxu0 0
      %856 = vmatprep.subr.bf16.mxu0 0
      %857 = vmatpush1.bf16.msra.mxu0 0
      %858 = vmatprep.mubr.bf16.mxu0 0
      %859 = vmatmul.mubr.bf16.gmra.mrb[0].mxu0 %v821
      %v860 = vpop.f32.mrb[0].mxu0
      %v861 = vadd.f32 %v805, %v860
      %v862 = vpop.f32.mrb[0].mxu0
      %v863 = vpop.f32.mrb[0].mxu0
      %v864 = vpop.f32.mrb[0].mxu0
      %865 = vdwg.mxu0
      %vm866 = vcmp.ge.f32.partialorder %v861, 0.0
      %v867 = vmul.f32 %v861, 0.1
      %v868 = vsel %vm866, %v861, %v867
      %v869 = vpack.c.bf16 %v868, %v868
      %v871 = vunpack.c.l.b16 %v869
      %v872 = vpack.c.b16 %v871, %v871
      %873 = vrot.lane.b32.xlu0 %v872, 6
      %v874 = vpop.permute.xlu0 %873
      %v875 = vrot.slane %v874, 4
      %v876 = vsel %vm561, %v875, %v874
      %878 = vst.msk [vmem:[#allocation2] sm:$0xff] %vm566, %v876
      %v879 = vld [vmem:[%s4] sm:$0xf]
      %v880 = vld [vmem:[%s12] sm:$0xff]
      %v881 = vld [vmem:[#allocation2] sm:$0xff]
      %v883 = vunpack.c.l.b16 %v881
      %v884 = vunpack.c.h.b16 %v881
      %v885 = vpack.c.b16 %v883, %v883
      %v886 = vpack.c.b16 %v884, %v884
      %887 = vrot.lane.b32.xlu0 %v885, 127
      %v888 = vpop.permute.xlu0 %887
      %889 = vrot.lane.b32.xlu0 %v886, 127
      %v890 = vpop.permute.xlu0 %889
      %v891 = vsel %vm580, %v888, %v890
      %892 = vrot.lane.b32.xlu0 %v885, 126
      %v893 = vpop.permute.xlu0 %892
      %894 = vrot.lane.b32.xlu0 %v886, 126
      %v895 = vpop.permute.xlu0 %894
      %v896 = vsel %vm586, %v893, %v895
      %v899 = vsel %vm588, %v885, %v891
      %v902 = vsel %vm588, %v886, %v890
      %904 = vset.pattern.permute.xlu0 0
      %905 = vperm.xlu0 %904, %v880
      %v906 = vpop.permute.xlu0 %905
      %910 = vrot.lane.b32.xlu0 %v899, 123
      %v911 = vpop.permute.xlu0 %910
      %912 = vrot.lane.b32.xlu0 %v902, 123
      %v913 = vpop.permute.xlu0 %912
      %914 = vrot.lane.b32.xlu0 %v896, 123
      %v915 = vpop.permute.xlu0 %914
      %916 = vrot.lane.b32.xlu0 %v895, 123
      %v917 = vpop.permute.xlu0 %916
      %v918 = vsel %vm610, %v911, %v913
      %v919 = vsel %vm610, %v915, %v917
      %v922 = vsel %vm614, %v879, 0
      %v925 = vsel %vm588, %v919, 0
      %927 = vmatprep.subr.bf16.mxu0 0
      %928 = vmatpush1.bf16.msra.mxu0 %v918
      %929 = vmatprep.subr.bf16.mxu0 0
      %930 = vmatpush1.bf16.msra.mxu0 %v925
      %931 = vmatprep.subr.bf16.mxu0 0
      %932 = vmatpush1.bf16.msra.mxu0 0
      %933 = vmatprep.subr.bf16.mxu0 0
      %934 = vmatpush1.bf16.msra.mxu0 0
      %935 = vmatprep.subr.bf16.mxu0 0
      %936 = vmatpush1.bf16.msra.mxu0 0
      %937 = vmatprep.subr.bf16.mxu0 0
      %938 = vmatpush1.bf16.msra.mxu0 0
      %939 = vmatprep.subr.bf16.mxu0 0
      %940 = vmatpush1.bf16.msra.mxu0 0
      %941 = vmatprep.subr.bf16.mxu0 0
      %942 = vmatpush1.bf16.msra.mxu0 0
      %943 = vmatprep.subr.bf16.mxu0 0
      %944 = vmatpush1.bf16.msra.mxu0 0
      %945 = vmatprep.subr.bf16.mxu0 0
      %946 = vmatpush1.bf16.msra.mxu0 0
      %947 = vmatprep.subr.bf16.mxu0 0
      %948 = vmatpush1.bf16.msra.mxu0 0
      %949 = vmatprep.subr.bf16.mxu0 0
      %950 = vmatpush1.bf16.msra.mxu0 0
      %951 = vmatprep.subr.bf16.mxu0 0
      %952 = vmatpush1.bf16.msra.mxu0 0
      %953 = vmatprep.subr.bf16.mxu0 0
      %954 = vmatpush1.bf16.msra.mxu0 0
      %955 = vmatprep.subr.bf16.mxu0 0
      %956 = vmatpush1.bf16.msra.mxu0 0
      %957 = vmatprep.subr.bf16.mxu0 0
      %958 = vmatpush1.bf16.msra.mxu0 0
      %959 = vmatprep.mubr.bf16.mxu0 0
      %960 = vmatmul.mubr.bf16.gmra.mrb[0].mxu0 %v922
      %v961 = vpop.f32.mrb[0].mxu0
      %v962 = vadd.f32 %v906, %v961
      %v963 = vpop.f32.mrb[0].mxu0
      %v964 = vpop.f32.mrb[0].mxu0
      %v965 = vpop.f32.mrb[0].mxu0
      %966 = vdwg.mxu0
      %v967 = vadd.f32 %v962, %v762
      %968 = vst.msk [vmem:[#allocation2] sm:$0xff] %vm566, %v562
      %v969 = vld [vmem:[%s5] sm:$0xf]
      %v970 = vld [vmem:[%s13] sm:$0xff]
      %v971 = vld [vmem:[#allocation2] sm:$0xff]
      %v973 = vunpack.c.l.b16 %v971
      %v974 = vunpack.c.h.b16 %v971
      %v975 = vpack.c.b16 %v973, %v973
      %v976 = vpack.c.b16 %v974, %v974
      %977 = vrot.lane.b32.xlu0 %v975, 127
      %v978 = vpop.permute.xlu0 %977
      %979 = vrot.lane.b32.xlu0 %v976, 127
      %v980 = vpop.permute.xlu0 %979
      %v981 = vsel %vm580, %v978, %v980
      %982 = vrot.lane.b32.xlu0 %v975, 126
      %v983 = vpop.permute.xlu0 %982
      %984 = vrot.lane.b32.xlu0 %v976, 126
      %v985 = vpop.permute.xlu0 %984
      %v986 = vsel %vm586, %v983, %v985
      %987 = vrot.lane.b32.xlu0 %v975, 125
      %v988 = vpop.permute.xlu0 %987
      %989 = vrot.lane.b32.xlu0 %v976, 125
      %v990 = vpop.permute.xlu0 %989
      %v991 = vsel %vm788, %v988, %v990
      %992 = vrot.lane.b32.xlu0 %v975, 124
      %v993 = vpop.permute.xlu0 %992
      %994 = vrot.lane.b32.xlu0 %v976, 124
      %v995 = vpop.permute.xlu0 %994
      %vm996 = vcmask 1014784
      %v997 = vsel %vm996, %v993, %v995
      %v1000 = vsel %vm588, %v975, %v981
      %v1003 = vsel %vm588, %v976, %v980
      %v1006 = vsel %vm588, %v986, %v991
      %v1009 = vsel %vm588, %v985, %v990
      %1011 = vset.pattern.permute.xlu0 0
      %1012 = vperm.xlu0 %1011, %v970
      %v1013 = vpop.permute.xlu0 %1012
      %1019 = vrot.lane.b32.xlu0 %v1000, 124
      %v1020 = vpop.permute.xlu0 %1019
      %1021 = vrot.lane.b32.xlu0 %v1003, 124
      %v1022 = vpop.permute.xlu0 %1021
      %1023 = vrot.lane.b32.xlu0 %v1006, 124
      %v1024 = vpop.permute.xlu0 %1023
      %1025 = vrot.lane.b32.xlu0 %v1009, 124
      %v1026 = vpop.permute.xlu0 %1025
      %1027 = vrot.lane.b32.xlu0 %v997, 124
      %v1028 = vpop.permute.xlu0 %1027
      %1029 = vrot.lane.b32.xlu0 %v995, 124
      %v1030 = vpop.permute.xlu0 %1029
      %v1031 = vsel %vm996, %v1020, %v1022
      %v1032 = vsel %vm996, %v1024, %v1026
      %v1033 = vsel %vm996, %v1028, %v1030
      %vm1036 = vcmask 326656
      %v1038 = vsel %vm1036, %v969, 0
      %v1041 = vsel %vm588, %v1033, 0
      %1043 = vmatprep.subr.bf16.mxu0 0
      %1044 = vmatpush1.bf16.msra.mxu0 %v1031
      %1045 = vmatprep.subr.bf16.mxu0 0
      %1046 = vmatpush1.bf16.msra.mxu0 %v1032
      %1047 = vmatprep.subr.bf16.mxu0 0
      %1048 = vmatpush1.bf16.msra.mxu0 %v1041
      %1049 = vmatprep.subr.bf16.mxu0 0
      %1050 = vmatpush1.bf16.msra.mxu0 0
      %1051 = vmatprep.subr.bf16.mxu0 0
      %1052 = vmatpush1.bf16.msra.mxu0 0
      %1053 = vmatprep.subr.bf16.mxu0 0
      %1054 = vmatpush1.bf16.msra.mxu0 0
      %1055 = vmatprep.subr.bf16.mxu0 0
      %1056 = vmatpush1.bf16.msra.mxu0 0
      %1057 = vmatprep.subr.bf16.mxu0 0
      %1058 = vmatpush1.bf16.msra.mxu0 0
      %1059 = vmatprep.subr.bf16.mxu0 0
      %1060 = vmatpush1.bf16.msra.mxu0 0
      %1061 = vmatprep.subr.bf16.mxu0 0
      %1062 = vmatpush1.bf16.msra.mxu0 0
      %1063 = vmatprep.subr.bf16.mxu0 0
      %1064 = vmatpush1.bf16.msra.mxu0 0
      %1065 = vmatprep.subr.bf16.mxu0 0
      %1066 = vmatpush1.bf16.msra.mxu0 0
      %1067 = vmatprep.subr.bf16.mxu0 0
      %1068 = vmatpush1.bf16.msra.mxu0 0
      %1069 = vmatprep.subr.bf16.mxu0 0
      %1070 = vmatpush1.bf16.msra.mxu0 0
      %1071 = vmatprep.subr.bf16.mxu0 0
      %1072 = vmatpush1.bf16.msra.mxu0 0
      %1073 = vmatprep.subr.bf16.mxu0 0
      %1074 = vmatpush1.bf16.msra.mxu0 0
      %1075 = vmatprep.mubr.bf16.mxu0 0
      %1076 = vmatmul.mubr.bf16.gmra.mrb[0].mxu0 %v1038
      %v1077 = vpop.f32.mrb[0].mxu0
      %v1078 = vadd.f32 %v1013, %v1077
      %v1079 = vpop.f32.mrb[0].mxu0
      %v1080 = vpop.f32.mrb[0].mxu0
      %v1081 = vpop.f32.mrb[0].mxu0
      %1082 = vdwg.mxu0
      %vm1083 = vcmp.ge.f32.partialorder %v1078, 0.0
      %v1084 = vmul.f32 %v1078, 0.1
      %v1085 = vsel %vm1083, %v1078, %v1084
      %v1086 = vpack.c.bf16 %v1085, %v1085
      %v1088 = vunpack.c.l.b16 %v1086
      %v1089 = vpack.c.b16 %v1088, %v1088
      %1090 = vrot.lane.b32.xlu0 %v1089, 6
      %v1091 = vpop.permute.xlu0 %1090
      %v1092 = vrot.slane %v1091, 4
      %v1093 = vsel %vm561, %v1092, %v1091
      %1095 = vst.msk [vmem:[#allocation2] sm:$0xff] %vm566, %v1093
      %v1096 = vld [vmem:[%s6] sm:$0xf]
      %v1097 = vld [vmem:[%s14] sm:$0xff]
      %v1098 = vld [vmem:[#allocation2] sm:$0xff]
      %v1100 = vunpack.c.l.b16 %v1098
      %v1101 = vunpack.c.h.b16 %v1098
      %v1102 = vpack.c.b16 %v1100, %v1100
      %v1103 = vpack.c.b16 %v1101, %v1101
      %1104 = vrot.lane.b32.xlu0 %v1102, 127
      %v1105 = vpop.permute.xlu0 %1104
      %1106 = vrot.lane.b32.xlu0 %v1103, 127
      %v1107 = vpop.permute.xlu0 %1106
      %v1108 = vsel %vm580, %v1105, %v1107
      %1109 = vrot.lane.b32.xlu0 %v1102, 126
      %v1110 = vpop.permute.xlu0 %1109
      %1111 = vrot.lane.b32.xlu0 %v1103, 126
      %v1112 = vpop.permute.xlu0 %1111
      %v1113 = vsel %vm586, %v1110, %v1112
      %1114 = vrot.lane.b32.xlu0 %v1102, 125
      %v1115 = vpop.permute.xlu0 %1114
      %1116 = vrot.lane.b32.xlu0 %v1103, 125
      %v1117 = vpop.permute.xlu0 %1116
      %v1118 = vsel %vm788, %v1115, %v1117
      %1119 = vrot.lane.b32.xlu0 %v1102, 124
      %v1120 = vpop.permute.xlu0 %1119
      %1121 = vrot.lane.b32.xlu0 %v1103, 124
      %v1122 = vpop.permute.xlu0 %1121
      %v1123 = vsel %vm996, %v1120, %v1122
      %v1126 = vsel %vm588, %v1102, %v1108
      %v1129 = vsel %vm588, %v1103, %v1107
      %v1132 = vsel %vm588, %v1113, %v1118
      %v1135 = vsel %vm588, %v1112, %v1117
      %1137 = vset.pattern.permute.xlu0 0
      %1138 = vperm.xlu0 %1137, %v1097
      %v1139 = vpop.permute.xlu0 %1138
      %1145 = vrot.lane.b32.xlu0 %v1126, 124
      %v1146 = vpop.permute.xlu0 %1145
      %1147 = vrot.lane.b32.xlu0 %v1129, 124
      %v1148 = vpop.permute.xlu0 %1147
      %1149 = vrot.lane.b32.xlu0 %v1132, 124
      %v1150 = vpop.permute.xlu0 %1149
      %1151 = vrot.lane.b32.xlu0 %v1135, 124
      %v1152 = vpop.permute.xlu0 %1151
      %1153 = vrot.lane.b32.xlu0 %v1123, 124
      %v1154 = vpop.permute.xlu0 %1153
      %1155 = vrot.lane.b32.xlu0 %v1122, 124
      %v1156 = vpop.permute.xlu0 %1155
      %v1157 = vsel %vm996, %v1146, %v1148
      %v1158 = vsel %vm996, %v1150, %v1152
      %v1159 = vsel %vm996, %v1154, %v1156
      %v1163 = vsel %vm1036, %v1096, 0
      %v1166 = vsel %vm588, %v1159, 0
      %1168 = vmatprep.subr.bf16.mxu0 0
      %1169 = vmatpush1.bf16.msra.mxu0 %v1157
      %1170 = vmatprep.subr.bf16.mxu0 0
      %1171 = vmatpush1.bf16.msra.mxu0 %v1158
      %1172 = vmatprep.subr.bf16.mxu0 0
      %1173 = vmatpush1.bf16.msra.mxu0 %v1166
      %1174 = vmatprep.subr.bf16.mxu0 0
      %1175 = vmatpush1.bf16.msra.mxu0 0
      %1176 = vmatprep.subr.bf16.mxu0 0
      %1177 = vmatpush1.bf16.msra.mxu0 0
      %1178 = vmatprep.subr.bf16.mxu0 0
      %1179 = vmatpush1.bf16.msra.mxu0 0
      %1180 = vmatprep.subr.bf16.mxu0 0
      %1181 = vmatpush1.bf16.msra.mxu0 0
      %1182 = vmatprep.subr.bf16.mxu0 0
      %1183 = vmatpush1.bf16.msra.mxu0 0
      %1184 = vmatprep.subr.bf16.mxu0 0
      %1185 = vmatpush1.bf16.msra.mxu0 0
      %1186 = vmatprep.subr.bf16.mxu0 0
      %1187 = vmatpush1.bf16.msra.mxu0 0
      %1188 = vmatprep.subr.bf16.mxu0 0
      %1189 = vmatpush1.bf16.msra.mxu0 0
      %1190 = vmatprep.subr.bf16.mxu0 0
      %1191 = vmatpush1.bf16.msra.mxu0 0
      %1192 = vmatprep.subr.bf16.mxu0 0
      %1193 = vmatpush1.bf16.msra.mxu0 0
      %1194 = vmatprep.subr.bf16.mxu0 0
      %1195 = vmatpush1.bf16.msra.mxu0 0
      %1196 = vmatprep.subr.bf16.mxu0 0
      %1197 = vmatpush1.bf16.msra.mxu0 0
      %1198 = vmatprep.subr.bf16.mxu0 0
      %1199 = vmatpush1.bf16.msra.mxu0 0
      %1200 = vmatprep.mubr.bf16.mxu0 0
      %1201 = vmatmul.mubr.bf16.gmra.mrb[0].mxu0 %v1163
      %v1202 = vpop.f32.mrb[0].mxu0
      %v1203 = vadd.f32 %v1139, %v1202
      %v1204 = vpop.f32.mrb[0].mxu0
      %v1205 = vpop.f32.mrb[0].mxu0
      %v1206 = vpop.f32.mrb[0].mxu0
      %1207 = vdwg.mxu0
      %v1208 = vadd.f32 %v1203, %v550
      %vm1209 = vcmp.ge.f32.partialorder %v1208, 0.0
      %v1210 = vmul.f32 %v1208, 0.1
      %v1211 = vsel %vm1209, %v1208, %v1210
      %v1212 = vpack.c.bf16 %v1211, %v1211
      %v1214 = vunpack.c.l.b16 %v1212
      %v1215 = vpack.c.b16 %v1214, %v1214
      %1216 = vrot.lane.b32.xlu0 %v1215, 6
      %v1217 = vpop.permute.xlu0 %1216
      %v1218 = vrot.slane %v1217, 4
      %v1219 = vsel %vm561, %v1218, %v1217
      %1221 = vst.msk [vmem:[#allocation2] sm:$0xff] %vm566, %v1219
      %v1222 = vld [vmem:[%s7] sm:$0xf]
      %v1223 = vld [vmem:[%s15] sm:$0xff]
      %v1224 = vld [vmem:[#allocation2] sm:$0xf]
      %v1225 = vld [vmem:[#allocation2] sm:$0xff]
      %v1227 = vunpack.c.l.b16 %v1225
      %v1228 = vunpack.c.h.b16 %v1225
      %v1229 = vpack.c.b16 %v1227, %v1227
      %v1230 = vpack.c.b16 %v1228, %v1228
      %1231 = vrot.lane.b32.xlu0 %v1229, 125
      %v1232 = vpop.permute.xlu0 %1231
      %1233 = vrot.lane.b32.xlu0 %v1230, 125
      %v1234 = vpop.permute.xlu0 %1233
      %v1235 = vsel %vm788, %v1232, %v1234
      %1236 = vrot.lane.b32.xlu0 %v1229, 122
      %v1237 = vpop.permute.xlu0 %1236
      %1238 = vrot.lane.b32.xlu0 %v1230, 122
      %v1239 = vpop.permute.xlu0 %1238
      %v1240 = vsel %vm794, %v1237, %v1239
      %1241 = vrot.lane.b32.xlu0 %v1229, 119
      %v1242 = vpop.permute.xlu0 %1241
      %1243 = vrot.lane.b32.xlu0 %v1230, 119
      %v1244 = vpop.permute.xlu0 %1243
      %vm1245 = vcmask 973824
      %v1246 = vsel %vm1245, %v1242, %v1244
      %1247 = vrot.lane.b32.xlu0 %v1229, 116
      %v1248 = vpop.permute.xlu0 %1247
      %1249 = vrot.lane.b32.xlu0 %v1230, 116
      %v1250 = vpop.permute.xlu0 %1249
      %vm1251 = vcmask 949248
      %v1252 = vsel %vm1251, %v1248, %v1250
      %v1255 = vsel %vm588, %v1224, %v1235
      %v1259 = vsel %vm588, %v1240, %v1246
      %1262 = vset.pattern.permute.xlu0 0
      %1263 = vperm.xlu0 %1262, %v1223
      %v1264 = vpop.permute.xlu0 %1263
      %v1267 = vsel %vm1036, %v1222, 0
      %v1270 = vsel %vm588, %v1252, 0
      %1272 = vmatprep.subr.bf16.mxu0 0
      %1273 = vmatpush1.bf16.msra.mxu0 %v1255
      %1274 = vmatprep.subr.bf16.mxu0 0
      %1275 = vmatpush1.bf16.msra.mxu0 %v1259
      %1276 = vmatprep.subr.bf16.mxu0 0
      %1277 = vmatpush1.bf16.msra.mxu0 %v1270
      %1278 = vmatprep.subr.bf16.mxu0 0
      %1279 = vmatpush1.bf16.msra.mxu0 0
      %1280 = vmatprep.subr.bf16.mxu0 0
      %1281 = vmatpush1.bf16.msra.mxu0 0
      %1282 = vmatprep.subr.bf16.mxu0 0
      %1283 = vmatpush1.bf16.msra.mxu0 0
      %1284 = vmatprep.subr.bf16.mxu0 0
      %1285 = vmatpush1.bf16.msra.mxu0 0
      %1286 = vmatprep.subr.bf16.mxu0 0
      %1287 = vmatpush1.bf16.msra.mxu0 0
      %1288 = vmatprep.subr.bf16.mxu0 0
      %1289 = vmatpush1.bf16.msra.mxu0 0
      %1290 = vmatprep.subr.bf16.mxu0 0
      %1291 = vmatpush1.bf16.msra.mxu0 0
      %1292 = vmatprep.subr.bf16.mxu0 0
      %1293 = vmatpush1.bf16.msra.mxu0 0
      %1294 = vmatprep.subr.bf16.mxu0 0
      %1295 = vmatpush1.bf16.msra.mxu0 0
      %1296 = vmatprep.subr.bf16.mxu0 0
      %1297 = vmatpush1.bf16.msra.mxu0 0
      %1298 = vmatprep.subr.bf16.mxu0 0
      %1299 = vmatpush1.bf16.msra.mxu0 0
      %1300 = vmatprep.subr.bf16.mxu0 0
      %1301 = vmatpush1.bf16.msra.mxu0 0
      %1302 = vmatprep.subr.bf16.mxu0 0
      %1303 = vmatpush1.bf16.msra.mxu0 0
      %1304 = vmatprep.mubr.bf16.mxu0 0
      %1305 = vmatmul.mubr.bf16.gmra.mrb[0].mxu0 %v1267
      %v1306 = vpop.f32.mrb[0].mxu0
      %v1307 = vadd.f32 %v1264, %v1306
      %v1308 = vpop.f32.mrb[0].mxu0
      %v1309 = vpop.f32.mrb[0].mxu0
      %v1310 = vpop.f32.mrb[0].mxu0
      %1311 = vdwg.mxu0
      %vm1312 = vcmp.ge.f32.partialorder %v1307, 0.0
      %v1313 = vmul.f32 %v1307, 0.1
      %v1314 = vsel %vm1312, %v1307, %v1313
      %v1315 = vpack.c.bf16 %v1314, %v1314
      %v1317 = vunpack.c.l.b16 %v1315
      %v1318 = vpack.c.b16 %v1317, %v1317
      %1319 = vrot.lane.b32.xlu0 %v1318, 6
      %v1320 = vpop.permute.xlu0 %1319
      %v1321 = vrot.slane %v1320, 4
      %v1322 = vsel %vm561, %v1321, %v1320
      %1324 = vst.msk [vmem:[#allocation2] sm:$0xff] %vm566, %v1322
      %v1325 = vld [vmem:[%s8] sm:$0xf]
      %v1326 = vld [vmem:[%s16] sm:$0xff]
      %v1327 = vld [vmem:[#allocation2] sm:$0xff]
      %v1329 = vunpack.c.l.b16 %v1327
      %v1330 = vunpack.c.h.b16 %v1327
      %v1331 = vpack.c.b16 %v1329, %v1329
      %v1332 = vpack.c.b16 %v1330, %v1330
      %1333 = vrot.lane.b32.xlu0 %v1331, 127
      %v1334 = vpop.permute.xlu0 %1333
      %1335 = vrot.lane.b32.xlu0 %v1332, 127
      %v1336 = vpop.permute.xlu0 %1335
      %v1337 = vsel %vm580, %v1334, %v1336
      %1338 = vrot.lane.b32.xlu0 %v1331, 126
      %v1339 = vpop.permute.xlu0 %1338
      %1340 = vrot.lane.b32.xlu0 %v1332, 126
      %v1341 = vpop.permute.xlu0 %1340
      %v1342 = vsel %vm586, %v1339, %v1341
      %1343 = vrot.lane.b32.xlu0 %v1331, 125
      %v1344 = vpop.permute.xlu0 %1343
      %1345 = vrot.lane.b32.xlu0 %v1332, 125
      %v1346 = vpop.permute.xlu0 %1345
      %v1347 = vsel %vm788, %v1344, %v1346
      %1348 = vrot.lane.b32.xlu0 %v1331, 124
      %v1349 = vpop.permute.xlu0 %1348
      %1350 = vrot.lane.b32.xlu0 %v1332, 124
      %v1351 = vpop.permute.xlu0 %1350
      %v1352 = vsel %vm996, %v1349, %v1351
      %v1355 = vsel %vm588, %v1331, %v1337
      %v1358 = vsel %vm588, %v1332, %v1336
      %v1361 = vsel %vm588, %v1342, %v1347
      %v1364 = vsel %vm588, %v1341, %v1346
      %1366 = vset.pattern.permute.xlu0 0
      %1367 = vperm.xlu0 %1366, %v1326
      %v1368 = vpop.permute.xlu0 %1367
      %1374 = vrot.lane.b32.xlu0 %v1355, 124
      %v1375 = vpop.permute.xlu0 %1374
      %1376 = vrot.lane.b32.xlu0 %v1358, 124
      %v1377 = vpop.permute.xlu0 %1376
      %1378 = vrot.lane.b32.xlu0 %v1361, 124
      %v1379 = vpop.permute.xlu0 %1378
      %1380 = vrot.lane.b32.xlu0 %v1364, 124
      %v1381 = vpop.permute.xlu0 %1380
      %1382 = vrot.lane.b32.xlu0 %v1352, 124
      %v1383 = vpop.permute.xlu0 %1382
      %1384 = vrot.lane.b32.xlu0 %v1351, 124
      %v1385 = vpop.permute.xlu0 %1384
      %v1386 = vsel %vm996, %v1375, %v1377
      %v1387 = vsel %vm996, %v1379, %v1381
      %v1388 = vsel %vm996, %v1383, %v1385
      %v1392 = vsel %vm1036, %v1325, 0
      %v1395 = vsel %vm588, %v1388, 0
      %1397 = vmatprep.subr.bf16.mxu0 0
      %1398 = vmatpush1.bf16.msra.mxu0 %v1386
      %1399 = vmatprep.subr.bf16.mxu0 0
      %1400 = vmatpush1.bf16.msra.mxu0 %v1387
      %1401 = vmatprep.subr.bf16.mxu0 0
      %1402 = vmatpush1.bf16.msra.mxu0 %v1395
      %1403 = vmatprep.subr.bf16.mxu0 0
      %1404 = vmatpush1.bf16.msra.mxu0 0
      %1405 = vmatprep.subr.bf16.mxu0 0
      %1406 = vmatpush1.bf16.msra.mxu0 0
      %1407 = vmatprep.subr.bf16.mxu0 0
      %1408 = vmatpush1.bf16.msra.mxu0 0
      %1409 = vmatprep.subr.bf16.mxu0 0
      %1410 = vmatpush1.bf16.msra.mxu0 0
      %1411 = vmatprep.subr.bf16.mxu0 0
      %1412 = vmatpush1.bf16.msra.mxu0 0
      %1413 = vmatprep.subr.bf16.mxu0 0
      %1414 = vmatpush1.bf16.msra.mxu0 0
      %1415 = vmatprep.subr.bf16.mxu0 0
      %1416 = vmatpush1.bf16.msra.mxu0 0
      %1417 = vmatprep.subr.bf16.mxu0 0
      %1418 = vmatpush1.bf16.msra.mxu0 0
      %1419 = vmatprep.subr.bf16.mxu0 0
      %1420 = vmatpush1.bf16.msra.mxu0 0
      %1421 = vmatprep.subr.bf16.mxu0 0
      %1422 = vmatpush1.bf16.msra.mxu0 0
      %1423 = vmatprep.subr.bf16.mxu0 0
      %1424 = vmatpush1.bf16.msra.mxu0 0
      %1425 = vmatprep.subr.bf16.mxu0 0
      %1426 = vmatpush1.bf16.msra.mxu0 0
      %1427 = vmatprep.subr.bf16.mxu0 0
      %1428 = vmatpush1.bf16.msra.mxu0 0
      %1429 = vmatprep.mubr.bf16.mxu0 0
      %1430 = vmatmul.mubr.bf16.gmra.mrb[0].mxu0 %v1392
      %v1431 = vpop.f32.mrb[0].mxu0
      %v1432 = vadd.f32 %v1368, %v1431
      %v1433 = vpop.f32.mrb[0].mxu0
      %v1434 = vpop.f32.mrb[0].mxu0
      %v1435 = vpop.f32.mrb[0].mxu0
      %1436 = vdwg.mxu0
      %v1437 = vadd.f32 %v1432, %v1208
      %v1438 = vadd.f32 %v967, %v1437
      %v1439 = vmul.f32 %v1438, 0.5
      %v1440 = vpack.c.bf16 %v1439, %v1439
      %1441 = vst [vmem:[%s543] sm:$0xf] %v1440
      %p1442 = scmp.lt.s32.totalorder %s28, 1
      %s1443 = scalar_select %p1442, %s28, 1
      %s1444 = smul.addr %s1443, 4
      %s1445 = scalar_lea.vmem %s17, %s1444
      // Predicated region
      $region89: #{istft_forward.10} parent=87 // pred_check
        %p1446 = pneg %p408
      $region90: #{istft_forward.10} parent=87 // pred_check_branch
        %1448 = sbr.rel (%p1446) target = $region92
      $region91: #{istft_forward.10} parent=87 // pred_region
        _
      $region92: #{istft_forward.10} parent=87 // pred_fallthru
        _
    $region88: #{istft_forward.10} parent=5 // pred_fallthru
      _
    %p1449 = scmp.le.s32.totalorder 2, %s23
    // Predicated region
    $region93: #{istft_forward.10} parent=5 // pred_check
      %p1450 = pneg %p1449
    $region94: #{istft_forward.10} parent=5 // pred_check_branch
      %1452 = sbr.rel (%p1450) target = $region96
    $region95: #{istft_forward.10} parent=5 // pred_region
      %s1453 = ssub.s32 %s23, 2
      // Predicated region
      $region97: #{istft_forward.10} parent=95 // pred_check
        %p1454 = pneg %p414
      $region98: #{istft_forward.10} parent=95 // pred_check_branch
        %1456 = sbr.rel (%p1454) target = $region100
      $region99: #{istft_forward.10} parent=95 // pred_region
        %p1457 = scmp.lt.s32.totalorder %s29, 1
        %s1458 = scalar_select %p1457, %s29, 1
        %s1459 = smul.addr %s1458, 4
        %s1460 = scalar_lea.vmem %s17, %s1459
      $region100: #{istft_forward.10} parent=95 // pred_fallthru
        _
    $region96: #{istft_forward.10} parent=5 // pred_fallthru
      _
  $region6: #{istft_forward.10} parent=0 // loop_footer
    %s27 = sadd.s32 1, %s23
  $region7: #{istft_forward.10} parent=0 // loop_footer_branch
    %22 = sbr.rel target = $region3
  $region8: #{istft_forward.10} parent=0 // loop_exit
    _

</llo_original>
